<compile_context>
chip_gen: v5e
topology: v5e:2x2
jax: 0.10.0
libtpu: 0.0.40
codegen_flags: <defaults>
</compile_context>

<pallas_src>
import math
import functools

import jax
import jax.numpy as jnp
from jax.experimental import pallas as pl
from jax.experimental.pallas import tpu as pltpu


# --------------------------------------------------------------------------
# Fused forward kernel
# --------------------------------------------------------------------------
def _fused_vae_kernel(*refs, B, L, lat, n_enc, n_dec, bn_eps):
    it = iter(refs)
    cond_ref = next(it)      # [B*L, Cin]  rows layout: row b*L+l, channels in lanes
    eps_ref = next(it)       # [B, lat]    pre-drawn standard-normal noise
    sd_ref = next(it)        # [BL, BL]    shift rows down by 1 within each batch (zero at l==0)
    su_ref = next(it)        # [BL, BL]    shift rows up by 1 within each batch (zero at l==L-1)
    sel_ref = next(it)       # [L, B, BL]  gather rows {b*L+l} -> [B, C]
    selt_ref = next(it)      # [L, BL, B]  scatter [B, C] -> rows {b*L+l}
    embed_w = next(it)       # [Cin, C0]
    embed_b = next(it)       # [1, C0]
    enc = [tuple(next(it) for _ in range(4)) for _ in range(n_enc)]   # (taps[3,Ci,Co], b, gamma, beta)
    fcmu_w = next(it)        # [L, Ce, lat]
    fcmu_b = next(it)        # [1, lat]
    fcls_w = next(it)        # [L, Ce, lat]
    fcls_b = next(it)        # [1, lat]
    din_w = next(it)         # [L, lat, Cd0]
    din_b = next(it)         # [B*L, Cd0]  (decoder_input bias, already in rows layout)
    dec = [tuple(next(it) for _ in range(4)) for _ in range(n_dec)]   # conv-equivalent taps of ConvT
    fin_w = next(it)         # [L, 3, 3N]
    fin_b = next(it)         # [1, 3N]
    out_ref = next(it)       # [B, 3N]
    mu_ref = next(it)        # [B, lat]
    ls_ref = next(it)        # [B, lat]
    z_ref = next(it)         # [B, lat]

    f32 = jnp.float32
    sd = sd_ref[...]
    su = su_ref[...]

    def dot(a, b):
        return jnp.dot(a, b, preferred_element_type=f32)

    def conv3(x, w_ref, b_ref):
        # K=3, stride=1, pad=1 conv in rows layout:
        #   y[b*L+l] = x[l-1] @ W0 + x[l] @ W1 + x[l+1] @ W2 + b   (zero padded per batch)
        return (dot(sd, dot(x, w_ref[0])) + dot(x, w_ref[1])
                + dot(su, dot(x, w_ref[2])) + b_ref[...])

    def bn_relu(x, g_ref, beta_ref):
        # BatchNorm1d training-mode batch statistics (biased variance) per channel + ReLU
        mean = jnp.mean(x, axis=0, keepdims=True)
        var = jnp.mean((x - mean) ** 2, axis=0, keepdims=True)
        y = (x - mean) * jax.lax.rsqrt(var + bn_eps)
        return jnp.maximum(y * g_ref[...] + beta_ref[...], 0.0)

    # ----------------------------- encode -----------------------------
    h = dot(cond_ref[...], embed_w[...]) + embed_b[...]      # embed_data (1x1 conv)
    for (w_r, b_r, g_r, bt_r) in enc:
        h = bn_relu(conv3(h, w_r, b_r), g_r, bt_r)

    # fc_mu_var over PyTorch's flatten(start_dim=1) order; the (c,l)-permutation is folded
    # into the pre-permuted weights, the row gather is done with constant selector matmuls.
    mu_acc = jnp.zeros((B, lat), f32)
    ls_acc = jnp.zeros((B, lat), f32)
    for l in range(L):
        xl = dot(sel_ref[l], h)                              # [B, C_enc] == rows {b*L+l}
        mu_acc = mu_acc + dot(xl, fcmu_w[l])
        ls_acc = ls_acc + dot(xl, fcls_w[l])
    mu_enc = mu_acc + fcmu_b[...]
    log_std = ls_acc + fcls_b[...]

    # ------------------- reparameterize (train=True) ------------------
    z0 = eps_ref[...] * jnp.exp(log_std) + mu_enc

    # ----------------------------- decode ------------------------------
    d = din_b[...]                                           # decoder_input bias in rows layout
    for l in range(L):
        d = d + dot(selt_ref[l], dot(z0, din_w[l]))          # scatter [B, Cd0] into rows {b*L+l}
    for (w_r, b_r, g_r, bt_r) in dec:
        d = bn_relu(conv3(d, w_r, b_r), g_r, bt_r)

    out = jnp.zeros((B, fin_b.shape[1]), f32)
    for l in range(L):
        out = out + dot(dot(sel_ref[l], d), fin_w[l])        # final_layer on flattened decoder out
    out = out + fin_b[...]

    out_ref[...] = out
    mu_ref[...] = mu_enc
    ls_ref[...] = log_std
    z_ref[...] = z0


# --------------------------------------------------------------------------
# Config (mirrors VAECircCovReal.__init__ geometry)
# --------------------------------------------------------------------------
def build_config():
    cfg = dict(
        in_channels=2,          # encoder input is [B, 2, N]
        stride=1,
        kernel_szs=[3, 3, 3],
        latent_dim=8,
        hidden_dims=[8, 16, 16],
        input_size=16,
        pad=1,
    )
    tmp = cfg["input_size"]
    pre_latent = tmp
    for k in cfg["kernel_szs"]:
        tmp = int(math.floor((tmp + 2 * cfg["pad"] - k) / cfg["stride"] + 1))
        pre_latent = tmp
    cfg["pre_latent"] = pre_latent
    cfg["hidden_dims_rev"] = cfg["hidden_dims"][::-1]
    cfg["kernel_szs_rev"] = cfg["kernel_szs"][::-1]
    pre_out = pre_latent
    for k in cfg["kernel_szs_rev"]:
        pre_out = (pre_out - 1) * cfg["stride"] - 2 * cfg["pad"] + k
    cfg["pre_out"] = pre_out
    # The fused kernel is written for this config's geometry (K=3, stride=1, pad=1,
    # length preserved through every layer).
    assert cfg["stride"] == 1 and all(k == 3 for k in cfg["kernel_szs"])
    assert cfg["pre_latent"] == cfg["input_size"] and cfg["pre_out"] == cfg["input_size"]
    return cfg


# --------------------------------------------------------------------------
# Parameter init (PyTorch layouts, weights_init ~ N(0, 0.05) incl. BatchNorm affine)
# --------------------------------------------------------------------------
def init_params(key, cfg):
    keys = iter(jax.random.split(key, 128))

    def nrm(shape):
        return 0.05 * jax.random.normal(next(keys), shape, jnp.float32)

    hd, ks = cfg["hidden_dims"], cfg["kernel_szs"]
    hdr, ksr = cfg["hidden_dims_rev"], cfg["kernel_szs_rev"]
    N, lat = cfg["input_size"], cfg["latent_dim"]

    params = {}
    params["embed_w"] = nrm((hd[0], cfg["in_channels"], 1))          # Conv1d(in, hd[0], k=1)
    params["embed_b"] = nrm((hd[0],))
    enc, cin = [], hd[0]
    for h, k in zip(hd, ks):
        enc.append(dict(w=nrm((h, cin, k)), b=nrm((h,)), g=nrm((h,)), beta=nrm((h,))))
        cin = h
    params["enc"] = enc
    params["fc_w"] = nrm((2 * lat, cfg["pre_latent"] * hd[-1]))
    params["fc_b"] = nrm((2 * lat,))
    params["dec_in_w"] = nrm((hdr[0] * cfg["pre_latent"], lat))
    params["dec_in_b"] = nrm((hdr[0] * cfg["pre_latent"],))
    dec = []
    for i in range(len(hdr)):
        cin_t = hdr[i]
        cout_t = hdr[i + 1] if i < len(hdr) - 1 else 3
        dec.append(dict(w=nrm((cin_t, cout_t, ksr[i])), b=nrm((cout_t,)),
                        g=nrm((cout_t,)), beta=nrm((cout_t,))))
    params["dec"] = dec
    params["final_w"] = nrm((3 * N, 3 * cfg["pre_out"]))
    params["final_b"] = nrm((3 * N,))
    return params


# --------------------------------------------------------------------------
# One-time weight preparation (all transposes / flips / flatten-permutations hoisted here)
# --------------------------------------------------------------------------
def prepare_params(params, cfg, B):
    N = cfg["input_size"]
    lat = cfg["latent_dim"]
    L = cfg["pre_latent"]
    Lout = cfg["pre_out"]
    hd, hdr = cfg["hidden_dims"], cfg["hidden_dims_rev"]
    Ce, C0 = hd[-1], hdr[0]
    w = []

    # embed_data 1x1 conv: [Cout, Cin, 1] -> [Cin, Cout]
    w.append(params["embed_w"][:, :, 0].T)
    w.append(params["embed_b"].reshape(1, -1))

    # encoder Conv1d: [Cout, Cin, K] -> taps [K, Cin, Cout] (tap k multiplies x[l-1+k])
    for lyr in params["enc"]:
        w.append(jnp.transpose(lyr["w"], (2, 1, 0)))
        w.append(lyr["b"].reshape(1, -1))
        w.append(lyr["g"].reshape(1, -1))
        w.append(lyr["beta"].reshape(1, -1))

    # fc_mu_var: [2lat, Ce*L] (flatten index c*L + l) -> [L, Ce, lat] per head
    fc3 = params["fc_w"].reshape(2 * lat, Ce, L).transpose(2, 1, 0)   # [L, Ce, 2lat]
    w.append(fc3[:, :, :lat])
    w.append(params["fc_b"][:lat].reshape(1, lat))
    w.append(fc3[:, :, lat:])
    w.append(params["fc_b"][lat:].reshape(1, lat))

    # decoder_input Linear: [C0*L, lat] -> [L, lat, C0]; bias -> rows layout [B*L, C0]
    w.append(params["dec_in_w"].reshape(C0, L, lat).transpose(1, 2, 0))
    w.append(jnp.tile(params["dec_in_b"].reshape(C0, L).T, (B, 1)))

    # decoder ConvTranspose1d (stride=1, pad=1) == conv with flipped kernel:
    # [Cin, Cout, K] -> taps [K, Cin, Cout] with tap k = w[:, :, K-1-k]
    for lyr in params["dec"]:
        w.append(jnp.transpose(jnp.flip(lyr["w"], axis=2), (2, 0, 1)))
        w.append(lyr["b"].reshape(1, -1))
        w.append(lyr["g"].reshape(1, -1))
        w.append(lyr["beta"].reshape(1, -1))

    # final_layer: [3N, 3*Lout] (flatten index c*Lout + l) -> [Lout, 3, 3N]
    w.append(params["final_w"].reshape(3 * N, 3, Lout).transpose(2, 1, 0))
    w.append(params["final_b"].reshape(1, -1))

    return [jnp.asarray(a, jnp.float32) for a in w]


# --------------------------------------------------------------------------
# Forward builder (train=True branch of VAECircCovReal.forward)
# --------------------------------------------------------------------------
def make_forward(cfg, B):
    N = cfg["input_size"]
    lat = cfg["latent_dim"]
    L = cfg["pre_latent"]
    Cin = cfg["in_channels"]
    n_enc = len(cfg["hidden_dims"])
    n_dec = len(cfg["hidden_dims_rev"])
    BL = B * L

    # Constant shift / selector matrices (built once, ~8 KB total).
    rr = jnp.arange(BL)
    sd = ((rr[:, None] == rr[None, :] + 1) & (rr[:, None] % L != 0)).astype(jnp.float32)
    su = ((rr[:, None] == rr[None, :] - 1) & (rr[:, None] % L != L - 1)).astype(jnp.float32)
    lidx = jnp.arange(L)[:, None, None]
    bidx = jnp.arange(B)[None, :, None]
    ridx = jnp.arange(BL)[None, None, :]
    sel = (ridx == bidx * L + lidx).astype(jnp.float32)               # [L, B, BL]
    selt = jnp.transpose(sel, (0, 2, 1))                              # [L, BL, B]

    kernel = functools.partial(_fused_vae_kernel, B=B, L=L, lat=lat,
                               n_enc=n_enc, n_dec=n_dec, bn_eps=1e-5)

    @jax.jit
    def _run(cond, eps, weights):
        cond_rows = jnp.transpose(cond, (0, 2, 1)).reshape(BL, Cin).astype(jnp.float32)
        operands = [cond_rows, eps.astype(jnp.float32), sd, su, sel, selt] + list(weights)

        def full_spec(shape):
            nd = len(shape)
            return pl.BlockSpec(shape, lambda i: (0,) * nd)

        out_shape = (jax.ShapeDtypeStruct((B, 3 * N), jnp.float32),
                     jax.ShapeDtypeStruct((B, lat), jnp.float32),
                     jax.ShapeDtypeStruct((B, lat), jnp.float32),
                     jax.ShapeDtypeStruct((B, lat), jnp.float32))
        out, mu_enc, log_std, z0 = pl.pallas_call(
            kernel,
            grid=(1,),
            in_specs=[full_spec(op.shape) for op in operands],
            out_specs=tuple(full_spec(s.shape) for s in out_shape),
            out_shape=out_shape,
            compiler_params=pltpu.CompilerParams(dimension_semantics=("arbitrary",)),
        )(*operands)
        return out, mu_enc, log_std, z0

    def forward(weights, data, cond, eps):
        out, mu_enc, log_std, z0 = _run(cond, eps, tuple(weights))
        mu_out = out[:, :N] + 1j * out[:, N:2 * N]
        log_var = out[:, 2 * N:]
        cond_c = cond[:, 0, :] + 1j * cond[:, 1, :]
        jacobians = jnp.zeros((), jnp.float32)
        # TODO(synk): eval-mode (train=False) branch — C_h/C_y = F^H diag(var) F and
        #             mu = mu_out @ F.conj() (complex covariance assembly) is not lowered
        #             to Pallas; the train branch returns (None, None) just like PyTorch.
        mu, C = None, None
        return [mu_out, data, cond_c, log_var, mu_enc, log_std, z0, z0, jacobians, mu, C]

    return forward


# --------------------------------------------------------------------------
if __name__ == "__main__":
    cfg = build_config()
    key = jax.random.PRNGKey(0)
    k_params, k_cond, k_data, k_eps = jax.random.split(key, 4)

    B, N = 2, cfg["input_size"]
    params = init_params(k_params, cfg)
    weights = prepare_params(params, cfg, B)

    cond = jax.random.normal(k_cond, (B, 2, N), jnp.float32)          # noisy pilot obs [B, 2, N]
    data_ri = jax.random.normal(k_data, (B, 2, N), jnp.float32)
    data = data_ri[:, 0, :] + 1j * data_ri[:, 1, :]                   # "true channel", passed through
    eps = jax.random.normal(k_eps, (B, cfg["latent_dim"]), jnp.float32)

    forward = make_forward(cfg, B)
    outs = forward(weights, data, cond, eps)
    jax.block_until_ready([o for o in outs if o is not None])

    # light sanity checks on shapes
    assert outs[0].shape == (B, N) and jnp.iscomplexobj(outs[0])      # mu_out
    assert outs[3].shape == (B, N)                                    # log_var
    assert outs[4].shape == (B, cfg["latent_dim"])                    # mu_enc
    assert outs[6].shape == (B, cfg["latent_dim"])                    # z_0
    print("KERNEL_OK")
</pallas_src>

<mosaic_0001>
module attributes {stable_mosaic.version = 11 : i64} {
  func.func @_fused_vae_kernel(%arg0: i32, %arg1: memref<32x2xf32, #tpu.memory_space<vmem>>, %arg2: memref<2x8xf32, #tpu.memory_space<vmem>>, %arg3: memref<32x32xf32, #tpu.memory_space<vmem>>, %arg4: memref<32x32xf32, #tpu.memory_space<vmem>>, %arg5: memref<16x2x32xf32, #tpu.memory_space<vmem>>, %arg6: memref<16x32x2xf32, #tpu.memory_space<vmem>>, %arg7: memref<2x8xf32, #tpu.memory_space<vmem>>, %arg8: memref<1x8xf32, #tpu.memory_space<vmem>>, %arg9: memref<3x8x8xf32, #tpu.memory_space<vmem>>, %arg10: memref<1x8xf32, #tpu.memory_space<vmem>>, %arg11: memref<1x8xf32, #tpu.memory_space<vmem>>, %arg12: memref<1x8xf32, #tpu.memory_space<vmem>>, %arg13: memref<3x8x16xf32, #tpu.memory_space<vmem>>, %arg14: memref<1x16xf32, #tpu.memory_space<vmem>>, %arg15: memref<1x16xf32, #tpu.memory_space<vmem>>, %arg16: memref<1x16xf32, #tpu.memory_space<vmem>>, %arg17: memref<3x16x16xf32, #tpu.memory_space<vmem>>, %arg18: memref<1x16xf32, #tpu.memory_space<vmem>>, %arg19: memref<1x16xf32, #tpu.memory_space<vmem>>, %arg20: memref<1x16xf32, #tpu.memory_space<vmem>>, %arg21: memref<16x16x8xf32, #tpu.memory_space<vmem>>, %arg22: memref<1x8xf32, #tpu.memory_space<vmem>>, %arg23: memref<16x16x8xf32, #tpu.memory_space<vmem>>, %arg24: memref<1x8xf32, #tpu.memory_space<vmem>>, %arg25: memref<16x8x16xf32, #tpu.memory_space<vmem>>, %arg26: memref<32x16xf32, #tpu.memory_space<vmem>>, %arg27: memref<3x16x16xf32, #tpu.memory_space<vmem>>, %arg28: memref<1x16xf32, #tpu.memory_space<vmem>>, %arg29: memref<1x16xf32, #tpu.memory_space<vmem>>, %arg30: memref<1x16xf32, #tpu.memory_space<vmem>>, %arg31: memref<3x16x8xf32, #tpu.memory_space<vmem>>, %arg32: memref<1x8xf32, #tpu.memory_space<vmem>>, %arg33: memref<1x8xf32, #tpu.memory_space<vmem>>, %arg34: memref<1x8xf32, #tpu.memory_space<vmem>>, %arg35: memref<3x8x3xf32, #tpu.memory_space<vmem>>, %arg36: memref<1x3xf32, #tpu.memory_space<vmem>>, %arg37: memref<1x3xf32, #tpu.memory_space<vmem>>, %arg38: memref<1x3xf32, #tpu.memory_space<vmem>>, %arg39: memref<16x3x48xf32, #tpu.memory_space<vmem>>, %arg40: memref<1x48xf32, #tpu.memory_space<vmem>>, %arg41: memref<2x48xf32, #tpu.memory_space<vmem>>, %arg42: memref<2x8xf32, #tpu.memory_space<vmem>>, %arg43: memref<2x8xf32, #tpu.memory_space<vmem>>, %arg44: memref<2x8xf32, #tpu.memory_space<vmem>>) attributes {dimension_semantics = [#tpu.dimension_semantics<arbitrary>], iteration_bounds = array<i64: 1>, scalar_prefetch = 0 : i64, scratch_operands = 0 : i64, tpu.core_type = #tpu.core_type<tc>, window_params = [{pipeline_mode = #tpu.pipeline_mode<synchronous>, transform_indices = @transform_0, window_bounds = array<i64: 32, 2>}, {pipeline_mode = #tpu.pipeline_mode<synchronous>, transform_indices = @transform_1, window_bounds = array<i64: 2, 8>}, {pipeline_mode = #tpu.pipeline_mode<synchronous>, transform_indices = @transform_2, window_bounds = array<i64: 32, 32>}, {pipeline_mode = #tpu.pipeline_mode<synchronous>, transform_indices = @transform_3, window_bounds = array<i64: 32, 32>}, {pipeline_mode = #tpu.pipeline_mode<synchronous>, transform_indices = @transform_4, window_bounds = array<i64: 16, 2, 32>}, {pipeline_mode = #tpu.pipeline_mode<synchronous>, transform_indices = @transform_5, window_bounds = array<i64: 16, 32, 2>}, {pipeline_mode = #tpu.pipeline_mode<synchronous>, transform_indices = @transform_6, window_bounds = array<i64: 2, 8>}, {pipeline_mode = #tpu.pipeline_mode<synchronous>, transform_indices = @transform_7, window_bounds = array<i64: 1, 8>}, {pipeline_mode = #tpu.pipeline_mode<synchronous>, transform_indices = @transform_8, window_bounds = array<i64: 3, 8, 8>}, {pipeline_mode = #tpu.pipeline_mode<synchronous>, transform_indices = @transform_9, window_bounds = array<i64: 1, 8>}, {pipeline_mode = #tpu.pipeline_mode<synchronous>, transform_indices = @transform_10, window_bounds = array<i64: 1, 8>}, {pipeline_mode = #tpu.pipeline_mode<synchronous>, transform_indices = @transform_11, window_bounds = array<i64: 1, 8>}, {pipeline_mode = #tpu.pipeline_mode<synchronous>, transform_indices = @transform_12, window_bounds = array<i64: 3, 8, 16>}, {pipeline_mode = #tpu.pipeline_mode<synchronous>, transform_indices = @transform_13, window_bounds = array<i64: 1, 16>}, {pipeline_mode = #tpu.pipeline_mode<synchronous>, transform_indices = @transform_14, window_bounds = array<i64: 1, 16>}, {pipeline_mode = #tpu.pipeline_mode<synchronous>, transform_indices = @transform_15, window_bounds = array<i64: 1, 16>}, {pipeline_mode = #tpu.pipeline_mode<synchronous>, transform_indices = @transform_16, window_bounds = array<i64: 3, 16, 16>}, {pipeline_mode = #tpu.pipeline_mode<synchronous>, transform_indices = @transform_17, window_bounds = array<i64: 1, 16>}, {pipeline_mode = #tpu.pipeline_mode<synchronous>, transform_indices = @transform_18, window_bounds = array<i64: 1, 16>}, {pipeline_mode = #tpu.pipeline_mode<synchronous>, transform_indices = @transform_19, window_bounds = array<i64: 1, 16>}, {pipeline_mode = #tpu.pipeline_mode<synchronous>, transform_indices = @transform_20, window_bounds = array<i64: 16, 16, 8>}, {pipeline_mode = #tpu.pipeline_mode<synchronous>, transform_indices = @transform_21, window_bounds = array<i64: 1, 8>}, {pipeline_mode = #tpu.pipeline_mode<synchronous>, transform_indices = @transform_22, window_bounds = array<i64: 16, 16, 8>}, {pipeline_mode = #tpu.pipeline_mode<synchronous>, transform_indices = @transform_23, window_bounds = array<i64: 1, 8>}, {pipeline_mode = #tpu.pipeline_mode<synchronous>, transform_indices = @transform_24, window_bounds = array<i64: 16, 8, 16>}, {pipeline_mode = #tpu.pipeline_mode<synchronous>, transform_indices = @transform_25, window_bounds = array<i64: 32, 16>}, {pipeline_mode = #tpu.pipeline_mode<synchronous>, transform_indices = @transform_26, window_bounds = array<i64: 3, 16, 16>}, {pipeline_mode = #tpu.pipeline_mode<synchronous>, transform_indices = @transform_27, window_bounds = array<i64: 1, 16>}, {pipeline_mode = #tpu.pipeline_mode<synchronous>, transform_indices = @transform_28, window_bounds = array<i64: 1, 16>}, {pipeline_mode = #tpu.pipeline_mode<synchronous>, transform_indices = @transform_29, window_bounds = array<i64: 1, 16>}, {pipeline_mode = #tpu.pipeline_mode<synchronous>, transform_indices = @transform_30, window_bounds = array<i64: 3, 16, 8>}, {pipeline_mode = #tpu.pipeline_mode<synchronous>, transform_indices = @transform_31, window_bounds = array<i64: 1, 8>}, {pipeline_mode = #tpu.pipeline_mode<synchronous>, transform_indices = @transform_32, window_bounds = array<i64: 1, 8>}, {pipeline_mode = #tpu.pipeline_mode<synchronous>, transform_indices = @transform_33, window_bounds = array<i64: 1, 8>}, {pipeline_mode = #tpu.pipeline_mode<synchronous>, transform_indices = @transform_34, window_bounds = array<i64: 3, 8, 3>}, {pipeline_mode = #tpu.pipeline_mode<synchronous>, transform_indices = @transform_35, window_bounds = array<i64: 1, 3>}, {pipeline_mode = #tpu.pipeline_mode<synchronous>, transform_indices = @transform_36, window_bounds = array<i64: 1, 3>}, {pipeline_mode = #tpu.pipeline_mode<synchronous>, transform_indices = @transform_37, window_bounds = array<i64: 1, 3>}, {pipeline_mode = #tpu.pipeline_mode<synchronous>, transform_indices = @transform_38, window_bounds = array<i64: 16, 3, 48>}, {pipeline_mode = #tpu.pipeline_mode<synchronous>, transform_indices = @transform_39, window_bounds = array<i64: 1, 48>}, {pipeline_mode = #tpu.pipeline_mode<synchronous>, transform_indices = @transform_40, window_bounds = array<i64: 2, 48>}, {pipeline_mode = #tpu.pipeline_mode<synchronous>, transform_indices = @transform_41, window_bounds = array<i64: 2, 8>}, {pipeline_mode = #tpu.pipeline_mode<synchronous>, transform_indices = @transform_42, window_bounds = array<i64: 2, 8>}, {pipeline_mode = #tpu.pipeline_mode<synchronous>, transform_indices = @transform_43, window_bounds = array<i64: 2, 8>}]} {
    %c0 = arith.constant 0 : index
    %c0_0 = arith.constant 0 : index
    %0 = vector.load %arg3[%c0, %c0_0] : memref<32x32xf32, #tpu.memory_space<vmem>>, vector<32x32xf32>
    %c0_1 = arith.constant 0 : index
    %c0_2 = arith.constant 0 : index
    %1 = vector.load %arg4[%c0_1, %c0_2] : memref<32x32xf32, #tpu.memory_space<vmem>>, vector<32x32xf32>
    %c0_3 = arith.constant 0 : index
    %c0_4 = arith.constant 0 : index
    %2 = vector.load %arg1[%c0_3, %c0_4] : memref<32x2xf32, #tpu.memory_space<vmem>>, vector<32x2xf32>
    %c0_5 = arith.constant 0 : index
    %c0_6 = arith.constant 0 : index
    %3 = vector.load %arg7[%c0_5, %c0_6] : memref<2x8xf32, #tpu.memory_space<vmem>>, vector<2x8xf32>
    %cst = arith.constant dense<0.000000e+00> : vector<32x8xf32>
    %4 = tpu.matmul %2, %3, %cst {dimension_numbers = #tpu.dot_dimension_numbers<[1], [0], [0], [1], [0, 0, 1, 1], [], []>} : vector<32x2xf32>, vector<2x8xf32>, vector<32x8xf32> -> vector<32x8xf32>
    %c0_7 = arith.constant 0 : index
    %c0_8 = arith.constant 0 : index
    %5 = vector.load %arg8[%c0_7, %c0_8] : memref<1x8xf32, #tpu.memory_space<vmem>>, vector<1x8xf32>
    %6 = vector.broadcast %5 : vector<1x8xf32> to vector<32x8xf32>
    %7 = arith.addf %4, %6 : vector<32x8xf32>
    %c0_9 = arith.constant 0 : index
    %c0_10 = arith.constant 0 : index
    %c0_11 = arith.constant 0 : index
    %8 = vector.load %arg9[%c0_9, %c0_10, %c0_11] : memref<3x8x8xf32, #tpu.memory_space<vmem>>, vector<1x8x8xf32>
    %9 = vector.shape_cast %8 : vector<1x8x8xf32> to vector<8x8xf32>
    %cst_12 = arith.constant dense<0.000000e+00> : vector<32x8xf32>
    %10 = tpu.matmul %7, %9, %cst_12 {dimension_numbers = #tpu.dot_dimension_numbers<[1], [0], [0], [1], [0, 0, 1, 1], [], []>} : vector<32x8xf32>, vector<8x8xf32>, vector<32x8xf32> -> vector<32x8xf32>
    %cst_13 = arith.constant dense<0.000000e+00> : vector<32x8xf32>
    %11 = tpu.matmul %0, %10, %cst_13 {dimension_numbers = #tpu.dot_dimension_numbers<[1], [0], [0], [1], [0, 0, 1, 1], [], []>} : vector<32x32xf32>, vector<32x8xf32>, vector<32x8xf32> -> vector<32x8xf32>
    %c1 = arith.constant 1 : index
    %c0_14 = arith.constant 0 : index
    %c0_15 = arith.constant 0 : index
    %12 = vector.load %arg9[%c1, %c0_14, %c0_15] : memref<3x8x8xf32, #tpu.memory_space<vmem>>, vector<1x8x8xf32>
    %13 = vector.shape_cast %12 : vector<1x8x8xf32> to vector<8x8xf32>
    %cst_16 = arith.constant dense<0.000000e+00> : vector<32x8xf32>
    %14 = tpu.matmul %7, %13, %cst_16 {dimension_numbers = #tpu.dot_dimension_numbers<[1], [0], [0], [1], [0, 0, 1, 1], [], []>} : vector<32x8xf32>, vector<8x8xf32>, vector<32x8xf32> -> vector<32x8xf32>
    %15 = arith.addf %11, %14 : vector<32x8xf32>
    %c2 = arith.constant 2 : index
    %c0_17 = arith.constant 0 : index
    %c0_18 = arith.constant 0 : index
    %16 = vector.load %arg9[%c2, %c0_17, %c0_18] : memref<3x8x8xf32, #tpu.memory_space<vmem>>, vector<1x8x8xf32>
    %17 = vector.shape_cast %16 : vector<1x8x8xf32> to vector<8x8xf32>
    %cst_19 = arith.constant dense<0.000000e+00> : vector<32x8xf32>
    %18 = tpu.matmul %7, %17, %cst_19 {dimension_numbers = #tpu.dot_dimension_numbers<[1], [0], [0], [1], [0, 0, 1, 1], [], []>} : vector<32x8xf32>, vector<8x8xf32>, vector<32x8xf32> -> vector<32x8xf32>
    %cst_20 = arith.constant dense<0.000000e+00> : vector<32x8xf32>
    %19 = tpu.matmul %1, %18, %cst_20 {dimension_numbers = #tpu.dot_dimension_numbers<[1], [0], [0], [1], [0, 0, 1, 1], [], []>} : vector<32x32xf32>, vector<32x8xf32>, vector<32x8xf32> -> vector<32x8xf32>
    %20 = arith.addf %15, %19 : vector<32x8xf32>
    %c0_21 = arith.constant 0 : index
    %c0_22 = arith.constant 0 : index
    %21 = vector.load %arg10[%c0_21, %c0_22] : memref<1x8xf32, #tpu.memory_space<vmem>>, vector<1x8xf32>
    %22 = vector.broadcast %21 : vector<1x8xf32> to vector<32x8xf32>
    %23 = arith.addf %20, %22 : vector<32x8xf32>
    %cst_23 = arith.constant dense<0.000000e+00> : vector<8xf32>
    %24 = vector.multi_reduction <add>, %23, %cst_23 [0] : vector<32x8xf32> to vector<8xf32>
    %25 = vector.shape_cast %24 : vector<8xf32> to vector<1x8xf32>
    %cst_24 = arith.constant 3.200000e+01 : f32
    %26 = vector.broadcast %cst_24 : f32 to vector<1x8xf32>
    %27 = arith.divf %25, %26 : vector<1x8xf32>
    %28 = vector.broadcast %27 : vector<1x8xf32> to vector<32x8xf32>
    %29 = arith.subf %23, %28 : vector<32x8xf32>
    %30 = arith.mulf %29, %29 : vector<32x8xf32>
    %cst_25 = arith.constant dense<0.000000e+00> : vector<8xf32>
    %31 = vector.multi_reduction <add>, %30, %cst_25 [0] : vector<32x8xf32> to vector<8xf32>
    %32 = vector.shape_cast %31 : vector<8xf32> to vector<1x8xf32>
    %cst_26 = arith.constant 3.200000e+01 : f32
    %33 = vector.broadcast %cst_26 : f32 to vector<1x8xf32>
    %34 = arith.divf %32, %33 : vector<1x8xf32>
    %35 = vector.broadcast %27 : vector<1x8xf32> to vector<32x8xf32>
    %36 = arith.subf %23, %35 : vector<32x8xf32>
    %cst_27 = arith.constant 9.99999974E-6 : f32
    %37 = vector.broadcast %cst_27 : f32 to vector<1x8xf32>
    %38 = arith.addf %34, %37 : vector<1x8xf32>
    %39 = math.rsqrt %38 : vector<1x8xf32>
    %40 = vector.broadcast %39 : vector<1x8xf32> to vector<32x8xf32>
    %41 = arith.mulf %36, %40 : vector<32x8xf32>
    %c0_28 = arith.constant 0 : index
    %c0_29 = arith.constant 0 : index
    %42 = vector.load %arg11[%c0_28, %c0_29] : memref<1x8xf32, #tpu.memory_space<vmem>>, vector<1x8xf32>
    %43 = vector.broadcast %42 : vector<1x8xf32> to vector<32x8xf32>
    %44 = arith.mulf %41, %43 : vector<32x8xf32>
    %c0_30 = arith.constant 0 : index
    %c0_31 = arith.constant 0 : index
    %45 = vector.load %arg12[%c0_30, %c0_31] : memref<1x8xf32, #tpu.memory_space<vmem>>, vector<1x8xf32>
    %46 = vector.broadcast %45 : vector<1x8xf32> to vector<32x8xf32>
    %47 = arith.addf %44, %46 : vector<32x8xf32>
    %cst_32 = arith.constant 0.000000e+00 : f32
    %48 = vector.broadcast %cst_32 : f32 to vector<32x8xf32>
    %49 = arith.maximumf %47, %48 : vector<32x8xf32>
    %c0_33 = arith.constant 0 : index
    %c0_34 = arith.constant 0 : index
    %c0_35 = arith.constant 0 : index
    %50 = vector.load %arg13[%c0_33, %c0_34, %c0_35] : memref<3x8x16xf32, #tpu.memory_space<vmem>>, vector<1x8x16xf32>
    %51 = vector.shape_cast %50 : vector<1x8x16xf32> to vector<8x16xf32>
    %cst_36 = arith.constant dense<0.000000e+00> : vector<32x16xf32>
    %52 = tpu.matmul %49, %51, %cst_36 {dimension_numbers = #tpu.dot_dimension_numbers<[1], [0], [0], [1], [0, 0, 1, 1], [], []>} : vector<32x8xf32>, vector<8x16xf32>, vector<32x16xf32> -> vector<32x16xf32>
    %cst_37 = arith.constant dense<0.000000e+00> : vector<32x16xf32>
    %53 = tpu.matmul %0, %52, %cst_37 {dimension_numbers = #tpu.dot_dimension_numbers<[1], [0], [0], [1], [0, 0, 1, 1], [], []>} : vector<32x32xf32>, vector<32x16xf32>, vector<32x16xf32> -> vector<32x16xf32>
    %c1_38 = arith.constant 1 : index
    %c0_39 = arith.constant 0 : index
    %c0_40 = arith.constant 0 : index
    %54 = vector.load %arg13[%c1_38, %c0_39, %c0_40] : memref<3x8x16xf32, #tpu.memory_space<vmem>>, vector<1x8x16xf32>
    %55 = vector.shape_cast %54 : vector<1x8x16xf32> to vector<8x16xf32>
    %cst_41 = arith.constant dense<0.000000e+00> : vector<32x16xf32>
    %56 = tpu.matmul %49, %55, %cst_41 {dimension_numbers = #tpu.dot_dimension_numbers<[1], [0], [0], [1], [0, 0, 1, 1], [], []>} : vector<32x8xf32>, vector<8x16xf32>, vector<32x16xf32> -> vector<32x16xf32>
    %57 = arith.addf %53, %56 : vector<32x16xf32>
    %c2_42 = arith.constant 2 : index
    %c0_43 = arith.constant 0 : index
    %c0_44 = arith.constant 0 : index
    %58 = vector.load %arg13[%c2_42, %c0_43, %c0_44] : memref<3x8x16xf32, #tpu.memory_space<vmem>>, vector<1x8x16xf32>
    %59 = vector.shape_cast %58 : vector<1x8x16xf32> to vector<8x16xf32>
    %cst_45 = arith.constant dense<0.000000e+00> : vector<32x16xf32>
    %60 = tpu.matmul %49, %59, %cst_45 {dimension_numbers = #tpu.dot_dimension_numbers<[1], [0], [0], [1], [0, 0, 1, 1], [], []>} : vector<32x8xf32>, vector<8x16xf32>, vector<32x16xf32> -> vector<32x16xf32>
    %cst_46 = arith.constant dense<0.000000e+00> : vector<32x16xf32>
    %61 = tpu.matmul %1, %60, %cst_46 {dimension_numbers = #tpu.dot_dimension_numbers<[1], [0], [0], [1], [0, 0, 1, 1], [], []>} : vector<32x32xf32>, vector<32x16xf32>, vector<32x16xf32> -> vector<32x16xf32>
    %62 = arith.addf %57, %61 : vector<32x16xf32>
    %c0_47 = arith.constant 0 : index
    %c0_48 = arith.constant 0 : index
    %63 = vector.load %arg14[%c0_47, %c0_48] : memref<1x16xf32, #tpu.memory_space<vmem>>, vector<1x16xf32>
    %64 = vector.broadcast %63 : vector<1x16xf32> to vector<32x16xf32>
    %65 = arith.addf %62, %64 : vector<32x16xf32>
    %cst_49 = arith.constant dense<0.000000e+00> : vector<16xf32>
    %66 = vector.multi_reduction <add>, %65, %cst_49 [0] : vector<32x16xf32> to vector<16xf32>
    %67 = vector.shape_cast %66 : vector<16xf32> to vector<1x16xf32>
    %cst_50 = arith.constant 3.200000e+01 : f32
    %68 = vector.broadcast %cst_50 : f32 to vector<1x16xf32>
    %69 = arith.divf %67, %68 : vector<1x16xf32>
    %70 = vector.broadcast %69 : vector<1x16xf32> to vector<32x16xf32>
    %71 = arith.subf %65, %70 : vector<32x16xf32>
    %72 = arith.mulf %71, %71 : vector<32x16xf32>
    %cst_51 = arith.constant dense<0.000000e+00> : vector<16xf32>
    %73 = vector.multi_reduction <add>, %72, %cst_51 [0] : vector<32x16xf32> to vector<16xf32>
    %74 = vector.shape_cast %73 : vector<16xf32> to vector<1x16xf32>
    %cst_52 = arith.constant 3.200000e+01 : f32
    %75 = vector.broadcast %cst_52 : f32 to vector<1x16xf32>
    %76 = arith.divf %74, %75 : vector<1x16xf32>
    %77 = vector.broadcast %69 : vector<1x16xf32> to vector<32x16xf32>
    %78 = arith.subf %65, %77 : vector<32x16xf32>
    %cst_53 = arith.constant 9.99999974E-6 : f32
    %79 = vector.broadcast %cst_53 : f32 to vector<1x16xf32>
    %80 = arith.addf %76, %79 : vector<1x16xf32>
    %81 = math.rsqrt %80 : vector<1x16xf32>
    %82 = vector.broadcast %81 : vector<1x16xf32> to vector<32x16xf32>
    %83 = arith.mulf %78, %82 : vector<32x16xf32>
    %c0_54 = arith.constant 0 : index
    %c0_55 = arith.constant 0 : index
    %84 = vector.load %arg15[%c0_54, %c0_55] : memref<1x16xf32, #tpu.memory_space<vmem>>, vector<1x16xf32>
    %85 = vector.broadcast %84 : vector<1x16xf32> to vector<32x16xf32>
    %86 = arith.mulf %83, %85 : vector<32x16xf32>
    %c0_56 = arith.constant 0 : index
    %c0_57 = arith.constant 0 : index
    %87 = vector.load %arg16[%c0_56, %c0_57] : memref<1x16xf32, #tpu.memory_space<vmem>>, vector<1x16xf32>
    %88 = vector.broadcast %87 : vector<1x16xf32> to vector<32x16xf32>
    %89 = arith.addf %86, %88 : vector<32x16xf32>
    %cst_58 = arith.constant 0.000000e+00 : f32
    %90 = vector.broadcast %cst_58 : f32 to vector<32x16xf32>
    %91 = arith.maximumf %89, %90 : vector<32x16xf32>
    %c0_59 = arith.constant 0 : index
    %c0_60 = arith.constant 0 : index
    %c0_61 = arith.constant 0 : index
    %92 = vector.load %arg17[%c0_59, %c0_60, %c0_61] : memref<3x16x16xf32, #tpu.memory_space<vmem>>, vector<1x16x16xf32>
    %93 = vector.shape_cast %92 : vector<1x16x16xf32> to vector<16x16xf32>
    %cst_62 = arith.constant dense<0.000000e+00> : vector<32x16xf32>
    %94 = tpu.matmul %91, %93, %cst_62 {dimension_numbers = #tpu.dot_dimension_numbers<[1], [0], [0], [1], [0, 0, 1, 1], [], []>} : vector<32x16xf32>, vector<16x16xf32>, vector<32x16xf32> -> vector<32x16xf32>
    %cst_63 = arith.constant dense<0.000000e+00> : vector<32x16xf32>
    %95 = tpu.matmul %0, %94, %cst_63 {dimension_numbers = #tpu.dot_dimension_numbers<[1], [0], [0], [1], [0, 0, 1, 1], [], []>} : vector<32x32xf32>, vector<32x16xf32>, vector<32x16xf32> -> vector<32x16xf32>
    %c1_64 = arith.constant 1 : index
    %c0_65 = arith.constant 0 : index
    %c0_66 = arith.constant 0 : index
    %96 = vector.load %arg17[%c1_64, %c0_65, %c0_66] : memref<3x16x16xf32, #tpu.memory_space<vmem>>, vector<1x16x16xf32>
    %97 = vector.shape_cast %96 : vector<1x16x16xf32> to vector<16x16xf32>
    %cst_67 = arith.constant dense<0.000000e+00> : vector<32x16xf32>
    %98 = tpu.matmul %91, %97, %cst_67 {dimension_numbers = #tpu.dot_dimension_numbers<[1], [0], [0], [1], [0, 0, 1, 1], [], []>} : vector<32x16xf32>, vector<16x16xf32>, vector<32x16xf32> -> vector<32x16xf32>
    %99 = arith.addf %95, %98 : vector<32x16xf32>
    %c2_68 = arith.constant 2 : index
    %c0_69 = arith.constant 0 : index
    %c0_70 = arith.constant 0 : index
    %100 = vector.load %arg17[%c2_68, %c0_69, %c0_70] : memref<3x16x16xf32, #tpu.memory_space<vmem>>, vector<1x16x16xf32>
    %101 = vector.shape_cast %100 : vector<1x16x16xf32> to vector<16x16xf32>
    %cst_71 = arith.constant dense<0.000000e+00> : vector<32x16xf32>
    %102 = tpu.matmul %91, %101, %cst_71 {dimension_numbers = #tpu.dot_dimension_numbers<[1], [0], [0], [1], [0, 0, 1, 1], [], []>} : vector<32x16xf32>, vector<16x16xf32>, vector<32x16xf32> -> vector<32x16xf32>
    %cst_72 = arith.constant dense<0.000000e+00> : vector<32x16xf32>
    %103 = tpu.matmul %1, %102, %cst_72 {dimension_numbers = #tpu.dot_dimension_numbers<[1], [0], [0], [1], [0, 0, 1, 1], [], []>} : vector<32x32xf32>, vector<32x16xf32>, vector<32x16xf32> -> vector<32x16xf32>
    %104 = arith.addf %99, %103 : vector<32x16xf32>
    %c0_73 = arith.constant 0 : index
    %c0_74 = arith.constant 0 : index
    %105 = vector.load %arg18[%c0_73, %c0_74] : memref<1x16xf32, #tpu.memory_space<vmem>>, vector<1x16xf32>
    %106 = vector.broadcast %105 : vector<1x16xf32> to vector<32x16xf32>
    %107 = arith.addf %104, %106 : vector<32x16xf32>
    %cst_75 = arith.constant dense<0.000000e+00> : vector<16xf32>
    %108 = vector.multi_reduction <add>, %107, %cst_75 [0] : vector<32x16xf32> to vector<16xf32>
    %109 = vector.shape_cast %108 : vector<16xf32> to vector<1x16xf32>
    %cst_76 = arith.constant 3.200000e+01 : f32
    %110 = vector.broadcast %cst_76 : f32 to vector<1x16xf32>
    %111 = arith.divf %109, %110 : vector<1x16xf32>
    %112 = vector.broadcast %111 : vector<1x16xf32> to vector<32x16xf32>
    %113 = arith.subf %107, %112 : vector<32x16xf32>
    %114 = arith.mulf %113, %113 : vector<32x16xf32>
    %cst_77 = arith.constant dense<0.000000e+00> : vector<16xf32>
    %115 = vector.multi_reduction <add>, %114, %cst_77 [0] : vector<32x16xf32> to vector<16xf32>
    %116 = vector.shape_cast %115 : vector<16xf32> to vector<1x16xf32>
    %cst_78 = arith.constant 3.200000e+01 : f32
    %117 = vector.broadcast %cst_78 : f32 to vector<1x16xf32>
    %118 = arith.divf %116, %117 : vector<1x16xf32>
    %119 = vector.broadcast %111 : vector<1x16xf32> to vector<32x16xf32>
    %120 = arith.subf %107, %119 : vector<32x16xf32>
    %cst_79 = arith.constant 9.99999974E-6 : f32
    %121 = vector.broadcast %cst_79 : f32 to vector<1x16xf32>
    %122 = arith.addf %118, %121 : vector<1x16xf32>
    %123 = math.rsqrt %122 : vector<1x16xf32>
    %124 = vector.broadcast %123 : vector<1x16xf32> to vector<32x16xf32>
    %125 = arith.mulf %120, %124 : vector<32x16xf32>
    %c0_80 = arith.constant 0 : index
    %c0_81 = arith.constant 0 : index
    %126 = vector.load %arg19[%c0_80, %c0_81] : memref<1x16xf32, #tpu.memory_space<vmem>>, vector<1x16xf32>
    %127 = vector.broadcast %126 : vector<1x16xf32> to vector<32x16xf32>
    %128 = arith.mulf %125, %127 : vector<32x16xf32>
    %c0_82 = arith.constant 0 : index
    %c0_83 = arith.constant 0 : index
    %129 = vector.load %arg20[%c0_82, %c0_83] : memref<1x16xf32, #tpu.memory_space<vmem>>, vector<1x16xf32>
    %130 = vector.broadcast %129 : vector<1x16xf32> to vector<32x16xf32>
    %131 = arith.addf %128, %130 : vector<32x16xf32>
    %cst_84 = arith.constant 0.000000e+00 : f32
    %132 = vector.broadcast %cst_84 : f32 to vector<32x16xf32>
    %133 = arith.maximumf %131, %132 : vector<32x16xf32>
    %cst_85 = arith.constant 0.000000e+00 : f32
    %134 = vector.broadcast %cst_85 : f32 to vector<2x8xf32>
    %cst_86 = arith.constant 0.000000e+00 : f32
    %135 = vector.broadcast %cst_86 : f32 to vector<2x8xf32>
    %c0_87 = arith.constant 0 : index
    %c0_88 = arith.constant 0 : index
    %c0_89 = arith.constant 0 : index
    %136 = vector.load %arg5[%c0_87, %c0_88, %c0_89] : memref<16x2x32xf32, #tpu.memory_space<vmem>>, vector<1x2x32xf32>
    %137 = vector.shape_cast %136 : vector<1x2x32xf32> to vector<2x32xf32>
    %cst_90 = arith.constant dense<0.000000e+00> : vector<2x16xf32>
    %138 = tpu.matmul %137, %133, %cst_90 {dimension_numbers = #tpu.dot_dimension_numbers<[1], [0], [0], [1], [0, 0, 1, 1], [], []>} : vector<2x32xf32>, vector<32x16xf32>, vector<2x16xf32> -> vector<2x16xf32>
    %c0_91 = arith.constant 0 : index
    %c0_92 = arith.constant 0 : index
    %c0_93 = arith.constant 0 : index
    %139 = vector.load %arg21[%c0_91, %c0_92, %c0_93] : memref<16x16x8xf32, #tpu.memory_space<vmem>>, vector<1x16x8xf32>
    %140 = vector.shape_cast %139 : vector<1x16x8xf32> to vector<16x8xf32>
    %cst_94 = arith.constant dense<0.000000e+00> : vector<2x8xf32>
    %141 = tpu.matmul %138, %140, %cst_94 {dimension_numbers = #tpu.dot_dimension_numbers<[1], [0], [0], [1], [0, 0, 1, 1], [], []>} : vector<2x16xf32>, vector<16x8xf32>, vector<2x8xf32> -> vector<2x8xf32>
    %142 = arith.addf %134, %141 : vector<2x8xf32>
    %c0_95 = arith.constant 0 : index
    %c0_96 = arith.constant 0 : index
    %c0_97 = arith.constant 0 : index
    %143 = vector.load %arg23[%c0_95, %c0_96, %c0_97] : memref<16x16x8xf32, #tpu.memory_space<vmem>>, vector<1x16x8xf32>
    %144 = vector.shape_cast %143 : vector<1x16x8xf32> to vector<16x8xf32>
    %cst_98 = arith.constant dense<0.000000e+00> : vector<2x8xf32>
    %145 = tpu.matmul %138, %144, %cst_98 {dimension_numbers = #tpu.dot_dimension_numbers<[1], [0], [0], [1], [0, 0, 1, 1], [], []>} : vector<2x16xf32>, vector<16x8xf32>, vector<2x8xf32> -> vector<2x8xf32>
    %146 = arith.addf %135, %145 : vector<2x8xf32>
    %c1_99 = arith.constant 1 : index
    %c0_100 = arith.constant 0 : index
    %c0_101 = arith.constant 0 : index
    %147 = vector.load %arg5[%c1_99, %c0_100, %c0_101] : memref<16x2x32xf32, #tpu.memory_space<vmem>>, vector<1x2x32xf32>
    %148 = vector.shape_cast %147 : vector<1x2x32xf32> to vector<2x32xf32>
    %cst_102 = arith.constant dense<0.000000e+00> : vector<2x16xf32>
    %149 = tpu.matmul %148, %133, %cst_102 {dimension_numbers = #tpu.dot_dimension_numbers<[1], [0], [0], [1], [0, 0, 1, 1], [], []>} : vector<2x32xf32>, vector<32x16xf32>, vector<2x16xf32> -> vector<2x16xf32>
    %c1_103 = arith.constant 1 : index
    %c0_104 = arith.constant 0 : index
    %c0_105 = arith.constant 0 : index
    %150 = vector.load %arg21[%c1_103, %c0_104, %c0_105] : memref<16x16x8xf32, #tpu.memory_space<vmem>>, vector<1x16x8xf32>
    %151 = vector.shape_cast %150 : vector<1x16x8xf32> to vector<16x8xf32>
    %cst_106 = arith.constant dense<0.000000e+00> : vector<2x8xf32>
    %152 = tpu.matmul %149, %151, %cst_106 {dimension_numbers = #tpu.dot_dimension_numbers<[1], [0], [0], [1], [0, 0, 1, 1], [], []>} : vector<2x16xf32>, vector<16x8xf32>, vector<2x8xf32> -> vector<2x8xf32>
    %153 = arith.addf %142, %152 : vector<2x8xf32>
    %c1_107 = arith.constant 1 : index
    %c0_108 = arith.constant 0 : index
    %c0_109 = arith.constant 0 : index
    %154 = vector.load %arg23[%c1_107, %c0_108, %c0_109] : memref<16x16x8xf32, #tpu.memory_space<vmem>>, vector<1x16x8xf32>
    %155 = vector.shape_cast %154 : vector<1x16x8xf32> to vector<16x8xf32>
    %cst_110 = arith.constant dense<0.000000e+00> : vector<2x8xf32>
    %156 = tpu.matmul %149, %155, %cst_110 {dimension_numbers = #tpu.dot_dimension_numbers<[1], [0], [0], [1], [0, 0, 1, 1], [], []>} : vector<2x16xf32>, vector<16x8xf32>, vector<2x8xf32> -> vector<2x8xf32>
    %157 = arith.addf %146, %156 : vector<2x8xf32>
    %c2_111 = arith.constant 2 : index
    %c0_112 = arith.constant 0 : index
    %c0_113 = arith.constant 0 : index
    %158 = vector.load %arg5[%c2_111, %c0_112, %c0_113] : memref<16x2x32xf32, #tpu.memory_space<vmem>>, vector<1x2x32xf32>
    %159 = vector.shape_cast %158 : vector<1x2x32xf32> to vector<2x32xf32>
    %cst_114 = arith.constant dense<0.000000e+00> : vector<2x16xf32>
    %160 = tpu.matmul %159, %133, %cst_114 {dimension_numbers = #tpu.dot_dimension_numbers<[1], [0], [0], [1], [0, 0, 1, 1], [], []>} : vector<2x32xf32>, vector<32x16xf32>, vector<2x16xf32> -> vector<2x16xf32>
    %c2_115 = arith.constant 2 : index
    %c0_116 = arith.constant 0 : index
    %c0_117 = arith.constant 0 : index
    %161 = vector.load %arg21[%c2_115, %c0_116, %c0_117] : memref<16x16x8xf32, #tpu.memory_space<vmem>>, vector<1x16x8xf32>
    %162 = vector.shape_cast %161 : vector<1x16x8xf32> to vector<16x8xf32>
    %cst_118 = arith.constant dense<0.000000e+00> : vector<2x8xf32>
    %163 = tpu.matmul %160, %162, %cst_118 {dimension_numbers = #tpu.dot_dimension_numbers<[1], [0], [0], [1], [0, 0, 1, 1], [], []>} : vector<2x16xf32>, vector<16x8xf32>, vector<2x8xf32> -> vector<2x8xf32>
    %164 = arith.addf %153, %163 : vector<2x8xf32>
    %c2_119 = arith.constant 2 : index
    %c0_120 = arith.constant 0 : index
    %c0_121 = arith.constant 0 : index
    %165 = vector.load %arg23[%c2_119, %c0_120, %c0_121] : memref<16x16x8xf32, #tpu.memory_space<vmem>>, vector<1x16x8xf32>
    %166 = vector.shape_cast %165 : vector<1x16x8xf32> to vector<16x8xf32>
    %cst_122 = arith.constant dense<0.000000e+00> : vector<2x8xf32>
    %167 = tpu.matmul %160, %166, %cst_122 {dimension_numbers = #tpu.dot_dimension_numbers<[1], [0], [0], [1], [0, 0, 1, 1], [], []>} : vector<2x16xf32>, vector<16x8xf32>, vector<2x8xf32> -> vector<2x8xf32>
    %168 = arith.addf %157, %167 : vector<2x8xf32>
    %c3 = arith.constant 3 : index
    %c0_123 = arith.constant 0 : index
    %c0_124 = arith.constant 0 : index
    %169 = vector.load %arg5[%c3, %c0_123, %c0_124] : memref<16x2x32xf32, #tpu.memory_space<vmem>>, vector<1x2x32xf32>
    %170 = vector.shape_cast %169 : vector<1x2x32xf32> to vector<2x32xf32>
    %cst_125 = arith.constant dense<0.000000e+00> : vector<2x16xf32>
    %171 = tpu.matmul %170, %133, %cst_125 {dimension_numbers = #tpu.dot_dimension_numbers<[1], [0], [0], [1], [0, 0, 1, 1], [], []>} : vector<2x32xf32>, vector<32x16xf32>, vector<2x16xf32> -> vector<2x16xf32>
    %c3_126 = arith.constant 3 : index
    %c0_127 = arith.constant 0 : index
    %c0_128 = arith.constant 0 : index
    %172 = vector.load %arg21[%c3_126, %c0_127, %c0_128] : memref<16x16x8xf32, #tpu.memory_space<vmem>>, vector<1x16x8xf32>
    %173 = vector.shape_cast %172 : vector<1x16x8xf32> to vector<16x8xf32>
    %cst_129 = arith.constant dense<0.000000e+00> : vector<2x8xf32>
    %174 = tpu.matmul %171, %173, %cst_129 {dimension_numbers = #tpu.dot_dimension_numbers<[1], [0], [0], [1], [0, 0, 1, 1], [], []>} : vector<2x16xf32>, vector<16x8xf32>, vector<2x8xf32> -> vector<2x8xf32>
    %175 = arith.addf %164, %174 : vector<2x8xf32>
    %c3_130 = arith.constant 3 : index
    %c0_131 = arith.constant 0 : index
    %c0_132 = arith.constant 0 : index
    %176 = vector.load %arg23[%c3_130, %c0_131, %c0_132] : memref<16x16x8xf32, #tpu.memory_space<vmem>>, vector<1x16x8xf32>
    %177 = vector.shape_cast %176 : vector<1x16x8xf32> to vector<16x8xf32>
    %cst_133 = arith.constant dense<0.000000e+00> : vector<2x8xf32>
    %178 = tpu.matmul %171, %177, %cst_133 {dimension_numbers = #tpu.dot_dimension_numbers<[1], [0], [0], [1], [0, 0, 1, 1], [], []>} : vector<2x16xf32>, vector<16x8xf32>, vector<2x8xf32> -> vector<2x8xf32>
    %179 = arith.addf %168, %178 : vector<2x8xf32>
    %c4 = arith.constant 4 : index
    %c0_134 = arith.constant 0 : index
    %c0_135 = arith.constant 0 : index
    %180 = vector.load %arg5[%c4, %c0_134, %c0_135] : memref<16x2x32xf32, #tpu.memory_space<vmem>>, vector<1x2x32xf32>
    %181 = vector.shape_cast %180 : vector<1x2x32xf32> to vector<2x32xf32>
    %cst_136 = arith.constant dense<0.000000e+00> : vector<2x16xf32>
    %182 = tpu.matmul %181, %133, %cst_136 {dimension_numbers = #tpu.dot_dimension_numbers<[1], [0], [0], [1], [0, 0, 1, 1], [], []>} : vector<2x32xf32>, vector<32x16xf32>, vector<2x16xf32> -> vector<2x16xf32>
    %c4_137 = arith.constant 4 : index
    %c0_138 = arith.constant 0 : index
    %c0_139 = arith.constant 0 : index
    %183 = vector.load %arg21[%c4_137, %c0_138, %c0_139] : memref<16x16x8xf32, #tpu.memory_space<vmem>>, vector<1x16x8xf32>
    %184 = vector.shape_cast %183 : vector<1x16x8xf32> to vector<16x8xf32>
    %cst_140 = arith.constant dense<0.000000e+00> : vector<2x8xf32>
    %185 = tpu.matmul %182, %184, %cst_140 {dimension_numbers = #tpu.dot_dimension_numbers<[1], [0], [0], [1], [0, 0, 1, 1], [], []>} : vector<2x16xf32>, vector<16x8xf32>, vector<2x8xf32> -> vector<2x8xf32>
    %186 = arith.addf %175, %185 : vector<2x8xf32>
    %c4_141 = arith.constant 4 : index
    %c0_142 = arith.constant 0 : index
    %c0_143 = arith.constant 0 : index
    %187 = vector.load %arg23[%c4_141, %c0_142, %c0_143] : memref<16x16x8xf32, #tpu.memory_space<vmem>>, vector<1x16x8xf32>
    %188 = vector.shape_cast %187 : vector<1x16x8xf32> to vector<16x8xf32>
    %cst_144 = arith.constant dense<0.000000e+00> : vector<2x8xf32>
    %189 = tpu.matmul %182, %188, %cst_144 {dimension_numbers = #tpu.dot_dimension_numbers<[1], [0], [0], [1], [0, 0, 1, 1], [], []>} : vector<2x16xf32>, vector<16x8xf32>, vector<2x8xf32> -> vector<2x8xf32>
    %190 = arith.addf %179, %189 : vector<2x8xf32>
    %c5 = arith.constant 5 : index
    %c0_145 = arith.constant 0 : index
    %c0_146 = arith.constant 0 : index
    %191 = vector.load %arg5[%c5, %c0_145, %c0_146] : memref<16x2x32xf32, #tpu.memory_space<vmem>>, vector<1x2x32xf32>
    %192 = vector.shape_cast %191 : vector<1x2x32xf32> to vector<2x32xf32>
    %cst_147 = arith.constant dense<0.000000e+00> : vector<2x16xf32>
    %193 = tpu.matmul %192, %133, %cst_147 {dimension_numbers = #tpu.dot_dimension_numbers<[1], [0], [0], [1], [0, 0, 1, 1], [], []>} : vector<2x32xf32>, vector<32x16xf32>, vector<2x16xf32> -> vector<2x16xf32>
    %c5_148 = arith.constant 5 : index
    %c0_149 = arith.constant 0 : index
    %c0_150 = arith.constant 0 : index
    %194 = vector.load %arg21[%c5_148, %c0_149, %c0_150] : memref<16x16x8xf32, #tpu.memory_space<vmem>>, vector<1x16x8xf32>
    %195 = vector.shape_cast %194 : vector<1x16x8xf32> to vector<16x8xf32>
    %cst_151 = arith.constant dense<0.000000e+00> : vector<2x8xf32>
    %196 = tpu.matmul %193, %195, %cst_151 {dimension_numbers = #tpu.dot_dimension_numbers<[1], [0], [0], [1], [0, 0, 1, 1], [], []>} : vector<2x16xf32>, vector<16x8xf32>, vector<2x8xf32> -> vector<2x8xf32>
    %197 = arith.addf %186, %196 : vector<2x8xf32>
    %c5_152 = arith.constant 5 : index
    %c0_153 = arith.constant 0 : index
    %c0_154 = arith.constant 0 : index
    %198 = vector.load %arg23[%c5_152, %c0_153, %c0_154] : memref<16x16x8xf32, #tpu.memory_space<vmem>>, vector<1x16x8xf32>
    %199 = vector.shape_cast %198 : vector<1x16x8xf32> to vector<16x8xf32>
    %cst_155 = arith.constant dense<0.000000e+00> : vector<2x8xf32>
    %200 = tpu.matmul %193, %199, %cst_155 {dimension_numbers = #tpu.dot_dimension_numbers<[1], [0], [0], [1], [0, 0, 1, 1], [], []>} : vector<2x16xf32>, vector<16x8xf32>, vector<2x8xf32> -> vector<2x8xf32>
    %201 = arith.addf %190, %200 : vector<2x8xf32>
    %c6 = arith.constant 6 : index
    %c0_156 = arith.constant 0 : index
    %c0_157 = arith.constant 0 : index
    %202 = vector.load %arg5[%c6, %c0_156, %c0_157] : memref<16x2x32xf32, #tpu.memory_space<vmem>>, vector<1x2x32xf32>
    %203 = vector.shape_cast %202 : vector<1x2x32xf32> to vector<2x32xf32>
    %cst_158 = arith.constant dense<0.000000e+00> : vector<2x16xf32>
    %204 = tpu.matmul %203, %133, %cst_158 {dimension_numbers = #tpu.dot_dimension_numbers<[1], [0], [0], [1], [0, 0, 1, 1], [], []>} : vector<2x32xf32>, vector<32x16xf32>, vector<2x16xf32> -> vector<2x16xf32>
    %c6_159 = arith.constant 6 : index
    %c0_160 = arith.constant 0 : index
    %c0_161 = arith.constant 0 : index
    %205 = vector.load %arg21[%c6_159, %c0_160, %c0_161] : memref<16x16x8xf32, #tpu.memory_space<vmem>>, vector<1x16x8xf32>
    %206 = vector.shape_cast %205 : vector<1x16x8xf32> to vector<16x8xf32>
    %cst_162 = arith.constant dense<0.000000e+00> : vector<2x8xf32>
    %207 = tpu.matmul %204, %206, %cst_162 {dimension_numbers = #tpu.dot_dimension_numbers<[1], [0], [0], [1], [0, 0, 1, 1], [], []>} : vector<2x16xf32>, vector<16x8xf32>, vector<2x8xf32> -> vector<2x8xf32>
    %208 = arith.addf %197, %207 : vector<2x8xf32>
    %c6_163 = arith.constant 6 : index
    %c0_164 = arith.constant 0 : index
    %c0_165 = arith.constant 0 : index
    %209 = vector.load %arg23[%c6_163, %c0_164, %c0_165] : memref<16x16x8xf32, #tpu.memory_space<vmem>>, vector<1x16x8xf32>
    %210 = vector.shape_cast %209 : vector<1x16x8xf32> to vector<16x8xf32>
    %cst_166 = arith.constant dense<0.000000e+00> : vector<2x8xf32>
    %211 = tpu.matmul %204, %210, %cst_166 {dimension_numbers = #tpu.dot_dimension_numbers<[1], [0], [0], [1], [0, 0, 1, 1], [], []>} : vector<2x16xf32>, vector<16x8xf32>, vector<2x8xf32> -> vector<2x8xf32>
    %212 = arith.addf %201, %211 : vector<2x8xf32>
    %c7 = arith.constant 7 : index
    %c0_167 = arith.constant 0 : index
    %c0_168 = arith.constant 0 : index
    %213 = vector.load %arg5[%c7, %c0_167, %c0_168] : memref<16x2x32xf32, #tpu.memory_space<vmem>>, vector<1x2x32xf32>
    %214 = vector.shape_cast %213 : vector<1x2x32xf32> to vector<2x32xf32>
    %cst_169 = arith.constant dense<0.000000e+00> : vector<2x16xf32>
    %215 = tpu.matmul %214, %133, %cst_169 {dimension_numbers = #tpu.dot_dimension_numbers<[1], [0], [0], [1], [0, 0, 1, 1], [], []>} : vector<2x32xf32>, vector<32x16xf32>, vector<2x16xf32> -> vector<2x16xf32>
    %c7_170 = arith.constant 7 : index
    %c0_171 = arith.constant 0 : index
    %c0_172 = arith.constant 0 : index
    %216 = vector.load %arg21[%c7_170, %c0_171, %c0_172] : memref<16x16x8xf32, #tpu.memory_space<vmem>>, vector<1x16x8xf32>
    %217 = vector.shape_cast %216 : vector<1x16x8xf32> to vector<16x8xf32>
    %cst_173 = arith.constant dense<0.000000e+00> : vector<2x8xf32>
    %218 = tpu.matmul %215, %217, %cst_173 {dimension_numbers = #tpu.dot_dimension_numbers<[1], [0], [0], [1], [0, 0, 1, 1], [], []>} : vector<2x16xf32>, vector<16x8xf32>, vector<2x8xf32> -> vector<2x8xf32>
    %219 = arith.addf %208, %218 : vector<2x8xf32>
    %c7_174 = arith.constant 7 : index
    %c0_175 = arith.constant 0 : index
    %c0_176 = arith.constant 0 : index
    %220 = vector.load %arg23[%c7_174, %c0_175, %c0_176] : memref<16x16x8xf32, #tpu.memory_space<vmem>>, vector<1x16x8xf32>
    %221 = vector.shape_cast %220 : vector<1x16x8xf32> to vector<16x8xf32>
    %cst_177 = arith.constant dense<0.000000e+00> : vector<2x8xf32>
    %222 = tpu.matmul %215, %221, %cst_177 {dimension_numbers = #tpu.dot_dimension_numbers<[1], [0], [0], [1], [0, 0, 1, 1], [], []>} : vector<2x16xf32>, vector<16x8xf32>, vector<2x8xf32> -> vector<2x8xf32>
    %223 = arith.addf %212, %222 : vector<2x8xf32>
    %c8 = arith.constant 8 : index
    %c0_178 = arith.constant 0 : index
    %c0_179 = arith.constant 0 : index
    %224 = vector.load %arg5[%c8, %c0_178, %c0_179] : memref<16x2x32xf32, #tpu.memory_space<vmem>>, vector<1x2x32xf32>
    %225 = vector.shape_cast %224 : vector<1x2x32xf32> to vector<2x32xf32>
    %cst_180 = arith.constant dense<0.000000e+00> : vector<2x16xf32>
    %226 = tpu.matmul %225, %133, %cst_180 {dimension_numbers = #tpu.dot_dimension_numbers<[1], [0], [0], [1], [0, 0, 1, 1], [], []>} : vector<2x32xf32>, vector<32x16xf32>, vector<2x16xf32> -> vector<2x16xf32>
    %c8_181 = arith.constant 8 : index
    %c0_182 = arith.constant 0 : index
    %c0_183 = arith.constant 0 : index
    %227 = vector.load %arg21[%c8_181, %c0_182, %c0_183] : memref<16x16x8xf32, #tpu.memory_space<vmem>>, vector<1x16x8xf32>
    %228 = vector.shape_cast %227 : vector<1x16x8xf32> to vector<16x8xf32>
    %cst_184 = arith.constant dense<0.000000e+00> : vector<2x8xf32>
    %229 = tpu.matmul %226, %228, %cst_184 {dimension_numbers = #tpu.dot_dimension_numbers<[1], [0], [0], [1], [0, 0, 1, 1], [], []>} : vector<2x16xf32>, vector<16x8xf32>, vector<2x8xf32> -> vector<2x8xf32>
    %230 = arith.addf %219, %229 : vector<2x8xf32>
    %c8_185 = arith.constant 8 : index
    %c0_186 = arith.constant 0 : index
    %c0_187 = arith.constant 0 : index
    %231 = vector.load %arg23[%c8_185, %c0_186, %c0_187] : memref<16x16x8xf32, #tpu.memory_space<vmem>>, vector<1x16x8xf32>
    %232 = vector.shape_cast %231 : vector<1x16x8xf32> to vector<16x8xf32>
    %cst_188 = arith.constant dense<0.000000e+00> : vector<2x8xf32>
    %233 = tpu.matmul %226, %232, %cst_188 {dimension_numbers = #tpu.dot_dimension_numbers<[1], [0], [0], [1], [0, 0, 1, 1], [], []>} : vector<2x16xf32>, vector<16x8xf32>, vector<2x8xf32> -> vector<2x8xf32>
    %234 = arith.addf %223, %233 : vector<2x8xf32>
    %c9 = arith.constant 9 : index
    %c0_189 = arith.constant 0 : index
    %c0_190 = arith.constant 0 : index
    %235 = vector.load %arg5[%c9, %c0_189, %c0_190] : memref<16x2x32xf32, #tpu.memory_space<vmem>>, vector<1x2x32xf32>
    %236 = vector.shape_cast %235 : vector<1x2x32xf32> to vector<2x32xf32>
    %cst_191 = arith.constant dense<0.000000e+00> : vector<2x16xf32>
    %237 = tpu.matmul %236, %133, %cst_191 {dimension_numbers = #tpu.dot_dimension_numbers<[1], [0], [0], [1], [0, 0, 1, 1], [], []>} : vector<2x32xf32>, vector<32x16xf32>, vector<2x16xf32> -> vector<2x16xf32>
    %c9_192 = arith.constant 9 : index
    %c0_193 = arith.constant 0 : index
    %c0_194 = arith.constant 0 : index
    %238 = vector.load %arg21[%c9_192, %c0_193, %c0_194] : memref<16x16x8xf32, #tpu.memory_space<vmem>>, vector<1x16x8xf32>
    %239 = vector.shape_cast %238 : vector<1x16x8xf32> to vector<16x8xf32>
    %cst_195 = arith.constant dense<0.000000e+00> : vector<2x8xf32>
    %240 = tpu.matmul %237, %239, %cst_195 {dimension_numbers = #tpu.dot_dimension_numbers<[1], [0], [0], [1], [0, 0, 1, 1], [], []>} : vector<2x16xf32>, vector<16x8xf32>, vector<2x8xf32> -> vector<2x8xf32>
    %241 = arith.addf %230, %240 : vector<2x8xf32>
    %c9_196 = arith.constant 9 : index
    %c0_197 = arith.constant 0 : index
    %c0_198 = arith.constant 0 : index
    %242 = vector.load %arg23[%c9_196, %c0_197, %c0_198] : memref<16x16x8xf32, #tpu.memory_space<vmem>>, vector<1x16x8xf32>
    %243 = vector.shape_cast %242 : vector<1x16x8xf32> to vector<16x8xf32>
    %cst_199 = arith.constant dense<0.000000e+00> : vector<2x8xf32>
    %244 = tpu.matmul %237, %243, %cst_199 {dimension_numbers = #tpu.dot_dimension_numbers<[1], [0], [0], [1], [0, 0, 1, 1], [], []>} : vector<2x16xf32>, vector<16x8xf32>, vector<2x8xf32> -> vector<2x8xf32>
    %245 = arith.addf %234, %244 : vector<2x8xf32>
    %c10 = arith.constant 10 : index
    %c0_200 = arith.constant 0 : index
    %c0_201 = arith.constant 0 : index
    %246 = vector.load %arg5[%c10, %c0_200, %c0_201] : memref<16x2x32xf32, #tpu.memory_space<vmem>>, vector<1x2x32xf32>
    %247 = vector.shape_cast %246 : vector<1x2x32xf32> to vector<2x32xf32>
    %cst_202 = arith.constant dense<0.000000e+00> : vector<2x16xf32>
    %248 = tpu.matmul %247, %133, %cst_202 {dimension_numbers = #tpu.dot_dimension_numbers<[1], [0], [0], [1], [0, 0, 1, 1], [], []>} : vector<2x32xf32>, vector<32x16xf32>, vector<2x16xf32> -> vector<2x16xf32>
    %c10_203 = arith.constant 10 : index
    %c0_204 = arith.constant 0 : index
    %c0_205 = arith.constant 0 : index
    %249 = vector.load %arg21[%c10_203, %c0_204, %c0_205] : memref<16x16x8xf32, #tpu.memory_space<vmem>>, vector<1x16x8xf32>
    %250 = vector.shape_cast %249 : vector<1x16x8xf32> to vector<16x8xf32>
    %cst_206 = arith.constant dense<0.000000e+00> : vector<2x8xf32>
    %251 = tpu.matmul %248, %250, %cst_206 {dimension_numbers = #tpu.dot_dimension_numbers<[1], [0], [0], [1], [0, 0, 1, 1], [], []>} : vector<2x16xf32>, vector<16x8xf32>, vector<2x8xf32> -> vector<2x8xf32>
    %252 = arith.addf %241, %251 : vector<2x8xf32>
    %c10_207 = arith.constant 10 : index
    %c0_208 = arith.constant 0 : index
    %c0_209 = arith.constant 0 : index
    %253 = vector.load %arg23[%c10_207, %c0_208, %c0_209] : memref<16x16x8xf32, #tpu.memory_space<vmem>>, vector<1x16x8xf32>
    %254 = vector.shape_cast %253 : vector<1x16x8xf32> to vector<16x8xf32>
    %cst_210 = arith.constant dense<0.000000e+00> : vector<2x8xf32>
    %255 = tpu.matmul %248, %254, %cst_210 {dimension_numbers = #tpu.dot_dimension_numbers<[1], [0], [0], [1], [0, 0, 1, 1], [], []>} : vector<2x16xf32>, vector<16x8xf32>, vector<2x8xf32> -> vector<2x8xf32>
    %256 = arith.addf %245, %255 : vector<2x8xf32>
    %c11 = arith.constant 11 : index
    %c0_211 = arith.constant 0 : index
    %c0_212 = arith.constant 0 : index
    %257 = vector.load %arg5[%c11, %c0_211, %c0_212] : memref<16x2x32xf32, #tpu.memory_space<vmem>>, vector<1x2x32xf32>
    %258 = vector.shape_cast %257 : vector<1x2x32xf32> to vector<2x32xf32>
    %cst_213 = arith.constant dense<0.000000e+00> : vector<2x16xf32>
    %259 = tpu.matmul %258, %133, %cst_213 {dimension_numbers = #tpu.dot_dimension_numbers<[1], [0], [0], [1], [0, 0, 1, 1], [], []>} : vector<2x32xf32>, vector<32x16xf32>, vector<2x16xf32> -> vector<2x16xf32>
    %c11_214 = arith.constant 11 : index
    %c0_215 = arith.constant 0 : index
    %c0_216 = arith.constant 0 : index
    %260 = vector.load %arg21[%c11_214, %c0_215, %c0_216] : memref<16x16x8xf32, #tpu.memory_space<vmem>>, vector<1x16x8xf32>
    %261 = vector.shape_cast %260 : vector<1x16x8xf32> to vector<16x8xf32>
    %cst_217 = arith.constant dense<0.000000e+00> : vector<2x8xf32>
    %262 = tpu.matmul %259, %261, %cst_217 {dimension_numbers = #tpu.dot_dimension_numbers<[1], [0], [0], [1], [0, 0, 1, 1], [], []>} : vector<2x16xf32>, vector<16x8xf32>, vector<2x8xf32> -> vector<2x8xf32>
    %263 = arith.addf %252, %262 : vector<2x8xf32>
    %c11_218 = arith.constant 11 : index
    %c0_219 = arith.constant 0 : index
    %c0_220 = arith.constant 0 : index
    %264 = vector.load %arg23[%c11_218, %c0_219, %c0_220] : memref<16x16x8xf32, #tpu.memory_space<vmem>>, vector<1x16x8xf32>
    %265 = vector.shape_cast %264 : vector<1x16x8xf32> to vector<16x8xf32>
    %cst_221 = arith.constant dense<0.000000e+00> : vector<2x8xf32>
    %266 = tpu.matmul %259, %265, %cst_221 {dimension_numbers = #tpu.dot_dimension_numbers<[1], [0], [0], [1], [0, 0, 1, 1], [], []>} : vector<2x16xf32>, vector<16x8xf32>, vector<2x8xf32> -> vector<2x8xf32>
    %267 = arith.addf %256, %266 : vector<2x8xf32>
    %c12 = arith.constant 12 : index
    %c0_222 = arith.constant 0 : index
    %c0_223 = arith.constant 0 : index
    %268 = vector.load %arg5[%c12, %c0_222, %c0_223] : memref<16x2x32xf32, #tpu.memory_space<vmem>>, vector<1x2x32xf32>
    %269 = vector.shape_cast %268 : vector<1x2x32xf32> to vector<2x32xf32>
    %cst_224 = arith.constant dense<0.000000e+00> : vector<2x16xf32>
    %270 = tpu.matmul %269, %133, %cst_224 {dimension_numbers = #tpu.dot_dimension_numbers<[1], [0], [0], [1], [0, 0, 1, 1], [], []>} : vector<2x32xf32>, vector<32x16xf32>, vector<2x16xf32> -> vector<2x16xf32>
    %c12_225 = arith.constant 12 : index
    %c0_226 = arith.constant 0 : index
    %c0_227 = arith.constant 0 : index
    %271 = vector.load %arg21[%c12_225, %c0_226, %c0_227] : memref<16x16x8xf32, #tpu.memory_space<vmem>>, vector<1x16x8xf32>
    %272 = vector.shape_cast %271 : vector<1x16x8xf32> to vector<16x8xf32>
    %cst_228 = arith.constant dense<0.000000e+00> : vector<2x8xf32>
    %273 = tpu.matmul %270, %272, %cst_228 {dimension_numbers = #tpu.dot_dimension_numbers<[1], [0], [0], [1], [0, 0, 1, 1], [], []>} : vector<2x16xf32>, vector<16x8xf32>, vector<2x8xf32> -> vector<2x8xf32>
    %274 = arith.addf %263, %273 : vector<2x8xf32>
    %c12_229 = arith.constant 12 : index
    %c0_230 = arith.constant 0 : index
    %c0_231 = arith.constant 0 : index
    %275 = vector.load %arg23[%c12_229, %c0_230, %c0_231] : memref<16x16x8xf32, #tpu.memory_space<vmem>>, vector<1x16x8xf32>
    %276 = vector.shape_cast %275 : vector<1x16x8xf32> to vector<16x8xf32>
    %cst_232 = arith.constant dense<0.000000e+00> : vector<2x8xf32>
    %277 = tpu.matmul %270, %276, %cst_232 {dimension_numbers = #tpu.dot_dimension_numbers<[1], [0], [0], [1], [0, 0, 1, 1], [], []>} : vector<2x16xf32>, vector<16x8xf32>, vector<2x8xf32> -> vector<2x8xf32>
    %278 = arith.addf %267, %277 : vector<2x8xf32>
    %c13 = arith.constant 13 : index
    %c0_233 = arith.constant 0 : index
    %c0_234 = arith.constant 0 : index
    %279 = vector.load %arg5[%c13, %c0_233, %c0_234] : memref<16x2x32xf32, #tpu.memory_space<vmem>>, vector<1x2x32xf32>
    %280 = vector.shape_cast %279 : vector<1x2x32xf32> to vector<2x32xf32>
    %cst_235 = arith.constant dense<0.000000e+00> : vector<2x16xf32>
    %281 = tpu.matmul %280, %133, %cst_235 {dimension_numbers = #tpu.dot_dimension_numbers<[1], [0], [0], [1], [0, 0, 1, 1], [], []>} : vector<2x32xf32>, vector<32x16xf32>, vector<2x16xf32> -> vector<2x16xf32>
    %c13_236 = arith.constant 13 : index
    %c0_237 = arith.constant 0 : index
    %c0_238 = arith.constant 0 : index
    %282 = vector.load %arg21[%c13_236, %c0_237, %c0_238] : memref<16x16x8xf32, #tpu.memory_space<vmem>>, vector<1x16x8xf32>
    %283 = vector.shape_cast %282 : vector<1x16x8xf32> to vector<16x8xf32>
    %cst_239 = arith.constant dense<0.000000e+00> : vector<2x8xf32>
    %284 = tpu.matmul %281, %283, %cst_239 {dimension_numbers = #tpu.dot_dimension_numbers<[1], [0], [0], [1], [0, 0, 1, 1], [], []>} : vector<2x16xf32>, vector<16x8xf32>, vector<2x8xf32> -> vector<2x8xf32>
    %285 = arith.addf %274, %284 : vector<2x8xf32>
    %c13_240 = arith.constant 13 : index
    %c0_241 = arith.constant 0 : index
    %c0_242 = arith.constant 0 : index
    %286 = vector.load %arg23[%c13_240, %c0_241, %c0_242] : memref<16x16x8xf32, #tpu.memory_space<vmem>>, vector<1x16x8xf32>
    %287 = vector.shape_cast %286 : vector<1x16x8xf32> to vector<16x8xf32>
    %cst_243 = arith.constant dense<0.000000e+00> : vector<2x8xf32>
    %288 = tpu.matmul %281, %287, %cst_243 {dimension_numbers = #tpu.dot_dimension_numbers<[1], [0], [0], [1], [0, 0, 1, 1], [], []>} : vector<2x16xf32>, vector<16x8xf32>, vector<2x8xf32> -> vector<2x8xf32>
    %289 = arith.addf %278, %288 : vector<2x8xf32>
    %c14 = arith.constant 14 : index
    %c0_244 = arith.constant 0 : index
    %c0_245 = arith.constant 0 : index
    %290 = vector.load %arg5[%c14, %c0_244, %c0_245] : memref<16x2x32xf32, #tpu.memory_space<vmem>>, vector<1x2x32xf32>
    %291 = vector.shape_cast %290 : vector<1x2x32xf32> to vector<2x32xf32>
    %cst_246 = arith.constant dense<0.000000e+00> : vector<2x16xf32>
    %292 = tpu.matmul %291, %133, %cst_246 {dimension_numbers = #tpu.dot_dimension_numbers<[1], [0], [0], [1], [0, 0, 1, 1], [], []>} : vector<2x32xf32>, vector<32x16xf32>, vector<2x16xf32> -> vector<2x16xf32>
    %c14_247 = arith.constant 14 : index
    %c0_248 = arith.constant 0 : index
    %c0_249 = arith.constant 0 : index
    %293 = vector.load %arg21[%c14_247, %c0_248, %c0_249] : memref<16x16x8xf32, #tpu.memory_space<vmem>>, vector<1x16x8xf32>
    %294 = vector.shape_cast %293 : vector<1x16x8xf32> to vector<16x8xf32>
    %cst_250 = arith.constant dense<0.000000e+00> : vector<2x8xf32>
    %295 = tpu.matmul %292, %294, %cst_250 {dimension_numbers = #tpu.dot_dimension_numbers<[1], [0], [0], [1], [0, 0, 1, 1], [], []>} : vector<2x16xf32>, vector<16x8xf32>, vector<2x8xf32> -> vector<2x8xf32>
    %296 = arith.addf %285, %295 : vector<2x8xf32>
    %c14_251 = arith.constant 14 : index
    %c0_252 = arith.constant 0 : index
    %c0_253 = arith.constant 0 : index
    %297 = vector.load %arg23[%c14_251, %c0_252, %c0_253] : memref<16x16x8xf32, #tpu.memory_space<vmem>>, vector<1x16x8xf32>
    %298 = vector.shape_cast %297 : vector<1x16x8xf32> to vector<16x8xf32>
    %cst_254 = arith.constant dense<0.000000e+00> : vector<2x8xf32>
    %299 = tpu.matmul %292, %298, %cst_254 {dimension_numbers = #tpu.dot_dimension_numbers<[1], [0], [0], [1], [0, 0, 1, 1], [], []>} : vector<2x16xf32>, vector<16x8xf32>, vector<2x8xf32> -> vector<2x8xf32>
    %300 = arith.addf %289, %299 : vector<2x8xf32>
    %c15 = arith.constant 15 : index
    %c0_255 = arith.constant 0 : index
    %c0_256 = arith.constant 0 : index
    %301 = vector.load %arg5[%c15, %c0_255, %c0_256] : memref<16x2x32xf32, #tpu.memory_space<vmem>>, vector<1x2x32xf32>
    %302 = vector.shape_cast %301 : vector<1x2x32xf32> to vector<2x32xf32>
    %cst_257 = arith.constant dense<0.000000e+00> : vector<2x16xf32>
    %303 = tpu.matmul %302, %133, %cst_257 {dimension_numbers = #tpu.dot_dimension_numbers<[1], [0], [0], [1], [0, 0, 1, 1], [], []>} : vector<2x32xf32>, vector<32x16xf32>, vector<2x16xf32> -> vector<2x16xf32>
    %c15_258 = arith.constant 15 : index
    %c0_259 = arith.constant 0 : index
    %c0_260 = arith.constant 0 : index
    %304 = vector.load %arg21[%c15_258, %c0_259, %c0_260] : memref<16x16x8xf32, #tpu.memory_space<vmem>>, vector<1x16x8xf32>
    %305 = vector.shape_cast %304 : vector<1x16x8xf32> to vector<16x8xf32>
    %cst_261 = arith.constant dense<0.000000e+00> : vector<2x8xf32>
    %306 = tpu.matmul %303, %305, %cst_261 {dimension_numbers = #tpu.dot_dimension_numbers<[1], [0], [0], [1], [0, 0, 1, 1], [], []>} : vector<2x16xf32>, vector<16x8xf32>, vector<2x8xf32> -> vector<2x8xf32>
    %307 = arith.addf %296, %306 : vector<2x8xf32>
    %c15_262 = arith.constant 15 : index
    %c0_263 = arith.constant 0 : index
    %c0_264 = arith.constant 0 : index
    %308 = vector.load %arg23[%c15_262, %c0_263, %c0_264] : memref<16x16x8xf32, #tpu.memory_space<vmem>>, vector<1x16x8xf32>
    %309 = vector.shape_cast %308 : vector<1x16x8xf32> to vector<16x8xf32>
    %cst_265 = arith.constant dense<0.000000e+00> : vector<2x8xf32>
    %310 = tpu.matmul %303, %309, %cst_265 {dimension_numbers = #tpu.dot_dimension_numbers<[1], [0], [0], [1], [0, 0, 1, 1], [], []>} : vector<2x16xf32>, vector<16x8xf32>, vector<2x8xf32> -> vector<2x8xf32>
    %311 = arith.addf %300, %310 : vector<2x8xf32>
    %c0_266 = arith.constant 0 : index
    %c0_267 = arith.constant 0 : index
    %312 = vector.load %arg22[%c0_266, %c0_267] : memref<1x8xf32, #tpu.memory_space<vmem>>, vector<1x8xf32>
    %313 = vector.broadcast %312 : vector<1x8xf32> to vector<2x8xf32>
    %314 = arith.addf %307, %313 : vector<2x8xf32>
    %c0_268 = arith.constant 0 : index
    %c0_269 = arith.constant 0 : index
    %315 = vector.load %arg24[%c0_268, %c0_269] : memref<1x8xf32, #tpu.memory_space<vmem>>, vector<1x8xf32>
    %316 = vector.broadcast %315 : vector<1x8xf32> to vector<2x8xf32>
    %317 = arith.addf %311, %316 : vector<2x8xf32>
    %c0_270 = arith.constant 0 : index
    %c0_271 = arith.constant 0 : index
    %318 = vector.load %arg2[%c0_270, %c0_271] : memref<2x8xf32, #tpu.memory_space<vmem>>, vector<2x8xf32>
    %319 = math.exp %317 : vector<2x8xf32>
    %320 = arith.mulf %318, %319 : vector<2x8xf32>
    %321 = arith.addf %320, %314 : vector<2x8xf32>
    %c0_272 = arith.constant 0 : index
    %c0_273 = arith.constant 0 : index
    %322 = vector.load %arg26[%c0_272, %c0_273] : memref<32x16xf32, #tpu.memory_space<vmem>>, vector<32x16xf32>
    %c0_274 = arith.constant 0 : index
    %c0_275 = arith.constant 0 : index
    %c0_276 = arith.constant 0 : index
    %323 = vector.load %arg6[%c0_274, %c0_275, %c0_276] : memref<16x32x2xf32, #tpu.memory_space<vmem>>, vector<1x32x2xf32>
    %324 = vector.shape_cast %323 : vector<1x32x2xf32> to vector<32x2xf32>
    %c0_277 = arith.constant 0 : index
    %c0_278 = arith.constant 0 : index
    %c0_279 = arith.constant 0 : index
    %325 = vector.load %arg25[%c0_277, %c0_278, %c0_279] : memref<16x8x16xf32, #tpu.memory_space<vmem>>, vector<1x8x16xf32>
    %326 = vector.shape_cast %325 : vector<1x8x16xf32> to vector<8x16xf32>
    %cst_280 = arith.constant dense<0.000000e+00> : vector<2x16xf32>
    %327 = tpu.matmul %321, %326, %cst_280 {dimension_numbers = #tpu.dot_dimension_numbers<[1], [0], [0], [1], [0, 0, 1, 1], [], []>} : vector<2x8xf32>, vector<8x16xf32>, vector<2x16xf32> -> vector<2x16xf32>
    %cst_281 = arith.constant dense<0.000000e+00> : vector<32x16xf32>
    %328 = tpu.matmul %324, %327, %cst_281 {dimension_numbers = #tpu.dot_dimension_numbers<[1], [0], [0], [1], [0, 0, 1, 1], [], []>} : vector<32x2xf32>, vector<2x16xf32>, vector<32x16xf32> -> vector<32x16xf32>
    %329 = arith.addf %322, %328 : vector<32x16xf32>
    %c1_282 = arith.constant 1 : index
    %c0_283 = arith.constant 0 : index
    %c0_284 = arith.constant 0 : index
    %330 = vector.load %arg6[%c1_282, %c0_283, %c0_284] : memref<16x32x2xf32, #tpu.memory_space<vmem>>, vector<1x32x2xf32>
    %331 = vector.shape_cast %330 : vector<1x32x2xf32> to vector<32x2xf32>
    %c1_285 = arith.constant 1 : index
    %c0_286 = arith.constant 0 : index
    %c0_287 = arith.constant 0 : index
    %332 = vector.load %arg25[%c1_285, %c0_286, %c0_287] : memref<16x8x16xf32, #tpu.memory_space<vmem>>, vector<1x8x16xf32>
    %333 = vector.shape_cast %332 : vector<1x8x16xf32> to vector<8x16xf32>
    %cst_288 = arith.constant dense<0.000000e+00> : vector<2x16xf32>
    %334 = tpu.matmul %321, %333, %cst_288 {dimension_numbers = #tpu.dot_dimension_numbers<[1], [0], [0], [1], [0, 0, 1, 1], [], []>} : vector<2x8xf32>, vector<8x16xf32>, vector<2x16xf32> -> vector<2x16xf32>
    %cst_289 = arith.constant dense<0.000000e+00> : vector<32x16xf32>
    %335 = tpu.matmul %331, %334, %cst_289 {dimension_numbers = #tpu.dot_dimension_numbers<[1], [0], [0], [1], [0, 0, 1, 1], [], []>} : vector<32x2xf32>, vector<2x16xf32>, vector<32x16xf32> -> vector<32x16xf32>
    %336 = arith.addf %329, %335 : vector<32x16xf32>
    %c2_290 = arith.constant 2 : index
    %c0_291 = arith.constant 0 : index
    %c0_292 = arith.constant 0 : index
    %337 = vector.load %arg6[%c2_290, %c0_291, %c0_292] : memref<16x32x2xf32, #tpu.memory_space<vmem>>, vector<1x32x2xf32>
    %338 = vector.shape_cast %337 : vector<1x32x2xf32> to vector<32x2xf32>
    %c2_293 = arith.constant 2 : index
    %c0_294 = arith.constant 0 : index
    %c0_295 = arith.constant 0 : index
    %339 = vector.load %arg25[%c2_293, %c0_294, %c0_295] : memref<16x8x16xf32, #tpu.memory_space<vmem>>, vector<1x8x16xf32>
    %340 = vector.shape_cast %339 : vector<1x8x16xf32> to vector<8x16xf32>
    %cst_296 = arith.constant dense<0.000000e+00> : vector<2x16xf32>
    %341 = tpu.matmul %321, %340, %cst_296 {dimension_numbers = #tpu.dot_dimension_numbers<[1], [0], [0], [1], [0, 0, 1, 1], [], []>} : vector<2x8xf32>, vector<8x16xf32>, vector<2x16xf32> -> vector<2x16xf32>
    %cst_297 = arith.constant dense<0.000000e+00> : vector<32x16xf32>
    %342 = tpu.matmul %338, %341, %cst_297 {dimension_numbers = #tpu.dot_dimension_numbers<[1], [0], [0], [1], [0, 0, 1, 1], [], []>} : vector<32x2xf32>, vector<2x16xf32>, vector<32x16xf32> -> vector<32x16xf32>
    %343 = arith.addf %336, %342 : vector<32x16xf32>
    %c3_298 = arith.constant 3 : index
    %c0_299 = arith.constant 0 : index
    %c0_300 = arith.constant 0 : index
    %344 = vector.load %arg6[%c3_298, %c0_299, %c0_300] : memref<16x32x2xf32, #tpu.memory_space<vmem>>, vector<1x32x2xf32>
    %345 = vector.shape_cast %344 : vector<1x32x2xf32> to vector<32x2xf32>
    %c3_301 = arith.constant 3 : index
    %c0_302 = arith.constant 0 : index
    %c0_303 = arith.constant 0 : index
    %346 = vector.load %arg25[%c3_301, %c0_302, %c0_303] : memref<16x8x16xf32, #tpu.memory_space<vmem>>, vector<1x8x16xf32>
    %347 = vector.shape_cast %346 : vector<1x8x16xf32> to vector<8x16xf32>
    %cst_304 = arith.constant dense<0.000000e+00> : vector<2x16xf32>
    %348 = tpu.matmul %321, %347, %cst_304 {dimension_numbers = #tpu.dot_dimension_numbers<[1], [0], [0], [1], [0, 0, 1, 1], [], []>} : vector<2x8xf32>, vector<8x16xf32>, vector<2x16xf32> -> vector<2x16xf32>
    %cst_305 = arith.constant dense<0.000000e+00> : vector<32x16xf32>
    %349 = tpu.matmul %345, %348, %cst_305 {dimension_numbers = #tpu.dot_dimension_numbers<[1], [0], [0], [1], [0, 0, 1, 1], [], []>} : vector<32x2xf32>, vector<2x16xf32>, vector<32x16xf32> -> vector<32x16xf32>
    %350 = arith.addf %343, %349 : vector<32x16xf32>
    %c4_306 = arith.constant 4 : index
    %c0_307 = arith.constant 0 : index
    %c0_308 = arith.constant 0 : index
    %351 = vector.load %arg6[%c4_306, %c0_307, %c0_308] : memref<16x32x2xf32, #tpu.memory_space<vmem>>, vector<1x32x2xf32>
    %352 = vector.shape_cast %351 : vector<1x32x2xf32> to vector<32x2xf32>
    %c4_309 = arith.constant 4 : index
    %c0_310 = arith.constant 0 : index
    %c0_311 = arith.constant 0 : index
    %353 = vector.load %arg25[%c4_309, %c0_310, %c0_311] : memref<16x8x16xf32, #tpu.memory_space<vmem>>, vector<1x8x16xf32>
    %354 = vector.shape_cast %353 : vector<1x8x16xf32> to vector<8x16xf32>
    %cst_312 = arith.constant dense<0.000000e+00> : vector<2x16xf32>
    %355 = tpu.matmul %321, %354, %cst_312 {dimension_numbers = #tpu.dot_dimension_numbers<[1], [0], [0], [1], [0, 0, 1, 1], [], []>} : vector<2x8xf32>, vector<8x16xf32>, vector<2x16xf32> -> vector<2x16xf32>
    %cst_313 = arith.constant dense<0.000000e+00> : vector<32x16xf32>
    %356 = tpu.matmul %352, %355, %cst_313 {dimension_numbers = #tpu.dot_dimension_numbers<[1], [0], [0], [1], [0, 0, 1, 1], [], []>} : vector<32x2xf32>, vector<2x16xf32>, vector<32x16xf32> -> vector<32x16xf32>
    %357 = arith.addf %350, %356 : vector<32x16xf32>
    %c5_314 = arith.constant 5 : index
    %c0_315 = arith.constant 0 : index
    %c0_316 = arith.constant 0 : index
    %358 = vector.load %arg6[%c5_314, %c0_315, %c0_316] : memref<16x32x2xf32, #tpu.memory_space<vmem>>, vector<1x32x2xf32>
    %359 = vector.shape_cast %358 : vector<1x32x2xf32> to vector<32x2xf32>
    %c5_317 = arith.constant 5 : index
    %c0_318 = arith.constant 0 : index
    %c0_319 = arith.constant 0 : index
    %360 = vector.load %arg25[%c5_317, %c0_318, %c0_319] : memref<16x8x16xf32, #tpu.memory_space<vmem>>, vector<1x8x16xf32>
    %361 = vector.shape_cast %360 : vector<1x8x16xf32> to vector<8x16xf32>
    %cst_320 = arith.constant dense<0.000000e+00> : vector<2x16xf32>
    %362 = tpu.matmul %321, %361, %cst_320 {dimension_numbers = #tpu.dot_dimension_numbers<[1], [0], [0], [1], [0, 0, 1, 1], [], []>} : vector<2x8xf32>, vector<8x16xf32>, vector<2x16xf32> -> vector<2x16xf32>
    %cst_321 = arith.constant dense<0.000000e+00> : vector<32x16xf32>
    %363 = tpu.matmul %359, %362, %cst_321 {dimension_numbers = #tpu.dot_dimension_numbers<[1], [0], [0], [1], [0, 0, 1, 1], [], []>} : vector<32x2xf32>, vector<2x16xf32>, vector<32x16xf32> -> vector<32x16xf32>
    %364 = arith.addf %357, %363 : vector<32x16xf32>
    %c6_322 = arith.constant 6 : index
    %c0_323 = arith.constant 0 : index
    %c0_324 = arith.constant 0 : index
    %365 = vector.load %arg6[%c6_322, %c0_323, %c0_324] : memref<16x32x2xf32, #tpu.memory_space<vmem>>, vector<1x32x2xf32>
    %366 = vector.shape_cast %365 : vector<1x32x2xf32> to vector<32x2xf32>
    %c6_325 = arith.constant 6 : index
    %c0_326 = arith.constant 0 : index
    %c0_327 = arith.constant 0 : index
    %367 = vector.load %arg25[%c6_325, %c0_326, %c0_327] : memref<16x8x16xf32, #tpu.memory_space<vmem>>, vector<1x8x16xf32>
    %368 = vector.shape_cast %367 : vector<1x8x16xf32> to vector<8x16xf32>
    %cst_328 = arith.constant dense<0.000000e+00> : vector<2x16xf32>
    %369 = tpu.matmul %321, %368, %cst_328 {dimension_numbers = #tpu.dot_dimension_numbers<[1], [0], [0], [1], [0, 0, 1, 1], [], []>} : vector<2x8xf32>, vector<8x16xf32>, vector<2x16xf32> -> vector<2x16xf32>
    %cst_329 = arith.constant dense<0.000000e+00> : vector<32x16xf32>
    %370 = tpu.matmul %366, %369, %cst_329 {dimension_numbers = #tpu.dot_dimension_numbers<[1], [0], [0], [1], [0, 0, 1, 1], [], []>} : vector<32x2xf32>, vector<2x16xf32>, vector<32x16xf32> -> vector<32x16xf32>
    %371 = arith.addf %364, %370 : vector<32x16xf32>
    %c7_330 = arith.constant 7 : index
    %c0_331 = arith.constant 0 : index
    %c0_332 = arith.constant 0 : index
    %372 = vector.load %arg6[%c7_330, %c0_331, %c0_332] : memref<16x32x2xf32, #tpu.memory_space<vmem>>, vector<1x32x2xf32>
    %373 = vector.shape_cast %372 : vector<1x32x2xf32> to vector<32x2xf32>
    %c7_333 = arith.constant 7 : index
    %c0_334 = arith.constant 0 : index
    %c0_335 = arith.constant 0 : index
    %374 = vector.load %arg25[%c7_333, %c0_334, %c0_335] : memref<16x8x16xf32, #tpu.memory_space<vmem>>, vector<1x8x16xf32>
    %375 = vector.shape_cast %374 : vector<1x8x16xf32> to vector<8x16xf32>
    %cst_336 = arith.constant dense<0.000000e+00> : vector<2x16xf32>
    %376 = tpu.matmul %321, %375, %cst_336 {dimension_numbers = #tpu.dot_dimension_numbers<[1], [0], [0], [1], [0, 0, 1, 1], [], []>} : vector<2x8xf32>, vector<8x16xf32>, vector<2x16xf32> -> vector<2x16xf32>
    %cst_337 = arith.constant dense<0.000000e+00> : vector<32x16xf32>
    %377 = tpu.matmul %373, %376, %cst_337 {dimension_numbers = #tpu.dot_dimension_numbers<[1], [0], [0], [1], [0, 0, 1, 1], [], []>} : vector<32x2xf32>, vector<2x16xf32>, vector<32x16xf32> -> vector<32x16xf32>
    %378 = arith.addf %371, %377 : vector<32x16xf32>
    %c8_338 = arith.constant 8 : index
    %c0_339 = arith.constant 0 : index
    %c0_340 = arith.constant 0 : index
    %379 = vector.load %arg6[%c8_338, %c0_339, %c0_340] : memref<16x32x2xf32, #tpu.memory_space<vmem>>, vector<1x32x2xf32>
    %380 = vector.shape_cast %379 : vector<1x32x2xf32> to vector<32x2xf32>
    %c8_341 = arith.constant 8 : index
    %c0_342 = arith.constant 0 : index
    %c0_343 = arith.constant 0 : index
    %381 = vector.load %arg25[%c8_341, %c0_342, %c0_343] : memref<16x8x16xf32, #tpu.memory_space<vmem>>, vector<1x8x16xf32>
    %382 = vector.shape_cast %381 : vector<1x8x16xf32> to vector<8x16xf32>
    %cst_344 = arith.constant dense<0.000000e+00> : vector<2x16xf32>
    %383 = tpu.matmul %321, %382, %cst_344 {dimension_numbers = #tpu.dot_dimension_numbers<[1], [0], [0], [1], [0, 0, 1, 1], [], []>} : vector<2x8xf32>, vector<8x16xf32>, vector<2x16xf32> -> vector<2x16xf32>
    %cst_345 = arith.constant dense<0.000000e+00> : vector<32x16xf32>
    %384 = tpu.matmul %380, %383, %cst_345 {dimension_numbers = #tpu.dot_dimension_numbers<[1], [0], [0], [1], [0, 0, 1, 1], [], []>} : vector<32x2xf32>, vector<2x16xf32>, vector<32x16xf32> -> vector<32x16xf32>
    %385 = arith.addf %378, %384 : vector<32x16xf32>
    %c9_346 = arith.constant 9 : index
    %c0_347 = arith.constant 0 : index
    %c0_348 = arith.constant 0 : index
    %386 = vector.load %arg6[%c9_346, %c0_347, %c0_348] : memref<16x32x2xf32, #tpu.memory_space<vmem>>, vector<1x32x2xf32>
    %387 = vector.shape_cast %386 : vector<1x32x2xf32> to vector<32x2xf32>
    %c9_349 = arith.constant 9 : index
    %c0_350 = arith.constant 0 : index
    %c0_351 = arith.constant 0 : index
    %388 = vector.load %arg25[%c9_349, %c0_350, %c0_351] : memref<16x8x16xf32, #tpu.memory_space<vmem>>, vector<1x8x16xf32>
    %389 = vector.shape_cast %388 : vector<1x8x16xf32> to vector<8x16xf32>
    %cst_352 = arith.constant dense<0.000000e+00> : vector<2x16xf32>
    %390 = tpu.matmul %321, %389, %cst_352 {dimension_numbers = #tpu.dot_dimension_numbers<[1], [0], [0], [1], [0, 0, 1, 1], [], []>} : vector<2x8xf32>, vector<8x16xf32>, vector<2x16xf32> -> vector<2x16xf32>
    %cst_353 = arith.constant dense<0.000000e+00> : vector<32x16xf32>
    %391 = tpu.matmul %387, %390, %cst_353 {dimension_numbers = #tpu.dot_dimension_numbers<[1], [0], [0], [1], [0, 0, 1, 1], [], []>} : vector<32x2xf32>, vector<2x16xf32>, vector<32x16xf32> -> vector<32x16xf32>
    %392 = arith.addf %385, %391 : vector<32x16xf32>
    %c10_354 = arith.constant 10 : index
    %c0_355 = arith.constant 0 : index
    %c0_356 = arith.constant 0 : index
    %393 = vector.load %arg6[%c10_354, %c0_355, %c0_356] : memref<16x32x2xf32, #tpu.memory_space<vmem>>, vector<1x32x2xf32>
    %394 = vector.shape_cast %393 : vector<1x32x2xf32> to vector<32x2xf32>
    %c10_357 = arith.constant 10 : index
    %c0_358 = arith.constant 0 : index
    %c0_359 = arith.constant 0 : index
    %395 = vector.load %arg25[%c10_357, %c0_358, %c0_359] : memref<16x8x16xf32, #tpu.memory_space<vmem>>, vector<1x8x16xf32>
    %396 = vector.shape_cast %395 : vector<1x8x16xf32> to vector<8x16xf32>
    %cst_360 = arith.constant dense<0.000000e+00> : vector<2x16xf32>
    %397 = tpu.matmul %321, %396, %cst_360 {dimension_numbers = #tpu.dot_dimension_numbers<[1], [0], [0], [1], [0, 0, 1, 1], [], []>} : vector<2x8xf32>, vector<8x16xf32>, vector<2x16xf32> -> vector<2x16xf32>
    %cst_361 = arith.constant dense<0.000000e+00> : vector<32x16xf32>
    %398 = tpu.matmul %394, %397, %cst_361 {dimension_numbers = #tpu.dot_dimension_numbers<[1], [0], [0], [1], [0, 0, 1, 1], [], []>} : vector<32x2xf32>, vector<2x16xf32>, vector<32x16xf32> -> vector<32x16xf32>
    %399 = arith.addf %392, %398 : vector<32x16xf32>
    %c11_362 = arith.constant 11 : index
    %c0_363 = arith.constant 0 : index
    %c0_364 = arith.constant 0 : index
    %400 = vector.load %arg6[%c11_362, %c0_363, %c0_364] : memref<16x32x2xf32, #tpu.memory_space<vmem>>, vector<1x32x2xf32>
    %401 = vector.shape_cast %400 : vector<1x32x2xf32> to vector<32x2xf32>
    %c11_365 = arith.constant 11 : index
    %c0_366 = arith.constant 0 : index
    %c0_367 = arith.constant 0 : index
    %402 = vector.load %arg25[%c11_365, %c0_366, %c0_367] : memref<16x8x16xf32, #tpu.memory_space<vmem>>, vector<1x8x16xf32>
    %403 = vector.shape_cast %402 : vector<1x8x16xf32> to vector<8x16xf32>
    %cst_368 = arith.constant dense<0.000000e+00> : vector<2x16xf32>
    %404 = tpu.matmul %321, %403, %cst_368 {dimension_numbers = #tpu.dot_dimension_numbers<[1], [0], [0], [1], [0, 0, 1, 1], [], []>} : vector<2x8xf32>, vector<8x16xf32>, vector<2x16xf32> -> vector<2x16xf32>
    %cst_369 = arith.constant dense<0.000000e+00> : vector<32x16xf32>
    %405 = tpu.matmul %401, %404, %cst_369 {dimension_numbers = #tpu.dot_dimension_numbers<[1], [0], [0], [1], [0, 0, 1, 1], [], []>} : vector<32x2xf32>, vector<2x16xf32>, vector<32x16xf32> -> vector<32x16xf32>
    %406 = arith.addf %399, %405 : vector<32x16xf32>
    %c12_370 = arith.constant 12 : index
    %c0_371 = arith.constant 0 : index
    %c0_372 = arith.constant 0 : index
    %407 = vector.load %arg6[%c12_370, %c0_371, %c0_372] : memref<16x32x2xf32, #tpu.memory_space<vmem>>, vector<1x32x2xf32>
    %408 = vector.shape_cast %407 : vector<1x32x2xf32> to vector<32x2xf32>
    %c12_373 = arith.constant 12 : index
    %c0_374 = arith.constant 0 : index
    %c0_375 = arith.constant 0 : index
    %409 = vector.load %arg25[%c12_373, %c0_374, %c0_375] : memref<16x8x16xf32, #tpu.memory_space<vmem>>, vector<1x8x16xf32>
    %410 = vector.shape_cast %409 : vector<1x8x16xf32> to vector<8x16xf32>
    %cst_376 = arith.constant dense<0.000000e+00> : vector<2x16xf32>
    %411 = tpu.matmul %321, %410, %cst_376 {dimension_numbers = #tpu.dot_dimension_numbers<[1], [0], [0], [1], [0, 0, 1, 1], [], []>} : vector<2x8xf32>, vector<8x16xf32>, vector<2x16xf32> -> vector<2x16xf32>
    %cst_377 = arith.constant dense<0.000000e+00> : vector<32x16xf32>
    %412 = tpu.matmul %408, %411, %cst_377 {dimension_numbers = #tpu.dot_dimension_numbers<[1], [0], [0], [1], [0, 0, 1, 1], [], []>} : vector<32x2xf32>, vector<2x16xf32>, vector<32x16xf32> -> vector<32x16xf32>
    %413 = arith.addf %406, %412 : vector<32x16xf32>
    %c13_378 = arith.constant 13 : index
    %c0_379 = arith.constant 0 : index
    %c0_380 = arith.constant 0 : index
    %414 = vector.load %arg6[%c13_378, %c0_379, %c0_380] : memref<16x32x2xf32, #tpu.memory_space<vmem>>, vector<1x32x2xf32>
    %415 = vector.shape_cast %414 : vector<1x32x2xf32> to vector<32x2xf32>
    %c13_381 = arith.constant 13 : index
    %c0_382 = arith.constant 0 : index
    %c0_383 = arith.constant 0 : index
    %416 = vector.load %arg25[%c13_381, %c0_382, %c0_383] : memref<16x8x16xf32, #tpu.memory_space<vmem>>, vector<1x8x16xf32>
    %417 = vector.shape_cast %416 : vector<1x8x16xf32> to vector<8x16xf32>
    %cst_384 = arith.constant dense<0.000000e+00> : vector<2x16xf32>
    %418 = tpu.matmul %321, %417, %cst_384 {dimension_numbers = #tpu.dot_dimension_numbers<[1], [0], [0], [1], [0, 0, 1, 1], [], []>} : vector<2x8xf32>, vector<8x16xf32>, vector<2x16xf32> -> vector<2x16xf32>
    %cst_385 = arith.constant dense<0.000000e+00> : vector<32x16xf32>
    %419 = tpu.matmul %415, %418, %cst_385 {dimension_numbers = #tpu.dot_dimension_numbers<[1], [0], [0], [1], [0, 0, 1, 1], [], []>} : vector<32x2xf32>, vector<2x16xf32>, vector<32x16xf32> -> vector<32x16xf32>
    %420 = arith.addf %413, %419 : vector<32x16xf32>
    %c14_386 = arith.constant 14 : index
    %c0_387 = arith.constant 0 : index
    %c0_388 = arith.constant 0 : index
    %421 = vector.load %arg6[%c14_386, %c0_387, %c0_388] : memref<16x32x2xf32, #tpu.memory_space<vmem>>, vector<1x32x2xf32>
    %422 = vector.shape_cast %421 : vector<1x32x2xf32> to vector<32x2xf32>
    %c14_389 = arith.constant 14 : index
    %c0_390 = arith.constant 0 : index
    %c0_391 = arith.constant 0 : index
    %423 = vector.load %arg25[%c14_389, %c0_390, %c0_391] : memref<16x8x16xf32, #tpu.memory_space<vmem>>, vector<1x8x16xf32>
    %424 = vector.shape_cast %423 : vector<1x8x16xf32> to vector<8x16xf32>
    %cst_392 = arith.constant dense<0.000000e+00> : vector<2x16xf32>
    %425 = tpu.matmul %321, %424, %cst_392 {dimension_numbers = #tpu.dot_dimension_numbers<[1], [0], [0], [1], [0, 0, 1, 1], [], []>} : vector<2x8xf32>, vector<8x16xf32>, vector<2x16xf32> -> vector<2x16xf32>
    %cst_393 = arith.constant dense<0.000000e+00> : vector<32x16xf32>
    %426 = tpu.matmul %422, %425, %cst_393 {dimension_numbers = #tpu.dot_dimension_numbers<[1], [0], [0], [1], [0, 0, 1, 1], [], []>} : vector<32x2xf32>, vector<2x16xf32>, vector<32x16xf32> -> vector<32x16xf32>
    %427 = arith.addf %420, %426 : vector<32x16xf32>
    %c15_394 = arith.constant 15 : index
    %c0_395 = arith.constant 0 : index
    %c0_396 = arith.constant 0 : index
    %428 = vector.load %arg6[%c15_394, %c0_395, %c0_396] : memref<16x32x2xf32, #tpu.memory_space<vmem>>, vector<1x32x2xf32>
    %429 = vector.shape_cast %428 : vector<1x32x2xf32> to vector<32x2xf32>
    %c15_397 = arith.constant 15 : index
    %c0_398 = arith.constant 0 : index
    %c0_399 = arith.constant 0 : index
    %430 = vector.load %arg25[%c15_397, %c0_398, %c0_399] : memref<16x8x16xf32, #tpu.memory_space<vmem>>, vector<1x8x16xf32>
    %431 = vector.shape_cast %430 : vector<1x8x16xf32> to vector<8x16xf32>
    %cst_400 = arith.constant dense<0.000000e+00> : vector<2x16xf32>
    %432 = tpu.matmul %321, %431, %cst_400 {dimension_numbers = #tpu.dot_dimension_numbers<[1], [0], [0], [1], [0, 0, 1, 1], [], []>} : vector<2x8xf32>, vector<8x16xf32>, vector<2x16xf32> -> vector<2x16xf32>
    %cst_401 = arith.constant dense<0.000000e+00> : vector<32x16xf32>
    %433 = tpu.matmul %429, %432, %cst_401 {dimension_numbers = #tpu.dot_dimension_numbers<[1], [0], [0], [1], [0, 0, 1, 1], [], []>} : vector<32x2xf32>, vector<2x16xf32>, vector<32x16xf32> -> vector<32x16xf32>
    %434 = arith.addf %427, %433 : vector<32x16xf32>
    %c0_402 = arith.constant 0 : index
    %c0_403 = arith.constant 0 : index
    %c0_404 = arith.constant 0 : index
    %435 = vector.load %arg27[%c0_402, %c0_403, %c0_404] : memref<3x16x16xf32, #tpu.memory_space<vmem>>, vector<1x16x16xf32>
    %436 = vector.shape_cast %435 : vector<1x16x16xf32> to vector<16x16xf32>
    %cst_405 = arith.constant dense<0.000000e+00> : vector<32x16xf32>
    %437 = tpu.matmul %434, %436, %cst_405 {dimension_numbers = #tpu.dot_dimension_numbers<[1], [0], [0], [1], [0, 0, 1, 1], [], []>} : vector<32x16xf32>, vector<16x16xf32>, vector<32x16xf32> -> vector<32x16xf32>
    %cst_406 = arith.constant dense<0.000000e+00> : vector<32x16xf32>
    %438 = tpu.matmul %0, %437, %cst_406 {dimension_numbers = #tpu.dot_dimension_numbers<[1], [0], [0], [1], [0, 0, 1, 1], [], []>} : vector<32x32xf32>, vector<32x16xf32>, vector<32x16xf32> -> vector<32x16xf32>
    %c1_407 = arith.constant 1 : index
    %c0_408 = arith.constant 0 : index
    %c0_409 = arith.constant 0 : index
    %439 = vector.load %arg27[%c1_407, %c0_408, %c0_409] : memref<3x16x16xf32, #tpu.memory_space<vmem>>, vector<1x16x16xf32>
    %440 = vector.shape_cast %439 : vector<1x16x16xf32> to vector<16x16xf32>
    %cst_410 = arith.constant dense<0.000000e+00> : vector<32x16xf32>
    %441 = tpu.matmul %434, %440, %cst_410 {dimension_numbers = #tpu.dot_dimension_numbers<[1], [0], [0], [1], [0, 0, 1, 1], [], []>} : vector<32x16xf32>, vector<16x16xf32>, vector<32x16xf32> -> vector<32x16xf32>
    %442 = arith.addf %438, %441 : vector<32x16xf32>
    %c2_411 = arith.constant 2 : index
    %c0_412 = arith.constant 0 : index
    %c0_413 = arith.constant 0 : index
    %443 = vector.load %arg27[%c2_411, %c0_412, %c0_413] : memref<3x16x16xf32, #tpu.memory_space<vmem>>, vector<1x16x16xf32>
    %444 = vector.shape_cast %443 : vector<1x16x16xf32> to vector<16x16xf32>
    %cst_414 = arith.constant dense<0.000000e+00> : vector<32x16xf32>
    %445 = tpu.matmul %434, %444, %cst_414 {dimension_numbers = #tpu.dot_dimension_numbers<[1], [0], [0], [1], [0, 0, 1, 1], [], []>} : vector<32x16xf32>, vector<16x16xf32>, vector<32x16xf32> -> vector<32x16xf32>
    %cst_415 = arith.constant dense<0.000000e+00> : vector<32x16xf32>
    %446 = tpu.matmul %1, %445, %cst_415 {dimension_numbers = #tpu.dot_dimension_numbers<[1], [0], [0], [1], [0, 0, 1, 1], [], []>} : vector<32x32xf32>, vector<32x16xf32>, vector<32x16xf32> -> vector<32x16xf32>
    %447 = arith.addf %442, %446 : vector<32x16xf32>
    %c0_416 = arith.constant 0 : index
    %c0_417 = arith.constant 0 : index
    %448 = vector.load %arg28[%c0_416, %c0_417] : memref<1x16xf32, #tpu.memory_space<vmem>>, vector<1x16xf32>
    %449 = vector.broadcast %448 : vector<1x16xf32> to vector<32x16xf32>
    %450 = arith.addf %447, %449 : vector<32x16xf32>
    %cst_418 = arith.constant dense<0.000000e+00> : vector<16xf32>
    %451 = vector.multi_reduction <add>, %450, %cst_418 [0] : vector<32x16xf32> to vector<16xf32>
    %452 = vector.shape_cast %451 : vector<16xf32> to vector<1x16xf32>
    %cst_419 = arith.constant 3.200000e+01 : f32
    %453 = vector.broadcast %cst_419 : f32 to vector<1x16xf32>
    %454 = arith.divf %452, %453 : vector<1x16xf32>
    %455 = vector.broadcast %454 : vector<1x16xf32> to vector<32x16xf32>
    %456 = arith.subf %450, %455 : vector<32x16xf32>
    %457 = arith.mulf %456, %456 : vector<32x16xf32>
    %cst_420 = arith.constant dense<0.000000e+00> : vector<16xf32>
    %458 = vector.multi_reduction <add>, %457, %cst_420 [0] : vector<32x16xf32> to vector<16xf32>
    %459 = vector.shape_cast %458 : vector<16xf32> to vector<1x16xf32>
    %cst_421 = arith.constant 3.200000e+01 : f32
    %460 = vector.broadcast %cst_421 : f32 to vector<1x16xf32>
    %461 = arith.divf %459, %460 : vector<1x16xf32>
    %462 = vector.broadcast %454 : vector<1x16xf32> to vector<32x16xf32>
    %463 = arith.subf %450, %462 : vector<32x16xf32>
    %cst_422 = arith.constant 9.99999974E-6 : f32
    %464 = vector.broadcast %cst_422 : f32 to vector<1x16xf32>
    %465 = arith.addf %461, %464 : vector<1x16xf32>
    %466 = math.rsqrt %465 : vector<1x16xf32>
    %467 = vector.broadcast %466 : vector<1x16xf32> to vector<32x16xf32>
    %468 = arith.mulf %463, %467 : vector<32x16xf32>
    %c0_423 = arith.constant 0 : index
    %c0_424 = arith.constant 0 : index
    %469 = vector.load %arg29[%c0_423, %c0_424] : memref<1x16xf32, #tpu.memory_space<vmem>>, vector<1x16xf32>
    %470 = vector.broadcast %469 : vector<1x16xf32> to vector<32x16xf32>
    %471 = arith.mulf %468, %470 : vector<32x16xf32>
    %c0_425 = arith.constant 0 : index
    %c0_426 = arith.constant 0 : index
    %472 = vector.load %arg30[%c0_425, %c0_426] : memref<1x16xf32, #tpu.memory_space<vmem>>, vector<1x16xf32>
    %473 = vector.broadcast %472 : vector<1x16xf32> to vector<32x16xf32>
    %474 = arith.addf %471, %473 : vector<32x16xf32>
    %cst_427 = arith.constant 0.000000e+00 : f32
    %475 = vector.broadcast %cst_427 : f32 to vector<32x16xf32>
    %476 = arith.maximumf %474, %475 : vector<32x16xf32>
    %c0_428 = arith.constant 0 : index
    %c0_429 = arith.constant 0 : index
    %c0_430 = arith.constant 0 : index
    %477 = vector.load %arg31[%c0_428, %c0_429, %c0_430] : memref<3x16x8xf32, #tpu.memory_space<vmem>>, vector<1x16x8xf32>
    %478 = vector.shape_cast %477 : vector<1x16x8xf32> to vector<16x8xf32>
    %cst_431 = arith.constant dense<0.000000e+00> : vector<32x8xf32>
    %479 = tpu.matmul %476, %478, %cst_431 {dimension_numbers = #tpu.dot_dimension_numbers<[1], [0], [0], [1], [0, 0, 1, 1], [], []>} : vector<32x16xf32>, vector<16x8xf32>, vector<32x8xf32> -> vector<32x8xf32>
    %cst_432 = arith.constant dense<0.000000e+00> : vector<32x8xf32>
    %480 = tpu.matmul %0, %479, %cst_432 {dimension_numbers = #tpu.dot_dimension_numbers<[1], [0], [0], [1], [0, 0, 1, 1], [], []>} : vector<32x32xf32>, vector<32x8xf32>, vector<32x8xf32> -> vector<32x8xf32>
    %c1_433 = arith.constant 1 : index
    %c0_434 = arith.constant 0 : index
    %c0_435 = arith.constant 0 : index
    %481 = vector.load %arg31[%c1_433, %c0_434, %c0_435] : memref<3x16x8xf32, #tpu.memory_space<vmem>>, vector<1x16x8xf32>
    %482 = vector.shape_cast %481 : vector<1x16x8xf32> to vector<16x8xf32>
    %cst_436 = arith.constant dense<0.000000e+00> : vector<32x8xf32>
    %483 = tpu.matmul %476, %482, %cst_436 {dimension_numbers = #tpu.dot_dimension_numbers<[1], [0], [0], [1], [0, 0, 1, 1], [], []>} : vector<32x16xf32>, vector<16x8xf32>, vector<32x8xf32> -> vector<32x8xf32>
    %484 = arith.addf %480, %483 : vector<32x8xf32>
    %c2_437 = arith.constant 2 : index
    %c0_438 = arith.constant 0 : index
    %c0_439 = arith.constant 0 : index
    %485 = vector.load %arg31[%c2_437, %c0_438, %c0_439] : memref<3x16x8xf32, #tpu.memory_space<vmem>>, vector<1x16x8xf32>
    %486 = vector.shape_cast %485 : vector<1x16x8xf32> to vector<16x8xf32>
    %cst_440 = arith.constant dense<0.000000e+00> : vector<32x8xf32>
    %487 = tpu.matmul %476, %486, %cst_440 {dimension_numbers = #tpu.dot_dimension_numbers<[1], [0], [0], [1], [0, 0, 1, 1], [], []>} : vector<32x16xf32>, vector<16x8xf32>, vector<32x8xf32> -> vector<32x8xf32>
    %cst_441 = arith.constant dense<0.000000e+00> : vector<32x8xf32>
    %488 = tpu.matmul %1, %487, %cst_441 {dimension_numbers = #tpu.dot_dimension_numbers<[1], [0], [0], [1], [0, 0, 1, 1], [], []>} : vector<32x32xf32>, vector<32x8xf32>, vector<32x8xf32> -> vector<32x8xf32>
    %489 = arith.addf %484, %488 : vector<32x8xf32>
    %c0_442 = arith.constant 0 : index
    %c0_443 = arith.constant 0 : index
    %490 = vector.load %arg32[%c0_442, %c0_443] : memref<1x8xf32, #tpu.memory_space<vmem>>, vector<1x8xf32>
    %491 = vector.broadcast %490 : vector<1x8xf32> to vector<32x8xf32>
    %492 = arith.addf %489, %491 : vector<32x8xf32>
    %cst_444 = arith.constant dense<0.000000e+00> : vector<8xf32>
    %493 = vector.multi_reduction <add>, %492, %cst_444 [0] : vector<32x8xf32> to vector<8xf32>
    %494 = vector.shape_cast %493 : vector<8xf32> to vector<1x8xf32>
    %cst_445 = arith.constant 3.200000e+01 : f32
    %495 = vector.broadcast %cst_445 : f32 to vector<1x8xf32>
    %496 = arith.divf %494, %495 : vector<1x8xf32>
    %497 = vector.broadcast %496 : vector<1x8xf32> to vector<32x8xf32>
    %498 = arith.subf %492, %497 : vector<32x8xf32>
    %499 = arith.mulf %498, %498 : vector<32x8xf32>
    %cst_446 = arith.constant dense<0.000000e+00> : vector<8xf32>
    %500 = vector.multi_reduction <add>, %499, %cst_446 [0] : vector<32x8xf32> to vector<8xf32>
    %501 = vector.shape_cast %500 : vector<8xf32> to vector<1x8xf32>
    %cst_447 = arith.constant 3.200000e+01 : f32
    %502 = vector.broadcast %cst_447 : f32 to vector<1x8xf32>
    %503 = arith.divf %501, %502 : vector<1x8xf32>
    %504 = vector.broadcast %496 : vector<1x8xf32> to vector<32x8xf32>
    %505 = arith.subf %492, %504 : vector<32x8xf32>
    %cst_448 = arith.constant 9.99999974E-6 : f32
    %506 = vector.broadcast %cst_448 : f32 to vector<1x8xf32>
    %507 = arith.addf %503, %506 : vector<1x8xf32>
    %508 = math.rsqrt %507 : vector<1x8xf32>
    %509 = vector.broadcast %508 : vector<1x8xf32> to vector<32x8xf32>
    %510 = arith.mulf %505, %509 : vector<32x8xf32>
    %c0_449 = arith.constant 0 : index
    %c0_450 = arith.constant 0 : index
    %511 = vector.load %arg33[%c0_449, %c0_450] : memref<1x8xf32, #tpu.memory_space<vmem>>, vector<1x8xf32>
    %512 = vector.broadcast %511 : vector<1x8xf32> to vector<32x8xf32>
    %513 = arith.mulf %510, %512 : vector<32x8xf32>
    %c0_451 = arith.constant 0 : index
    %c0_452 = arith.constant 0 : index
    %514 = vector.load %arg34[%c0_451, %c0_452] : memref<1x8xf32, #tpu.memory_space<vmem>>, vector<1x8xf32>
    %515 = vector.broadcast %514 : vector<1x8xf32> to vector<32x8xf32>
    %516 = arith.addf %513, %515 : vector<32x8xf32>
    %cst_453 = arith.constant 0.000000e+00 : f32
    %517 = vector.broadcast %cst_453 : f32 to vector<32x8xf32>
    %518 = arith.maximumf %516, %517 : vector<32x8xf32>
    %c0_454 = arith.constant 0 : index
    %c0_455 = arith.constant 0 : index
    %c0_456 = arith.constant 0 : index
    %519 = vector.load %arg35[%c0_454, %c0_455, %c0_456] : memref<3x8x3xf32, #tpu.memory_space<vmem>>, vector<1x8x3xf32>
    %520 = vector.shape_cast %519 : vector<1x8x3xf32> to vector<8x3xf32>
    %cst_457 = arith.constant dense<0.000000e+00> : vector<32x3xf32>
    %521 = tpu.matmul %518, %520, %cst_457 {dimension_numbers = #tpu.dot_dimension_numbers<[1], [0], [0], [1], [0, 0, 1, 1], [], []>} : vector<32x8xf32>, vector<8x3xf32>, vector<32x3xf32> -> vector<32x3xf32>
    %cst_458 = arith.constant dense<0.000000e+00> : vector<32x3xf32>
    %522 = tpu.matmul %0, %521, %cst_458 {dimension_numbers = #tpu.dot_dimension_numbers<[1], [0], [0], [1], [0, 0, 1, 1], [], []>} : vector<32x32xf32>, vector<32x3xf32>, vector<32x3xf32> -> vector<32x3xf32>
    %c1_459 = arith.constant 1 : index
    %c0_460 = arith.constant 0 : index
    %c0_461 = arith.constant 0 : index
    %523 = vector.load %arg35[%c1_459, %c0_460, %c0_461] : memref<3x8x3xf32, #tpu.memory_space<vmem>>, vector<1x8x3xf32>
    %524 = vector.shape_cast %523 : vector<1x8x3xf32> to vector<8x3xf32>
    %cst_462 = arith.constant dense<0.000000e+00> : vector<32x3xf32>
    %525 = tpu.matmul %518, %524, %cst_462 {dimension_numbers = #tpu.dot_dimension_numbers<[1], [0], [0], [1], [0, 0, 1, 1], [], []>} : vector<32x8xf32>, vector<8x3xf32>, vector<32x3xf32> -> vector<32x3xf32>
    %526 = arith.addf %522, %525 : vector<32x3xf32>
    %c2_463 = arith.constant 2 : index
    %c0_464 = arith.constant 0 : index
    %c0_465 = arith.constant 0 : index
    %527 = vector.load %arg35[%c2_463, %c0_464, %c0_465] : memref<3x8x3xf32, #tpu.memory_space<vmem>>, vector<1x8x3xf32>
    %528 = vector.shape_cast %527 : vector<1x8x3xf32> to vector<8x3xf32>
    %cst_466 = arith.constant dense<0.000000e+00> : vector<32x3xf32>
    %529 = tpu.matmul %518, %528, %cst_466 {dimension_numbers = #tpu.dot_dimension_numbers<[1], [0], [0], [1], [0, 0, 1, 1], [], []>} : vector<32x8xf32>, vector<8x3xf32>, vector<32x3xf32> -> vector<32x3xf32>
    %cst_467 = arith.constant dense<0.000000e+00> : vector<32x3xf32>
    %530 = tpu.matmul %1, %529, %cst_467 {dimension_numbers = #tpu.dot_dimension_numbers<[1], [0], [0], [1], [0, 0, 1, 1], [], []>} : vector<32x32xf32>, vector<32x3xf32>, vector<32x3xf32> -> vector<32x3xf32>
    %531 = arith.addf %526, %530 : vector<32x3xf32>
    %c0_468 = arith.constant 0 : index
    %c0_469 = arith.constant 0 : index
    %532 = vector.load %arg36[%c0_468, %c0_469] : memref<1x3xf32, #tpu.memory_space<vmem>>, vector<1x3xf32>
    %533 = vector.broadcast %532 : vector<1x3xf32> to vector<32x3xf32>
    %534 = arith.addf %531, %533 : vector<32x3xf32>
    %cst_470 = arith.constant dense<0.000000e+00> : vector<3xf32>
    %535 = vector.multi_reduction <add>, %534, %cst_470 [0] : vector<32x3xf32> to vector<3xf32>
    %536 = vector.shape_cast %535 : vector<3xf32> to vector<1x3xf32>
    %cst_471 = arith.constant 3.200000e+01 : f32
    %537 = vector.broadcast %cst_471 : f32 to vector<1x3xf32>
    %538 = arith.divf %536, %537 : vector<1x3xf32>
    %539 = vector.broadcast %538 : vector<1x3xf32> to vector<32x3xf32>
    %540 = arith.subf %534, %539 : vector<32x3xf32>
    %541 = arith.mulf %540, %540 : vector<32x3xf32>
    %cst_472 = arith.constant dense<0.000000e+00> : vector<3xf32>
    %542 = vector.multi_reduction <add>, %541, %cst_472 [0] : vector<32x3xf32> to vector<3xf32>
    %543 = vector.shape_cast %542 : vector<3xf32> to vector<1x3xf32>
    %cst_473 = arith.constant 3.200000e+01 : f32
    %544 = vector.broadcast %cst_473 : f32 to vector<1x3xf32>
    %545 = arith.divf %543, %544 : vector<1x3xf32>
    %546 = vector.broadcast %538 : vector<1x3xf32> to vector<32x3xf32>
    %547 = arith.subf %534, %546 : vector<32x3xf32>
    %cst_474 = arith.constant 9.99999974E-6 : f32
    %548 = vector.broadcast %cst_474 : f32 to vector<1x3xf32>
    %549 = arith.addf %545, %548 : vector<1x3xf32>
    %550 = math.rsqrt %549 : vector<1x3xf32>
    %551 = vector.broadcast %550 : vector<1x3xf32> to vector<32x3xf32>
    %552 = arith.mulf %547, %551 : vector<32x3xf32>
    %c0_475 = arith.constant 0 : index
    %c0_476 = arith.constant 0 : index
    %553 = vector.load %arg37[%c0_475, %c0_476] : memref<1x3xf32, #tpu.memory_space<vmem>>, vector<1x3xf32>
    %554 = vector.broadcast %553 : vector<1x3xf32> to vector<32x3xf32>
    %555 = arith.mulf %552, %554 : vector<32x3xf32>
    %c0_477 = arith.constant 0 : index
    %c0_478 = arith.constant 0 : index
    %556 = vector.load %arg38[%c0_477, %c0_478] : memref<1x3xf32, #tpu.memory_space<vmem>>, vector<1x3xf32>
    %557 = vector.broadcast %556 : vector<1x3xf32> to vector<32x3xf32>
    %558 = arith.addf %555, %557 : vector<32x3xf32>
    %cst_479 = arith.constant 0.000000e+00 : f32
    %559 = vector.broadcast %cst_479 : f32 to vector<32x3xf32>
    %560 = arith.maximumf %558, %559 : vector<32x3xf32>
    %cst_480 = arith.constant 0.000000e+00 : f32
    %561 = vector.broadcast %cst_480 : f32 to vector<2x48xf32>
    %c0_481 = arith.constant 0 : index
    %c0_482 = arith.constant 0 : index
    %c0_483 = arith.constant 0 : index
    %562 = vector.load %arg5[%c0_481, %c0_482, %c0_483] : memref<16x2x32xf32, #tpu.memory_space<vmem>>, vector<1x2x32xf32>
    %563 = vector.shape_cast %562 : vector<1x2x32xf32> to vector<2x32xf32>
    %cst_484 = arith.constant dense<0.000000e+00> : vector<2x3xf32>
    %564 = tpu.matmul %563, %560, %cst_484 {dimension_numbers = #tpu.dot_dimension_numbers<[1], [0], [0], [1], [0, 0, 1, 1], [], []>} : vector<2x32xf32>, vector<32x3xf32>, vector<2x3xf32> -> vector<2x3xf32>
    %c0_485 = arith.constant 0 : index
    %c0_486 = arith.constant 0 : index
    %c0_487 = arith.constant 0 : index
    %565 = vector.load %arg39[%c0_485, %c0_486, %c0_487] : memref<16x3x48xf32, #tpu.memory_space<vmem>>, vector<1x3x48xf32>
    %566 = vector.shape_cast %565 : vector<1x3x48xf32> to vector<3x48xf32>
    %cst_488 = arith.constant dense<0.000000e+00> : vector<2x48xf32>
    %567 = tpu.matmul %564, %566, %cst_488 {dimension_numbers = #tpu.dot_dimension_numbers<[1], [0], [0], [1], [0, 0, 1, 1], [], []>} : vector<2x3xf32>, vector<3x48xf32>, vector<2x48xf32> -> vector<2x48xf32>
    %568 = arith.addf %561, %567 : vector<2x48xf32>
    %c1_489 = arith.constant 1 : index
    %c0_490 = arith.constant 0 : index
    %c0_491 = arith.constant 0 : index
    %569 = vector.load %arg5[%c1_489, %c0_490, %c0_491] : memref<16x2x32xf32, #tpu.memory_space<vmem>>, vector<1x2x32xf32>
    %570 = vector.shape_cast %569 : vector<1x2x32xf32> to vector<2x32xf32>
    %cst_492 = arith.constant dense<0.000000e+00> : vector<2x3xf32>
    %571 = tpu.matmul %570, %560, %cst_492 {dimension_numbers = #tpu.dot_dimension_numbers<[1], [0], [0], [1], [0, 0, 1, 1], [], []>} : vector<2x32xf32>, vector<32x3xf32>, vector<2x3xf32> -> vector<2x3xf32>
    %c1_493 = arith.constant 1 : index
    %c0_494 = arith.constant 0 : index
    %c0_495 = arith.constant 0 : index
    %572 = vector.load %arg39[%c1_493, %c0_494, %c0_495] : memref<16x3x48xf32, #tpu.memory_space<vmem>>, vector<1x3x48xf32>
    %573 = vector.shape_cast %572 : vector<1x3x48xf32> to vector<3x48xf32>
    %cst_496 = arith.constant dense<0.000000e+00> : vector<2x48xf32>
    %574 = tpu.matmul %571, %573, %cst_496 {dimension_numbers = #tpu.dot_dimension_numbers<[1], [0], [0], [1], [0, 0, 1, 1], [], []>} : vector<2x3xf32>, vector<3x48xf32>, vector<2x48xf32> -> vector<2x48xf32>
    %575 = arith.addf %568, %574 : vector<2x48xf32>
    %c2_497 = arith.constant 2 : index
    %c0_498 = arith.constant 0 : index
    %c0_499 = arith.constant 0 : index
    %576 = vector.load %arg5[%c2_497, %c0_498, %c0_499] : memref<16x2x32xf32, #tpu.memory_space<vmem>>, vector<1x2x32xf32>
    %577 = vector.shape_cast %576 : vector<1x2x32xf32> to vector<2x32xf32>
    %cst_500 = arith.constant dense<0.000000e+00> : vector<2x3xf32>
    %578 = tpu.matmul %577, %560, %cst_500 {dimension_numbers = #tpu.dot_dimension_numbers<[1], [0], [0], [1], [0, 0, 1, 1], [], []>} : vector<2x32xf32>, vector<32x3xf32>, vector<2x3xf32> -> vector<2x3xf32>
    %c2_501 = arith.constant 2 : index
    %c0_502 = arith.constant 0 : index
    %c0_503 = arith.constant 0 : index
    %579 = vector.load %arg39[%c2_501, %c0_502, %c0_503] : memref<16x3x48xf32, #tpu.memory_space<vmem>>, vector<1x3x48xf32>
    %580 = vector.shape_cast %579 : vector<1x3x48xf32> to vector<3x48xf32>
    %cst_504 = arith.constant dense<0.000000e+00> : vector<2x48xf32>
    %581 = tpu.matmul %578, %580, %cst_504 {dimension_numbers = #tpu.dot_dimension_numbers<[1], [0], [0], [1], [0, 0, 1, 1], [], []>} : vector<2x3xf32>, vector<3x48xf32>, vector<2x48xf32> -> vector<2x48xf32>
    %582 = arith.addf %575, %581 : vector<2x48xf32>
    %c3_505 = arith.constant 3 : index
    %c0_506 = arith.constant 0 : index
    %c0_507 = arith.constant 0 : index
    %583 = vector.load %arg5[%c3_505, %c0_506, %c0_507] : memref<16x2x32xf32, #tpu.memory_space<vmem>>, vector<1x2x32xf32>
    %584 = vector.shape_cast %583 : vector<1x2x32xf32> to vector<2x32xf32>
    %cst_508 = arith.constant dense<0.000000e+00> : vector<2x3xf32>
    %585 = tpu.matmul %584, %560, %cst_508 {dimension_numbers = #tpu.dot_dimension_numbers<[1], [0], [0], [1], [0, 0, 1, 1], [], []>} : vector<2x32xf32>, vector<32x3xf32>, vector<2x3xf32> -> vector<2x3xf32>
    %c3_509 = arith.constant 3 : index
    %c0_510 = arith.constant 0 : index
    %c0_511 = arith.constant 0 : index
    %586 = vector.load %arg39[%c3_509, %c0_510, %c0_511] : memref<16x3x48xf32, #tpu.memory_space<vmem>>, vector<1x3x48xf32>
    %587 = vector.shape_cast %586 : vector<1x3x48xf32> to vector<3x48xf32>
    %cst_512 = arith.constant dense<0.000000e+00> : vector<2x48xf32>
    %588 = tpu.matmul %585, %587, %cst_512 {dimension_numbers = #tpu.dot_dimension_numbers<[1], [0], [0], [1], [0, 0, 1, 1], [], []>} : vector<2x3xf32>, vector<3x48xf32>, vector<2x48xf32> -> vector<2x48xf32>
    %589 = arith.addf %582, %588 : vector<2x48xf32>
    %c4_513 = arith.constant 4 : index
    %c0_514 = arith.constant 0 : index
    %c0_515 = arith.constant 0 : index
    %590 = vector.load %arg5[%c4_513, %c0_514, %c0_515] : memref<16x2x32xf32, #tpu.memory_space<vmem>>, vector<1x2x32xf32>
    %591 = vector.shape_cast %590 : vector<1x2x32xf32> to vector<2x32xf32>
    %cst_516 = arith.constant dense<0.000000e+00> : vector<2x3xf32>
    %592 = tpu.matmul %591, %560, %cst_516 {dimension_numbers = #tpu.dot_dimension_numbers<[1], [0], [0], [1], [0, 0, 1, 1], [], []>} : vector<2x32xf32>, vector<32x3xf32>, vector<2x3xf32> -> vector<2x3xf32>
    %c4_517 = arith.constant 4 : index
    %c0_518 = arith.constant 0 : index
    %c0_519 = arith.constant 0 : index
    %593 = vector.load %arg39[%c4_517, %c0_518, %c0_519] : memref<16x3x48xf32, #tpu.memory_space<vmem>>, vector<1x3x48xf32>
    %594 = vector.shape_cast %593 : vector<1x3x48xf32> to vector<3x48xf32>
    %cst_520 = arith.constant dense<0.000000e+00> : vector<2x48xf32>
    %595 = tpu.matmul %592, %594, %cst_520 {dimension_numbers = #tpu.dot_dimension_numbers<[1], [0], [0], [1], [0, 0, 1, 1], [], []>} : vector<2x3xf32>, vector<3x48xf32>, vector<2x48xf32> -> vector<2x48xf32>
    %596 = arith.addf %589, %595 : vector<2x48xf32>
    %c5_521 = arith.constant 5 : index
    %c0_522 = arith.constant 0 : index
    %c0_523 = arith.constant 0 : index
    %597 = vector.load %arg5[%c5_521, %c0_522, %c0_523] : memref<16x2x32xf32, #tpu.memory_space<vmem>>, vector<1x2x32xf32>
    %598 = vector.shape_cast %597 : vector<1x2x32xf32> to vector<2x32xf32>
    %cst_524 = arith.constant dense<0.000000e+00> : vector<2x3xf32>
    %599 = tpu.matmul %598, %560, %cst_524 {dimension_numbers = #tpu.dot_dimension_numbers<[1], [0], [0], [1], [0, 0, 1, 1], [], []>} : vector<2x32xf32>, vector<32x3xf32>, vector<2x3xf32> -> vector<2x3xf32>
    %c5_525 = arith.constant 5 : index
    %c0_526 = arith.constant 0 : index
    %c0_527 = arith.constant 0 : index
    %600 = vector.load %arg39[%c5_525, %c0_526, %c0_527] : memref<16x3x48xf32, #tpu.memory_space<vmem>>, vector<1x3x48xf32>
    %601 = vector.shape_cast %600 : vector<1x3x48xf32> to vector<3x48xf32>
    %cst_528 = arith.constant dense<0.000000e+00> : vector<2x48xf32>
    %602 = tpu.matmul %599, %601, %cst_528 {dimension_numbers = #tpu.dot_dimension_numbers<[1], [0], [0], [1], [0, 0, 1, 1], [], []>} : vector<2x3xf32>, vector<3x48xf32>, vector<2x48xf32> -> vector<2x48xf32>
    %603 = arith.addf %596, %602 : vector<2x48xf32>
    %c6_529 = arith.constant 6 : index
    %c0_530 = arith.constant 0 : index
    %c0_531 = arith.constant 0 : index
    %604 = vector.load %arg5[%c6_529, %c0_530, %c0_531] : memref<16x2x32xf32, #tpu.memory_space<vmem>>, vector<1x2x32xf32>
    %605 = vector.shape_cast %604 : vector<1x2x32xf32> to vector<2x32xf32>
    %cst_532 = arith.constant dense<0.000000e+00> : vector<2x3xf32>
    %606 = tpu.matmul %605, %560, %cst_532 {dimension_numbers = #tpu.dot_dimension_numbers<[1], [0], [0], [1], [0, 0, 1, 1], [], []>} : vector<2x32xf32>, vector<32x3xf32>, vector<2x3xf32> -> vector<2x3xf32>
    %c6_533 = arith.constant 6 : index
    %c0_534 = arith.constant 0 : index
    %c0_535 = arith.constant 0 : index
    %607 = vector.load %arg39[%c6_533, %c0_534, %c0_535] : memref<16x3x48xf32, #tpu.memory_space<vmem>>, vector<1x3x48xf32>
    %608 = vector.shape_cast %607 : vector<1x3x48xf32> to vector<3x48xf32>
    %cst_536 = arith.constant dense<0.000000e+00> : vector<2x48xf32>
    %609 = tpu.matmul %606, %608, %cst_536 {dimension_numbers = #tpu.dot_dimension_numbers<[1], [0], [0], [1], [0, 0, 1, 1], [], []>} : vector<2x3xf32>, vector<3x48xf32>, vector<2x48xf32> -> vector<2x48xf32>
    %610 = arith.addf %603, %609 : vector<2x48xf32>
    %c7_537 = arith.constant 7 : index
    %c0_538 = arith.constant 0 : index
    %c0_539 = arith.constant 0 : index
    %611 = vector.load %arg5[%c7_537, %c0_538, %c0_539] : memref<16x2x32xf32, #tpu.memory_space<vmem>>, vector<1x2x32xf32>
    %612 = vector.shape_cast %611 : vector<1x2x32xf32> to vector<2x32xf32>
    %cst_540 = arith.constant dense<0.000000e+00> : vector<2x3xf32>
    %613 = tpu.matmul %612, %560, %cst_540 {dimension_numbers = #tpu.dot_dimension_numbers<[1], [0], [0], [1], [0, 0, 1, 1], [], []>} : vector<2x32xf32>, vector<32x3xf32>, vector<2x3xf32> -> vector<2x3xf32>
    %c7_541 = arith.constant 7 : index
    %c0_542 = arith.constant 0 : index
    %c0_543 = arith.constant 0 : index
    %614 = vector.load %arg39[%c7_541, %c0_542, %c0_543] : memref<16x3x48xf32, #tpu.memory_space<vmem>>, vector<1x3x48xf32>
    %615 = vector.shape_cast %614 : vector<1x3x48xf32> to vector<3x48xf32>
    %cst_544 = arith.constant dense<0.000000e+00> : vector<2x48xf32>
    %616 = tpu.matmul %613, %615, %cst_544 {dimension_numbers = #tpu.dot_dimension_numbers<[1], [0], [0], [1], [0, 0, 1, 1], [], []>} : vector<2x3xf32>, vector<3x48xf32>, vector<2x48xf32> -> vector<2x48xf32>
    %617 = arith.addf %610, %616 : vector<2x48xf32>
    %c8_545 = arith.constant 8 : index
    %c0_546 = arith.constant 0 : index
    %c0_547 = arith.constant 0 : index
    %618 = vector.load %arg5[%c8_545, %c0_546, %c0_547] : memref<16x2x32xf32, #tpu.memory_space<vmem>>, vector<1x2x32xf32>
    %619 = vector.shape_cast %618 : vector<1x2x32xf32> to vector<2x32xf32>
    %cst_548 = arith.constant dense<0.000000e+00> : vector<2x3xf32>
    %620 = tpu.matmul %619, %560, %cst_548 {dimension_numbers = #tpu.dot_dimension_numbers<[1], [0], [0], [1], [0, 0, 1, 1], [], []>} : vector<2x32xf32>, vector<32x3xf32>, vector<2x3xf32> -> vector<2x3xf32>
    %c8_549 = arith.constant 8 : index
    %c0_550 = arith.constant 0 : index
    %c0_551 = arith.constant 0 : index
    %621 = vector.load %arg39[%c8_549, %c0_550, %c0_551] : memref<16x3x48xf32, #tpu.memory_space<vmem>>, vector<1x3x48xf32>
    %622 = vector.shape_cast %621 : vector<1x3x48xf32> to vector<3x48xf32>
    %cst_552 = arith.constant dense<0.000000e+00> : vector<2x48xf32>
    %623 = tpu.matmul %620, %622, %cst_552 {dimension_numbers = #tpu.dot_dimension_numbers<[1], [0], [0], [1], [0, 0, 1, 1], [], []>} : vector<2x3xf32>, vector<3x48xf32>, vector<2x48xf32> -> vector<2x48xf32>
    %624 = arith.addf %617, %623 : vector<2x48xf32>
    %c9_553 = arith.constant 9 : index
    %c0_554 = arith.constant 0 : index
    %c0_555 = arith.constant 0 : index
    %625 = vector.load %arg5[%c9_553, %c0_554, %c0_555] : memref<16x2x32xf32, #tpu.memory_space<vmem>>, vector<1x2x32xf32>
    %626 = vector.shape_cast %625 : vector<1x2x32xf32> to vector<2x32xf32>
    %cst_556 = arith.constant dense<0.000000e+00> : vector<2x3xf32>
    %627 = tpu.matmul %626, %560, %cst_556 {dimension_numbers = #tpu.dot_dimension_numbers<[1], [0], [0], [1], [0, 0, 1, 1], [], []>} : vector<2x32xf32>, vector<32x3xf32>, vector<2x3xf32> -> vector<2x3xf32>
    %c9_557 = arith.constant 9 : index
    %c0_558 = arith.constant 0 : index
    %c0_559 = arith.constant 0 : index
    %628 = vector.load %arg39[%c9_557, %c0_558, %c0_559] : memref<16x3x48xf32, #tpu.memory_space<vmem>>, vector<1x3x48xf32>
    %629 = vector.shape_cast %628 : vector<1x3x48xf32> to vector<3x48xf32>
    %cst_560 = arith.constant dense<0.000000e+00> : vector<2x48xf32>
    %630 = tpu.matmul %627, %629, %cst_560 {dimension_numbers = #tpu.dot_dimension_numbers<[1], [0], [0], [1], [0, 0, 1, 1], [], []>} : vector<2x3xf32>, vector<3x48xf32>, vector<2x48xf32> -> vector<2x48xf32>
    %631 = arith.addf %624, %630 : vector<2x48xf32>
    %c10_561 = arith.constant 10 : index
    %c0_562 = arith.constant 0 : index
    %c0_563 = arith.constant 0 : index
    %632 = vector.load %arg5[%c10_561, %c0_562, %c0_563] : memref<16x2x32xf32, #tpu.memory_space<vmem>>, vector<1x2x32xf32>
    %633 = vector.shape_cast %632 : vector<1x2x32xf32> to vector<2x32xf32>
    %cst_564 = arith.constant dense<0.000000e+00> : vector<2x3xf32>
    %634 = tpu.matmul %633, %560, %cst_564 {dimension_numbers = #tpu.dot_dimension_numbers<[1], [0], [0], [1], [0, 0, 1, 1], [], []>} : vector<2x32xf32>, vector<32x3xf32>, vector<2x3xf32> -> vector<2x3xf32>
    %c10_565 = arith.constant 10 : index
    %c0_566 = arith.constant 0 : index
    %c0_567 = arith.constant 0 : index
    %635 = vector.load %arg39[%c10_565, %c0_566, %c0_567] : memref<16x3x48xf32, #tpu.memory_space<vmem>>, vector<1x3x48xf32>
    %636 = vector.shape_cast %635 : vector<1x3x48xf32> to vector<3x48xf32>
    %cst_568 = arith.constant dense<0.000000e+00> : vector<2x48xf32>
    %637 = tpu.matmul %634, %636, %cst_568 {dimension_numbers = #tpu.dot_dimension_numbers<[1], [0], [0], [1], [0, 0, 1, 1], [], []>} : vector<2x3xf32>, vector<3x48xf32>, vector<2x48xf32> -> vector<2x48xf32>
    %638 = arith.addf %631, %637 : vector<2x48xf32>
    %c11_569 = arith.constant 11 : index
    %c0_570 = arith.constant 0 : index
    %c0_571 = arith.constant 0 : index
    %639 = vector.load %arg5[%c11_569, %c0_570, %c0_571] : memref<16x2x32xf32, #tpu.memory_space<vmem>>, vector<1x2x32xf32>
    %640 = vector.shape_cast %639 : vector<1x2x32xf32> to vector<2x32xf32>
    %cst_572 = arith.constant dense<0.000000e+00> : vector<2x3xf32>
    %641 = tpu.matmul %640, %560, %cst_572 {dimension_numbers = #tpu.dot_dimension_numbers<[1], [0], [0], [1], [0, 0, 1, 1], [], []>} : vector<2x32xf32>, vector<32x3xf32>, vector<2x3xf32> -> vector<2x3xf32>
    %c11_573 = arith.constant 11 : index
    %c0_574 = arith.constant 0 : index
    %c0_575 = arith.constant 0 : index
    %642 = vector.load %arg39[%c11_573, %c0_574, %c0_575] : memref<16x3x48xf32, #tpu.memory_space<vmem>>, vector<1x3x48xf32>
    %643 = vector.shape_cast %642 : vector<1x3x48xf32> to vector<3x48xf32>
    %cst_576 = arith.constant dense<0.000000e+00> : vector<2x48xf32>
    %644 = tpu.matmul %641, %643, %cst_576 {dimension_numbers = #tpu.dot_dimension_numbers<[1], [0], [0], [1], [0, 0, 1, 1], [], []>} : vector<2x3xf32>, vector<3x48xf32>, vector<2x48xf32> -> vector<2x48xf32>
    %645 = arith.addf %638, %644 : vector<2x48xf32>
    %c12_577 = arith.constant 12 : index
    %c0_578 = arith.constant 0 : index
    %c0_579 = arith.constant 0 : index
    %646 = vector.load %arg5[%c12_577, %c0_578, %c0_579] : memref<16x2x32xf32, #tpu.memory_space<vmem>>, vector<1x2x32xf32>
    %647 = vector.shape_cast %646 : vector<1x2x32xf32> to vector<2x32xf32>
    %cst_580 = arith.constant dense<0.000000e+00> : vector<2x3xf32>
    %648 = tpu.matmul %647, %560, %cst_580 {dimension_numbers = #tpu.dot_dimension_numbers<[1], [0], [0], [1], [0, 0, 1, 1], [], []>} : vector<2x32xf32>, vector<32x3xf32>, vector<2x3xf32> -> vector<2x3xf32>
    %c12_581 = arith.constant 12 : index
    %c0_582 = arith.constant 0 : index
    %c0_583 = arith.constant 0 : index
    %649 = vector.load %arg39[%c12_581, %c0_582, %c0_583] : memref<16x3x48xf32, #tpu.memory_space<vmem>>, vector<1x3x48xf32>
    %650 = vector.shape_cast %649 : vector<1x3x48xf32> to vector<3x48xf32>
    %cst_584 = arith.constant dense<0.000000e+00> : vector<2x48xf32>
    %651 = tpu.matmul %648, %650, %cst_584 {dimension_numbers = #tpu.dot_dimension_numbers<[1], [0], [0], [1], [0, 0, 1, 1], [], []>} : vector<2x3xf32>, vector<3x48xf32>, vector<2x48xf32> -> vector<2x48xf32>
    %652 = arith.addf %645, %651 : vector<2x48xf32>
    %c13_585 = arith.constant 13 : index
    %c0_586 = arith.constant 0 : index
    %c0_587 = arith.constant 0 : index
    %653 = vector.load %arg5[%c13_585, %c0_586, %c0_587] : memref<16x2x32xf32, #tpu.memory_space<vmem>>, vector<1x2x32xf32>
    %654 = vector.shape_cast %653 : vector<1x2x32xf32> to vector<2x32xf32>
    %cst_588 = arith.constant dense<0.000000e+00> : vector<2x3xf32>
    %655 = tpu.matmul %654, %560, %cst_588 {dimension_numbers = #tpu.dot_dimension_numbers<[1], [0], [0], [1], [0, 0, 1, 1], [], []>} : vector<2x32xf32>, vector<32x3xf32>, vector<2x3xf32> -> vector<2x3xf32>
    %c13_589 = arith.constant 13 : index
    %c0_590 = arith.constant 0 : index
    %c0_591 = arith.constant 0 : index
    %656 = vector.load %arg39[%c13_589, %c0_590, %c0_591] : memref<16x3x48xf32, #tpu.memory_space<vmem>>, vector<1x3x48xf32>
    %657 = vector.shape_cast %656 : vector<1x3x48xf32> to vector<3x48xf32>
    %cst_592 = arith.constant dense<0.000000e+00> : vector<2x48xf32>
    %658 = tpu.matmul %655, %657, %cst_592 {dimension_numbers = #tpu.dot_dimension_numbers<[1], [0], [0], [1], [0, 0, 1, 1], [], []>} : vector<2x3xf32>, vector<3x48xf32>, vector<2x48xf32> -> vector<2x48xf32>
    %659 = arith.addf %652, %658 : vector<2x48xf32>
    %c14_593 = arith.constant 14 : index
    %c0_594 = arith.constant 0 : index
    %c0_595 = arith.constant 0 : index
    %660 = vector.load %arg5[%c14_593, %c0_594, %c0_595] : memref<16x2x32xf32, #tpu.memory_space<vmem>>, vector<1x2x32xf32>
    %661 = vector.shape_cast %660 : vector<1x2x32xf32> to vector<2x32xf32>
    %cst_596 = arith.constant dense<0.000000e+00> : vector<2x3xf32>
    %662 = tpu.matmul %661, %560, %cst_596 {dimension_numbers = #tpu.dot_dimension_numbers<[1], [0], [0], [1], [0, 0, 1, 1], [], []>} : vector<2x32xf32>, vector<32x3xf32>, vector<2x3xf32> -> vector<2x3xf32>
    %c14_597 = arith.constant 14 : index
    %c0_598 = arith.constant 0 : index
    %c0_599 = arith.constant 0 : index
    %663 = vector.load %arg39[%c14_597, %c0_598, %c0_599] : memref<16x3x48xf32, #tpu.memory_space<vmem>>, vector<1x3x48xf32>
    %664 = vector.shape_cast %663 : vector<1x3x48xf32> to vector<3x48xf32>
    %cst_600 = arith.constant dense<0.000000e+00> : vector<2x48xf32>
    %665 = tpu.matmul %662, %664, %cst_600 {dimension_numbers = #tpu.dot_dimension_numbers<[1], [0], [0], [1], [0, 0, 1, 1], [], []>} : vector<2x3xf32>, vector<3x48xf32>, vector<2x48xf32> -> vector<2x48xf32>
    %666 = arith.addf %659, %665 : vector<2x48xf32>
    %c15_601 = arith.constant 15 : index
    %c0_602 = arith.constant 0 : index
    %c0_603 = arith.constant 0 : index
    %667 = vector.load %arg5[%c15_601, %c0_602, %c0_603] : memref<16x2x32xf32, #tpu.memory_space<vmem>>, vector<1x2x32xf32>
    %668 = vector.shape_cast %667 : vector<1x2x32xf32> to vector<2x32xf32>
    %cst_604 = arith.constant dense<0.000000e+00> : vector<2x3xf32>
    %669 = tpu.matmul %668, %560, %cst_604 {dimension_numbers = #tpu.dot_dimension_numbers<[1], [0], [0], [1], [0, 0, 1, 1], [], []>} : vector<2x32xf32>, vector<32x3xf32>, vector<2x3xf32> -> vector<2x3xf32>
    %c15_605 = arith.constant 15 : index
    %c0_606 = arith.constant 0 : index
    %c0_607 = arith.constant 0 : index
    %670 = vector.load %arg39[%c15_605, %c0_606, %c0_607] : memref<16x3x48xf32, #tpu.memory_space<vmem>>, vector<1x3x48xf32>
    %671 = vector.shape_cast %670 : vector<1x3x48xf32> to vector<3x48xf32>
    %cst_608 = arith.constant dense<0.000000e+00> : vector<2x48xf32>
    %672 = tpu.matmul %669, %671, %cst_608 {dimension_numbers = #tpu.dot_dimension_numbers<[1], [0], [0], [1], [0, 0, 1, 1], [], []>} : vector<2x3xf32>, vector<3x48xf32>, vector<2x48xf32> -> vector<2x48xf32>
    %673 = arith.addf %666, %672 : vector<2x48xf32>
    %c0_609 = arith.constant 0 : index
    %c0_610 = arith.constant 0 : index
    %674 = vector.load %arg40[%c0_609, %c0_610] : memref<1x48xf32, #tpu.memory_space<vmem>>, vector<1x48xf32>
    %675 = vector.broadcast %674 : vector<1x48xf32> to vector<2x48xf32>
    %676 = arith.addf %673, %675 : vector<2x48xf32>
    %c0_611 = arith.constant 0 : index
    %c0_612 = arith.constant 0 : index
    %677 = vector.load %arg41[%c0_611, %c0_612] : memref<2x48xf32, #tpu.memory_space<vmem>>, vector<2x48xf32>
    tpu.vector_store %arg41[%c0_611, %c0_612], %676 {strides = array<i32>} : memref<2x48xf32, #tpu.memory_space<vmem>>, vector<2x48xf32>,
    %c0_613 = arith.constant 0 : index
    %c0_614 = arith.constant 0 : index
    %678 = vector.load %arg42[%c0_613, %c0_614] : memref<2x8xf32, #tpu.memory_space<vmem>>, vector<2x8xf32>
    tpu.vector_store %arg42[%c0_613, %c0_614], %314 {strides = array<i32>} : memref<2x8xf32, #tpu.memory_space<vmem>>, vector<2x8xf32>,
    %c0_615 = arith.constant 0 : index
    %c0_616 = arith.constant 0 : index
    %679 = vector.load %arg43[%c0_615, %c0_616] : memref<2x8xf32, #tpu.memory_space<vmem>>, vector<2x8xf32>
    tpu.vector_store %arg43[%c0_615, %c0_616], %317 {strides = array<i32>} : memref<2x8xf32, #tpu.memory_space<vmem>>, vector<2x8xf32>,
    %c0_617 = arith.constant 0 : index
    %c0_618 = arith.constant 0 : index
    %680 = vector.load %arg44[%c0_617, %c0_618] : memref<2x8xf32, #tpu.memory_space<vmem>>, vector<2x8xf32>
    tpu.vector_store %arg44[%c0_617, %c0_618], %321 {strides = array<i32>} : memref<2x8xf32, #tpu.memory_space<vmem>>, vector<2x8xf32>,
    return
  }
  func.func @transform_0(%arg0: i32) -> (i32, i32) {
    %c0_i32 = arith.constant 0 : i32
    %c0_i32_0 = arith.constant 0 : i32
    %c0_i32_1 = arith.constant 0 : i32
    return %c0_i32, %c0_i32_0 : i32, i32
  }
  func.func @transform_1(%arg0: i32) -> (i32, i32) {
    %c0_i32 = arith.constant 0 : i32
    %c0_i32_0 = arith.constant 0 : i32
    %c0_i32_1 = arith.constant 0 : i32
    return %c0_i32, %c0_i32_0 : i32, i32
  }
  func.func @transform_2(%arg0: i32) -> (i32, i32) {
    %c0_i32 = arith.constant 0 : i32
    %c0_i32_0 = arith.constant 0 : i32
    %c0_i32_1 = arith.constant 0 : i32
    return %c0_i32, %c0_i32_0 : i32, i32
  }
  func.func @transform_3(%arg0: i32) -> (i32, i32) {
    %c0_i32 = arith.constant 0 : i32
    %c0_i32_0 = arith.constant 0 : i32
    %c0_i32_1 = arith.constant 0 : i32
    return %c0_i32, %c0_i32_0 : i32, i32
  }
  func.func @transform_4(%arg0: i32) -> (i32, i32, i32) {
    %c0_i32 = arith.constant 0 : i32
    %c0_i32_0 = arith.constant 0 : i32
    %c0_i32_1 = arith.constant 0 : i32
    %c0_i32_2 = arith.constant 0 : i32
    return %c0_i32, %c0_i32_0, %c0_i32_1 : i32, i32, i32
  }
  func.func @transform_5(%arg0: i32) -> (i32, i32, i32) {
    %c0_i32 = arith.constant 0 : i32
    %c0_i32_0 = arith.constant 0 : i32
    %c0_i32_1 = arith.constant 0 : i32
    %c0_i32_2 = arith.constant 0 : i32
    return %c0_i32, %c0_i32_0, %c0_i32_1 : i32, i32, i32
  }
  func.func @transform_6(%arg0: i32) -> (i32, i32) {
    %c0_i32 = arith.constant 0 : i32
    %c0_i32_0 = arith.constant 0 : i32
    %c0_i32_1 = arith.constant 0 : i32
    return %c0_i32, %c0_i32_0 : i32, i32
  }
  func.func @transform_7(%arg0: i32) -> (i32, i32) {
    %c0_i32 = arith.constant 0 : i32
    %c0_i32_0 = arith.constant 0 : i32
    %c0_i32_1 = arith.constant 0 : i32
    return %c0_i32, %c0_i32_0 : i32, i32
  }
  func.func @transform_8(%arg0: i32) -> (i32, i32, i32) {
    %c0_i32 = arith.constant 0 : i32
    %c0_i32_0 = arith.constant 0 : i32
    %c0_i32_1 = arith.constant 0 : i32
    %c0_i32_2 = arith.constant 0 : i32
    return %c0_i32, %c0_i32_0, %c0_i32_1 : i32, i32, i32
  }
  func.func @transform_9(%arg0: i32) -> (i32, i32) {
    %c0_i32 = arith.constant 0 : i32
    %c0_i32_0 = arith.constant 0 : i32
    %c0_i32_1 = arith.constant 0 : i32
    return %c0_i32, %c0_i32_0 : i32, i32
  }
  func.func @transform_10(%arg0: i32) -> (i32, i32) {
    %c0_i32 = arith.constant 0 : i32
    %c0_i32_0 = arith.constant 0 : i32
    %c0_i32_1 = arith.constant 0 : i32
    return %c0_i32, %c0_i32_0 : i32, i32
  }
  func.func @transform_11(%arg0: i32) -> (i32, i32) {
    %c0_i32 = arith.constant 0 : i32
    %c0_i32_0 = arith.constant 0 : i32
    %c0_i32_1 = arith.constant 0 : i32
    return %c0_i32, %c0_i32_0 : i32, i32
  }
  func.func @transform_12(%arg0: i32) -> (i32, i32, i32) {
    %c0_i32 = arith.constant 0 : i32
    %c0_i32_0 = arith.constant 0 : i32
    %c0_i32_1 = arith.constant 0 : i32
    %c0_i32_2 = arith.constant 0 : i32
    return %c0_i32, %c0_i32_0, %c0_i32_1 : i32, i32, i32
  }
  func.func @transform_13(%arg0: i32) -> (i32, i32) {
    %c0_i32 = arith.constant 0 : i32
    %c0_i32_0 = arith.constant 0 : i32
    %c0_i32_1 = arith.constant 0 : i32
    return %c0_i32, %c0_i32_0 : i32, i32
  }
  func.func @transform_14(%arg0: i32) -> (i32, i32) {
    %c0_i32 = arith.constant 0 : i32
    %c0_i32_0 = arith.constant 0 : i32
    %c0_i32_1 = arith.constant 0 : i32
    return %c0_i32, %c0_i32_0 : i32, i32
  }
  func.func @transform_15(%arg0: i32) -> (i32, i32) {
    %c0_i32 = arith.constant 0 : i32
    %c0_i32_0 = arith.constant 0 : i32
    %c0_i32_1 = arith.constant 0 : i32
    return %c0_i32, %c0_i32_0 : i32, i32
  }
  func.func @transform_16(%arg0: i32) -> (i32, i32, i32) {
    %c0_i32 = arith.constant 0 : i32
    %c0_i32_0 = arith.constant 0 : i32
    %c0_i32_1 = arith.constant 0 : i32
    %c0_i32_2 = arith.constant 0 : i32
    return %c0_i32, %c0_i32_0, %c0_i32_1 : i32, i32, i32
  }
  func.func @transform_17(%arg0: i32) -> (i32, i32) {
    %c0_i32 = arith.constant 0 : i32
    %c0_i32_0 = arith.constant 0 : i32
    %c0_i32_1 = arith.constant 0 : i32
    return %c0_i32, %c0_i32_0 : i32, i32
  }
  func.func @transform_18(%arg0: i32) -> (i32, i32) {
    %c0_i32 = arith.constant 0 : i32
    %c0_i32_0 = arith.constant 0 : i32
    %c0_i32_1 = arith.constant 0 : i32
    return %c0_i32, %c0_i32_0 : i32, i32
  }
  func.func @transform_19(%arg0: i32) -> (i32, i32) {
    %c0_i32 = arith.constant 0 : i32
    %c0_i32_0 = arith.constant 0 : i32
    %c0_i32_1 = arith.constant 0 : i32
    return %c0_i32, %c0_i32_0 : i32, i32
  }
  func.func @transform_20(%arg0: i32) -> (i32, i32, i32) {
    %c0_i32 = arith.constant 0 : i32
    %c0_i32_0 = arith.constant 0 : i32
    %c0_i32_1 = arith.constant 0 : i32
    %c0_i32_2 = arith.constant 0 : i32
    return %c0_i32, %c0_i32_0, %c0_i32_1 : i32, i32, i32
  }
  func.func @transform_21(%arg0: i32) -> (i32, i32) {
    %c0_i32 = arith.constant 0 : i32
    %c0_i32_0 = arith.constant 0 : i32
    %c0_i32_1 = arith.constant 0 : i32
    return %c0_i32, %c0_i32_0 : i32, i32
  }
  func.func @transform_22(%arg0: i32) -> (i32, i32, i32) {
    %c0_i32 = arith.constant 0 : i32
    %c0_i32_0 = arith.constant 0 : i32
    %c0_i32_1 = arith.constant 0 : i32
    %c0_i32_2 = arith.constant 0 : i32
    return %c0_i32, %c0_i32_0, %c0_i32_1 : i32, i32, i32
  }
  func.func @transform_23(%arg0: i32) -> (i32, i32) {
    %c0_i32 = arith.constant 0 : i32
    %c0_i32_0 = arith.constant 0 : i32
    %c0_i32_1 = arith.constant 0 : i32
    return %c0_i32, %c0_i32_0 : i32, i32
  }
  func.func @transform_24(%arg0: i32) -> (i32, i32, i32) {
    %c0_i32 = arith.constant 0 : i32
    %c0_i32_0 = arith.constant 0 : i32
    %c0_i32_1 = arith.constant 0 : i32
    %c0_i32_2 = arith.constant 0 : i32
    return %c0_i32, %c0_i32_0, %c0_i32_1 : i32, i32, i32
  }
  func.func @transform_25(%arg0: i32) -> (i32, i32) {
    %c0_i32 = arith.constant 0 : i32
    %c0_i32_0 = arith.constant 0 : i32
    %c0_i32_1 = arith.constant 0 : i32
    return %c0_i32, %c0_i32_0 : i32, i32
  }
  func.func @transform_26(%arg0: i32) -> (i32, i32, i32) {
    %c0_i32 = arith.constant 0 : i32
    %c0_i32_0 = arith.constant 0 : i32
    %c0_i32_1 = arith.constant 0 : i32
    %c0_i32_2 = arith.constant 0 : i32
    return %c0_i32, %c0_i32_0, %c0_i32_1 : i32, i32, i32
  }
  func.func @transform_27(%arg0: i32) -> (i32, i32) {
    %c0_i32 = arith.constant 0 : i32
    %c0_i32_0 = arith.constant 0 : i32
    %c0_i32_1 = arith.constant 0 : i32
    return %c0_i32, %c0_i32_0 : i32, i32
  }
  func.func @transform_28(%arg0: i32) -> (i32, i32) {
    %c0_i32 = arith.constant 0 : i32
    %c0_i32_0 = arith.constant 0 : i32
    %c0_i32_1 = arith.constant 0 : i32
    return %c0_i32, %c0_i32_0 : i32, i32
  }
  func.func @transform_29(%arg0: i32) -> (i32, i32) {
    %c0_i32 = arith.constant 0 : i32
    %c0_i32_0 = arith.constant 0 : i32
    %c0_i32_1 = arith.constant 0 : i32
    return %c0_i32, %c0_i32_0 : i32, i32
  }
  func.func @transform_30(%arg0: i32) -> (i32, i32, i32) {
    %c0_i32 = arith.constant 0 : i32
    %c0_i32_0 = arith.constant 0 : i32
    %c0_i32_1 = arith.constant 0 : i32
    %c0_i32_2 = arith.constant 0 : i32
    return %c0_i32, %c0_i32_0, %c0_i32_1 : i32, i32, i32
  }
  func.func @transform_31(%arg0: i32) -> (i32, i32) {
    %c0_i32 = arith.constant 0 : i32
    %c0_i32_0 = arith.constant 0 : i32
    %c0_i32_1 = arith.constant 0 : i32
    return %c0_i32, %c0_i32_0 : i32, i32
  }
  func.func @transform_32(%arg0: i32) -> (i32, i32) {
    %c0_i32 = arith.constant 0 : i32
    %c0_i32_0 = arith.constant 0 : i32
    %c0_i32_1 = arith.constant 0 : i32
    return %c0_i32, %c0_i32_0 : i32, i32
  }
  func.func @transform_33(%arg0: i32) -> (i32, i32) {
    %c0_i32 = arith.constant 0 : i32
    %c0_i32_0 = arith.constant 0 : i32
    %c0_i32_1 = arith.constant 0 : i32
    return %c0_i32, %c0_i32_0 : i32, i32
  }
  func.func @transform_34(%arg0: i32) -> (i32, i32, i32) {
    %c0_i32 = arith.constant 0 : i32
    %c0_i32_0 = arith.constant 0 : i32
    %c0_i32_1 = arith.constant 0 : i32
    %c0_i32_2 = arith.constant 0 : i32
    return %c0_i32, %c0_i32_0, %c0_i32_1 : i32, i32, i32
  }
  func.func @transform_35(%arg0: i32) -> (i32, i32) {
    %c0_i32 = arith.constant 0 : i32
    %c0_i32_0 = arith.constant 0 : i32
    %c0_i32_1 = arith.constant 0 : i32
    return %c0_i32, %c0_i32_0 : i32, i32
  }
  func.func @transform_36(%arg0: i32) -> (i32, i32) {
    %c0_i32 = arith.constant 0 : i32
    %c0_i32_0 = arith.constant 0 : i32
    %c0_i32_1 = arith.constant 0 : i32
    return %c0_i32, %c0_i32_0 : i32, i32
  }
  func.func @transform_37(%arg0: i32) -> (i32, i32) {
    %c0_i32 = arith.constant 0 : i32
    %c0_i32_0 = arith.constant 0 : i32
    %c0_i32_1 = arith.constant 0 : i32
    return %c0_i32, %c0_i32_0 : i32, i32
  }
  func.func @transform_38(%arg0: i32) -> (i32, i32, i32) {
    %c0_i32 = arith.constant 0 : i32
    %c0_i32_0 = arith.constant 0 : i32
    %c0_i32_1 = arith.constant 0 : i32
    %c0_i32_2 = arith.constant 0 : i32
    return %c0_i32, %c0_i32_0, %c0_i32_1 : i32, i32, i32
  }
  func.func @transform_39(%arg0: i32) -> (i32, i32) {
    %c0_i32 = arith.constant 0 : i32
    %c0_i32_0 = arith.constant 0 : i32
    %c0_i32_1 = arith.constant 0 : i32
    return %c0_i32, %c0_i32_0 : i32, i32
  }
  func.func @transform_40(%arg0: i32) -> (i32, i32) {
    %c0_i32 = arith.constant 0 : i32
    %c0_i32_0 = arith.constant 0 : i32
    %c0_i32_1 = arith.constant 0 : i32
    return %c0_i32, %c0_i32_0 : i32, i32
  }
  func.func @transform_41(%arg0: i32) -> (i32, i32) {
    %c0_i32 = arith.constant 0 : i32
    %c0_i32_0 = arith.constant 0 : i32
    %c0_i32_1 = arith.constant 0 : i32
    return %c0_i32, %c0_i32_0 : i32, i32
  }
  func.func @transform_42(%arg0: i32) -> (i32, i32) {
    %c0_i32 = arith.constant 0 : i32
    %c0_i32_0 = arith.constant 0 : i32
    %c0_i32_1 = arith.constant 0 : i32
    return %c0_i32, %c0_i32_0 : i32, i32
  }
  func.func @transform_43(%arg0: i32) -> (i32, i32) {
    %c0_i32 = arith.constant 0 : i32
    %c0_i32_0 = arith.constant 0 : i32
    %c0_i32_1 = arith.constant 0 : i32
    return %c0_i32, %c0_i32_0 : i32, i32
  }
}

</mosaic_0001>

<llo_original>
// kernel: _run.1
$region0: #{_run.1}
  #allocation0 [shape = 'u32[]', space=smem, size = 0x4, offset = 0x4, fixed_abs, tag = 'smem constant byte address 0x4 - core index']
  #allocation1 [shape = 'u32[72,128]{1,0:T(1,128)}', space=vmem, size = 0x9000, scoped, tag = 'internal scratch']
  %s0 = inlined_call_operand.smem [shape: u32[44], index: -1, kind: input, shape index: {}]
  %s1 = sld [smem:[%s0]]
  %s2 = scalar_lea.smem %s0, 1
  %s3 = sld [smem:[%s2]]
  %s4 = scalar_lea.smem %s0, 2
  %s5 = sld [smem:[%s4]]
  %s6 = scalar_lea.smem %s0, 3
  %s7 = sld [smem:[%s6]]
  %s8 = scalar_lea.smem %s0, 4
  %s9 = sld [smem:[%s8]]
  %s10 = scalar_lea.smem %s0, 5
  %s11 = sld [smem:[%s10]]
  %s12 = scalar_lea.smem %s0, 6
  %s13 = sld [smem:[%s12]]
  %s14 = scalar_lea.smem %s0, 7
  %s15 = sld [smem:[%s14]]
  %s16 = scalar_lea.smem %s0, 8
  %s17 = sld [smem:[%s16]]
  %s18 = scalar_lea.smem %s0, 9
  %s19 = sld [smem:[%s18]]
  %s20 = scalar_lea.smem %s0, 10
  %s21 = sld [smem:[%s20]]
  %s22 = scalar_lea.smem %s0, 11
  %s23 = sld [smem:[%s22]]
  %s24 = scalar_lea.smem %s0, 12
  %s25 = sld [smem:[%s24]]
  %s26 = scalar_lea.smem %s0, 13
  %s27 = sld [smem:[%s26]]
  %s28 = scalar_lea.smem %s0, 14
  %s29 = sld [smem:[%s28]]
  %s30 = scalar_lea.smem %s0, 15
  %s31 = sld [smem:[%s30]]
  %s32 = scalar_lea.smem %s0, 16
  %s33 = sld [smem:[%s32]]
  %s34 = scalar_lea.smem %s0, 17
  %s35 = sld [smem:[%s34]]
  %s36 = scalar_lea.smem %s0, 18
  %s37 = sld [smem:[%s36]]
  %s38 = scalar_lea.smem %s0, 19
  %s39 = sld [smem:[%s38]]
  %s40 = scalar_lea.smem %s0, 20
  %s41 = sld [smem:[%s40]]
  %s42 = scalar_lea.smem %s0, 21
  %s43 = sld [smem:[%s42]]
  %s44 = scalar_lea.smem %s0, 22
  %s45 = sld [smem:[%s44]]
  %s46 = scalar_lea.smem %s0, 23
  %s47 = sld [smem:[%s46]]
  %s48 = scalar_lea.smem %s0, 24
  %s49 = sld [smem:[%s48]]
  %s50 = scalar_lea.smem %s0, 25
  %s51 = sld [smem:[%s50]]
  %s52 = scalar_lea.smem %s0, 26
  %s53 = sld [smem:[%s52]]
  %s54 = scalar_lea.smem %s0, 27
  %s55 = sld [smem:[%s54]]
  %s56 = scalar_lea.smem %s0, 28
  %s57 = sld [smem:[%s56]]
  %s58 = scalar_lea.smem %s0, 29
  %s59 = sld [smem:[%s58]]
  %s60 = scalar_lea.smem %s0, 30
  %s61 = sld [smem:[%s60]]
  %s62 = scalar_lea.smem %s0, 31
  %s63 = sld [smem:[%s62]]
  %s64 = scalar_lea.smem %s0, 32
  %s65 = sld [smem:[%s64]]
  %s66 = scalar_lea.smem %s0, 33
  %s67 = sld [smem:[%s66]]
  %s68 = scalar_lea.smem %s0, 34
  %s69 = sld [smem:[%s68]]
  %s70 = scalar_lea.smem %s0, 35
  %s71 = sld [smem:[%s70]]
  %s72 = scalar_lea.smem %s0, 36
  %s73 = sld [smem:[%s72]]
  %s74 = scalar_lea.smem %s0, 37
  %s75 = sld [smem:[%s74]]
  %s76 = scalar_lea.smem %s0, 38
  %s77 = sld [smem:[%s76]]
  %s78 = scalar_lea.smem %s0, 39
  %s79 = sld [smem:[%s78]]
  %s80 = scalar_lea.smem %s0, 40
  %s81 = sld [smem:[%s80]]
  %s82 = scalar_lea.smem %s0, 41
  %s83 = sld [smem:[%s82]]
  %s84 = scalar_lea.smem %s0, 42
  %s85 = sld [smem:[%s84]]
  %s86 = scalar_lea.smem %s0, 43
  %s87 = sld [smem:[%s86]]
  %88 = xla_tuple %s81, %s83, %s85, %s87
  %s89 = sld [smem:[#allocation0]]
  $region250: #{_run.1} parent=0
    _
  %s91 = ssub.s32 1, %s89
  %s92 = scalar_select 0, %s91, %s89
  $region1: #{_run.1} parent=0
    #allocation2 [shape = 'u8[16384]{0}', space=vmem, size = 0x4000, scoped, tag = 'input window, operand 2, single buffered']
    #allocation3 [shape = 's32[1]{0}', space=sflag, size = 0x4, scoped, tag = 'scoped memory for _run.1']
    #allocation4 [shape = 's32[1]{0}', space=sflag, size = 0x4, scoped, tag = 'scoped memory for _run.1']
    #allocation5 [shape = 'u8[16384]{0}', space=vmem, size = 0x4000, scoped, tag = 'input window, operand 3, single buffered']
    #allocation6 [shape = 's32[1]{0}', space=sflag, size = 0x4, scoped, tag = 'scoped memory for _run.1']
    #allocation7 [shape = 'u8[12288]{0}', space=vmem, size = 0x3000, scoped, tag = 'input window, operand 8, single buffered']
    #allocation8 [shape = 'u8[512]{0}', space=vmem, size = 0x400, scoped, tag = 'input window, operand 9, single buffered']
    #allocation9 [shape = 's32[1]{0}', space=sflag, size = 0x4, scoped, tag = 'scoped memory for _run.1']
    #allocation10 [shape = 'u8[512]{0}', space=vmem, size = 0x400, scoped, tag = 'input window, operand 10, single buffered']
    #allocation11 [shape = 'u8[512]{0}', space=vmem, size = 0x400, scoped, tag = 'input window, operand 11, single buffered']
    #allocation12 [shape = 's32[1]{0}', space=sflag, size = 0x4, scoped, tag = 'scoped memory for _run.1']
    #allocation13 [shape = 'u8[12288]{0}', space=vmem, size = 0x3000, scoped, tag = 'input window, operand 12, single buffered']
    #allocation14 [shape = 'u8[512]{0}', space=vmem, size = 0x400, scoped, tag = 'input window, operand 13, single buffered']
    #allocation15 [shape = 's32[1]{0}', space=sflag, size = 0x4, scoped, tag = 'scoped memory for _run.1']
    #allocation16 [shape = 'u8[512]{0}', space=vmem, size = 0x400, scoped, tag = 'input window, operand 14, single buffered']
    #allocation17 [shape = 'u8[24576]{0}', space=vmem, size = 0x6000, scoped, tag = 'input window, operand 26, single buffered']
    #allocation18 [shape = 's32[1]{0}', space=sflag, size = 0x4, scoped, tag = 'scoped memory for _run.1']
    #allocation19 [shape = 'u8[512]{0}', space=vmem, size = 0x400, scoped, tag = 'input window, operand 33, single buffered']
    #allocation20 [shape = 'u8[512]{0}', space=vmem, size = 0x400, scoped, tag = 'input window, operand 35, single buffered']
    #allocation21 [shape = 's32[1]{0}', space=sflag, size = 0x4, scoped, tag = 'scoped memory for _run.1']
    #allocation22 [shape = 'u8[512]{0}', space=vmem, size = 0x400, scoped, tag = 'input window, operand 36, single buffered']
    #allocation23 [shape = 'u8[512]{0}', space=vmem, size = 0x400, scoped, tag = 'input window, operand 37, single buffered']
    #allocation24 [shape = 's32[1]{0}', space=sflag, size = 0x4, scoped, tag = 'scoped memory for _run.1']
    #allocation25 [shape = 'u8[1024]{0}', space=vmem, size = 0x400, scoped, tag = 'output window, operand 0, single buffered']
    #allocation26 [shape = 'u8[1024]{0}', space=vmem, size = 0x400, scoped, tag = 'output window, operand 1, single buffered']
    #allocation27 [shape = 's32[1]{0}', space=sflag, size = 0x4, scoped, tag = 'scoped memory for _run.1']
    #allocation28 [shape = 'u8[1024]{0}', space=vmem, size = 0x400, scoped, tag = 'output window, operand 2, single buffered']
    #allocation29 [shape = 'u8[1024]{0}', space=vmem, size = 0x400, scoped, tag = 'output window, operand 3, single buffered']
    #allocation30 [shape = 's32[1]{0}', space=sflag, size = 0x4, scoped, tag = 'scoped memory for _run.1']
    %93 = vsyncpa [#allocation3], 0
    %94 = vsyncpa [#allocation6], 0
    %95 = vsyncpa [#allocation9], 0
    %96 = vsyncpa [#allocation12], 0
    %97 = vsyncpa [#allocation15], 0
    %98 = vsyncpa [#allocation18], 0
    %99 = vsyncpa [#allocation21], 0
    %100 = vsyncpa [#allocation24], 0
    %101 = vsyncpa [#allocation4], 0
    %102 = vsyncpa [#allocation27], 0
    %103 = vsyncpa [#allocation30], 0
    // Predicated region
    $region2: #{_run.1} parent=1 // pred_check
      _
    $region3: #{_run.1} parent=1 // pred_check_branch
      %105 = sbr.rel (0) target = $region5
    $region4: #{_run.1} parent=1 // pred_region
      _
    $region5: #{_run.1} parent=1 // pred_fallthru
      _
    // Predicated region
    $region6: #{_run.1} parent=1 // pred_check
      _
    $region7: #{_run.1} parent=1 // pred_check_branch
      %107 = sbr.rel (0) target = $region9
    $region8: #{_run.1} parent=1 // pred_region
      _
    $region9: #{_run.1} parent=1 // pred_fallthru
      _
    // Predicated region
    $region10: #{_run.1} parent=1 // pred_check
      _
    $region11: #{_run.1} parent=1 // pred_check_branch
      %109 = sbr.rel (0) target = $region13
    $region12: #{_run.1} parent=1 // pred_region
      %111 = vsyncadd [#allocation3], 0
      %s112 = sshll.u32 %s5, 4
      %s113 = int_to_ptr.hbm [resolvable:$true] %s112
      %s114 = sshll.u32 [#allocation2], 4
      %s115 = int_to_ptr.vmem [resolvable:$true] %s114
      %120 = dma.hbm_to_vmem [thread:$0]  %s113, 512, %s115, [#allocation3], 128, 128, 8
    $region13: #{_run.1} parent=1 // pred_fallthru
      _
    // Predicated region
    $region14: #{_run.1} parent=1 // pred_check
      _
    $region15: #{_run.1} parent=1 // pred_check_branch
      %122 = sbr.rel (0) target = $region17
    $region16: #{_run.1} parent=1 // pred_region
      %124 = vsyncadd [#allocation6], 0
      %s125 = sshll.u32 %s7, 4
      %s126 = int_to_ptr.hbm [resolvable:$true] %s125
      %s127 = sshll.u32 [#allocation5], 4
      %s128 = int_to_ptr.vmem [resolvable:$true] %s127
      %133 = dma.hbm_to_vmem [thread:$0]  %s126, 512, %s128, [#allocation6], 128, 128, 8
    $region17: #{_run.1} parent=1 // pred_fallthru
      _
    // Predicated region
    $region18: #{_run.1} parent=1 // pred_check
      _
    $region19: #{_run.1} parent=1 // pred_check_branch
      %135 = sbr.rel (0) target = $region21
    $region20: #{_run.1} parent=1 // pred_region
      _
    $region21: #{_run.1} parent=1 // pred_fallthru
      _
    // Predicated region
    $region22: #{_run.1} parent=1 // pred_check
      _
    $region23: #{_run.1} parent=1 // pred_check_branch
      %137 = sbr.rel (0) target = $region25
    $region24: #{_run.1} parent=1 // pred_region
      _
    $region25: #{_run.1} parent=1 // pred_fallthru
      _
    // Predicated region
    $region26: #{_run.1} parent=1 // pred_check
      _
    $region27: #{_run.1} parent=1 // pred_check_branch
      %139 = sbr.rel (0) target = $region29
    $region28: #{_run.1} parent=1 // pred_region
      _
    $region29: #{_run.1} parent=1 // pred_fallthru
      _
    // Predicated region
    $region30: #{_run.1} parent=1 // pred_check
      _
    $region31: #{_run.1} parent=1 // pred_check_branch
      %141 = sbr.rel (0) target = $region33
    $region32: #{_run.1} parent=1 // pred_region
      _
    $region33: #{_run.1} parent=1 // pred_fallthru
      _
    // Predicated region
    $region34: #{_run.1} parent=1 // pred_check
      _
    $region35: #{_run.1} parent=1 // pred_check_branch
      %143 = sbr.rel (0) target = $region37
    $region36: #{_run.1} parent=1 // pred_region
      %145 = vsyncadd [#allocation6], 0
      %s146 = sshll.u32 %s17, 4
      %s147 = int_to_ptr.hbm [resolvable:$true] %s146
      %s148 = sshll.u32 [#allocation7], 4
      %s149 = int_to_ptr.vmem [resolvable:$true] %s148
      %154 = dma.hbm_to_vmem [thread:$0]  %s147, 384, %s149, [#allocation6], 128, 128, 8
    $region37: #{_run.1} parent=1 // pred_fallthru
      _
    // Predicated region
    $region38: #{_run.1} parent=1 // pred_check
      _
    $region39: #{_run.1} parent=1 // pred_check_branch
      %156 = sbr.rel (0) target = $region41
    $region40: #{_run.1} parent=1 // pred_region
      %158 = vsyncadd [#allocation9], 0
      %s160 = sshll.u32 %s19, 4
      %s161 = int_to_ptr.hbm [resolvable:$true] %s160
      %s162 = sshll.u32 [#allocation8], 4
      %s163 = int_to_ptr.vmem [resolvable:$true] %s162
      %165 = dma.hbm_to_vmem [thread:$0]  %s161, 16, %s163, [#allocation9]
    $region41: #{_run.1} parent=1 // pred_fallthru
      _
    // Predicated region
    $region42: #{_run.1} parent=1 // pred_check
      _
    $region43: #{_run.1} parent=1 // pred_check_branch
      %167 = sbr.rel (0) target = $region45
    $region44: #{_run.1} parent=1 // pred_region
      %169 = vsyncadd [#allocation9], 0
      %s171 = sshll.u32 %s21, 4
      %s172 = int_to_ptr.hbm [resolvable:$true] %s171
      %s173 = sshll.u32 [#allocation10], 4
      %s174 = int_to_ptr.vmem [resolvable:$true] %s173
      %176 = dma.hbm_to_vmem [thread:$0]  %s172, 16, %s174, [#allocation9]
    $region45: #{_run.1} parent=1 // pred_fallthru
      _
    // Predicated region
    $region46: #{_run.1} parent=1 // pred_check
      _
    $region47: #{_run.1} parent=1 // pred_check_branch
      %178 = sbr.rel (0) target = $region49
    $region48: #{_run.1} parent=1 // pred_region
      %180 = vsyncadd [#allocation12], 0
      %s182 = sshll.u32 %s23, 4
      %s183 = int_to_ptr.hbm [resolvable:$true] %s182
      %s184 = sshll.u32 [#allocation11], 4
      %s185 = int_to_ptr.vmem [resolvable:$true] %s184
      %187 = dma.hbm_to_vmem [thread:$0]  %s183, 16, %s185, [#allocation12]
    $region49: #{_run.1} parent=1 // pred_fallthru
      _
    // Predicated region
    $region50: #{_run.1} parent=1 // pred_check
      _
    $region51: #{_run.1} parent=1 // pred_check_branch
      %189 = sbr.rel (0) target = $region53
    $region52: #{_run.1} parent=1 // pred_region
      %191 = vsyncadd [#allocation12], 0
      %s192 = sshll.u32 %s25, 4
      %s193 = int_to_ptr.hbm [resolvable:$true] %s192
      %s194 = sshll.u32 [#allocation13], 4
      %s195 = int_to_ptr.vmem [resolvable:$true] %s194
      %200 = dma.hbm_to_vmem [thread:$0]  %s193, 384, %s195, [#allocation12], 128, 128, 8
    $region53: #{_run.1} parent=1 // pred_fallthru
      _
    // Predicated region
    $region54: #{_run.1} parent=1 // pred_check
      _
    $region55: #{_run.1} parent=1 // pred_check_branch
      %202 = sbr.rel (0) target = $region57
    $region56: #{_run.1} parent=1 // pred_region
      %204 = vsyncadd [#allocation15], 0
      %s206 = sshll.u32 %s27, 4
      %s207 = int_to_ptr.hbm [resolvable:$true] %s206
      %s208 = sshll.u32 [#allocation14], 4
      %s209 = int_to_ptr.vmem [resolvable:$true] %s208
      %211 = dma.hbm_to_vmem [thread:$0]  %s207, 16, %s209, [#allocation15]
    $region57: #{_run.1} parent=1 // pred_fallthru
      _
    // Predicated region
    $region58: #{_run.1} parent=1 // pred_check
      _
    $region59: #{_run.1} parent=1 // pred_check_branch
      %213 = sbr.rel (0) target = $region61
    $region60: #{_run.1} parent=1 // pred_region
      %215 = vsyncadd [#allocation15], 0
      %s217 = sshll.u32 %s29, 4
      %s218 = int_to_ptr.hbm [resolvable:$true] %s217
      %s219 = sshll.u32 [#allocation16], 4
      %s220 = int_to_ptr.vmem [resolvable:$true] %s219
      %222 = dma.hbm_to_vmem [thread:$0]  %s218, 16, %s220, [#allocation15]
    $region61: #{_run.1} parent=1 // pred_fallthru
      _
    // Predicated region
    $region62: #{_run.1} parent=1 // pred_check
      _
    $region63: #{_run.1} parent=1 // pred_check_branch
      %224 = sbr.rel (0) target = $region65
    $region64: #{_run.1} parent=1 // pred_region
      _
    $region65: #{_run.1} parent=1 // pred_fallthru
      _
    // Predicated region
    $region66: #{_run.1} parent=1 // pred_check
      _
    $region67: #{_run.1} parent=1 // pred_check_branch
      %226 = sbr.rel (0) target = $region69
    $region68: #{_run.1} parent=1 // pred_region
      _
    $region69: #{_run.1} parent=1 // pred_fallthru
      _
    // Predicated region
    $region70: #{_run.1} parent=1 // pred_check
      _
    $region71: #{_run.1} parent=1 // pred_check_branch
      %228 = sbr.rel (0) target = $region73
    $region72: #{_run.1} parent=1 // pred_region
      _
    $region73: #{_run.1} parent=1 // pred_fallthru
      _
    // Predicated region
    $region74: #{_run.1} parent=1 // pred_check
      _
    $region75: #{_run.1} parent=1 // pred_check_branch
      %230 = sbr.rel (0) target = $region77
    $region76: #{_run.1} parent=1 // pred_region
      _
    $region77: #{_run.1} parent=1 // pred_fallthru
      _
    // Predicated region
    $region78: #{_run.1} parent=1 // pred_check
      _
    $region79: #{_run.1} parent=1 // pred_check_branch
      %232 = sbr.rel (0) target = $region81
    $region80: #{_run.1} parent=1 // pred_region
      _
    $region81: #{_run.1} parent=1 // pred_fallthru
      _
    // Predicated region
    $region82: #{_run.1} parent=1 // pred_check
      _
    $region83: #{_run.1} parent=1 // pred_check_branch
      %234 = sbr.rel (0) target = $region85
    $region84: #{_run.1} parent=1 // pred_region
      _
    $region85: #{_run.1} parent=1 // pred_fallthru
      _
    // Predicated region
    $region86: #{_run.1} parent=1 // pred_check
      _
    $region87: #{_run.1} parent=1 // pred_check_branch
      %236 = sbr.rel (0) target = $region89
    $region88: #{_run.1} parent=1 // pred_region
      _
    $region89: #{_run.1} parent=1 // pred_fallthru
      _
    // Predicated region
    $region90: #{_run.1} parent=1 // pred_check
      _
    $region91: #{_run.1} parent=1 // pred_check_branch
      %238 = sbr.rel (0) target = $region93
    $region92: #{_run.1} parent=1 // pred_region
      _
    $region93: #{_run.1} parent=1 // pred_fallthru
      _
    // Predicated region
    $region94: #{_run.1} parent=1 // pred_check
      _
    $region95: #{_run.1} parent=1 // pred_check_branch
      %240 = sbr.rel (0) target = $region97
    $region96: #{_run.1} parent=1 // pred_region
      _
    $region97: #{_run.1} parent=1 // pred_fallthru
      _
    // Predicated region
    $region98: #{_run.1} parent=1 // pred_check
      _
    $region99: #{_run.1} parent=1 // pred_check_branch
      %242 = sbr.rel (0) target = $region101
    $region100: #{_run.1} parent=1 // pred_region
      _
    $region101: #{_run.1} parent=1 // pred_fallthru
      _
    // Predicated region
    $region102: #{_run.1} parent=1 // pred_check
      _
    $region103: #{_run.1} parent=1 // pred_check_branch
      %244 = sbr.rel (0) target = $region105
    $region104: #{_run.1} parent=1 // pred_region
      _
    $region105: #{_run.1} parent=1 // pred_fallthru
      _
    // Predicated region
    $region106: #{_run.1} parent=1 // pred_check
      _
    $region107: #{_run.1} parent=1 // pred_check_branch
      %246 = sbr.rel (0) target = $region109
    $region108: #{_run.1} parent=1 // pred_region
      %248 = vsyncadd [#allocation18], 0
      %s249 = sshll.u32 %s53, 4
      %s250 = int_to_ptr.hbm [resolvable:$true] %s249
      %s251 = sshll.u32 [#allocation17], 4
      %s252 = int_to_ptr.vmem [resolvable:$true] %s251
      %257 = dma.hbm_to_vmem [thread:$0]  %s250, 768, %s252, [#allocation18], 128, 128, 8
    $region109: #{_run.1} parent=1 // pred_fallthru
      _
    // Predicated region
    $region110: #{_run.1} parent=1 // pred_check
      _
    $region111: #{_run.1} parent=1 // pred_check_branch
      %259 = sbr.rel (0) target = $region113
    $region112: #{_run.1} parent=1 // pred_region
      _
    $region113: #{_run.1} parent=1 // pred_fallthru
      _
    // Predicated region
    $region114: #{_run.1} parent=1 // pred_check
      _
    $region115: #{_run.1} parent=1 // pred_check_branch
      %261 = sbr.rel (0) target = $region117
    $region116: #{_run.1} parent=1 // pred_region
      _
    $region117: #{_run.1} parent=1 // pred_fallthru
      _
    // Predicated region
    $region118: #{_run.1} parent=1 // pred_check
      _
    $region119: #{_run.1} parent=1 // pred_check_branch
      %263 = sbr.rel (0) target = $region121
    $region120: #{_run.1} parent=1 // pred_region
      _
    $region121: #{_run.1} parent=1 // pred_fallthru
      _
    // Predicated region
    $region122: #{_run.1} parent=1 // pred_check
      _
    $region123: #{_run.1} parent=1 // pred_check_branch
      %265 = sbr.rel (0) target = $region125
    $region124: #{_run.1} parent=1 // pred_region
      _
    $region125: #{_run.1} parent=1 // pred_fallthru
      _
    // Predicated region
    $region126: #{_run.1} parent=1 // pred_check
      _
    $region127: #{_run.1} parent=1 // pred_check_branch
      %267 = sbr.rel (0) target = $region129
    $region128: #{_run.1} parent=1 // pred_region
      _
    $region129: #{_run.1} parent=1 // pred_fallthru
      _
    // Predicated region
    $region130: #{_run.1} parent=1 // pred_check
      _
    $region131: #{_run.1} parent=1 // pred_check_branch
      %269 = sbr.rel (0) target = $region133
    $region132: #{_run.1} parent=1 // pred_region
      _
    $region133: #{_run.1} parent=1 // pred_fallthru
      _
    // Predicated region
    $region134: #{_run.1} parent=1 // pred_check
      _
    $region135: #{_run.1} parent=1 // pred_check_branch
      %271 = sbr.rel (0) target = $region137
    $region136: #{_run.1} parent=1 // pred_region
      %273 = vsyncadd [#allocation18], 0
      %s275 = sshll.u32 %s67, 4
      %s276 = int_to_ptr.hbm [resolvable:$true] %s275
      %s277 = sshll.u32 [#allocation19], 4
      %s278 = int_to_ptr.vmem [resolvable:$true] %s277
      %280 = dma.hbm_to_vmem [thread:$0]  %s276, 16, %s278, [#allocation18]
    $region137: #{_run.1} parent=1 // pred_fallthru
      _
    // Predicated region
    $region138: #{_run.1} parent=1 // pred_check
      _
    $region139: #{_run.1} parent=1 // pred_check_branch
      %282 = sbr.rel (0) target = $region141
    $region140: #{_run.1} parent=1 // pred_region
      _
    $region141: #{_run.1} parent=1 // pred_fallthru
      _
    // Predicated region
    $region142: #{_run.1} parent=1 // pred_check
      _
    $region143: #{_run.1} parent=1 // pred_check_branch
      %284 = sbr.rel (0) target = $region145
    $region144: #{_run.1} parent=1 // pred_region
      %286 = vsyncadd [#allocation21], 0
      %s288 = sshll.u32 %s71, 4
      %s289 = int_to_ptr.hbm [resolvable:$true] %s288
      %s290 = sshll.u32 [#allocation20], 4
      %s291 = int_to_ptr.vmem [resolvable:$true] %s290
      %293 = dma.hbm_to_vmem [thread:$0]  %s289, 16, %s291, [#allocation21]
    $region145: #{_run.1} parent=1 // pred_fallthru
      _
    // Predicated region
    $region146: #{_run.1} parent=1 // pred_check
      _
    $region147: #{_run.1} parent=1 // pred_check_branch
      %295 = sbr.rel (0) target = $region149
    $region148: #{_run.1} parent=1 // pred_region
      %297 = vsyncadd [#allocation21], 0
      %s299 = sshll.u32 %s73, 4
      %s300 = int_to_ptr.hbm [resolvable:$true] %s299
      %s301 = sshll.u32 [#allocation22], 4
      %s302 = int_to_ptr.vmem [resolvable:$true] %s301
      %304 = dma.hbm_to_vmem [thread:$0]  %s300, 16, %s302, [#allocation21]
    $region149: #{_run.1} parent=1 // pred_fallthru
      _
    // Predicated region
    $region150: #{_run.1} parent=1 // pred_check
      _
    $region151: #{_run.1} parent=1 // pred_check_branch
      %306 = sbr.rel (0) target = $region153
    $region152: #{_run.1} parent=1 // pred_region
      %308 = vsyncadd [#allocation24], 0
      %s310 = sshll.u32 %s75, 4
      %s311 = int_to_ptr.hbm [resolvable:$true] %s310
      %s312 = sshll.u32 [#allocation23], 4
      %s313 = int_to_ptr.vmem [resolvable:$true] %s312
      %315 = dma.hbm_to_vmem [thread:$0]  %s311, 16, %s313, [#allocation24]
    $region153: #{_run.1} parent=1 // pred_fallthru
      _
    // Predicated region
    $region154: #{_run.1} parent=1 // pred_check
      _
    $region155: #{_run.1} parent=1 // pred_check_branch
      %317 = sbr.rel (0) target = $region157
    $region156: #{_run.1} parent=1 // pred_region
      _
    $region157: #{_run.1} parent=1 // pred_fallthru
      _
    // Predicated region
    $region158: #{_run.1} parent=1 // pred_check
      _
    $region159: #{_run.1} parent=1 // pred_check_branch
      %319 = sbr.rel (0) target = $region161
    $region160: #{_run.1} parent=1 // pred_region
      _
    $region161: #{_run.1} parent=1 // pred_fallthru
      _
    // Predicated region
    $region162: #{_run.1} parent=1 // pred_check
      _
    $region163: #{_run.1} parent=1 // pred_check_branch
      %321 = sbr.rel (0) target = $region165
    $region164: #{_run.1} parent=1 // pred_region
      %323 = dma.done [#allocation3], 512
    $region165: #{_run.1} parent=1 // pred_fallthru
      _
    // Predicated region
    $region166: #{_run.1} parent=1 // pred_check
      _
    $region167: #{_run.1} parent=1 // pred_check_branch
      %325 = sbr.rel (0) target = $region169
    $region168: #{_run.1} parent=1 // pred_region
      %327 = dma.done [#allocation6], 512
    $region169: #{_run.1} parent=1 // pred_fallthru
      _
    // Predicated region
    $region170: #{_run.1} parent=1 // pred_check
      _
    $region171: #{_run.1} parent=1 // pred_check_branch
      %329 = sbr.rel (0) target = $region173
    $region172: #{_run.1} parent=1 // pred_region
      %331 = dma.done [#allocation6], 384
    $region173: #{_run.1} parent=1 // pred_fallthru
      _
    // Predicated region
    $region174: #{_run.1} parent=1 // pred_check
      _
    $region175: #{_run.1} parent=1 // pred_check_branch
      %333 = sbr.rel (0) target = $region177
    $region176: #{_run.1} parent=1 // pred_region
      %335 = dma.done [#allocation9], 16
    $region177: #{_run.1} parent=1 // pred_fallthru
      _
    // Predicated region
    $region178: #{_run.1} parent=1 // pred_check
      _
    $region179: #{_run.1} parent=1 // pred_check_branch
      %337 = sbr.rel (0) target = $region181
    $region180: #{_run.1} parent=1 // pred_region
      %339 = dma.done [#allocation9], 16
    $region181: #{_run.1} parent=1 // pred_fallthru
      _
    // Predicated region
    $region182: #{_run.1} parent=1 // pred_check
      _
    $region183: #{_run.1} parent=1 // pred_check_branch
      %341 = sbr.rel (0) target = $region185
    $region184: #{_run.1} parent=1 // pred_region
      %343 = dma.done [#allocation12], 16
    $region185: #{_run.1} parent=1 // pred_fallthru
      _
    // Predicated region
    $region186: #{_run.1} parent=1 // pred_check
      _
    $region187: #{_run.1} parent=1 // pred_check_branch
      %345 = sbr.rel (0) target = $region189
    $region188: #{_run.1} parent=1 // pred_region
      %347 = dma.done [#allocation12], 384
    $region189: #{_run.1} parent=1 // pred_fallthru
      _
    // Predicated region
    $region190: #{_run.1} parent=1 // pred_check
      _
    $region191: #{_run.1} parent=1 // pred_check_branch
      %349 = sbr.rel (0) target = $region193
    $region192: #{_run.1} parent=1 // pred_region
      %351 = dma.done [#allocation15], 16
    $region193: #{_run.1} parent=1 // pred_fallthru
      _
    // Predicated region
    $region194: #{_run.1} parent=1 // pred_check
      _
    $region195: #{_run.1} parent=1 // pred_check_branch
      %353 = sbr.rel (0) target = $region197
    $region196: #{_run.1} parent=1 // pred_region
      %355 = dma.done [#allocation15], 16
    $region197: #{_run.1} parent=1 // pred_fallthru
      _
    // Predicated region
    $region198: #{_run.1} parent=1 // pred_check
      _
    $region199: #{_run.1} parent=1 // pred_check_branch
      %357 = sbr.rel (0) target = $region201
    $region200: #{_run.1} parent=1 // pred_region
      %359 = dma.done [#allocation18], 768
    $region201: #{_run.1} parent=1 // pred_fallthru
      _
    // Predicated region
    $region202: #{_run.1} parent=1 // pred_check
      _
    $region203: #{_run.1} parent=1 // pred_check_branch
      %361 = sbr.rel (0) target = $region205
    $region204: #{_run.1} parent=1 // pred_region
      %363 = dma.done [#allocation18], 16
    $region205: #{_run.1} parent=1 // pred_fallthru
      _
    // Predicated region
    $region206: #{_run.1} parent=1 // pred_check
      _
    $region207: #{_run.1} parent=1 // pred_check_branch
      %365 = sbr.rel (0) target = $region209
    $region208: #{_run.1} parent=1 // pred_region
      %367 = dma.done [#allocation21], 16
    $region209: #{_run.1} parent=1 // pred_fallthru
      _
    // Predicated region
    $region210: #{_run.1} parent=1 // pred_check
      _
    $region211: #{_run.1} parent=1 // pred_check_branch
      %369 = sbr.rel (0) target = $region213
    $region212: #{_run.1} parent=1 // pred_region
      %371 = dma.done [#allocation21], 16
    $region213: #{_run.1} parent=1 // pred_fallthru
      _
    // Predicated region
    $region214: #{_run.1} parent=1 // pred_check
      _
    $region215: #{_run.1} parent=1 // pred_check_branch
      %373 = sbr.rel (0) target = $region217
    $region216: #{_run.1} parent=1 // pred_region
      %375 = dma.done [#allocation24], 16
    $region217: #{_run.1} parent=1 // pred_fallthru
      _
    %v376 = vld [vmem:[#allocation2] sm:$0xff]
    %v377 = vld [vmem:[#allocation2 + $0x8] sm:$0xff]
    %v378 = vld [vmem:[#allocation2 + $0x10] sm:$0xff]
    %v379 = vld [vmem:[#allocation2 + $0x18] sm:$0xff]
    %v380 = vld [vmem:[#allocation5] sm:$0xff]
    %v381 = vld [vmem:[#allocation5 + $0x8] sm:$0xff]
    %v382 = vld [vmem:[#allocation5 + $0x10] sm:$0xff]
    %v383 = vld [vmem:[#allocation5 + $0x18] sm:$0xff]
    %v384 = vld [vmem:[%s1] sm:$0xff]
    %v385 = vld [vmem:[%s1 + $0x8] sm:$0xff]
    %v386 = vld [vmem:[%s1 + $0x10] sm:$0xff]
    %v387 = vld [vmem:[%s1 + $0x18] sm:$0xff]
    %v388 = vld [vmem:[%s13] sm:$0x3]
    %v389 = vld [vmem:[%s15] sm:$0x1]
    %v391 = vperm.slane %v389, 0
    %vm393 = vcmask 15360
    %v395 = vsel %vm393, %v384, 0
    %v398 = vsel %vm393, %v385, 0
    %v401 = vsel %vm393, %v386, 0
    %v404 = vsel %vm393, %v387, 0
    %vm406 = vcmask 1041408
    %v408 = vsel %vm406, %v388, 0
    %410 = vmatpush.msra.mxu0 0.0
    %411 = vmatpush.msra.mxu0 0.0
    %412 = vmatpush.msra.mxu0 0.0
    %413 = vmatpush.msra.mxu0 0.0
    %414 = vmatpush.msra.mxu0 0.0
    %415 = vmatpush.msra.mxu0 0.0
    %416 = vmatpush.msra.mxu0 0.0
    %417 = vmatpush.msra.mxu0 0.0
    %418 = vmatpush.msra.mxu0 0.0
    %419 = vmatpush.msra.mxu0 0.0
    %420 = vmatpush.msra.mxu0 0.0
    %421 = vmatpush.msra.mxu0 0.0
    %422 = vmatpush.msra.mxu0 0.0
    %423 = vmatpush.msra.mxu0 0.0
    %424 = vmatpush.msra.mxu0 0.0
    %425 = vmatpush.msra.mxu0 %v408
    %426 = vmatmul.f32.gmra.mxu0 %v395
    %v427 = vpop.f32.mrf.mxu0
    %v428 = vadd.f32 %v391, %v427
    %429 = vmatmul.f32.gmra.mxu0 %v398
    %v430 = vpop.f32.mrf.mxu0
    %v431 = vadd.f32 %v391, %v430
    %432 = vmatmul.f32.gmra.mxu0 %v401
    %v433 = vpop.f32.mrf.mxu0
    %v434 = vadd.f32 %v391, %v433
    %435 = vmatmul.f32.gmra.mxu0 %v404
    %v436 = vpop.f32.mrf.mxu0
    %v437 = vadd.f32 %v391, %v436
    %438 = vdwg.mxu0
    %v439 = vld [vmem:[#allocation7] sm:$0xff]
    %vm440 = vcmask 64512
    %v442 = vsel %vm440, %v428, 0
    %v445 = vsel %vm440, %v431, 0
    %v448 = vsel %vm440, %v434, 0
    %v451 = vsel %vm440, %v437, 0
    %453 = vmatpush.msra.mxu0 0.0
    %454 = vmatpush.msra.mxu0 0.0
    %455 = vmatpush.msra.mxu0 0.0
    %456 = vmatpush.msra.mxu0 0.0
    %457 = vmatpush.msra.mxu0 0.0
    %458 = vmatpush.msra.mxu0 0.0
    %459 = vmatpush.msra.mxu0 0.0
    %460 = vmatpush.msra.mxu0 0.0
    %461 = vmatpush.msra.mxu0 0.0
    %462 = vmatpush.msra.mxu0 0.0
    %463 = vmatpush.msra.mxu0 0.0
    %464 = vmatpush.msra.mxu0 0.0
    %465 = vmatpush.msra.mxu0 0.0
    %466 = vmatpush.msra.mxu0 0.0
    %467 = vmatpush.msra.mxu0 0.0
    %468 = vmatpush.msra.mxu0 %v439
    %469 = vmatmul.f32.gmra.mxu0 %v442
    %v470 = vpop.f32.mrf.mxu0
    %v471 = vadd.f32 0.0, %v470
    %472 = vmatmul.f32.gmra.mxu0 %v445
    %v473 = vpop.f32.mrf.mxu0
    %v474 = vadd.f32 0.0, %v473
    %475 = vmatmul.f32.gmra.mxu0 %v448
    %v476 = vpop.f32.mrf.mxu0
    %v477 = vadd.f32 0.0, %v476
    %478 = vmatmul.f32.gmra.mxu0 %v451
    %v479 = vpop.f32.mrf.mxu0
    %v480 = vadd.f32 0.0, %v479
    %481 = vdwg.mxu0
    %s482 = scalar_lea.vmem [#allocation7], 8
    %v483 = vld [vmem:[%s482] sm:$0xff]
    %484 = vmatpush.msra.mxu0 0.0
    %485 = vmatpush.msra.mxu0 0.0
    %486 = vmatpush.msra.mxu0 0.0
    %487 = vmatpush.msra.mxu0 0.0
    %488 = vmatpush.msra.mxu0 0.0
    %489 = vmatpush.msra.mxu0 0.0
    %490 = vmatpush.msra.mxu0 0.0
    %491 = vmatpush.msra.mxu0 0.0
    %492 = vmatpush.msra.mxu0 0.0
    %493 = vmatpush.msra.mxu0 0.0
    %494 = vmatpush.msra.mxu0 0.0
    %495 = vmatpush.msra.mxu0 0.0
    %496 = vmatpush.msra.mxu0 0.0
    %497 = vmatpush.msra.mxu0 0.0
    %498 = vmatpush.msra.mxu0 0.0
    %499 = vmatpush.msra.mxu0 %v483
    %500 = vmatmul.f32.gmra.mxu0 %v442
    %v501 = vpop.f32.mrf.mxu0
    %v502 = vadd.f32 0.0, %v501
    %503 = vmatmul.f32.gmra.mxu0 %v445
    %v504 = vpop.f32.mrf.mxu0
    %v505 = vadd.f32 0.0, %v504
    %506 = vmatmul.f32.gmra.mxu0 %v448
    %v507 = vpop.f32.mrf.mxu0
    %v508 = vadd.f32 0.0, %v507
    %509 = vmatmul.f32.gmra.mxu0 %v451
    %v510 = vpop.f32.mrf.mxu0
    %v511 = vadd.f32 0.0, %v510
    %512 = vdwg.mxu0
    %vm513 = vcmask 261120
    %v515 = vsel %vm513, %v376, 0
    %v518 = vsel %vm513, %v377, 0
    %v521 = vsel %vm513, %v378, 0
    %v524 = vsel %vm513, %v379, 0
    %526 = vmatpush.msra.mxu0 0.0
    %527 = vmatpush.msra.mxu0 0.0
    %528 = vmatpush.msra.mxu0 0.0
    %529 = vmatpush.msra.mxu0 0.0
    %530 = vmatpush.msra.mxu0 0.0
    %531 = vmatpush.msra.mxu0 0.0
    %532 = vmatpush.msra.mxu0 0.0
    %533 = vmatpush.msra.mxu0 0.0
    %534 = vmatpush.msra.mxu0 0.0
    %535 = vmatpush.msra.mxu0 0.0
    %536 = vmatpush.msra.mxu0 0.0
    %537 = vmatpush.msra.mxu0 0.0
    %538 = vmatpush.msra.mxu0 %v480
    %539 = vmatpush.msra.mxu0 %v477
    %540 = vmatpush.msra.mxu0 %v474
    %541 = vmatpush.msra.mxu0 %v471
    %542 = vmatmul.f32.gmra.mxu0 %v515
    %v543 = vpop.f32.mrf.mxu0
    %v544 = vadd.f32 %v502, %v543
    %545 = vmatmul.f32.gmra.mxu0 %v518
    %v546 = vpop.f32.mrf.mxu0
    %v547 = vadd.f32 %v505, %v546
    %548 = vmatmul.f32.gmra.mxu0 %v521
    %v549 = vpop.f32.mrf.mxu0
    %v550 = vadd.f32 %v508, %v549
    %551 = vmatmul.f32.gmra.mxu0 %v524
    %v552 = vpop.f32.mrf.mxu0
    %v553 = vadd.f32 %v511, %v552
    %554 = vdwg.mxu0
    %s555 = scalar_lea.vmem [#allocation7], 16
    %v556 = vld [vmem:[%s555] sm:$0xff]
    %557 = vmatpush.msra.mxu0 0.0
    %558 = vmatpush.msra.mxu0 0.0
    %559 = vmatpush.msra.mxu0 0.0
    %560 = vmatpush.msra.mxu0 0.0
    %561 = vmatpush.msra.mxu0 0.0
    %562 = vmatpush.msra.mxu0 0.0
    %563 = vmatpush.msra.mxu0 0.0
    %564 = vmatpush.msra.mxu0 0.0
    %565 = vmatpush.msra.mxu0 0.0
    %566 = vmatpush.msra.mxu0 0.0
    %567 = vmatpush.msra.mxu0 0.0
    %568 = vmatpush.msra.mxu0 0.0
    %569 = vmatpush.msra.mxu0 0.0
    %570 = vmatpush.msra.mxu0 0.0
    %571 = vmatpush.msra.mxu0 0.0
    %572 = vmatpush.msra.mxu0 %v556
    %573 = vmatmul.f32.gmra.mxu0 %v442
    %v574 = vpop.f32.mrf.mxu0
    %v575 = vadd.f32 0.0, %v574
    %576 = vmatmul.f32.gmra.mxu0 %v445
    %v577 = vpop.f32.mrf.mxu0
    %v578 = vadd.f32 0.0, %v577
    %579 = vmatmul.f32.gmra.mxu0 %v448
    %v580 = vpop.f32.mrf.mxu0
    %v581 = vadd.f32 0.0, %v580
    %582 = vmatmul.f32.gmra.mxu0 %v451
    %v583 = vpop.f32.mrf.mxu0
    %v584 = vadd.f32 0.0, %v583
    %585 = vdwg.mxu0
    %v587 = vsel %vm513, %v380, 0
    %v590 = vsel %vm513, %v381, 0
    %v593 = vsel %vm513, %v382, 0
    %v596 = vsel %vm513, %v383, 0
    %598 = vmatpush.msra.mxu0 0.0
    %599 = vmatpush.msra.mxu0 0.0
    %600 = vmatpush.msra.mxu0 0.0
    %601 = vmatpush.msra.mxu0 0.0
    %602 = vmatpush.msra.mxu0 0.0
    %603 = vmatpush.msra.mxu0 0.0
    %604 = vmatpush.msra.mxu0 0.0
    %605 = vmatpush.msra.mxu0 0.0
    %606 = vmatpush.msra.mxu0 0.0
    %607 = vmatpush.msra.mxu0 0.0
    %608 = vmatpush.msra.mxu0 0.0
    %609 = vmatpush.msra.mxu0 0.0
    %610 = vmatpush.msra.mxu0 %v584
    %611 = vmatpush.msra.mxu0 %v581
    %612 = vmatpush.msra.mxu0 %v578
    %613 = vmatpush.msra.mxu0 %v575
    %614 = vmatmul.f32.gmra.mxu0 %v587
    %v615 = vpop.f32.mrf.mxu0
    %v616 = vadd.f32 0.0, %v615
    %617 = vmatmul.f32.gmra.mxu0 %v590
    %v618 = vpop.f32.mrf.mxu0
    %v619 = vadd.f32 0.0, %v618
    %620 = vmatmul.f32.gmra.mxu0 %v593
    %v621 = vpop.f32.mrf.mxu0
    %v622 = vadd.f32 0.0, %v621
    %623 = vmatmul.f32.gmra.mxu0 %v596
    %v624 = vpop.f32.mrf.mxu0
    %v625 = vadd.f32 0.0, %v624
    %626 = vdwg.mxu0
    %v627 = vadd.f32 %v544, %v616
    %v628 = vadd.f32 %v547, %v619
    %v629 = vadd.f32 %v550, %v622
    %v630 = vadd.f32 %v553, %v625
    %v631 = vld [vmem:[#allocation8] sm:$0x1]
    %v633 = vperm.slane %v631, 0
    %v635 = vadd.f32 %v627, %v633
    %v636 = vadd.f32 %v628, %v633
    %v637 = vadd.f32 %v629, %v633
    %v638 = vadd.f32 %v630, %v633
    %v639 = vsel %vm440, %v635, 0.0
    %v640 = vsel %vm440, %v636, 0.0
    %v641 = vadd.f32 %v639, %v640
    %v642 = vsel %vm440, %v637, 0.0
    %v643 = vadd.f32 %v641, %v642
    %v644 = vsel %vm440, %v638, 0.0
    %v645 = vadd.f32 %v643, %v644
    %v646 = vrot.slane %v645, 4
    %v647 = vadd.f32 %v645, %v646
    %v648 = vrot.slane %v647, 2
    %v649 = vadd.f32 %v647, %v648
    %v650 = vrot.slane %v649, 1
    %v651 = vadd.f32 %v649, %v650
    %v652 = vrcp.pop 32.0
    %v653 = vmul.f32 32.0, %v652
    %v654 = vsub.f32 1.0, %v653
    %v655 = vmul.f32 %v652, %v654
    %v656 = vadd.f32 %v652, %v655
    %vm657 = vweird.f32 %v652
    %v658 = vsel %vm657, %v652, %v656
    %v659 = vmul.f32 %v651, %v658
    %v660 = vsub.f32 %v635, %v659
    %v661 = vsub.f32 %v636, %v659
    %v662 = vsub.f32 %v637, %v659
    %v663 = vsub.f32 %v638, %v659
    %v664 = vmul.f32 %v660, %v660
    %v665 = vmul.f32 %v661, %v661
    %v666 = vmul.f32 %v662, %v662
    %v667 = vmul.f32 %v663, %v663
    %v668 = vsel %vm440, %v664, 0.0
    %v669 = vsel %vm440, %v665, 0.0
    %v670 = vadd.f32 %v668, %v669
    %v671 = vsel %vm440, %v666, 0.0
    %v672 = vadd.f32 %v670, %v671
    %v673 = vsel %vm440, %v667, 0.0
    %v674 = vadd.f32 %v672, %v673
    %v675 = vrot.slane %v674, 4
    %v676 = vadd.f32 %v674, %v675
    %v677 = vrot.slane %v676, 2
    %v678 = vadd.f32 %v676, %v677
    %v679 = vrot.slane %v678, 1
    %v680 = vadd.f32 %v678, %v679
    %v681 = vmul.f32 %v680, %v658
    %v682 = vadd.f32 %v681, 1e-05
    %v683 = vrsqrt.pop %v682
    %v684 = vmul.f32 %v683, %v682
    %v685 = vmul.f32 %v684, %v683
    %v686 = vmul.f32 0.5, %v685
    %v687 = vsub.f32 1.5, %v686
    %v688 = vmul.f32 %v683, %v687
    %vm689 = vweird.f32 %v682
    %vm690 = vweird.f32 %v683
    %vm691 = vmor %vm689, %vm690
    %v692 = vsel %vm691, %v683, %v688
    %v693 = vmul.f32 %v660, %v692
    %v694 = vmul.f32 %v661, %v692
    %v695 = vmul.f32 %v662, %v692
    %v696 = vmul.f32 %v663, %v692
    %v697 = vld [vmem:[#allocation10] sm:$0x1]
    %v699 = vperm.slane %v697, 0
    %v701 = vmul.f32 %v693, %v699
    %v702 = vmul.f32 %v694, %v699
    %v703 = vmul.f32 %v695, %v699
    %v704 = vmul.f32 %v696, %v699
    %v705 = vld [vmem:[#allocation11] sm:$0x1]
    %v707 = vperm.slane %v705, 0
    %v709 = vadd.f32 %v701, %v707
    %v710 = vadd.f32 %v702, %v707
    %v711 = vadd.f32 %v703, %v707
    %v712 = vadd.f32 %v704, %v707
    %v713 = vmax.f32 %v709, 0.0
    %v714 = vmax.f32 %v710, 0.0
    %v715 = vmax.f32 %v711, 0.0
    %v716 = vmax.f32 %v712, 0.0
    %v717 = vld [vmem:[#allocation13] sm:$0xff]
    %v719 = vsel %vm440, %v713, 0
    %v722 = vsel %vm440, %v714, 0
    %v725 = vsel %vm440, %v715, 0
    %v728 = vsel %vm440, %v716, 0
    %730 = vmatpush.msra.mxu0 0.0
    %731 = vmatpush.msra.mxu0 0.0
    %732 = vmatpush.msra.mxu0 0.0
    %733 = vmatpush.msra.mxu0 0.0
    %734 = vmatpush.msra.mxu0 0.0
    %735 = vmatpush.msra.mxu0 0.0
    %736 = vmatpush.msra.mxu0 0.0
    %737 = vmatpush.msra.mxu0 0.0
    %738 = vmatpush.msra.mxu0 0.0
    %739 = vmatpush.msra.mxu0 0.0
    %740 = vmatpush.msra.mxu0 0.0
    %741 = vmatpush.msra.mxu0 0.0
    %742 = vmatpush.msra.mxu0 0.0
    %743 = vmatpush.msra.mxu0 0.0
    %744 = vmatpush.msra.mxu0 0.0
    %745 = vmatpush.msra.mxu0 %v717
    %746 = vmatmul.f32.gmra.mxu0 %v719
    %v747 = vpop.f32.mrf.mxu0
    %v748 = vadd.f32 0.0, %v747
    %749 = vmatmul.f32.gmra.mxu0 %v722
    %v750 = vpop.f32.mrf.mxu0
    %v751 = vadd.f32 0.0, %v750
    %752 = vmatmul.f32.gmra.mxu0 %v725
    %v753 = vpop.f32.mrf.mxu0
    %v754 = vadd.f32 0.0, %v753
    %755 = vmatmul.f32.gmra.mxu0 %v728
    %v756 = vpop.f32.mrf.mxu0
    %v757 = vadd.f32 0.0, %v756
    %758 = vdwg.mxu0
    %s759 = scalar_lea.vmem [#allocation13], 8
    %v760 = vld [vmem:[%s759] sm:$0xff]
    %761 = vmatpush.msra.mxu0 0.0
    %762 = vmatpush.msra.mxu0 0.0
    %763 = vmatpush.msra.mxu0 0.0
    %764 = vmatpush.msra.mxu0 0.0
    %765 = vmatpush.msra.mxu0 0.0
    %766 = vmatpush.msra.mxu0 0.0
    %767 = vmatpush.msra.mxu0 0.0
    %768 = vmatpush.msra.mxu0 0.0
    %769 = vmatpush.msra.mxu0 0.0
    %770 = vmatpush.msra.mxu0 0.0
    %771 = vmatpush.msra.mxu0 0.0
    %772 = vmatpush.msra.mxu0 0.0
    %773 = vmatpush.msra.mxu0 0.0
    %774 = vmatpush.msra.mxu0 0.0
    %775 = vmatpush.msra.mxu0 0.0
    %776 = vmatpush.msra.mxu0 %v760
    %777 = vmatmul.f32.gmra.mxu0 %v719
    %v778 = vpop.f32.mrf.mxu0
    %v779 = vadd.f32 0.0, %v778
    %780 = vmatmul.f32.gmra.mxu0 %v722
    %v781 = vpop.f32.mrf.mxu0
    %v782 = vadd.f32 0.0, %v781
    %783 = vmatmul.f32.gmra.mxu0 %v725
    %v784 = vpop.f32.mrf.mxu0
    %v785 = vadd.f32 0.0, %v784
    %786 = vmatmul.f32.gmra.mxu0 %v728
    %v787 = vpop.f32.mrf.mxu0
    %v788 = vadd.f32 0.0, %v787
    %789 = vdwg.mxu0
    %790 = vmatpush.msra.mxu0 0.0
    %791 = vmatpush.msra.mxu0 0.0
    %792 = vmatpush.msra.mxu0 0.0
    %793 = vmatpush.msra.mxu0 0.0
    %794 = vmatpush.msra.mxu0 0.0
    %795 = vmatpush.msra.mxu0 0.0
    %796 = vmatpush.msra.mxu0 0.0
    %797 = vmatpush.msra.mxu0 0.0
    %798 = vmatpush.msra.mxu0 0.0
    %799 = vmatpush.msra.mxu0 0.0
    %800 = vmatpush.msra.mxu0 0.0
    %801 = vmatpush.msra.mxu0 0.0
    %802 = vmatpush.msra.mxu0 %v757
    %803 = vmatpush.msra.mxu0 %v754
    %804 = vmatpush.msra.mxu0 %v751
    %805 = vmatpush.msra.mxu0 %v748
    %806 = vmatmul.f32.gmra.mxu0 %v515
    %v807 = vpop.f32.mrf.mxu0
    %v808 = vadd.f32 %v779, %v807
    %809 = vmatmul.f32.gmra.mxu0 %v518
    %v810 = vpop.f32.mrf.mxu0
    %v811 = vadd.f32 %v782, %v810
    %812 = vmatmul.f32.gmra.mxu0 %v521
    %v813 = vpop.f32.mrf.mxu0
    %v814 = vadd.f32 %v785, %v813
    %815 = vmatmul.f32.gmra.mxu0 %v524
    %v816 = vpop.f32.mrf.mxu0
    %v817 = vadd.f32 %v788, %v816
    %818 = vdwg.mxu0
    %s819 = scalar_lea.vmem [#allocation13], 16
    %v820 = vld [vmem:[%s819] sm:$0xff]
    %821 = vmatpush.msra.mxu0 0.0
    %822 = vmatpush.msra.mxu0 0.0
    %823 = vmatpush.msra.mxu0 0.0
    %824 = vmatpush.msra.mxu0 0.0
    %825 = vmatpush.msra.mxu0 0.0
    %826 = vmatpush.msra.mxu0 0.0
    %827 = vmatpush.msra.mxu0 0.0
    %828 = vmatpush.msra.mxu0 0.0
    %829 = vmatpush.msra.mxu0 0.0
    %830 = vmatpush.msra.mxu0 0.0
    %831 = vmatpush.msra.mxu0 0.0
    %832 = vmatpush.msra.mxu0 0.0
    %833 = vmatpush.msra.mxu0 0.0
    %834 = vmatpush.msra.mxu0 0.0
    %835 = vmatpush.msra.mxu0 0.0
    %836 = vmatpush.msra.mxu0 %v820
    %837 = vmatmul.f32.gmra.mxu0 %v719
    %v838 = vpop.f32.mrf.mxu0
    %v839 = vadd.f32 0.0, %v838
    %840 = vmatmul.f32.gmra.mxu0 %v722
    %v841 = vpop.f32.mrf.mxu0
    %v842 = vadd.f32 0.0, %v841
    %843 = vmatmul.f32.gmra.mxu0 %v725
    %v844 = vpop.f32.mrf.mxu0
    %v845 = vadd.f32 0.0, %v844
    %846 = vmatmul.f32.gmra.mxu0 %v728
    %v847 = vpop.f32.mrf.mxu0
    %v848 = vadd.f32 0.0, %v847
    %849 = vdwg.mxu0
    %850 = vmatpush.msra.mxu0 0.0
    %851 = vmatpush.msra.mxu0 0.0
    %852 = vmatpush.msra.mxu0 0.0
    %853 = vmatpush.msra.mxu0 0.0
    %854 = vmatpush.msra.mxu0 0.0
    %855 = vmatpush.msra.mxu0 0.0
    %856 = vmatpush.msra.mxu0 0.0
    %857 = vmatpush.msra.mxu0 0.0
    %858 = vmatpush.msra.mxu0 0.0
    %859 = vmatpush.msra.mxu0 0.0
    %860 = vmatpush.msra.mxu0 0.0
    %861 = vmatpush.msra.mxu0 0.0
    %862 = vmatpush.msra.mxu0 %v848
    %863 = vmatpush.msra.mxu0 %v845
    %864 = vmatpush.msra.mxu0 %v842
    %865 = vmatpush.msra.mxu0 %v839
    %866 = vmatmul.f32.gmra.mxu0 %v587
    %v867 = vpop.f32.mrf.mxu0
    %v868 = vadd.f32 0.0, %v867
    %869 = vmatmul.f32.gmra.mxu0 %v590
    %v870 = vpop.f32.mrf.mxu0
    %v871 = vadd.f32 0.0, %v870
    %872 = vmatmul.f32.gmra.mxu0 %v593
    %v873 = vpop.f32.mrf.mxu0
    %v874 = vadd.f32 0.0, %v873
    %875 = vmatmul.f32.gmra.mxu0 %v596
    %v876 = vpop.f32.mrf.mxu0
    %v877 = vadd.f32 0.0, %v876
    %878 = vdwg.mxu0
    %v879 = vadd.f32 %v808, %v868
    %v880 = vadd.f32 %v811, %v871
    %v881 = vadd.f32 %v814, %v874
    %v882 = vadd.f32 %v817, %v877
    %v883 = vld [vmem:[#allocation14] sm:$0x1]
    %v885 = vperm.slane %v883, 0
    %v887 = vadd.f32 %v879, %v885
    %v888 = vadd.f32 %v880, %v885
    %v889 = vadd.f32 %v881, %v885
    %v890 = vadd.f32 %v882, %v885
    %vm891 = vcmask 130048
    %v892 = vsel %vm891, %v887, 0.0
    %v893 = vsel %vm891, %v888, 0.0
    %v894 = vadd.f32 %v892, %v893
    %v895 = vsel %vm891, %v889, 0.0
    %v896 = vadd.f32 %v894, %v895
    %v897 = vsel %vm891, %v890, 0.0
    %v898 = vadd.f32 %v896, %v897
    %v899 = vrot.slane %v898, 4
    %v900 = vadd.f32 %v898, %v899
    %v901 = vrot.slane %v900, 2
    %v902 = vadd.f32 %v900, %v901
    %v903 = vrot.slane %v902, 1
    %v904 = vadd.f32 %v902, %v903
    %v905 = vmul.f32 %v904, %v658
    %v906 = vsub.f32 %v887, %v905
    %v907 = vsub.f32 %v888, %v905
    %v908 = vsub.f32 %v889, %v905
    %v909 = vsub.f32 %v890, %v905
    %v910 = vmul.f32 %v906, %v906
    %v911 = vmul.f32 %v907, %v907
    %v912 = vmul.f32 %v908, %v908
    %v913 = vmul.f32 %v909, %v909
    %v914 = vsel %vm891, %v910, 0.0
    %v915 = vsel %vm891, %v911, 0.0
    %v916 = vadd.f32 %v914, %v915
    %v917 = vsel %vm891, %v912, 0.0
    %v918 = vadd.f32 %v916, %v917
    %v919 = vsel %vm891, %v913, 0.0
    %v920 = vadd.f32 %v918, %v919
    %v921 = vrot.slane %v920, 4
    %v922 = vadd.f32 %v920, %v921
    %v923 = vrot.slane %v922, 2
    %v924 = vadd.f32 %v922, %v923
    %v925 = vrot.slane %v924, 1
    %v926 = vadd.f32 %v924, %v925
    %v927 = vmul.f32 %v926, %v658
    %v928 = vadd.f32 %v927, 1e-05
    %v929 = vrsqrt.pop %v928
    %v930 = vmul.f32 %v929, %v928
    %v931 = vmul.f32 %v930, %v929
    %v932 = vmul.f32 0.5, %v931
    %v933 = vsub.f32 1.5, %v932
    %v934 = vmul.f32 %v929, %v933
    %vm935 = vweird.f32 %v928
    %vm936 = vweird.f32 %v929
    %vm937 = vmor %vm935, %vm936
    %v938 = vsel %vm937, %v929, %v934
    %v939 = vmul.f32 %v906, %v938
    %v940 = vmul.f32 %v907, %v938
    %v941 = vmul.f32 %v908, %v938
    %v942 = vmul.f32 %v909, %v938
    %v943 = vld [vmem:[#allocation16] sm:$0x1]
    %v945 = vperm.slane %v943, 0
    %v947 = vmul.f32 %v939, %v945
    %v948 = vmul.f32 %v940, %v945
    %v949 = vmul.f32 %v941, %v945
    %v950 = vmul.f32 %v942, %v945
    %v951 = vld [vmem:[%s31] sm:$0x1]
    %v953 = vperm.slane %v951, 0
    %v955 = vadd.f32 %v947, %v953
    %v956 = vadd.f32 %v948, %v953
    %v957 = vadd.f32 %v949, %v953
    %v958 = vadd.f32 %v950, %v953
    %v959 = vmax.f32 %v955, 0.0
    %v960 = vmax.f32 %v956, 0.0
    %v961 = vmax.f32 %v957, 0.0
    %v962 = vmax.f32 %v958, 0.0
    %v963 = vld [vmem:[%s33] sm:$0xff]
    %v964 = vld [vmem:[%s33 + $0x8] sm:$0xff]
    %v966 = vsel %vm891, %v959, 0
    %v969 = vsel %vm891, %v960, 0
    %v972 = vsel %vm891, %v961, 0
    %v975 = vsel %vm891, %v962, 0
    %977 = vmatpush.msra.mxu0 0.0
    %978 = vmatpush.msra.mxu0 0.0
    %979 = vmatpush.msra.mxu0 0.0
    %980 = vmatpush.msra.mxu0 0.0
    %981 = vmatpush.msra.mxu0 0.0
    %982 = vmatpush.msra.mxu0 0.0
    %983 = vmatpush.msra.mxu0 0.0
    %984 = vmatpush.msra.mxu0 0.0
    %985 = vmatpush.msra.mxu0 0.0
    %986 = vmatpush.msra.mxu0 0.0
    %987 = vmatpush.msra.mxu0 0.0
    %988 = vmatpush.msra.mxu0 0.0
    %989 = vmatpush.msra.mxu0 0.0
    %990 = vmatpush.msra.mxu0 0.0
    %991 = vmatpush.msra.mxu0 %v964
    %992 = vmatpush.msra.mxu0 %v963
    %993 = vmatmul.f32.gmra.mxu0 %v966
    %v994 = vpop.f32.mrf.mxu0
    %v995 = vadd.f32 0.0, %v994
    %996 = vmatmul.f32.gmra.mxu0 %v969
    %v997 = vpop.f32.mrf.mxu0
    %v998 = vadd.f32 0.0, %v997
    %999 = vmatmul.f32.gmra.mxu0 %v972
    %v1000 = vpop.f32.mrf.mxu0
    %v1001 = vadd.f32 0.0, %v1000
    %1002 = vmatmul.f32.gmra.mxu0 %v975
    %v1003 = vpop.f32.mrf.mxu0
    %v1004 = vadd.f32 0.0, %v1003
    %1005 = vdwg.mxu0
    %s1006 = scalar_lea.vmem %s33, 16
    %v1007 = vld [vmem:[%s1006] sm:$0xff]
    %v1008 = vld [vmem:[%s1006 + $0x8] sm:$0xff]
    %1009 = vmatpush.msra.mxu0 0.0
    %1010 = vmatpush.msra.mxu0 0.0
    %1011 = vmatpush.msra.mxu0 0.0
    %1012 = vmatpush.msra.mxu0 0.0
    %1013 = vmatpush.msra.mxu0 0.0
    %1014 = vmatpush.msra.mxu0 0.0
    %1015 = vmatpush.msra.mxu0 0.0
    %1016 = vmatpush.msra.mxu0 0.0
    %1017 = vmatpush.msra.mxu0 0.0
    %1018 = vmatpush.msra.mxu0 0.0
    %1019 = vmatpush.msra.mxu0 0.0
    %1020 = vmatpush.msra.mxu0 0.0
    %1021 = vmatpush.msra.mxu0 0.0
    %1022 = vmatpush.msra.mxu0 0.0
    %1023 = vmatpush.msra.mxu0 %v1008
    %1024 = vmatpush.msra.mxu0 %v1007
    %1025 = vmatmul.f32.gmra.mxu0 %v966
    %v1026 = vpop.f32.mrf.mxu0
    %v1027 = vadd.f32 0.0, %v1026
    %1028 = vmatmul.f32.gmra.mxu0 %v969
    %v1029 = vpop.f32.mrf.mxu0
    %v1030 = vadd.f32 0.0, %v1029
    %1031 = vmatmul.f32.gmra.mxu0 %v972
    %v1032 = vpop.f32.mrf.mxu0
    %v1033 = vadd.f32 0.0, %v1032
    %1034 = vmatmul.f32.gmra.mxu0 %v975
    %v1035 = vpop.f32.mrf.mxu0
    %v1036 = vadd.f32 0.0, %v1035
    %1037 = vdwg.mxu0
    %1038 = vmatpush.msra.mxu0 0.0
    %1039 = vmatpush.msra.mxu0 0.0
    %1040 = vmatpush.msra.mxu0 0.0
    %1041 = vmatpush.msra.mxu0 0.0
    %1042 = vmatpush.msra.mxu0 0.0
    %1043 = vmatpush.msra.mxu0 0.0
    %1044 = vmatpush.msra.mxu0 0.0
    %1045 = vmatpush.msra.mxu0 0.0
    %1046 = vmatpush.msra.mxu0 0.0
    %1047 = vmatpush.msra.mxu0 0.0
    %1048 = vmatpush.msra.mxu0 0.0
    %1049 = vmatpush.msra.mxu0 0.0
    %1050 = vmatpush.msra.mxu0 %v1004
    %1051 = vmatpush.msra.mxu0 %v1001
    %1052 = vmatpush.msra.mxu0 %v998
    %1053 = vmatpush.msra.mxu0 %v995
    %1054 = vmatmul.f32.gmra.mxu0 %v515
    %v1055 = vpop.f32.mrf.mxu0
    %v1056 = vadd.f32 %v1027, %v1055
    %1057 = vmatmul.f32.gmra.mxu0 %v518
    %v1058 = vpop.f32.mrf.mxu0
    %v1059 = vadd.f32 %v1030, %v1058
    %1060 = vmatmul.f32.gmra.mxu0 %v521
    %v1061 = vpop.f32.mrf.mxu0
    %v1062 = vadd.f32 %v1033, %v1061
    %1063 = vmatmul.f32.gmra.mxu0 %v524
    %v1064 = vpop.f32.mrf.mxu0
    %v1065 = vadd.f32 %v1036, %v1064
    %1066 = vdwg.mxu0
    %s1067 = scalar_lea.vmem %s33, 32
    %v1068 = vld [vmem:[%s1067] sm:$0xff]
    %v1069 = vld [vmem:[%s1067 + $0x8] sm:$0xff]
    %1070 = vmatpush.msra.mxu0 0.0
    %1071 = vmatpush.msra.mxu0 0.0
    %1072 = vmatpush.msra.mxu0 0.0
    %1073 = vmatpush.msra.mxu0 0.0
    %1074 = vmatpush.msra.mxu0 0.0
    %1075 = vmatpush.msra.mxu0 0.0
    %1076 = vmatpush.msra.mxu0 0.0
    %1077 = vmatpush.msra.mxu0 0.0
    %1078 = vmatpush.msra.mxu0 0.0
    %1079 = vmatpush.msra.mxu0 0.0
    %1080 = vmatpush.msra.mxu0 0.0
    %1081 = vmatpush.msra.mxu0 0.0
    %1082 = vmatpush.msra.mxu0 0.0
    %1083 = vmatpush.msra.mxu0 0.0
    %1084 = vmatpush.msra.mxu0 %v1069
    %1085 = vmatpush.msra.mxu0 %v1068
    %1086 = vmatmul.f32.gmra.mxu0 %v966
    %v1087 = vpop.f32.mrf.mxu0
    %v1088 = vadd.f32 0.0, %v1087
    %1089 = vmatmul.f32.gmra.mxu0 %v969
    %v1090 = vpop.f32.mrf.mxu0
    %v1091 = vadd.f32 0.0, %v1090
    %1092 = vmatmul.f32.gmra.mxu0 %v972
    %v1093 = vpop.f32.mrf.mxu0
    %v1094 = vadd.f32 0.0, %v1093
    %1095 = vmatmul.f32.gmra.mxu0 %v975
    %v1096 = vpop.f32.mrf.mxu0
    %v1097 = vadd.f32 0.0, %v1096
    %1098 = vdwg.mxu0
    %1099 = vmatpush.msra.mxu0 0.0
    %1100 = vmatpush.msra.mxu0 0.0
    %1101 = vmatpush.msra.mxu0 0.0
    %1102 = vmatpush.msra.mxu0 0.0
    %1103 = vmatpush.msra.mxu0 0.0
    %1104 = vmatpush.msra.mxu0 0.0
    %1105 = vmatpush.msra.mxu0 0.0
    %1106 = vmatpush.msra.mxu0 0.0
    %1107 = vmatpush.msra.mxu0 0.0
    %1108 = vmatpush.msra.mxu0 0.0
    %1109 = vmatpush.msra.mxu0 0.0
    %1110 = vmatpush.msra.mxu0 0.0
    %1111 = vmatpush.msra.mxu0 %v1097
    %1112 = vmatpush.msra.mxu0 %v1094
    %1113 = vmatpush.msra.mxu0 %v1091
    %1114 = vmatpush.msra.mxu0 %v1088
    %1115 = vmatmul.f32.gmra.mxu0 %v587
    %v1116 = vpop.f32.mrf.mxu0
    %v1117 = vadd.f32 0.0, %v1116
    %1118 = vmatmul.f32.gmra.mxu0 %v590
    %v1119 = vpop.f32.mrf.mxu0
    %v1120 = vadd.f32 0.0, %v1119
    %1121 = vmatmul.f32.gmra.mxu0 %v593
    %v1122 = vpop.f32.mrf.mxu0
    %v1123 = vadd.f32 0.0, %v1122
    %1124 = vmatmul.f32.gmra.mxu0 %v596
    %v1125 = vpop.f32.mrf.mxu0
    %v1126 = vadd.f32 0.0, %v1125
    %1127 = vdwg.mxu0
    %v1128 = vadd.f32 %v1056, %v1117
    %v1129 = vadd.f32 %v1059, %v1120
    %v1130 = vadd.f32 %v1062, %v1123
    %v1131 = vadd.f32 %v1065, %v1126
    %v1132 = vld [vmem:[%s35] sm:$0x1]
    %v1134 = vperm.slane %v1132, 0
    %v1136 = vadd.f32 %v1128, %v1134
    %v1137 = vadd.f32 %v1129, %v1134
    %v1138 = vadd.f32 %v1130, %v1134
    %v1139 = vadd.f32 %v1131, %v1134
    %v1140 = vsel %vm891, %v1136, 0.0
    %v1141 = vsel %vm891, %v1137, 0.0
    %v1142 = vadd.f32 %v1140, %v1141
    %v1143 = vsel %vm891, %v1138, 0.0
    %v1144 = vadd.f32 %v1142, %v1143
    %v1145 = vsel %vm891, %v1139, 0.0
    %v1146 = vadd.f32 %v1144, %v1145
    %v1147 = vrot.slane %v1146, 4
    %v1148 = vadd.f32 %v1146, %v1147
    %v1149 = vrot.slane %v1148, 2
    %v1150 = vadd.f32 %v1148, %v1149
    %v1151 = vrot.slane %v1150, 1
    %v1152 = vadd.f32 %v1150, %v1151
    %v1153 = vmul.f32 %v1152, %v658
    %v1154 = vsub.f32 %v1136, %v1153
    %v1155 = vsub.f32 %v1137, %v1153
    %v1156 = vsub.f32 %v1138, %v1153
    %v1157 = vsub.f32 %v1139, %v1153
    %v1158 = vmul.f32 %v1154, %v1154
    %v1159 = vmul.f32 %v1155, %v1155
    %v1160 = vmul.f32 %v1156, %v1156
    %v1161 = vmul.f32 %v1157, %v1157
    %v1162 = vsel %vm891, %v1158, 0.0
    %v1163 = vsel %vm891, %v1159, 0.0
    %v1164 = vadd.f32 %v1162, %v1163
    %v1165 = vsel %vm891, %v1160, 0.0
    %v1166 = vadd.f32 %v1164, %v1165
    %v1167 = vsel %vm891, %v1161, 0.0
    %v1168 = vadd.f32 %v1166, %v1167
    %v1169 = vrot.slane %v1168, 4
    %v1170 = vadd.f32 %v1168, %v1169
    %v1171 = vrot.slane %v1170, 2
    %v1172 = vadd.f32 %v1170, %v1171
    %v1173 = vrot.slane %v1172, 1
    %v1174 = vadd.f32 %v1172, %v1173
    %v1175 = vmul.f32 %v1174, %v658
    %v1176 = vadd.f32 %v1175, 1e-05
    %v1177 = vrsqrt.pop %v1176
    %v1178 = vmul.f32 %v1177, %v1176
    %v1179 = vmul.f32 %v1178, %v1177
    %v1180 = vmul.f32 0.5, %v1179
    %v1181 = vsub.f32 1.5, %v1180
    %v1182 = vmul.f32 %v1177, %v1181
    %vm1183 = vweird.f32 %v1176
    %vm1184 = vweird.f32 %v1177
    %vm1185 = vmor %vm1183, %vm1184
    %v1186 = vsel %vm1185, %v1177, %v1182
    %v1187 = vmul.f32 %v1154, %v1186
    %v1188 = vmul.f32 %v1155, %v1186
    %v1189 = vmul.f32 %v1156, %v1186
    %v1190 = vmul.f32 %v1157, %v1186
    %v1191 = vld [vmem:[%s37] sm:$0x1]
    %v1193 = vperm.slane %v1191, 0
    %v1195 = vmul.f32 %v1187, %v1193
    %v1196 = vmul.f32 %v1188, %v1193
    %v1197 = vmul.f32 %v1189, %v1193
    %v1198 = vmul.f32 %v1190, %v1193
    %v1199 = vld [vmem:[%s39] sm:$0x1]
    %v1201 = vperm.slane %v1199, 0
    %v1203 = vadd.f32 %v1195, %v1201
    %v1204 = vadd.f32 %v1196, %v1201
    %v1205 = vadd.f32 %v1197, %v1201
    %v1206 = vadd.f32 %v1198, %v1201
    %v1207 = vmax.f32 %v1203, 0.0
    %v1208 = vmax.f32 %v1204, 0.0
    %v1209 = vmax.f32 %v1205, 0.0
    %v1210 = vmax.f32 %v1206, 0.0
    %v1211 = vld [vmem:[%s9] sm:$0x3]
    %v1213 = vsel %vm513, %v1211, 0
    %1215 = vmatpush.msra.mxu0 0.0
    %1216 = vmatpush.msra.mxu0 0.0
    %1217 = vmatpush.msra.mxu0 0.0
    %1218 = vmatpush.msra.mxu0 0.0
    %1219 = vmatpush.msra.mxu0 0.0
    %1220 = vmatpush.msra.mxu0 0.0
    %1221 = vmatpush.msra.mxu0 0.0
    %1222 = vmatpush.msra.mxu0 0.0
    %1223 = vmatpush.msra.mxu0 0.0
    %1224 = vmatpush.msra.mxu0 0.0
    %1225 = vmatpush.msra.mxu0 0.0
    %1226 = vmatpush.msra.mxu0 0.0
    %1227 = vmatpush.msra.mxu0 %v1210
    %1228 = vmatpush.msra.mxu0 %v1209
    %1229 = vmatpush.msra.mxu0 %v1208
    %1230 = vmatpush.msra.mxu0 %v1207
    %1231 = vmatmul.f32.gmra.mxu0 %v1213
    %v1232 = vpop.f32.mrf.mxu0
    %v1233 = vadd.f32 0.0, %v1232
    %1234 = vdwg.mxu0
    %v1235 = vld [vmem:[%s41] sm:$0xff]
    %v1236 = vld [vmem:[%s41 + $0x8] sm:$0xff]
    %v1237 = vld [vmem:[%s45] sm:$0xff]
    %v1238 = vld [vmem:[%s45 + $0x8] sm:$0xff]
    %s1239 = scalar_lea.vmem %s9, 2
    %v1240 = vld [vmem:[%s1239] sm:$0x3]
    %v1242 = vsel %vm513, %v1240, 0
    %1244 = vmatpush.msra.mxu0 0.0
    %1245 = vmatpush.msra.mxu0 0.0
    %1246 = vmatpush.msra.mxu0 0.0
    %1247 = vmatpush.msra.mxu0 0.0
    %1248 = vmatpush.msra.mxu0 0.0
    %1249 = vmatpush.msra.mxu0 0.0
    %1250 = vmatpush.msra.mxu0 0.0
    %1251 = vmatpush.msra.mxu0 0.0
    %1252 = vmatpush.msra.mxu0 0.0
    %1253 = vmatpush.msra.mxu0 0.0
    %1254 = vmatpush.msra.mxu0 0.0
    %1255 = vmatpush.msra.mxu0 0.0
    %1256 = vmatpush.msra.mxu0 %v1210
    %1257 = vmatpush.msra.mxu0 %v1209
    %1258 = vmatpush.msra.mxu0 %v1208
    %1259 = vmatpush.msra.mxu0 %v1207
    %1260 = vmatmul.f32.gmra.mxu0 %v1242
    %v1261 = vpop.f32.mrf.mxu0
    %v1262 = vadd.f32 0.0, %v1261
    %1263 = vdwg.mxu0
    %s1264 = scalar_lea.vmem %s41, 16
    %v1265 = vld [vmem:[%s1264] sm:$0xff]
    %v1266 = vld [vmem:[%s1264 + $0x8] sm:$0xff]
    %v1268 = vsel %vm891, %v1262, 0
    %1270 = vmatpush.msra.mxu0 0.0
    %1271 = vmatpush.msra.mxu0 0.0
    %1272 = vmatpush.msra.mxu0 0.0
    %1273 = vmatpush.msra.mxu0 0.0
    %1274 = vmatpush.msra.mxu0 0.0
    %1275 = vmatpush.msra.mxu0 0.0
    %1276 = vmatpush.msra.mxu0 0.0
    %1277 = vmatpush.msra.mxu0 0.0
    %1278 = vmatpush.msra.mxu0 0.0
    %1279 = vmatpush.msra.mxu0 0.0
    %1280 = vmatpush.msra.mxu0 0.0
    %1281 = vmatpush.msra.mxu0 0.0
    %1282 = vmatpush.msra.mxu0 0.0
    %1283 = vmatpush.msra.mxu0 0.0
    %1284 = vmatpush.msra.mxu0 %v1266
    %1285 = vmatpush.msra.mxu0 %v1265
    %1286 = vmatmul.f32.gmra.mxu0 %v1268
    %v1287 = vpop.f32.mrf.mxu0
    %v1288 = vadd.f32 0.0, %v1287
    %1289 = vdwg.mxu0
    %v1291 = vsel %vm891, %v1233, 0
    %1293 = vmatpush.msra.mxu0 0.0
    %1294 = vmatpush.msra.mxu0 0.0
    %1295 = vmatpush.msra.mxu0 0.0
    %1296 = vmatpush.msra.mxu0 0.0
    %1297 = vmatpush.msra.mxu0 0.0
    %1298 = vmatpush.msra.mxu0 0.0
    %1299 = vmatpush.msra.mxu0 0.0
    %1300 = vmatpush.msra.mxu0 0.0
    %1301 = vmatpush.msra.mxu0 0.0
    %1302 = vmatpush.msra.mxu0 0.0
    %1303 = vmatpush.msra.mxu0 0.0
    %1304 = vmatpush.msra.mxu0 0.0
    %1305 = vmatpush.msra.mxu0 0.0
    %1306 = vmatpush.msra.mxu0 0.0
    %1307 = vmatpush.msra.mxu0 %v1236
    %1308 = vmatpush.msra.mxu0 %v1235
    %1309 = vmatmul.f32.gmra.mxu0 %v1291
    %v1310 = vpop.f32.mrf.mxu0
    %v1311 = vadd.f32 %v1288, %v1310
    %1312 = vdwg.mxu0
    %s1313 = scalar_lea.vmem %s45, 16
    %v1314 = vld [vmem:[%s1313] sm:$0xff]
    %v1315 = vld [vmem:[%s1313 + $0x8] sm:$0xff]
    %1316 = vmatpush.msra.mxu0 0.0
    %1317 = vmatpush.msra.mxu0 0.0
    %1318 = vmatpush.msra.mxu0 0.0
    %1319 = vmatpush.msra.mxu0 0.0
    %1320 = vmatpush.msra.mxu0 0.0
    %1321 = vmatpush.msra.mxu0 0.0
    %1322 = vmatpush.msra.mxu0 0.0
    %1323 = vmatpush.msra.mxu0 0.0
    %1324 = vmatpush.msra.mxu0 0.0
    %1325 = vmatpush.msra.mxu0 0.0
    %1326 = vmatpush.msra.mxu0 0.0
    %1327 = vmatpush.msra.mxu0 0.0
    %1328 = vmatpush.msra.mxu0 0.0
    %1329 = vmatpush.msra.mxu0 0.0
    %1330 = vmatpush.msra.mxu0 %v1315
    %1331 = vmatpush.msra.mxu0 %v1314
    %1332 = vmatmul.f32.gmra.mxu0 %v1268
    %v1333 = vpop.f32.mrf.mxu0
    %v1334 = vadd.f32 0.0, %v1333
    %1335 = vdwg.mxu0
    %1336 = vmatpush.msra.mxu0 0.0
    %1337 = vmatpush.msra.mxu0 0.0
    %1338 = vmatpush.msra.mxu0 0.0
    %1339 = vmatpush.msra.mxu0 0.0
    %1340 = vmatpush.msra.mxu0 0.0
    %1341 = vmatpush.msra.mxu0 0.0
    %1342 = vmatpush.msra.mxu0 0.0
    %1343 = vmatpush.msra.mxu0 0.0
    %1344 = vmatpush.msra.mxu0 0.0
    %1345 = vmatpush.msra.mxu0 0.0
    %1346 = vmatpush.msra.mxu0 0.0
    %1347 = vmatpush.msra.mxu0 0.0
    %1348 = vmatpush.msra.mxu0 0.0
    %1349 = vmatpush.msra.mxu0 0.0
    %1350 = vmatpush.msra.mxu0 %v1238
    %1351 = vmatpush.msra.mxu0 %v1237
    %1352 = vmatmul.f32.gmra.mxu0 %v1291
    %v1353 = vpop.f32.mrf.mxu0
    %v1354 = vadd.f32 %v1334, %v1353
    %1355 = vdwg.mxu0
    %s1356 = scalar_lea.vmem %s9, 4
    %v1357 = vld [vmem:[%s1356] sm:$0x3]
    %v1359 = vsel %vm513, %v1357, 0
    %1361 = vmatpush.msra.mxu0 0.0
    %1362 = vmatpush.msra.mxu0 0.0
    %1363 = vmatpush.msra.mxu0 0.0
    %1364 = vmatpush.msra.mxu0 0.0
    %1365 = vmatpush.msra.mxu0 0.0
    %1366 = vmatpush.msra.mxu0 0.0
    %1367 = vmatpush.msra.mxu0 0.0
    %1368 = vmatpush.msra.mxu0 0.0
    %1369 = vmatpush.msra.mxu0 0.0
    %1370 = vmatpush.msra.mxu0 0.0
    %1371 = vmatpush.msra.mxu0 0.0
    %1372 = vmatpush.msra.mxu0 0.0
    %1373 = vmatpush.msra.mxu0 %v1210
    %1374 = vmatpush.msra.mxu0 %v1209
    %1375 = vmatpush.msra.mxu0 %v1208
    %1376 = vmatpush.msra.mxu0 %v1207
    %1377 = vmatmul.f32.gmra.mxu0 %v1359
    %v1378 = vpop.f32.mrf.mxu0
    %v1379 = vadd.f32 0.0, %v1378
    %1380 = vdwg.mxu0
    %s1381 = scalar_lea.vmem %s41, 32
    %v1382 = vld [vmem:[%s1381] sm:$0xff]
    %v1383 = vld [vmem:[%s1381 + $0x8] sm:$0xff]
    %v1385 = vsel %vm891, %v1379, 0
    %1387 = vmatpush.msra.mxu0 0.0
    %1388 = vmatpush.msra.mxu0 0.0
    %1389 = vmatpush.msra.mxu0 0.0
    %1390 = vmatpush.msra.mxu0 0.0
    %1391 = vmatpush.msra.mxu0 0.0
    %1392 = vmatpush.msra.mxu0 0.0
    %1393 = vmatpush.msra.mxu0 0.0
    %1394 = vmatpush.msra.mxu0 0.0
    %1395 = vmatpush.msra.mxu0 0.0
    %1396 = vmatpush.msra.mxu0 0.0
    %1397 = vmatpush.msra.mxu0 0.0
    %1398 = vmatpush.msra.mxu0 0.0
    %1399 = vmatpush.msra.mxu0 0.0
    %1400 = vmatpush.msra.mxu0 0.0
    %1401 = vmatpush.msra.mxu0 %v1383
    %1402 = vmatpush.msra.mxu0 %v1382
    %1403 = vmatmul.f32.gmra.mxu0 %v1385
    %v1404 = vpop.f32.mrf.mxu0
    %v1405 = vadd.f32 0.0, %v1404
    %1406 = vdwg.mxu0
    %v1407 = vadd.f32 %v1311, %v1405
    %s1408 = scalar_lea.vmem %s45, 32
    %v1409 = vld [vmem:[%s1408] sm:$0xff]
    %v1410 = vld [vmem:[%s1408 + $0x8] sm:$0xff]
    %1411 = vmatpush.msra.mxu0 0.0
    %1412 = vmatpush.msra.mxu0 0.0
    %1413 = vmatpush.msra.mxu0 0.0
    %1414 = vmatpush.msra.mxu0 0.0
    %1415 = vmatpush.msra.mxu0 0.0
    %1416 = vmatpush.msra.mxu0 0.0
    %1417 = vmatpush.msra.mxu0 0.0
    %1418 = vmatpush.msra.mxu0 0.0
    %1419 = vmatpush.msra.mxu0 0.0
    %1420 = vmatpush.msra.mxu0 0.0
    %1421 = vmatpush.msra.mxu0 0.0
    %1422 = vmatpush.msra.mxu0 0.0
    %1423 = vmatpush.msra.mxu0 0.0
    %1424 = vmatpush.msra.mxu0 0.0
    %1425 = vmatpush.msra.mxu0 %v1410
    %1426 = vmatpush.msra.mxu0 %v1409
    %1427 = vmatmul.f32.gmra.mxu0 %v1385
    %v1428 = vpop.f32.mrf.mxu0
    %v1429 = vadd.f32 0.0, %v1428
    %1430 = vdwg.mxu0
    %v1431 = vadd.f32 %v1354, %v1429
    %s1432 = scalar_lea.vmem %s9, 6
    %v1433 = vld [vmem:[%s1432] sm:$0x3]
    %v1435 = vsel %vm513, %v1433, 0
    %1437 = vmatpush.msra.mxu0 0.0
    %1438 = vmatpush.msra.mxu0 0.0
    %1439 = vmatpush.msra.mxu0 0.0
    %1440 = vmatpush.msra.mxu0 0.0
    %1441 = vmatpush.msra.mxu0 0.0
    %1442 = vmatpush.msra.mxu0 0.0
    %1443 = vmatpush.msra.mxu0 0.0
    %1444 = vmatpush.msra.mxu0 0.0
    %1445 = vmatpush.msra.mxu0 0.0
    %1446 = vmatpush.msra.mxu0 0.0
    %1447 = vmatpush.msra.mxu0 0.0
    %1448 = vmatpush.msra.mxu0 0.0
    %1449 = vmatpush.msra.mxu0 %v1210
    %1450 = vmatpush.msra.mxu0 %v1209
    %1451 = vmatpush.msra.mxu0 %v1208
    %1452 = vmatpush.msra.mxu0 %v1207
    %1453 = vmatmul.f32.gmra.mxu0 %v1435
    %v1454 = vpop.f32.mrf.mxu0
    %v1455 = vadd.f32 0.0, %v1454
    %1456 = vdwg.mxu0
    %s1457 = scalar_lea.vmem %s41, 48
    %v1458 = vld [vmem:[%s1457] sm:$0xff]
    %v1459 = vld [vmem:[%s1457 + $0x8] sm:$0xff]
    %v1461 = vsel %vm891, %v1455, 0
    %1463 = vmatpush.msra.mxu0 0.0
    %1464 = vmatpush.msra.mxu0 0.0
    %1465 = vmatpush.msra.mxu0 0.0
    %1466 = vmatpush.msra.mxu0 0.0
    %1467 = vmatpush.msra.mxu0 0.0
    %1468 = vmatpush.msra.mxu0 0.0
    %1469 = vmatpush.msra.mxu0 0.0
    %1470 = vmatpush.msra.mxu0 0.0
    %1471 = vmatpush.msra.mxu0 0.0
    %1472 = vmatpush.msra.mxu0 0.0
    %1473 = vmatpush.msra.mxu0 0.0
    %1474 = vmatpush.msra.mxu0 0.0
    %1475 = vmatpush.msra.mxu0 0.0
    %1476 = vmatpush.msra.mxu0 0.0
    %1477 = vmatpush.msra.mxu0 %v1459
    %1478 = vmatpush.msra.mxu0 %v1458
    %1479 = vmatmul.f32.gmra.mxu0 %v1461
    %v1480 = vpop.f32.mrf.mxu0
    %v1481 = vadd.f32 0.0, %v1480
    %1482 = vdwg.mxu0
    %v1483 = vadd.f32 %v1407, %v1481
    %s1484 = scalar_lea.vmem %s45, 48
    %v1485 = vld [vmem:[%s1484] sm:$0xff]
    %v1486 = vld [vmem:[%s1484 + $0x8] sm:$0xff]
    %1487 = vmatpush.msra.mxu0 0.0
    %1488 = vmatpush.msra.mxu0 0.0
    %1489 = vmatpush.msra.mxu0 0.0
    %1490 = vmatpush.msra.mxu0 0.0
    %1491 = vmatpush.msra.mxu0 0.0
    %1492 = vmatpush.msra.mxu0 0.0
    %1493 = vmatpush.msra.mxu0 0.0
    %1494 = vmatpush.msra.mxu0 0.0
    %1495 = vmatpush.msra.mxu0 0.0
    %1496 = vmatpush.msra.mxu0 0.0
    %1497 = vmatpush.msra.mxu0 0.0
    %1498 = vmatpush.msra.mxu0 0.0
    %1499 = vmatpush.msra.mxu0 0.0
    %1500 = vmatpush.msra.mxu0 0.0
    %1501 = vmatpush.msra.mxu0 %v1486
    %1502 = vmatpush.msra.mxu0 %v1485
    %1503 = vmatmul.f32.gmra.mxu0 %v1461
    %v1504 = vpop.f32.mrf.mxu0
    %v1505 = vadd.f32 0.0, %v1504
    %1506 = vdwg.mxu0
    %v1507 = vadd.f32 %v1431, %v1505
    %s1508 = scalar_lea.vmem %s9, 8
    %v1509 = vld [vmem:[%s1508] sm:$0x3]
    %v1511 = vsel %vm513, %v1509, 0
    %1513 = vmatpush.msra.mxu0 0.0
    %1514 = vmatpush.msra.mxu0 0.0
    %1515 = vmatpush.msra.mxu0 0.0
    %1516 = vmatpush.msra.mxu0 0.0
    %1517 = vmatpush.msra.mxu0 0.0
    %1518 = vmatpush.msra.mxu0 0.0
    %1519 = vmatpush.msra.mxu0 0.0
    %1520 = vmatpush.msra.mxu0 0.0
    %1521 = vmatpush.msra.mxu0 0.0
    %1522 = vmatpush.msra.mxu0 0.0
    %1523 = vmatpush.msra.mxu0 0.0
    %1524 = vmatpush.msra.mxu0 0.0
    %1525 = vmatpush.msra.mxu0 %v1210
    %1526 = vmatpush.msra.mxu0 %v1209
    %1527 = vmatpush.msra.mxu0 %v1208
    %1528 = vmatpush.msra.mxu0 %v1207
    %1529 = vmatmul.f32.gmra.mxu0 %v1511
    %v1530 = vpop.f32.mrf.mxu0
    %v1531 = vadd.f32 0.0, %v1530
    %1532 = vdwg.mxu0
    %s1533 = scalar_lea.vmem %s41, 64
    %v1534 = vld [vmem:[%s1533] sm:$0xff]
    %v1535 = vld [vmem:[%s1533 + $0x8] sm:$0xff]
    %v1537 = vsel %vm891, %v1531, 0
    %1539 = vmatpush.msra.mxu0 0.0
    %1540 = vmatpush.msra.mxu0 0.0
    %1541 = vmatpush.msra.mxu0 0.0
    %1542 = vmatpush.msra.mxu0 0.0
    %1543 = vmatpush.msra.mxu0 0.0
    %1544 = vmatpush.msra.mxu0 0.0
    %1545 = vmatpush.msra.mxu0 0.0
    %1546 = vmatpush.msra.mxu0 0.0
    %1547 = vmatpush.msra.mxu0 0.0
    %1548 = vmatpush.msra.mxu0 0.0
    %1549 = vmatpush.msra.mxu0 0.0
    %1550 = vmatpush.msra.mxu0 0.0
    %1551 = vmatpush.msra.mxu0 0.0
    %1552 = vmatpush.msra.mxu0 0.0
    %1553 = vmatpush.msra.mxu0 %v1535
    %1554 = vmatpush.msra.mxu0 %v1534
    %1555 = vmatmul.f32.gmra.mxu0 %v1537
    %v1556 = vpop.f32.mrf.mxu0
    %v1557 = vadd.f32 0.0, %v1556
    %1558 = vdwg.mxu0
    %v1559 = vadd.f32 %v1483, %v1557
    %s1560 = scalar_lea.vmem %s45, 64
    %v1561 = vld [vmem:[%s1560] sm:$0xff]
    %v1562 = vld [vmem:[%s1560 + $0x8] sm:$0xff]
    %1563 = vmatpush.msra.mxu0 0.0
    %1564 = vmatpush.msra.mxu0 0.0
    %1565 = vmatpush.msra.mxu0 0.0
    %1566 = vmatpush.msra.mxu0 0.0
    %1567 = vmatpush.msra.mxu0 0.0
    %1568 = vmatpush.msra.mxu0 0.0
    %1569 = vmatpush.msra.mxu0 0.0
    %1570 = vmatpush.msra.mxu0 0.0
    %1571 = vmatpush.msra.mxu0 0.0
    %1572 = vmatpush.msra.mxu0 0.0
    %1573 = vmatpush.msra.mxu0 0.0
    %1574 = vmatpush.msra.mxu0 0.0
    %1575 = vmatpush.msra.mxu0 0.0
    %1576 = vmatpush.msra.mxu0 0.0
    %1577 = vmatpush.msra.mxu0 %v1562
    %1578 = vmatpush.msra.mxu0 %v1561
    %1579 = vmatmul.f32.gmra.mxu0 %v1537
    %v1580 = vpop.f32.mrf.mxu0
    %v1581 = vadd.f32 0.0, %v1580
    %1582 = vdwg.mxu0
    %v1583 = vadd.f32 %v1507, %v1581
    %s1584 = scalar_lea.vmem %s9, 10
    %v1585 = vld [vmem:[%s1584] sm:$0x3]
    %v1587 = vsel %vm513, %v1585, 0
    %1589 = vmatpush.msra.mxu0 0.0
    %1590 = vmatpush.msra.mxu0 0.0
    %1591 = vmatpush.msra.mxu0 0.0
    %1592 = vmatpush.msra.mxu0 0.0
    %1593 = vmatpush.msra.mxu0 0.0
    %1594 = vmatpush.msra.mxu0 0.0
    %1595 = vmatpush.msra.mxu0 0.0
    %1596 = vmatpush.msra.mxu0 0.0
    %1597 = vmatpush.msra.mxu0 0.0
    %1598 = vmatpush.msra.mxu0 0.0
    %1599 = vmatpush.msra.mxu0 0.0
    %1600 = vmatpush.msra.mxu0 0.0
    %1601 = vmatpush.msra.mxu0 %v1210
    %1602 = vmatpush.msra.mxu0 %v1209
    %1603 = vmatpush.msra.mxu0 %v1208
    %1604 = vmatpush.msra.mxu0 %v1207
    %1605 = vmatmul.f32.gmra.mxu0 %v1587
    %v1606 = vpop.f32.mrf.mxu0
    %v1607 = vadd.f32 0.0, %v1606
    %1608 = vdwg.mxu0
    %s1609 = scalar_lea.vmem %s41, 80
    %v1610 = vld [vmem:[%s1609] sm:$0xff]
    %v1611 = vld [vmem:[%s1609 + $0x8] sm:$0xff]
    %v1613 = vsel %vm891, %v1607, 0
    %1615 = vmatpush.msra.mxu0 0.0
    %1616 = vmatpush.msra.mxu0 0.0
    %1617 = vmatpush.msra.mxu0 0.0
    %1618 = vmatpush.msra.mxu0 0.0
    %1619 = vmatpush.msra.mxu0 0.0
    %1620 = vmatpush.msra.mxu0 0.0
    %1621 = vmatpush.msra.mxu0 0.0
    %1622 = vmatpush.msra.mxu0 0.0
    %1623 = vmatpush.msra.mxu0 0.0
    %1624 = vmatpush.msra.mxu0 0.0
    %1625 = vmatpush.msra.mxu0 0.0
    %1626 = vmatpush.msra.mxu0 0.0
    %1627 = vmatpush.msra.mxu0 0.0
    %1628 = vmatpush.msra.mxu0 0.0
    %1629 = vmatpush.msra.mxu0 %v1611
    %1630 = vmatpush.msra.mxu0 %v1610
    %1631 = vmatmul.f32.gmra.mxu0 %v1613
    %v1632 = vpop.f32.mrf.mxu0
    %v1633 = vadd.f32 0.0, %v1632
    %1634 = vdwg.mxu0
    %v1635 = vadd.f32 %v1559, %v1633
    %s1636 = scalar_lea.vmem %s45, 80
    %v1637 = vld [vmem:[%s1636] sm:$0xff]
    %v1638 = vld [vmem:[%s1636 + $0x8] sm:$0xff]
    %1639 = vmatpush.msra.mxu0 0.0
    %1640 = vmatpush.msra.mxu0 0.0
    %1641 = vmatpush.msra.mxu0 0.0
    %1642 = vmatpush.msra.mxu0 0.0
    %1643 = vmatpush.msra.mxu0 0.0
    %1644 = vmatpush.msra.mxu0 0.0
    %1645 = vmatpush.msra.mxu0 0.0
    %1646 = vmatpush.msra.mxu0 0.0
    %1647 = vmatpush.msra.mxu0 0.0
    %1648 = vmatpush.msra.mxu0 0.0
    %1649 = vmatpush.msra.mxu0 0.0
    %1650 = vmatpush.msra.mxu0 0.0
    %1651 = vmatpush.msra.mxu0 0.0
    %1652 = vmatpush.msra.mxu0 0.0
    %1653 = vmatpush.msra.mxu0 %v1638
    %1654 = vmatpush.msra.mxu0 %v1637
    %1655 = vmatmul.f32.gmra.mxu0 %v1613
    %v1656 = vpop.f32.mrf.mxu0
    %v1657 = vadd.f32 0.0, %v1656
    %1658 = vdwg.mxu0
    %v1659 = vadd.f32 %v1583, %v1657
    %s1660 = scalar_lea.vmem %s9, 12
    %v1661 = vld [vmem:[%s1660] sm:$0x3]
    %v1663 = vsel %vm513, %v1661, 0
    %1665 = vmatpush.msra.mxu0 0.0
    %1666 = vmatpush.msra.mxu0 0.0
    %1667 = vmatpush.msra.mxu0 0.0
    %1668 = vmatpush.msra.mxu0 0.0
    %1669 = vmatpush.msra.mxu0 0.0
    %1670 = vmatpush.msra.mxu0 0.0
    %1671 = vmatpush.msra.mxu0 0.0
    %1672 = vmatpush.msra.mxu0 0.0
    %1673 = vmatpush.msra.mxu0 0.0
    %1674 = vmatpush.msra.mxu0 0.0
    %1675 = vmatpush.msra.mxu0 0.0
    %1676 = vmatpush.msra.mxu0 0.0
    %1677 = vmatpush.msra.mxu0 %v1210
    %1678 = vmatpush.msra.mxu0 %v1209
    %1679 = vmatpush.msra.mxu0 %v1208
    %1680 = vmatpush.msra.mxu0 %v1207
    %1681 = vmatmul.f32.gmra.mxu0 %v1663
    %v1682 = vpop.f32.mrf.mxu0
    %v1683 = vadd.f32 0.0, %v1682
    %1684 = vdwg.mxu0
    %s1685 = scalar_lea.vmem %s41, 96
    %v1686 = vld [vmem:[%s1685] sm:$0xff]
    %v1687 = vld [vmem:[%s1685 + $0x8] sm:$0xff]
    %v1689 = vsel %vm891, %v1683, 0
    %1691 = vmatpush.msra.mxu0 0.0
    %1692 = vmatpush.msra.mxu0 0.0
    %1693 = vmatpush.msra.mxu0 0.0
    %1694 = vmatpush.msra.mxu0 0.0
    %1695 = vmatpush.msra.mxu0 0.0
    %1696 = vmatpush.msra.mxu0 0.0
    %1697 = vmatpush.msra.mxu0 0.0
    %1698 = vmatpush.msra.mxu0 0.0
    %1699 = vmatpush.msra.mxu0 0.0
    %1700 = vmatpush.msra.mxu0 0.0
    %1701 = vmatpush.msra.mxu0 0.0
    %1702 = vmatpush.msra.mxu0 0.0
    %1703 = vmatpush.msra.mxu0 0.0
    %1704 = vmatpush.msra.mxu0 0.0
    %1705 = vmatpush.msra.mxu0 %v1687
    %1706 = vmatpush.msra.mxu0 %v1686
    %1707 = vmatmul.f32.gmra.mxu0 %v1689
    %v1708 = vpop.f32.mrf.mxu0
    %v1709 = vadd.f32 0.0, %v1708
    %1710 = vdwg.mxu0
    %v1711 = vadd.f32 %v1635, %v1709
    %s1712 = scalar_lea.vmem %s45, 96
    %v1713 = vld [vmem:[%s1712] sm:$0xff]
    %v1714 = vld [vmem:[%s1712 + $0x8] sm:$0xff]
    %1715 = vmatpush.msra.mxu0 0.0
    %1716 = vmatpush.msra.mxu0 0.0
    %1717 = vmatpush.msra.mxu0 0.0
    %1718 = vmatpush.msra.mxu0 0.0
    %1719 = vmatpush.msra.mxu0 0.0
    %1720 = vmatpush.msra.mxu0 0.0
    %1721 = vmatpush.msra.mxu0 0.0
    %1722 = vmatpush.msra.mxu0 0.0
    %1723 = vmatpush.msra.mxu0 0.0
    %1724 = vmatpush.msra.mxu0 0.0
    %1725 = vmatpush.msra.mxu0 0.0
    %1726 = vmatpush.msra.mxu0 0.0
    %1727 = vmatpush.msra.mxu0 0.0
    %1728 = vmatpush.msra.mxu0 0.0
    %1729 = vmatpush.msra.mxu0 %v1714
    %1730 = vmatpush.msra.mxu0 %v1713
    %1731 = vmatmul.f32.gmra.mxu0 %v1689
    %v1732 = vpop.f32.mrf.mxu0
    %v1733 = vadd.f32 0.0, %v1732
    %1734 = vdwg.mxu0
    %v1735 = vadd.f32 %v1659, %v1733
    %s1736 = scalar_lea.vmem %s9, 14
    %v1737 = vld [vmem:[%s1736] sm:$0x3]
    %v1739 = vsel %vm513, %v1737, 0
    %1741 = vmatpush.msra.mxu0 0.0
    %1742 = vmatpush.msra.mxu0 0.0
    %1743 = vmatpush.msra.mxu0 0.0
    %1744 = vmatpush.msra.mxu0 0.0
    %1745 = vmatpush.msra.mxu0 0.0
    %1746 = vmatpush.msra.mxu0 0.0
    %1747 = vmatpush.msra.mxu0 0.0
    %1748 = vmatpush.msra.mxu0 0.0
    %1749 = vmatpush.msra.mxu0 0.0
    %1750 = vmatpush.msra.mxu0 0.0
    %1751 = vmatpush.msra.mxu0 0.0
    %1752 = vmatpush.msra.mxu0 0.0
    %1753 = vmatpush.msra.mxu0 %v1210
    %1754 = vmatpush.msra.mxu0 %v1209
    %1755 = vmatpush.msra.mxu0 %v1208
    %1756 = vmatpush.msra.mxu0 %v1207
    %1757 = vmatmul.f32.gmra.mxu0 %v1739
    %v1758 = vpop.f32.mrf.mxu0
    %v1759 = vadd.f32 0.0, %v1758
    %1760 = vdwg.mxu0
    %s1761 = scalar_lea.vmem %s41, 112
    %v1762 = vld [vmem:[%s1761] sm:$0xff]
    %v1763 = vld [vmem:[%s1761 + $0x8] sm:$0xff]
    %v1765 = vsel %vm891, %v1759, 0
    %1767 = vmatpush.msra.mxu0 0.0
    %1768 = vmatpush.msra.mxu0 0.0
    %1769 = vmatpush.msra.mxu0 0.0
    %1770 = vmatpush.msra.mxu0 0.0
    %1771 = vmatpush.msra.mxu0 0.0
    %1772 = vmatpush.msra.mxu0 0.0
    %1773 = vmatpush.msra.mxu0 0.0
    %1774 = vmatpush.msra.mxu0 0.0
    %1775 = vmatpush.msra.mxu0 0.0
    %1776 = vmatpush.msra.mxu0 0.0
    %1777 = vmatpush.msra.mxu0 0.0
    %1778 = vmatpush.msra.mxu0 0.0
    %1779 = vmatpush.msra.mxu0 0.0
    %1780 = vmatpush.msra.mxu0 0.0
    %1781 = vmatpush.msra.mxu0 %v1763
    %1782 = vmatpush.msra.mxu0 %v1762
    %1783 = vmatmul.f32.gmra.mxu0 %v1765
    %v1784 = vpop.f32.mrf.mxu0
    %v1785 = vadd.f32 0.0, %v1784
    %1786 = vdwg.mxu0
    %v1787 = vadd.f32 %v1711, %v1785
    %s1788 = scalar_lea.vmem %s45, 112
    %v1789 = vld [vmem:[%s1788] sm:$0xff]
    %v1790 = vld [vmem:[%s1788 + $0x8] sm:$0xff]
    %1791 = vmatpush.msra.mxu0 0.0
    %1792 = vmatpush.msra.mxu0 0.0
    %1793 = vmatpush.msra.mxu0 0.0
    %1794 = vmatpush.msra.mxu0 0.0
    %1795 = vmatpush.msra.mxu0 0.0
    %1796 = vmatpush.msra.mxu0 0.0
    %1797 = vmatpush.msra.mxu0 0.0
    %1798 = vmatpush.msra.mxu0 0.0
    %1799 = vmatpush.msra.mxu0 0.0
    %1800 = vmatpush.msra.mxu0 0.0
    %1801 = vmatpush.msra.mxu0 0.0
    %1802 = vmatpush.msra.mxu0 0.0
    %1803 = vmatpush.msra.mxu0 0.0
    %1804 = vmatpush.msra.mxu0 0.0
    %1805 = vmatpush.msra.mxu0 %v1790
    %1806 = vmatpush.msra.mxu0 %v1789
    %1807 = vmatmul.f32.gmra.mxu0 %v1765
    %v1808 = vpop.f32.mrf.mxu0
    %v1809 = vadd.f32 0.0, %v1808
    %1810 = vdwg.mxu0
    %v1811 = vadd.f32 %v1735, %v1809
    %s1812 = scalar_lea.vmem %s9, 16
    %v1813 = vld [vmem:[%s1812] sm:$0x3]
    %v1815 = vsel %vm513, %v1813, 0
    %1817 = vmatpush.msra.mxu0 0.0
    %1818 = vmatpush.msra.mxu0 0.0
    %1819 = vmatpush.msra.mxu0 0.0
    %1820 = vmatpush.msra.mxu0 0.0
    %1821 = vmatpush.msra.mxu0 0.0
    %1822 = vmatpush.msra.mxu0 0.0
    %1823 = vmatpush.msra.mxu0 0.0
    %1824 = vmatpush.msra.mxu0 0.0
    %1825 = vmatpush.msra.mxu0 0.0
    %1826 = vmatpush.msra.mxu0 0.0
    %1827 = vmatpush.msra.mxu0 0.0
    %1828 = vmatpush.msra.mxu0 0.0
    %1829 = vmatpush.msra.mxu0 %v1210
    %1830 = vmatpush.msra.mxu0 %v1209
    %1831 = vmatpush.msra.mxu0 %v1208
    %1832 = vmatpush.msra.mxu0 %v1207
    %1833 = vmatmul.f32.gmra.mxu0 %v1815
    %v1834 = vpop.f32.mrf.mxu0
    %v1835 = vadd.f32 0.0, %v1834
    %1836 = vdwg.mxu0
    %s1837 = scalar_lea.vmem %s41, 128
    %v1838 = vld [vmem:[%s1837] sm:$0xff]
    %v1839 = vld [vmem:[%s1837 + $0x8] sm:$0xff]
    %v1841 = vsel %vm891, %v1835, 0
    %1843 = vmatpush.msra.mxu0 0.0
    %1844 = vmatpush.msra.mxu0 0.0
    %1845 = vmatpush.msra.mxu0 0.0
    %1846 = vmatpush.msra.mxu0 0.0
    %1847 = vmatpush.msra.mxu0 0.0
    %1848 = vmatpush.msra.mxu0 0.0
    %1849 = vmatpush.msra.mxu0 0.0
    %1850 = vmatpush.msra.mxu0 0.0
    %1851 = vmatpush.msra.mxu0 0.0
    %1852 = vmatpush.msra.mxu0 0.0
    %1853 = vmatpush.msra.mxu0 0.0
    %1854 = vmatpush.msra.mxu0 0.0
    %1855 = vmatpush.msra.mxu0 0.0
    %1856 = vmatpush.msra.mxu0 0.0
    %1857 = vmatpush.msra.mxu0 %v1839
    %1858 = vmatpush.msra.mxu0 %v1838
    %1859 = vmatmul.f32.gmra.mxu0 %v1841
    %v1860 = vpop.f32.mrf.mxu0
    %v1861 = vadd.f32 0.0, %v1860
    %1862 = vdwg.mxu0
    %v1863 = vadd.f32 %v1787, %v1861
    %s1864 = scalar_lea.vmem %s45, 128
    %v1865 = vld [vmem:[%s1864] sm:$0xff]
    %v1866 = vld [vmem:[%s1864 + $0x8] sm:$0xff]
    %1867 = vmatpush.msra.mxu0 0.0
    %1868 = vmatpush.msra.mxu0 0.0
    %1869 = vmatpush.msra.mxu0 0.0
    %1870 = vmatpush.msra.mxu0 0.0
    %1871 = vmatpush.msra.mxu0 0.0
    %1872 = vmatpush.msra.mxu0 0.0
    %1873 = vmatpush.msra.mxu0 0.0
    %1874 = vmatpush.msra.mxu0 0.0
    %1875 = vmatpush.msra.mxu0 0.0
    %1876 = vmatpush.msra.mxu0 0.0
    %1877 = vmatpush.msra.mxu0 0.0
    %1878 = vmatpush.msra.mxu0 0.0
    %1879 = vmatpush.msra.mxu0 0.0
    %1880 = vmatpush.msra.mxu0 0.0
    %1881 = vmatpush.msra.mxu0 %v1866
    %1882 = vmatpush.msra.mxu0 %v1865
    %1883 = vmatmul.f32.gmra.mxu0 %v1841
    %v1884 = vpop.f32.mrf.mxu0
    %v1885 = vadd.f32 0.0, %v1884
    %1886 = vdwg.mxu0
    %v1887 = vadd.f32 %v1811, %v1885
    %s1888 = scalar_lea.vmem %s9, 18
    %v1889 = vld [vmem:[%s1888] sm:$0x3]
    %v1891 = vsel %vm513, %v1889, 0
    %1893 = vmatpush.msra.mxu0 0.0
    %1894 = vmatpush.msra.mxu0 0.0
    %1895 = vmatpush.msra.mxu0 0.0
    %1896 = vmatpush.msra.mxu0 0.0
    %1897 = vmatpush.msra.mxu0 0.0
    %1898 = vmatpush.msra.mxu0 0.0
    %1899 = vmatpush.msra.mxu0 0.0
    %1900 = vmatpush.msra.mxu0 0.0
    %1901 = vmatpush.msra.mxu0 0.0
    %1902 = vmatpush.msra.mxu0 0.0
    %1903 = vmatpush.msra.mxu0 0.0
    %1904 = vmatpush.msra.mxu0 0.0
    %1905 = vmatpush.msra.mxu0 %v1210
    %1906 = vmatpush.msra.mxu0 %v1209
    %1907 = vmatpush.msra.mxu0 %v1208
    %1908 = vmatpush.msra.mxu0 %v1207
    %1909 = vmatmul.f32.gmra.mxu0 %v1891
    %v1910 = vpop.f32.mrf.mxu0
    %v1911 = vadd.f32 0.0, %v1910
    %1912 = vdwg.mxu0
    %s1913 = scalar_lea.vmem %s41, 144
    %v1914 = vld [vmem:[%s1913] sm:$0xff]
    %v1915 = vld [vmem:[%s1913 + $0x8] sm:$0xff]
    %v1917 = vsel %vm891, %v1911, 0
    %1919 = vmatpush.msra.mxu0 0.0
    %1920 = vmatpush.msra.mxu0 0.0
    %1921 = vmatpush.msra.mxu0 0.0
    %1922 = vmatpush.msra.mxu0 0.0
    %1923 = vmatpush.msra.mxu0 0.0
    %1924 = vmatpush.msra.mxu0 0.0
    %1925 = vmatpush.msra.mxu0 0.0
    %1926 = vmatpush.msra.mxu0 0.0
    %1927 = vmatpush.msra.mxu0 0.0
    %1928 = vmatpush.msra.mxu0 0.0
    %1929 = vmatpush.msra.mxu0 0.0
    %1930 = vmatpush.msra.mxu0 0.0
    %1931 = vmatpush.msra.mxu0 0.0
    %1932 = vmatpush.msra.mxu0 0.0
    %1933 = vmatpush.msra.mxu0 %v1915
    %1934 = vmatpush.msra.mxu0 %v1914
    %1935 = vmatmul.f32.gmra.mxu0 %v1917
    %v1936 = vpop.f32.mrf.mxu0
    %v1937 = vadd.f32 0.0, %v1936
    %1938 = vdwg.mxu0
    %v1939 = vadd.f32 %v1863, %v1937
    %s1940 = scalar_lea.vmem %s45, 144
    %v1941 = vld [vmem:[%s1940] sm:$0xff]
    %v1942 = vld [vmem:[%s1940 + $0x8] sm:$0xff]
    %1943 = vmatpush.msra.mxu0 0.0
    %1944 = vmatpush.msra.mxu0 0.0
    %1945 = vmatpush.msra.mxu0 0.0
    %1946 = vmatpush.msra.mxu0 0.0
    %1947 = vmatpush.msra.mxu0 0.0
    %1948 = vmatpush.msra.mxu0 0.0
    %1949 = vmatpush.msra.mxu0 0.0
    %1950 = vmatpush.msra.mxu0 0.0
    %1951 = vmatpush.msra.mxu0 0.0
    %1952 = vmatpush.msra.mxu0 0.0
    %1953 = vmatpush.msra.mxu0 0.0
    %1954 = vmatpush.msra.mxu0 0.0
    %1955 = vmatpush.msra.mxu0 0.0
    %1956 = vmatpush.msra.mxu0 0.0
    %1957 = vmatpush.msra.mxu0 %v1942
    %1958 = vmatpush.msra.mxu0 %v1941
    %1959 = vmatmul.f32.gmra.mxu0 %v1917
    %v1960 = vpop.f32.mrf.mxu0
    %v1961 = vadd.f32 0.0, %v1960
    %1962 = vdwg.mxu0
    %v1963 = vadd.f32 %v1887, %v1961
    %s1964 = scalar_lea.vmem %s9, 20
    %v1965 = vld [vmem:[%s1964] sm:$0x3]
    %v1967 = vsel %vm513, %v1965, 0
    %1969 = vmatpush.msra.mxu0 0.0
    %1970 = vmatpush.msra.mxu0 0.0
    %1971 = vmatpush.msra.mxu0 0.0
    %1972 = vmatpush.msra.mxu0 0.0
    %1973 = vmatpush.msra.mxu0 0.0
    %1974 = vmatpush.msra.mxu0 0.0
    %1975 = vmatpush.msra.mxu0 0.0
    %1976 = vmatpush.msra.mxu0 0.0
    %1977 = vmatpush.msra.mxu0 0.0
    %1978 = vmatpush.msra.mxu0 0.0
    %1979 = vmatpush.msra.mxu0 0.0
    %1980 = vmatpush.msra.mxu0 0.0
    %1981 = vmatpush.msra.mxu0 %v1210
    %1982 = vmatpush.msra.mxu0 %v1209
    %1983 = vmatpush.msra.mxu0 %v1208
    %1984 = vmatpush.msra.mxu0 %v1207
    %1985 = vmatmul.f32.gmra.mxu0 %v1967
    %v1986 = vpop.f32.mrf.mxu0
    %v1987 = vadd.f32 0.0, %v1986
    %1988 = vdwg.mxu0
    %s1989 = scalar_lea.vmem %s41, 160
    %v1990 = vld [vmem:[%s1989] sm:$0xff]
    %v1991 = vld [vmem:[%s1989 + $0x8] sm:$0xff]
    %v1993 = vsel %vm891, %v1987, 0
    %1995 = vmatpush.msra.mxu0 0.0
    %1996 = vmatpush.msra.mxu0 0.0
    %1997 = vmatpush.msra.mxu0 0.0
    %1998 = vmatpush.msra.mxu0 0.0
    %1999 = vmatpush.msra.mxu0 0.0
    %2000 = vmatpush.msra.mxu0 0.0
    %2001 = vmatpush.msra.mxu0 0.0
    %2002 = vmatpush.msra.mxu0 0.0
    %2003 = vmatpush.msra.mxu0 0.0
    %2004 = vmatpush.msra.mxu0 0.0
    %2005 = vmatpush.msra.mxu0 0.0
    %2006 = vmatpush.msra.mxu0 0.0
    %2007 = vmatpush.msra.mxu0 0.0
    %2008 = vmatpush.msra.mxu0 0.0
    %2009 = vmatpush.msra.mxu0 %v1991
    %2010 = vmatpush.msra.mxu0 %v1990
    %2011 = vmatmul.f32.gmra.mxu0 %v1993
    %v2012 = vpop.f32.mrf.mxu0
    %v2013 = vadd.f32 0.0, %v2012
    %2014 = vdwg.mxu0
    %v2015 = vadd.f32 %v1939, %v2013
    %s2016 = scalar_lea.vmem %s45, 160
    %v2017 = vld [vmem:[%s2016] sm:$0xff]
    %v2018 = vld [vmem:[%s2016 + $0x8] sm:$0xff]
    %2019 = vmatpush.msra.mxu0 0.0
    %2020 = vmatpush.msra.mxu0 0.0
    %2021 = vmatpush.msra.mxu0 0.0
    %2022 = vmatpush.msra.mxu0 0.0
    %2023 = vmatpush.msra.mxu0 0.0
    %2024 = vmatpush.msra.mxu0 0.0
    %2025 = vmatpush.msra.mxu0 0.0
    %2026 = vmatpush.msra.mxu0 0.0
    %2027 = vmatpush.msra.mxu0 0.0
    %2028 = vmatpush.msra.mxu0 0.0
    %2029 = vmatpush.msra.mxu0 0.0
    %2030 = vmatpush.msra.mxu0 0.0
    %2031 = vmatpush.msra.mxu0 0.0
    %2032 = vmatpush.msra.mxu0 0.0
    %2033 = vmatpush.msra.mxu0 %v2018
    %2034 = vmatpush.msra.mxu0 %v2017
    %2035 = vmatmul.f32.gmra.mxu0 %v1993
    %v2036 = vpop.f32.mrf.mxu0
    %v2037 = vadd.f32 0.0, %v2036
    %2038 = vdwg.mxu0
    %v2039 = vadd.f32 %v1963, %v2037
    %s2040 = scalar_lea.vmem %s9, 22
    %v2041 = vld [vmem:[%s2040] sm:$0x3]
    %v2043 = vsel %vm513, %v2041, 0
    %2045 = vmatpush.msra.mxu0 0.0
    %2046 = vmatpush.msra.mxu0 0.0
    %2047 = vmatpush.msra.mxu0 0.0
    %2048 = vmatpush.msra.mxu0 0.0
    %2049 = vmatpush.msra.mxu0 0.0
    %2050 = vmatpush.msra.mxu0 0.0
    %2051 = vmatpush.msra.mxu0 0.0
    %2052 = vmatpush.msra.mxu0 0.0
    %2053 = vmatpush.msra.mxu0 0.0
    %2054 = vmatpush.msra.mxu0 0.0
    %2055 = vmatpush.msra.mxu0 0.0
    %2056 = vmatpush.msra.mxu0 0.0
    %2057 = vmatpush.msra.mxu0 %v1210
    %2058 = vmatpush.msra.mxu0 %v1209
    %2059 = vmatpush.msra.mxu0 %v1208
    %2060 = vmatpush.msra.mxu0 %v1207
    %2061 = vmatmul.f32.gmra.mxu0 %v2043
    %v2062 = vpop.f32.mrf.mxu0
    %v2063 = vadd.f32 0.0, %v2062
    %2064 = vdwg.mxu0
    %s2065 = scalar_lea.vmem %s41, 176
    %v2066 = vld [vmem:[%s2065] sm:$0xff]
    %v2067 = vld [vmem:[%s2065 + $0x8] sm:$0xff]
    %v2069 = vsel %vm891, %v2063, 0
    %2071 = vmatpush.msra.mxu0 0.0
    %2072 = vmatpush.msra.mxu0 0.0
    %2073 = vmatpush.msra.mxu0 0.0
    %2074 = vmatpush.msra.mxu0 0.0
    %2075 = vmatpush.msra.mxu0 0.0
    %2076 = vmatpush.msra.mxu0 0.0
    %2077 = vmatpush.msra.mxu0 0.0
    %2078 = vmatpush.msra.mxu0 0.0
    %2079 = vmatpush.msra.mxu0 0.0
    %2080 = vmatpush.msra.mxu0 0.0
    %2081 = vmatpush.msra.mxu0 0.0
    %2082 = vmatpush.msra.mxu0 0.0
    %2083 = vmatpush.msra.mxu0 0.0
    %2084 = vmatpush.msra.mxu0 0.0
    %2085 = vmatpush.msra.mxu0 %v2067
    %2086 = vmatpush.msra.mxu0 %v2066
    %2087 = vmatmul.f32.gmra.mxu0 %v2069
    %v2088 = vpop.f32.mrf.mxu0
    %v2089 = vadd.f32 0.0, %v2088
    %2090 = vdwg.mxu0
    %v2091 = vadd.f32 %v2015, %v2089
    %s2092 = scalar_lea.vmem %s45, 176
    %v2093 = vld [vmem:[%s2092] sm:$0xff]
    %v2094 = vld [vmem:[%s2092 + $0x8] sm:$0xff]
    %2095 = vmatpush.msra.mxu0 0.0
    %2096 = vmatpush.msra.mxu0 0.0
    %2097 = vmatpush.msra.mxu0 0.0
    %2098 = vmatpush.msra.mxu0 0.0
    %2099 = vmatpush.msra.mxu0 0.0
    %2100 = vmatpush.msra.mxu0 0.0
    %2101 = vmatpush.msra.mxu0 0.0
    %2102 = vmatpush.msra.mxu0 0.0
    %2103 = vmatpush.msra.mxu0 0.0
    %2104 = vmatpush.msra.mxu0 0.0
    %2105 = vmatpush.msra.mxu0 0.0
    %2106 = vmatpush.msra.mxu0 0.0
    %2107 = vmatpush.msra.mxu0 0.0
    %2108 = vmatpush.msra.mxu0 0.0
    %2109 = vmatpush.msra.mxu0 %v2094
    %2110 = vmatpush.msra.mxu0 %v2093
    %2111 = vmatmul.f32.gmra.mxu0 %v2069
    %v2112 = vpop.f32.mrf.mxu0
    %v2113 = vadd.f32 0.0, %v2112
    %2114 = vdwg.mxu0
    %v2115 = vadd.f32 %v2039, %v2113
    %s2116 = scalar_lea.vmem %s9, 24
    %v2117 = vld [vmem:[%s2116] sm:$0x3]
    %v2119 = vsel %vm513, %v2117, 0
    %2121 = vmatpush.msra.mxu0 0.0
    %2122 = vmatpush.msra.mxu0 0.0
    %2123 = vmatpush.msra.mxu0 0.0
    %2124 = vmatpush.msra.mxu0 0.0
    %2125 = vmatpush.msra.mxu0 0.0
    %2126 = vmatpush.msra.mxu0 0.0
    %2127 = vmatpush.msra.mxu0 0.0
    %2128 = vmatpush.msra.mxu0 0.0
    %2129 = vmatpush.msra.mxu0 0.0
    %2130 = vmatpush.msra.mxu0 0.0
    %2131 = vmatpush.msra.mxu0 0.0
    %2132 = vmatpush.msra.mxu0 0.0
    %2133 = vmatpush.msra.mxu0 %v1210
    %2134 = vmatpush.msra.mxu0 %v1209
    %2135 = vmatpush.msra.mxu0 %v1208
    %2136 = vmatpush.msra.mxu0 %v1207
    %2137 = vmatmul.f32.gmra.mxu0 %v2119
    %v2138 = vpop.f32.mrf.mxu0
    %v2139 = vadd.f32 0.0, %v2138
    %2140 = vdwg.mxu0
    %s2141 = scalar_lea.vmem %s41, 192
    %v2142 = vld [vmem:[%s2141] sm:$0xff]
    %v2143 = vld [vmem:[%s2141 + $0x8] sm:$0xff]
    %v2145 = vsel %vm891, %v2139, 0
    %2147 = vmatpush.msra.mxu0 0.0
    %2148 = vmatpush.msra.mxu0 0.0
    %2149 = vmatpush.msra.mxu0 0.0
    %2150 = vmatpush.msra.mxu0 0.0
    %2151 = vmatpush.msra.mxu0 0.0
    %2152 = vmatpush.msra.mxu0 0.0
    %2153 = vmatpush.msra.mxu0 0.0
    %2154 = vmatpush.msra.mxu0 0.0
    %2155 = vmatpush.msra.mxu0 0.0
    %2156 = vmatpush.msra.mxu0 0.0
    %2157 = vmatpush.msra.mxu0 0.0
    %2158 = vmatpush.msra.mxu0 0.0
    %2159 = vmatpush.msra.mxu0 0.0
    %2160 = vmatpush.msra.mxu0 0.0
    %2161 = vmatpush.msra.mxu0 %v2143
    %2162 = vmatpush.msra.mxu0 %v2142
    %2163 = vmatmul.f32.gmra.mxu0 %v2145
    %v2164 = vpop.f32.mrf.mxu0
    %v2165 = vadd.f32 0.0, %v2164
    %2166 = vdwg.mxu0
    %v2167 = vadd.f32 %v2091, %v2165
    %s2168 = scalar_lea.vmem %s45, 192
    %v2169 = vld [vmem:[%s2168] sm:$0xff]
    %v2170 = vld [vmem:[%s2168 + $0x8] sm:$0xff]
    %2171 = vmatpush.msra.mxu0 0.0
    %2172 = vmatpush.msra.mxu0 0.0
    %2173 = vmatpush.msra.mxu0 0.0
    %2174 = vmatpush.msra.mxu0 0.0
    %2175 = vmatpush.msra.mxu0 0.0
    %2176 = vmatpush.msra.mxu0 0.0
    %2177 = vmatpush.msra.mxu0 0.0
    %2178 = vmatpush.msra.mxu0 0.0
    %2179 = vmatpush.msra.mxu0 0.0
    %2180 = vmatpush.msra.mxu0 0.0
    %2181 = vmatpush.msra.mxu0 0.0
    %2182 = vmatpush.msra.mxu0 0.0
    %2183 = vmatpush.msra.mxu0 0.0
    %2184 = vmatpush.msra.mxu0 0.0
    %2185 = vmatpush.msra.mxu0 %v2170
    %2186 = vmatpush.msra.mxu0 %v2169
    %2187 = vmatmul.f32.gmra.mxu0 %v2145
    %v2188 = vpop.f32.mrf.mxu0
    %v2189 = vadd.f32 0.0, %v2188
    %2190 = vdwg.mxu0
    %v2191 = vadd.f32 %v2115, %v2189
    %s2192 = scalar_lea.vmem %s9, 26
    %v2193 = vld [vmem:[%s2192] sm:$0x3]
    %v2195 = vsel %vm513, %v2193, 0
    %2197 = vmatpush.msra.mxu0 0.0
    %2198 = vmatpush.msra.mxu0 0.0
    %2199 = vmatpush.msra.mxu0 0.0
    %2200 = vmatpush.msra.mxu0 0.0
    %2201 = vmatpush.msra.mxu0 0.0
    %2202 = vmatpush.msra.mxu0 0.0
    %2203 = vmatpush.msra.mxu0 0.0
    %2204 = vmatpush.msra.mxu0 0.0
    %2205 = vmatpush.msra.mxu0 0.0
    %2206 = vmatpush.msra.mxu0 0.0
    %2207 = vmatpush.msra.mxu0 0.0
    %2208 = vmatpush.msra.mxu0 0.0
    %2209 = vmatpush.msra.mxu0 %v1210
    %2210 = vmatpush.msra.mxu0 %v1209
    %2211 = vmatpush.msra.mxu0 %v1208
    %2212 = vmatpush.msra.mxu0 %v1207
    %2213 = vmatmul.f32.gmra.mxu0 %v2195
    %v2214 = vpop.f32.mrf.mxu0
    %v2215 = vadd.f32 0.0, %v2214
    %2216 = vdwg.mxu0
    %s2217 = scalar_lea.vmem %s41, 208
    %v2218 = vld [vmem:[%s2217] sm:$0xff]
    %v2219 = vld [vmem:[%s2217 + $0x8] sm:$0xff]
    %v2221 = vsel %vm891, %v2215, 0
    %2223 = vmatpush.msra.mxu0 0.0
    %2224 = vmatpush.msra.mxu0 0.0
    %2225 = vmatpush.msra.mxu0 0.0
    %2226 = vmatpush.msra.mxu0 0.0
    %2227 = vmatpush.msra.mxu0 0.0
    %2228 = vmatpush.msra.mxu0 0.0
    %2229 = vmatpush.msra.mxu0 0.0
    %2230 = vmatpush.msra.mxu0 0.0
    %2231 = vmatpush.msra.mxu0 0.0
    %2232 = vmatpush.msra.mxu0 0.0
    %2233 = vmatpush.msra.mxu0 0.0
    %2234 = vmatpush.msra.mxu0 0.0
    %2235 = vmatpush.msra.mxu0 0.0
    %2236 = vmatpush.msra.mxu0 0.0
    %2237 = vmatpush.msra.mxu0 %v2219
    %2238 = vmatpush.msra.mxu0 %v2218
    %2239 = vmatmul.f32.gmra.mxu0 %v2221
    %v2240 = vpop.f32.mrf.mxu0
    %v2241 = vadd.f32 0.0, %v2240
    %2242 = vdwg.mxu0
    %v2243 = vadd.f32 %v2167, %v2241
    %s2244 = scalar_lea.vmem %s45, 208
    %v2245 = vld [vmem:[%s2244] sm:$0xff]
    %v2246 = vld [vmem:[%s2244 + $0x8] sm:$0xff]
    %2247 = vmatpush.msra.mxu0 0.0
    %2248 = vmatpush.msra.mxu0 0.0
    %2249 = vmatpush.msra.mxu0 0.0
    %2250 = vmatpush.msra.mxu0 0.0
    %2251 = vmatpush.msra.mxu0 0.0
    %2252 = vmatpush.msra.mxu0 0.0
    %2253 = vmatpush.msra.mxu0 0.0
    %2254 = vmatpush.msra.mxu0 0.0
    %2255 = vmatpush.msra.mxu0 0.0
    %2256 = vmatpush.msra.mxu0 0.0
    %2257 = vmatpush.msra.mxu0 0.0
    %2258 = vmatpush.msra.mxu0 0.0
    %2259 = vmatpush.msra.mxu0 0.0
    %2260 = vmatpush.msra.mxu0 0.0
    %2261 = vmatpush.msra.mxu0 %v2246
    %2262 = vmatpush.msra.mxu0 %v2245
    %2263 = vmatmul.f32.gmra.mxu0 %v2221
    %v2264 = vpop.f32.mrf.mxu0
    %v2265 = vadd.f32 0.0, %v2264
    %2266 = vdwg.mxu0
    %v2267 = vadd.f32 %v2191, %v2265
    %s2268 = scalar_lea.vmem %s9, 28
    %v2269 = vld [vmem:[%s2268] sm:$0x3]
    %v2271 = vsel %vm513, %v2269, 0
    %2273 = vmatpush.msra.mxu0 0.0
    %2274 = vmatpush.msra.mxu0 0.0
    %2275 = vmatpush.msra.mxu0 0.0
    %2276 = vmatpush.msra.mxu0 0.0
    %2277 = vmatpush.msra.mxu0 0.0
    %2278 = vmatpush.msra.mxu0 0.0
    %2279 = vmatpush.msra.mxu0 0.0
    %2280 = vmatpush.msra.mxu0 0.0
    %2281 = vmatpush.msra.mxu0 0.0
    %2282 = vmatpush.msra.mxu0 0.0
    %2283 = vmatpush.msra.mxu0 0.0
    %2284 = vmatpush.msra.mxu0 0.0
    %2285 = vmatpush.msra.mxu0 %v1210
    %2286 = vmatpush.msra.mxu0 %v1209
    %2287 = vmatpush.msra.mxu0 %v1208
    %2288 = vmatpush.msra.mxu0 %v1207
    %2289 = vmatmul.f32.gmra.mxu0 %v2271
    %v2290 = vpop.f32.mrf.mxu0
    %v2291 = vadd.f32 0.0, %v2290
    %2292 = vdwg.mxu0
    %s2293 = scalar_lea.vmem %s41, 224
    %v2294 = vld [vmem:[%s2293] sm:$0xff]
    %v2295 = vld [vmem:[%s2293 + $0x8] sm:$0xff]
    %v2297 = vsel %vm891, %v2291, 0
    %2299 = vmatpush.msra.mxu0 0.0
    %2300 = vmatpush.msra.mxu0 0.0
    %2301 = vmatpush.msra.mxu0 0.0
    %2302 = vmatpush.msra.mxu0 0.0
    %2303 = vmatpush.msra.mxu0 0.0
    %2304 = vmatpush.msra.mxu0 0.0
    %2305 = vmatpush.msra.mxu0 0.0
    %2306 = vmatpush.msra.mxu0 0.0
    %2307 = vmatpush.msra.mxu0 0.0
    %2308 = vmatpush.msra.mxu0 0.0
    %2309 = vmatpush.msra.mxu0 0.0
    %2310 = vmatpush.msra.mxu0 0.0
    %2311 = vmatpush.msra.mxu0 0.0
    %2312 = vmatpush.msra.mxu0 0.0
    %2313 = vmatpush.msra.mxu0 %v2295
    %2314 = vmatpush.msra.mxu0 %v2294
    %2315 = vmatmul.f32.gmra.mxu0 %v2297
    %v2316 = vpop.f32.mrf.mxu0
    %v2317 = vadd.f32 0.0, %v2316
    %2318 = vdwg.mxu0
    %v2319 = vadd.f32 %v2243, %v2317
    %s2320 = scalar_lea.vmem %s45, 224
    %v2321 = vld [vmem:[%s2320] sm:$0xff]
    %v2322 = vld [vmem:[%s2320 + $0x8] sm:$0xff]
    %2323 = vmatpush.msra.mxu0 0.0
    %2324 = vmatpush.msra.mxu0 0.0
    %2325 = vmatpush.msra.mxu0 0.0
    %2326 = vmatpush.msra.mxu0 0.0
    %2327 = vmatpush.msra.mxu0 0.0
    %2328 = vmatpush.msra.mxu0 0.0
    %2329 = vmatpush.msra.mxu0 0.0
    %2330 = vmatpush.msra.mxu0 0.0
    %2331 = vmatpush.msra.mxu0 0.0
    %2332 = vmatpush.msra.mxu0 0.0
    %2333 = vmatpush.msra.mxu0 0.0
    %2334 = vmatpush.msra.mxu0 0.0
    %2335 = vmatpush.msra.mxu0 0.0
    %2336 = vmatpush.msra.mxu0 0.0
    %2337 = vmatpush.msra.mxu0 %v2322
    %2338 = vmatpush.msra.mxu0 %v2321
    %2339 = vmatmul.f32.gmra.mxu0 %v2297
    %v2340 = vpop.f32.mrf.mxu0
    %v2341 = vadd.f32 0.0, %v2340
    %2342 = vdwg.mxu0
    %v2343 = vadd.f32 %v2267, %v2341
    %s2344 = scalar_lea.vmem %s9, 30
    %v2345 = vld [vmem:[%s2344] sm:$0x3]
    %v2347 = vsel %vm513, %v2345, 0
    %2349 = vmatpush.msra.mxu0 0.0
    %2350 = vmatpush.msra.mxu0 0.0
    %2351 = vmatpush.msra.mxu0 0.0
    %2352 = vmatpush.msra.mxu0 0.0
    %2353 = vmatpush.msra.mxu0 0.0
    %2354 = vmatpush.msra.mxu0 0.0
    %2355 = vmatpush.msra.mxu0 0.0
    %2356 = vmatpush.msra.mxu0 0.0
    %2357 = vmatpush.msra.mxu0 0.0
    %2358 = vmatpush.msra.mxu0 0.0
    %2359 = vmatpush.msra.mxu0 0.0
    %2360 = vmatpush.msra.mxu0 0.0
    %2361 = vmatpush.msra.mxu0 %v1210
    %2362 = vmatpush.msra.mxu0 %v1209
    %2363 = vmatpush.msra.mxu0 %v1208
    %2364 = vmatpush.msra.mxu0 %v1207
    %2365 = vmatmul.f32.gmra.mxu0 %v2347
    %v2366 = vpop.f32.mrf.mxu0
    %v2367 = vadd.f32 0.0, %v2366
    %2368 = vdwg.mxu0
    %s2369 = scalar_lea.vmem %s41, 240
    %v2370 = vld [vmem:[%s2369] sm:$0xff]
    %v2371 = vld [vmem:[%s2369 + $0x8] sm:$0xff]
    %v2373 = vsel %vm891, %v2367, 0
    %2375 = vmatpush.msra.mxu0 0.0
    %2376 = vmatpush.msra.mxu0 0.0
    %2377 = vmatpush.msra.mxu0 0.0
    %2378 = vmatpush.msra.mxu0 0.0
    %2379 = vmatpush.msra.mxu0 0.0
    %2380 = vmatpush.msra.mxu0 0.0
    %2381 = vmatpush.msra.mxu0 0.0
    %2382 = vmatpush.msra.mxu0 0.0
    %2383 = vmatpush.msra.mxu0 0.0
    %2384 = vmatpush.msra.mxu0 0.0
    %2385 = vmatpush.msra.mxu0 0.0
    %2386 = vmatpush.msra.mxu0 0.0
    %2387 = vmatpush.msra.mxu0 0.0
    %2388 = vmatpush.msra.mxu0 0.0
    %2389 = vmatpush.msra.mxu0 %v2371
    %2390 = vmatpush.msra.mxu0 %v2370
    %2391 = vmatmul.f32.gmra.mxu0 %v2373
    %v2392 = vpop.f32.mrf.mxu0
    %v2393 = vadd.f32 0.0, %v2392
    %2394 = vdwg.mxu0
    %v2395 = vadd.f32 %v2319, %v2393
    %s2396 = scalar_lea.vmem %s45, 240
    %v2397 = vld [vmem:[%s2396] sm:$0xff]
    %v2398 = vld [vmem:[%s2396 + $0x8] sm:$0xff]
    %2399 = vmatpush.msra.mxu0 0.0
    %2400 = vmatpush.msra.mxu0 0.0
    %2401 = vmatpush.msra.mxu0 0.0
    %2402 = vmatpush.msra.mxu0 0.0
    %2403 = vmatpush.msra.mxu0 0.0
    %2404 = vmatpush.msra.mxu0 0.0
    %2405 = vmatpush.msra.mxu0 0.0
    %2406 = vmatpush.msra.mxu0 0.0
    %2407 = vmatpush.msra.mxu0 0.0
    %2408 = vmatpush.msra.mxu0 0.0
    %2409 = vmatpush.msra.mxu0 0.0
    %2410 = vmatpush.msra.mxu0 0.0
    %2411 = vmatpush.msra.mxu0 0.0
    %2412 = vmatpush.msra.mxu0 0.0
    %2413 = vmatpush.msra.mxu0 %v2398
    %2414 = vmatpush.msra.mxu0 %v2397
    %2415 = vmatmul.f32.gmra.mxu0 %v2373
    %v2416 = vpop.f32.mrf.mxu0
    %v2417 = vadd.f32 0.0, %v2416
    %2418 = vdwg.mxu0
    %v2419 = vadd.f32 %v2343, %v2417
    %v2420 = vld [vmem:[%s43] sm:$0x1]
    %v2422 = vperm.slane %v2420, 0
    %v2424 = vadd.f32 %v2395, %v2422
    %v2425 = vld [vmem:[%s47] sm:$0x1]
    %v2427 = vperm.slane %v2425, 0
    %v2429 = vadd.f32 %v2419, %v2427
    %v2430 = vld [vmem:[%s3] sm:$0x3]
    %v2431 = vmul.f32 %v2429, 1.442695
    %v2432 = vpow.pop %v2431
    %v2433 = vmul.f32 %v2430, %v2432
    %v2434 = vadd.f32 %v2433, %v2424
    %v2435 = vld [vmem:[%s51] sm:$0xff]
    %v2436 = vld [vmem:[%s51 + $0x8] sm:$0xff]
    %v2437 = vld [vmem:[%s51 + $0x10] sm:$0xff]
    %v2438 = vld [vmem:[%s51 + $0x18] sm:$0xff]
    %v2439 = vld [vmem:[%s11] sm:$0xff]
    %v2440 = vld [vmem:[%s11 + $0x8] sm:$0xff]
    %v2441 = vld [vmem:[%s11 + $0x10] sm:$0xff]
    %v2442 = vld [vmem:[%s11 + $0x18] sm:$0xff]
    %v2443 = vld [vmem:[%s49] sm:$0xff]
    %v2445 = vsel %vm440, %v2434, 0
    %2447 = vmatpush.msra.mxu0 0.0
    %2448 = vmatpush.msra.mxu0 0.0
    %2449 = vmatpush.msra.mxu0 0.0
    %2450 = vmatpush.msra.mxu0 0.0
    %2451 = vmatpush.msra.mxu0 0.0
    %2452 = vmatpush.msra.mxu0 0.0
    %2453 = vmatpush.msra.mxu0 0.0
    %2454 = vmatpush.msra.mxu0 0.0
    %2455 = vmatpush.msra.mxu0 0.0
    %2456 = vmatpush.msra.mxu0 0.0
    %2457 = vmatpush.msra.mxu0 0.0
    %2458 = vmatpush.msra.mxu0 0.0
    %2459 = vmatpush.msra.mxu0 0.0
    %2460 = vmatpush.msra.mxu0 0.0
    %2461 = vmatpush.msra.mxu0 0.0
    %2462 = vmatpush.msra.mxu0 %v2443
    %2463 = vmatmul.f32.gmra.mxu0 %v2445
    %v2464 = vpop.f32.mrf.mxu0
    %v2465 = vadd.f32 0.0, %v2464
    %2466 = vdwg.mxu0
    %v2468 = vsel %vm393, %v2439, 0
    %v2471 = vsel %vm393, %v2440, 0
    %v2474 = vsel %vm393, %v2441, 0
    %v2477 = vsel %vm393, %v2442, 0
    %v2480 = vsel %vm406, %v2465, 0
    %2482 = vmatpush.msra.mxu0 0.0
    %2483 = vmatpush.msra.mxu0 0.0
    %2484 = vmatpush.msra.mxu0 0.0
    %2485 = vmatpush.msra.mxu0 0.0
    %2486 = vmatpush.msra.mxu0 0.0
    %2487 = vmatpush.msra.mxu0 0.0
    %2488 = vmatpush.msra.mxu0 0.0
    %2489 = vmatpush.msra.mxu0 0.0
    %2490 = vmatpush.msra.mxu0 0.0
    %2491 = vmatpush.msra.mxu0 0.0
    %2492 = vmatpush.msra.mxu0 0.0
    %2493 = vmatpush.msra.mxu0 0.0
    %2494 = vmatpush.msra.mxu0 0.0
    %2495 = vmatpush.msra.mxu0 0.0
    %2496 = vmatpush.msra.mxu0 0.0
    %2497 = vmatpush.msra.mxu0 %v2480
    %2498 = vmatmul.f32.gmra.mxu0 %v2468
    %v2499 = vpop.f32.mrf.mxu0
    %v2500 = vadd.f32 0.0, %v2499
    %2501 = vmatmul.f32.gmra.mxu0 %v2471
    %v2502 = vpop.f32.mrf.mxu0
    %v2503 = vadd.f32 0.0, %v2502
    %2504 = vmatmul.f32.gmra.mxu0 %v2474
    %v2505 = vpop.f32.mrf.mxu0
    %v2506 = vadd.f32 0.0, %v2505
    %2507 = vmatmul.f32.gmra.mxu0 %v2477
    %v2508 = vpop.f32.mrf.mxu0
    %v2509 = vadd.f32 0.0, %v2508
    %2510 = vdwg.mxu0
    %v2511 = vadd.f32 %v2435, %v2500
    %v2512 = vadd.f32 %v2436, %v2503
    %v2513 = vadd.f32 %v2437, %v2506
    %v2514 = vadd.f32 %v2438, %v2509
    %s2515 = scalar_lea.vmem %s11, 32
    %v2516 = vld [vmem:[%s2515] sm:$0xff]
    %v2517 = vld [vmem:[%s2515 + $0x8] sm:$0xff]
    %v2518 = vld [vmem:[%s2515 + $0x10] sm:$0xff]
    %v2519 = vld [vmem:[%s2515 + $0x18] sm:$0xff]
    %s2520 = scalar_lea.vmem %s49, 8
    %v2521 = vld [vmem:[%s2520] sm:$0xff]
    %2522 = vmatpush.msra.mxu0 0.0
    %2523 = vmatpush.msra.mxu0 0.0
    %2524 = vmatpush.msra.mxu0 0.0
    %2525 = vmatpush.msra.mxu0 0.0
    %2526 = vmatpush.msra.mxu0 0.0
    %2527 = vmatpush.msra.mxu0 0.0
    %2528 = vmatpush.msra.mxu0 0.0
    %2529 = vmatpush.msra.mxu0 0.0
    %2530 = vmatpush.msra.mxu0 0.0
    %2531 = vmatpush.msra.mxu0 0.0
    %2532 = vmatpush.msra.mxu0 0.0
    %2533 = vmatpush.msra.mxu0 0.0
    %2534 = vmatpush.msra.mxu0 0.0
    %2535 = vmatpush.msra.mxu0 0.0
    %2536 = vmatpush.msra.mxu0 0.0
    %2537 = vmatpush.msra.mxu0 %v2521
    %2538 = vmatmul.f32.gmra.mxu0 %v2445
    %v2539 = vpop.f32.mrf.mxu0
    %v2540 = vadd.f32 0.0, %v2539
    %2541 = vdwg.mxu0
    %v2543 = vsel %vm393, %v2516, 0
    %v2546 = vsel %vm393, %v2517, 0
    %v2549 = vsel %vm393, %v2518, 0
    %v2552 = vsel %vm393, %v2519, 0
    %v2555 = vsel %vm406, %v2540, 0
    %2557 = vmatpush.msra.mxu0 0.0
    %2558 = vmatpush.msra.mxu0 0.0
    %2559 = vmatpush.msra.mxu0 0.0
    %2560 = vmatpush.msra.mxu0 0.0
    %2561 = vmatpush.msra.mxu0 0.0
    %2562 = vmatpush.msra.mxu0 0.0
    %2563 = vmatpush.msra.mxu0 0.0
    %2564 = vmatpush.msra.mxu0 0.0
    %2565 = vmatpush.msra.mxu0 0.0
    %2566 = vmatpush.msra.mxu0 0.0
    %2567 = vmatpush.msra.mxu0 0.0
    %2568 = vmatpush.msra.mxu0 0.0
    %2569 = vmatpush.msra.mxu0 0.0
    %2570 = vmatpush.msra.mxu0 0.0
    %2571 = vmatpush.msra.mxu0 0.0
    %2572 = vmatpush.msra.mxu0 %v2555
    %2573 = vmatmul.f32.gmra.mxu0 %v2543
    %v2574 = vpop.f32.mrf.mxu0
    %v2575 = vadd.f32 0.0, %v2574
    %2576 = vmatmul.f32.gmra.mxu0 %v2546
    %v2577 = vpop.f32.mrf.mxu0
    %v2578 = vadd.f32 0.0, %v2577
    %2579 = vmatmul.f32.gmra.mxu0 %v2549
    %v2580 = vpop.f32.mrf.mxu0
    %v2581 = vadd.f32 0.0, %v2580
    %2582 = vmatmul.f32.gmra.mxu0 %v2552
    %v2583 = vpop.f32.mrf.mxu0
    %v2584 = vadd.f32 0.0, %v2583
    %2585 = vdwg.mxu0
    %v2586 = vadd.f32 %v2511, %v2575
    %v2587 = vadd.f32 %v2512, %v2578
    %v2588 = vadd.f32 %v2513, %v2581
    %v2589 = vadd.f32 %v2514, %v2584
    %s2590 = scalar_lea.vmem %s11, 64
    %v2591 = vld [vmem:[%s2590] sm:$0xff]
    %v2592 = vld [vmem:[%s2590 + $0x8] sm:$0xff]
    %v2593 = vld [vmem:[%s2590 + $0x10] sm:$0xff]
    %v2594 = vld [vmem:[%s2590 + $0x18] sm:$0xff]
    %s2595 = scalar_lea.vmem %s49, 16
    %v2596 = vld [vmem:[%s2595] sm:$0xff]
    %2597 = vmatpush.msra.mxu0 0.0
    %2598 = vmatpush.msra.mxu0 0.0
    %2599 = vmatpush.msra.mxu0 0.0
    %2600 = vmatpush.msra.mxu0 0.0
    %2601 = vmatpush.msra.mxu0 0.0
    %2602 = vmatpush.msra.mxu0 0.0
    %2603 = vmatpush.msra.mxu0 0.0
    %2604 = vmatpush.msra.mxu0 0.0
    %2605 = vmatpush.msra.mxu0 0.0
    %2606 = vmatpush.msra.mxu0 0.0
    %2607 = vmatpush.msra.mxu0 0.0
    %2608 = vmatpush.msra.mxu0 0.0
    %2609 = vmatpush.msra.mxu0 0.0
    %2610 = vmatpush.msra.mxu0 0.0
    %2611 = vmatpush.msra.mxu0 0.0
    %2612 = vmatpush.msra.mxu0 %v2596
    %2613 = vmatmul.f32.gmra.mxu0 %v2445
    %v2614 = vpop.f32.mrf.mxu0
    %v2615 = vadd.f32 0.0, %v2614
    %2616 = vdwg.mxu0
    %v2618 = vsel %vm393, %v2591, 0
    %v2621 = vsel %vm393, %v2592, 0
    %v2624 = vsel %vm393, %v2593, 0
    %v2627 = vsel %vm393, %v2594, 0
    %v2630 = vsel %vm406, %v2615, 0
    %2632 = vmatpush.msra.mxu0 0.0
    %2633 = vmatpush.msra.mxu0 0.0
    %2634 = vmatpush.msra.mxu0 0.0
    %2635 = vmatpush.msra.mxu0 0.0
    %2636 = vmatpush.msra.mxu0 0.0
    %2637 = vmatpush.msra.mxu0 0.0
    %2638 = vmatpush.msra.mxu0 0.0
    %2639 = vmatpush.msra.mxu0 0.0
    %2640 = vmatpush.msra.mxu0 0.0
    %2641 = vmatpush.msra.mxu0 0.0
    %2642 = vmatpush.msra.mxu0 0.0
    %2643 = vmatpush.msra.mxu0 0.0
    %2644 = vmatpush.msra.mxu0 0.0
    %2645 = vmatpush.msra.mxu0 0.0
    %2646 = vmatpush.msra.mxu0 0.0
    %2647 = vmatpush.msra.mxu0 %v2630
    %2648 = vmatmul.f32.gmra.mxu0 %v2618
    %v2649 = vpop.f32.mrf.mxu0
    %v2650 = vadd.f32 0.0, %v2649
    %2651 = vmatmul.f32.gmra.mxu0 %v2621
    %v2652 = vpop.f32.mrf.mxu0
    %v2653 = vadd.f32 0.0, %v2652
    %2654 = vmatmul.f32.gmra.mxu0 %v2624
    %v2655 = vpop.f32.mrf.mxu0
    %v2656 = vadd.f32 0.0, %v2655
    %2657 = vmatmul.f32.gmra.mxu0 %v2627
    %v2658 = vpop.f32.mrf.mxu0
    %v2659 = vadd.f32 0.0, %v2658
    %2660 = vdwg.mxu0
    %v2661 = vadd.f32 %v2586, %v2650
    %v2662 = vadd.f32 %v2587, %v2653
    %v2663 = vadd.f32 %v2588, %v2656
    %v2664 = vadd.f32 %v2589, %v2659
    %s2665 = scalar_lea.vmem %s11, 96
    %v2666 = vld [vmem:[%s2665] sm:$0xff]
    %v2667 = vld [vmem:[%s2665 + $0x8] sm:$0xff]
    %v2668 = vld [vmem:[%s2665 + $0x10] sm:$0xff]
    %v2669 = vld [vmem:[%s2665 + $0x18] sm:$0xff]
    %s2670 = scalar_lea.vmem %s49, 24
    %v2671 = vld [vmem:[%s2670] sm:$0xff]
    %2672 = vmatpush.msra.mxu0 0.0
    %2673 = vmatpush.msra.mxu0 0.0
    %2674 = vmatpush.msra.mxu0 0.0
    %2675 = vmatpush.msra.mxu0 0.0
    %2676 = vmatpush.msra.mxu0 0.0
    %2677 = vmatpush.msra.mxu0 0.0
    %2678 = vmatpush.msra.mxu0 0.0
    %2679 = vmatpush.msra.mxu0 0.0
    %2680 = vmatpush.msra.mxu0 0.0
    %2681 = vmatpush.msra.mxu0 0.0
    %2682 = vmatpush.msra.mxu0 0.0
    %2683 = vmatpush.msra.mxu0 0.0
    %2684 = vmatpush.msra.mxu0 0.0
    %2685 = vmatpush.msra.mxu0 0.0
    %2686 = vmatpush.msra.mxu0 0.0
    %2687 = vmatpush.msra.mxu0 %v2671
    %2688 = vmatmul.f32.gmra.mxu0 %v2445
    %v2689 = vpop.f32.mrf.mxu0
    %v2690 = vadd.f32 0.0, %v2689
    %2691 = vdwg.mxu0
    %v2693 = vsel %vm393, %v2666, 0
    %v2696 = vsel %vm393, %v2667, 0
    %v2699 = vsel %vm393, %v2668, 0
    %v2702 = vsel %vm393, %v2669, 0
    %v2705 = vsel %vm406, %v2690, 0
    %2707 = vmatpush.msra.mxu0 0.0
    %2708 = vmatpush.msra.mxu0 0.0
    %2709 = vmatpush.msra.mxu0 0.0
    %2710 = vmatpush.msra.mxu0 0.0
    %2711 = vmatpush.msra.mxu0 0.0
    %2712 = vmatpush.msra.mxu0 0.0
    %2713 = vmatpush.msra.mxu0 0.0
    %2714 = vmatpush.msra.mxu0 0.0
    %2715 = vmatpush.msra.mxu0 0.0
    %2716 = vmatpush.msra.mxu0 0.0
    %2717 = vmatpush.msra.mxu0 0.0
    %2718 = vmatpush.msra.mxu0 0.0
    %2719 = vmatpush.msra.mxu0 0.0
    %2720 = vmatpush.msra.mxu0 0.0
    %2721 = vmatpush.msra.mxu0 0.0
    %2722 = vmatpush.msra.mxu0 %v2705
    %2723 = vmatmul.f32.gmra.mxu0 %v2693
    %v2724 = vpop.f32.mrf.mxu0
    %v2725 = vadd.f32 0.0, %v2724
    %2726 = vmatmul.f32.gmra.mxu0 %v2696
    %v2727 = vpop.f32.mrf.mxu0
    %v2728 = vadd.f32 0.0, %v2727
    %2729 = vmatmul.f32.gmra.mxu0 %v2699
    %v2730 = vpop.f32.mrf.mxu0
    %v2731 = vadd.f32 0.0, %v2730
    %2732 = vmatmul.f32.gmra.mxu0 %v2702
    %v2733 = vpop.f32.mrf.mxu0
    %v2734 = vadd.f32 0.0, %v2733
    %2735 = vdwg.mxu0
    %v2736 = vadd.f32 %v2661, %v2725
    %v2737 = vadd.f32 %v2662, %v2728
    %v2738 = vadd.f32 %v2663, %v2731
    %v2739 = vadd.f32 %v2664, %v2734
    %s2740 = scalar_lea.vmem %s11, 128
    %v2741 = vld [vmem:[%s2740] sm:$0xff]
    %v2742 = vld [vmem:[%s2740 + $0x8] sm:$0xff]
    %v2743 = vld [vmem:[%s2740 + $0x10] sm:$0xff]
    %v2744 = vld [vmem:[%s2740 + $0x18] sm:$0xff]
    %s2745 = scalar_lea.vmem %s49, 32
    %v2746 = vld [vmem:[%s2745] sm:$0xff]
    %2747 = vmatpush.msra.mxu0 0.0
    %2748 = vmatpush.msra.mxu0 0.0
    %2749 = vmatpush.msra.mxu0 0.0
    %2750 = vmatpush.msra.mxu0 0.0
    %2751 = vmatpush.msra.mxu0 0.0
    %2752 = vmatpush.msra.mxu0 0.0
    %2753 = vmatpush.msra.mxu0 0.0
    %2754 = vmatpush.msra.mxu0 0.0
    %2755 = vmatpush.msra.mxu0 0.0
    %2756 = vmatpush.msra.mxu0 0.0
    %2757 = vmatpush.msra.mxu0 0.0
    %2758 = vmatpush.msra.mxu0 0.0
    %2759 = vmatpush.msra.mxu0 0.0
    %2760 = vmatpush.msra.mxu0 0.0
    %2761 = vmatpush.msra.mxu0 0.0
    %2762 = vmatpush.msra.mxu0 %v2746
    %2763 = vmatmul.f32.gmra.mxu0 %v2445
    %v2764 = vpop.f32.mrf.mxu0
    %v2765 = vadd.f32 0.0, %v2764
    %2766 = vdwg.mxu0
    %v2768 = vsel %vm393, %v2741, 0
    %v2771 = vsel %vm393, %v2742, 0
    %v2774 = vsel %vm393, %v2743, 0
    %v2777 = vsel %vm393, %v2744, 0
    %v2780 = vsel %vm406, %v2765, 0
    %2782 = vmatpush.msra.mxu0 0.0
    %2783 = vmatpush.msra.mxu0 0.0
    %2784 = vmatpush.msra.mxu0 0.0
    %2785 = vmatpush.msra.mxu0 0.0
    %2786 = vmatpush.msra.mxu0 0.0
    %2787 = vmatpush.msra.mxu0 0.0
    %2788 = vmatpush.msra.mxu0 0.0
    %2789 = vmatpush.msra.mxu0 0.0
    %2790 = vmatpush.msra.mxu0 0.0
    %2791 = vmatpush.msra.mxu0 0.0
    %2792 = vmatpush.msra.mxu0 0.0
    %2793 = vmatpush.msra.mxu0 0.0
    %2794 = vmatpush.msra.mxu0 0.0
    %2795 = vmatpush.msra.mxu0 0.0
    %2796 = vmatpush.msra.mxu0 0.0
    %2797 = vmatpush.msra.mxu0 %v2780
    %2798 = vmatmul.f32.gmra.mxu0 %v2768
    %v2799 = vpop.f32.mrf.mxu0
    %v2800 = vadd.f32 0.0, %v2799
    %2801 = vmatmul.f32.gmra.mxu0 %v2771
    %v2802 = vpop.f32.mrf.mxu0
    %v2803 = vadd.f32 0.0, %v2802
    %2804 = vmatmul.f32.gmra.mxu0 %v2774
    %v2805 = vpop.f32.mrf.mxu0
    %v2806 = vadd.f32 0.0, %v2805
    %2807 = vmatmul.f32.gmra.mxu0 %v2777
    %v2808 = vpop.f32.mrf.mxu0
    %v2809 = vadd.f32 0.0, %v2808
    %2810 = vdwg.mxu0
    %v2811 = vadd.f32 %v2736, %v2800
    %v2812 = vadd.f32 %v2737, %v2803
    %v2813 = vadd.f32 %v2738, %v2806
    %v2814 = vadd.f32 %v2739, %v2809
    %s2815 = scalar_lea.vmem %s11, 160
    %v2816 = vld [vmem:[%s2815] sm:$0xff]
    %v2817 = vld [vmem:[%s2815 + $0x8] sm:$0xff]
    %v2818 = vld [vmem:[%s2815 + $0x10] sm:$0xff]
    %v2819 = vld [vmem:[%s2815 + $0x18] sm:$0xff]
    %s2820 = scalar_lea.vmem %s49, 40
    %v2821 = vld [vmem:[%s2820] sm:$0xff]
    %2822 = vmatpush.msra.mxu0 0.0
    %2823 = vmatpush.msra.mxu0 0.0
    %2824 = vmatpush.msra.mxu0 0.0
    %2825 = vmatpush.msra.mxu0 0.0
    %2826 = vmatpush.msra.mxu0 0.0
    %2827 = vmatpush.msra.mxu0 0.0
    %2828 = vmatpush.msra.mxu0 0.0
    %2829 = vmatpush.msra.mxu0 0.0
    %2830 = vmatpush.msra.mxu0 0.0
    %2831 = vmatpush.msra.mxu0 0.0
    %2832 = vmatpush.msra.mxu0 0.0
    %2833 = vmatpush.msra.mxu0 0.0
    %2834 = vmatpush.msra.mxu0 0.0
    %2835 = vmatpush.msra.mxu0 0.0
    %2836 = vmatpush.msra.mxu0 0.0
    %2837 = vmatpush.msra.mxu0 %v2821
    %2838 = vmatmul.f32.gmra.mxu0 %v2445
    %v2839 = vpop.f32.mrf.mxu0
    %v2840 = vadd.f32 0.0, %v2839
    %2841 = vdwg.mxu0
    %v2843 = vsel %vm393, %v2816, 0
    %v2846 = vsel %vm393, %v2817, 0
    %v2849 = vsel %vm393, %v2818, 0
    %v2852 = vsel %vm393, %v2819, 0
    %v2855 = vsel %vm406, %v2840, 0
    %2857 = vmatpush.msra.mxu0 0.0
    %2858 = vmatpush.msra.mxu0 0.0
    %2859 = vmatpush.msra.mxu0 0.0
    %2860 = vmatpush.msra.mxu0 0.0
    %2861 = vmatpush.msra.mxu0 0.0
    %2862 = vmatpush.msra.mxu0 0.0
    %2863 = vmatpush.msra.mxu0 0.0
    %2864 = vmatpush.msra.mxu0 0.0
    %2865 = vmatpush.msra.mxu0 0.0
    %2866 = vmatpush.msra.mxu0 0.0
    %2867 = vmatpush.msra.mxu0 0.0
    %2868 = vmatpush.msra.mxu0 0.0
    %2869 = vmatpush.msra.mxu0 0.0
    %2870 = vmatpush.msra.mxu0 0.0
    %2871 = vmatpush.msra.mxu0 0.0
    %2872 = vmatpush.msra.mxu0 %v2855
    %2873 = vmatmul.f32.gmra.mxu0 %v2843
    %v2874 = vpop.f32.mrf.mxu0
    %v2875 = vadd.f32 0.0, %v2874
    %2876 = vmatmul.f32.gmra.mxu0 %v2846
    %v2877 = vpop.f32.mrf.mxu0
    %v2878 = vadd.f32 0.0, %v2877
    %2879 = vmatmul.f32.gmra.mxu0 %v2849
    %v2880 = vpop.f32.mrf.mxu0
    %v2881 = vadd.f32 0.0, %v2880
    %2882 = vmatmul.f32.gmra.mxu0 %v2852
    %v2883 = vpop.f32.mrf.mxu0
    %v2884 = vadd.f32 0.0, %v2883
    %2885 = vdwg.mxu0
    %v2886 = vadd.f32 %v2811, %v2875
    %v2887 = vadd.f32 %v2812, %v2878
    %v2888 = vadd.f32 %v2813, %v2881
    %v2889 = vadd.f32 %v2814, %v2884
    %s2890 = scalar_lea.vmem %s11, 192
    %v2891 = vld [vmem:[%s2890] sm:$0xff]
    %v2892 = vld [vmem:[%s2890 + $0x8] sm:$0xff]
    %v2893 = vld [vmem:[%s2890 + $0x10] sm:$0xff]
    %v2894 = vld [vmem:[%s2890 + $0x18] sm:$0xff]
    %s2895 = scalar_lea.vmem %s49, 48
    %v2896 = vld [vmem:[%s2895] sm:$0xff]
    %2897 = vmatpush.msra.mxu0 0.0
    %2898 = vmatpush.msra.mxu0 0.0
    %2899 = vmatpush.msra.mxu0 0.0
    %2900 = vmatpush.msra.mxu0 0.0
    %2901 = vmatpush.msra.mxu0 0.0
    %2902 = vmatpush.msra.mxu0 0.0
    %2903 = vmatpush.msra.mxu0 0.0
    %2904 = vmatpush.msra.mxu0 0.0
    %2905 = vmatpush.msra.mxu0 0.0
    %2906 = vmatpush.msra.mxu0 0.0
    %2907 = vmatpush.msra.mxu0 0.0
    %2908 = vmatpush.msra.mxu0 0.0
    %2909 = vmatpush.msra.mxu0 0.0
    %2910 = vmatpush.msra.mxu0 0.0
    %2911 = vmatpush.msra.mxu0 0.0
    %2912 = vmatpush.msra.mxu0 %v2896
    %2913 = vmatmul.f32.gmra.mxu0 %v2445
    %v2914 = vpop.f32.mrf.mxu0
    %v2915 = vadd.f32 0.0, %v2914
    %2916 = vdwg.mxu0
    %v2918 = vsel %vm393, %v2891, 0
    %v2921 = vsel %vm393, %v2892, 0
    %v2924 = vsel %vm393, %v2893, 0
    %v2927 = vsel %vm393, %v2894, 0
    %v2930 = vsel %vm406, %v2915, 0
    %2932 = vmatpush.msra.mxu0 0.0
    %2933 = vmatpush.msra.mxu0 0.0
    %2934 = vmatpush.msra.mxu0 0.0
    %2935 = vmatpush.msra.mxu0 0.0
    %2936 = vmatpush.msra.mxu0 0.0
    %2937 = vmatpush.msra.mxu0 0.0
    %2938 = vmatpush.msra.mxu0 0.0
    %2939 = vmatpush.msra.mxu0 0.0
    %2940 = vmatpush.msra.mxu0 0.0
    %2941 = vmatpush.msra.mxu0 0.0
    %2942 = vmatpush.msra.mxu0 0.0
    %2943 = vmatpush.msra.mxu0 0.0
    %2944 = vmatpush.msra.mxu0 0.0
    %2945 = vmatpush.msra.mxu0 0.0
    %2946 = vmatpush.msra.mxu0 0.0
    %2947 = vmatpush.msra.mxu0 %v2930
    %2948 = vmatmul.f32.gmra.mxu0 %v2918
    %v2949 = vpop.f32.mrf.mxu0
    %v2950 = vadd.f32 0.0, %v2949
    %2951 = vmatmul.f32.gmra.mxu0 %v2921
    %v2952 = vpop.f32.mrf.mxu0
    %v2953 = vadd.f32 0.0, %v2952
    %2954 = vmatmul.f32.gmra.mxu0 %v2924
    %v2955 = vpop.f32.mrf.mxu0
    %v2956 = vadd.f32 0.0, %v2955
    %2957 = vmatmul.f32.gmra.mxu0 %v2927
    %v2958 = vpop.f32.mrf.mxu0
    %v2959 = vadd.f32 0.0, %v2958
    %2960 = vdwg.mxu0
    %v2961 = vadd.f32 %v2886, %v2950
    %v2962 = vadd.f32 %v2887, %v2953
    %v2963 = vadd.f32 %v2888, %v2956
    %v2964 = vadd.f32 %v2889, %v2959
    %s2965 = scalar_lea.vmem %s11, 224
    %v2966 = vld [vmem:[%s2965] sm:$0xff]
    %v2967 = vld [vmem:[%s2965 + $0x8] sm:$0xff]
    %v2968 = vld [vmem:[%s2965 + $0x10] sm:$0xff]
    %v2969 = vld [vmem:[%s2965 + $0x18] sm:$0xff]
    %s2970 = scalar_lea.vmem %s49, 56
    %v2971 = vld [vmem:[%s2970] sm:$0xff]
    %2972 = vmatpush.msra.mxu0 0.0
    %2973 = vmatpush.msra.mxu0 0.0
    %2974 = vmatpush.msra.mxu0 0.0
    %2975 = vmatpush.msra.mxu0 0.0
    %2976 = vmatpush.msra.mxu0 0.0
    %2977 = vmatpush.msra.mxu0 0.0
    %2978 = vmatpush.msra.mxu0 0.0
    %2979 = vmatpush.msra.mxu0 0.0
    %2980 = vmatpush.msra.mxu0 0.0
    %2981 = vmatpush.msra.mxu0 0.0
    %2982 = vmatpush.msra.mxu0 0.0
    %2983 = vmatpush.msra.mxu0 0.0
    %2984 = vmatpush.msra.mxu0 0.0
    %2985 = vmatpush.msra.mxu0 0.0
    %2986 = vmatpush.msra.mxu0 0.0
    %2987 = vmatpush.msra.mxu0 %v2971
    %2988 = vmatmul.f32.gmra.mxu0 %v2445
    %v2989 = vpop.f32.mrf.mxu0
    %v2990 = vadd.f32 0.0, %v2989
    %2991 = vdwg.mxu0
    %v2993 = vsel %vm393, %v2966, 0
    %v2996 = vsel %vm393, %v2967, 0
    %v2999 = vsel %vm393, %v2968, 0
    %v3002 = vsel %vm393, %v2969, 0
    %v3005 = vsel %vm406, %v2990, 0
    %3007 = vmatpush.msra.mxu0 0.0
    %3008 = vmatpush.msra.mxu0 0.0
    %3009 = vmatpush.msra.mxu0 0.0
    %3010 = vmatpush.msra.mxu0 0.0
    %3011 = vmatpush.msra.mxu0 0.0
    %3012 = vmatpush.msra.mxu0 0.0
    %3013 = vmatpush.msra.mxu0 0.0
    %3014 = vmatpush.msra.mxu0 0.0
    %3015 = vmatpush.msra.mxu0 0.0
    %3016 = vmatpush.msra.mxu0 0.0
    %3017 = vmatpush.msra.mxu0 0.0
    %3018 = vmatpush.msra.mxu0 0.0
    %3019 = vmatpush.msra.mxu0 0.0
    %3020 = vmatpush.msra.mxu0 0.0
    %3021 = vmatpush.msra.mxu0 0.0
    %3022 = vmatpush.msra.mxu0 %v3005
    %3023 = vmatmul.f32.gmra.mxu0 %v2993
    %v3024 = vpop.f32.mrf.mxu0
    %v3025 = vadd.f32 0.0, %v3024
    %3026 = vmatmul.f32.gmra.mxu0 %v2996
    %v3027 = vpop.f32.mrf.mxu0
    %v3028 = vadd.f32 0.0, %v3027
    %3029 = vmatmul.f32.gmra.mxu0 %v2999
    %v3030 = vpop.f32.mrf.mxu0
    %v3031 = vadd.f32 0.0, %v3030
    %3032 = vmatmul.f32.gmra.mxu0 %v3002
    %v3033 = vpop.f32.mrf.mxu0
    %v3034 = vadd.f32 0.0, %v3033
    %3035 = vdwg.mxu0
    %v3036 = vadd.f32 %v2961, %v3025
    %v3037 = vadd.f32 %v2962, %v3028
    %v3038 = vadd.f32 %v2963, %v3031
    %v3039 = vadd.f32 %v2964, %v3034
    %s3040 = scalar_lea.vmem %s11, 256
    %v3041 = vld [vmem:[%s3040] sm:$0xff]
    %v3042 = vld [vmem:[%s3040 + $0x8] sm:$0xff]
    %v3043 = vld [vmem:[%s3040 + $0x10] sm:$0xff]
    %v3044 = vld [vmem:[%s3040 + $0x18] sm:$0xff]
    %s3045 = scalar_lea.vmem %s49, 64
    %v3046 = vld [vmem:[%s3045] sm:$0xff]
    %3047 = vmatpush.msra.mxu0 0.0
    %3048 = vmatpush.msra.mxu0 0.0
    %3049 = vmatpush.msra.mxu0 0.0
    %3050 = vmatpush.msra.mxu0 0.0
    %3051 = vmatpush.msra.mxu0 0.0
    %3052 = vmatpush.msra.mxu0 0.0
    %3053 = vmatpush.msra.mxu0 0.0
    %3054 = vmatpush.msra.mxu0 0.0
    %3055 = vmatpush.msra.mxu0 0.0
    %3056 = vmatpush.msra.mxu0 0.0
    %3057 = vmatpush.msra.mxu0 0.0
    %3058 = vmatpush.msra.mxu0 0.0
    %3059 = vmatpush.msra.mxu0 0.0
    %3060 = vmatpush.msra.mxu0 0.0
    %3061 = vmatpush.msra.mxu0 0.0
    %3062 = vmatpush.msra.mxu0 %v3046
    %3063 = vmatmul.f32.gmra.mxu0 %v2445
    %v3064 = vpop.f32.mrf.mxu0
    %v3065 = vadd.f32 0.0, %v3064
    %3066 = vdwg.mxu0
    %v3068 = vsel %vm393, %v3041, 0
    %v3071 = vsel %vm393, %v3042, 0
    %v3074 = vsel %vm393, %v3043, 0
    %v3077 = vsel %vm393, %v3044, 0
    %v3080 = vsel %vm406, %v3065, 0
    %3082 = vmatpush.msra.mxu0 0.0
    %3083 = vmatpush.msra.mxu0 0.0
    %3084 = vmatpush.msra.mxu0 0.0
    %3085 = vmatpush.msra.mxu0 0.0
    %3086 = vmatpush.msra.mxu0 0.0
    %3087 = vmatpush.msra.mxu0 0.0
    %3088 = vmatpush.msra.mxu0 0.0
    %3089 = vmatpush.msra.mxu0 0.0
    %3090 = vmatpush.msra.mxu0 0.0
    %3091 = vmatpush.msra.mxu0 0.0
    %3092 = vmatpush.msra.mxu0 0.0
    %3093 = vmatpush.msra.mxu0 0.0
    %3094 = vmatpush.msra.mxu0 0.0
    %3095 = vmatpush.msra.mxu0 0.0
    %3096 = vmatpush.msra.mxu0 0.0
    %3097 = vmatpush.msra.mxu0 %v3080
    %3098 = vmatmul.f32.gmra.mxu0 %v3068
    %v3099 = vpop.f32.mrf.mxu0
    %v3100 = vadd.f32 0.0, %v3099
    %3101 = vmatmul.f32.gmra.mxu0 %v3071
    %v3102 = vpop.f32.mrf.mxu0
    %v3103 = vadd.f32 0.0, %v3102
    %3104 = vmatmul.f32.gmra.mxu0 %v3074
    %v3105 = vpop.f32.mrf.mxu0
    %v3106 = vadd.f32 0.0, %v3105
    %3107 = vmatmul.f32.gmra.mxu0 %v3077
    %v3108 = vpop.f32.mrf.mxu0
    %v3109 = vadd.f32 0.0, %v3108
    %3110 = vdwg.mxu0
    %v3111 = vadd.f32 %v3036, %v3100
    %v3112 = vadd.f32 %v3037, %v3103
    %v3113 = vadd.f32 %v3038, %v3106
    %v3114 = vadd.f32 %v3039, %v3109
    %s3115 = scalar_lea.vmem %s11, 288
    %v3116 = vld [vmem:[%s3115] sm:$0xff]
    %v3117 = vld [vmem:[%s3115 + $0x8] sm:$0xff]
    %v3118 = vld [vmem:[%s3115 + $0x10] sm:$0xff]
    %v3119 = vld [vmem:[%s3115 + $0x18] sm:$0xff]
    %s3120 = scalar_lea.vmem %s49, 72
    %v3121 = vld [vmem:[%s3120] sm:$0xff]
    %3122 = vmatpush.msra.mxu0 0.0
    %3123 = vmatpush.msra.mxu0 0.0
    %3124 = vmatpush.msra.mxu0 0.0
    %3125 = vmatpush.msra.mxu0 0.0
    %3126 = vmatpush.msra.mxu0 0.0
    %3127 = vmatpush.msra.mxu0 0.0
    %3128 = vmatpush.msra.mxu0 0.0
    %3129 = vmatpush.msra.mxu0 0.0
    %3130 = vmatpush.msra.mxu0 0.0
    %3131 = vmatpush.msra.mxu0 0.0
    %3132 = vmatpush.msra.mxu0 0.0
    %3133 = vmatpush.msra.mxu0 0.0
    %3134 = vmatpush.msra.mxu0 0.0
    %3135 = vmatpush.msra.mxu0 0.0
    %3136 = vmatpush.msra.mxu0 0.0
    %3137 = vmatpush.msra.mxu0 %v3121
    %3138 = vmatmul.f32.gmra.mxu0 %v2445
    %v3139 = vpop.f32.mrf.mxu0
    %v3140 = vadd.f32 0.0, %v3139
    %3141 = vdwg.mxu0
    %v3143 = vsel %vm393, %v3116, 0
    %v3146 = vsel %vm393, %v3117, 0
    %v3149 = vsel %vm393, %v3118, 0
    %v3152 = vsel %vm393, %v3119, 0
    %v3155 = vsel %vm406, %v3140, 0
    %3157 = vmatpush.msra.mxu0 0.0
    %3158 = vmatpush.msra.mxu0 0.0
    %3159 = vmatpush.msra.mxu0 0.0
    %3160 = vmatpush.msra.mxu0 0.0
    %3161 = vmatpush.msra.mxu0 0.0
    %3162 = vmatpush.msra.mxu0 0.0
    %3163 = vmatpush.msra.mxu0 0.0
    %3164 = vmatpush.msra.mxu0 0.0
    %3165 = vmatpush.msra.mxu0 0.0
    %3166 = vmatpush.msra.mxu0 0.0
    %3167 = vmatpush.msra.mxu0 0.0
    %3168 = vmatpush.msra.mxu0 0.0
    %3169 = vmatpush.msra.mxu0 0.0
    %3170 = vmatpush.msra.mxu0 0.0
    %3171 = vmatpush.msra.mxu0 0.0
    %3172 = vmatpush.msra.mxu0 %v3155
    %3173 = vmatmul.f32.gmra.mxu0 %v3143
    %v3174 = vpop.f32.mrf.mxu0
    %v3175 = vadd.f32 0.0, %v3174
    %3176 = vmatmul.f32.gmra.mxu0 %v3146
    %v3177 = vpop.f32.mrf.mxu0
    %v3178 = vadd.f32 0.0, %v3177
    %3179 = vmatmul.f32.gmra.mxu0 %v3149
    %v3180 = vpop.f32.mrf.mxu0
    %v3181 = vadd.f32 0.0, %v3180
    %3182 = vmatmul.f32.gmra.mxu0 %v3152
    %v3183 = vpop.f32.mrf.mxu0
    %v3184 = vadd.f32 0.0, %v3183
    %3185 = vdwg.mxu0
    %v3186 = vadd.f32 %v3111, %v3175
    %v3187 = vadd.f32 %v3112, %v3178
    %v3188 = vadd.f32 %v3113, %v3181
    %v3189 = vadd.f32 %v3114, %v3184
    %s3190 = scalar_lea.vmem %s11, 320
    %v3191 = vld [vmem:[%s3190] sm:$0xff]
    %v3192 = vld [vmem:[%s3190 + $0x8] sm:$0xff]
    %v3193 = vld [vmem:[%s3190 + $0x10] sm:$0xff]
    %v3194 = vld [vmem:[%s3190 + $0x18] sm:$0xff]
    %s3195 = scalar_lea.vmem %s49, 80
    %v3196 = vld [vmem:[%s3195] sm:$0xff]
    %3197 = vmatpush.msra.mxu0 0.0
    %3198 = vmatpush.msra.mxu0 0.0
    %3199 = vmatpush.msra.mxu0 0.0
    %3200 = vmatpush.msra.mxu0 0.0
    %3201 = vmatpush.msra.mxu0 0.0
    %3202 = vmatpush.msra.mxu0 0.0
    %3203 = vmatpush.msra.mxu0 0.0
    %3204 = vmatpush.msra.mxu0 0.0
    %3205 = vmatpush.msra.mxu0 0.0
    %3206 = vmatpush.msra.mxu0 0.0
    %3207 = vmatpush.msra.mxu0 0.0
    %3208 = vmatpush.msra.mxu0 0.0
    %3209 = vmatpush.msra.mxu0 0.0
    %3210 = vmatpush.msra.mxu0 0.0
    %3211 = vmatpush.msra.mxu0 0.0
    %3212 = vmatpush.msra.mxu0 %v3196
    %3213 = vmatmul.f32.gmra.mxu0 %v2445
    %v3214 = vpop.f32.mrf.mxu0
    %v3215 = vadd.f32 0.0, %v3214
    %3216 = vdwg.mxu0
    %v3218 = vsel %vm393, %v3191, 0
    %v3221 = vsel %vm393, %v3192, 0
    %v3224 = vsel %vm393, %v3193, 0
    %v3227 = vsel %vm393, %v3194, 0
    %v3230 = vsel %vm406, %v3215, 0
    %3232 = vmatpush.msra.mxu0 0.0
    %3233 = vmatpush.msra.mxu0 0.0
    %3234 = vmatpush.msra.mxu0 0.0
    %3235 = vmatpush.msra.mxu0 0.0
    %3236 = vmatpush.msra.mxu0 0.0
    %3237 = vmatpush.msra.mxu0 0.0
    %3238 = vmatpush.msra.mxu0 0.0
    %3239 = vmatpush.msra.mxu0 0.0
    %3240 = vmatpush.msra.mxu0 0.0
    %3241 = vmatpush.msra.mxu0 0.0
    %3242 = vmatpush.msra.mxu0 0.0
    %3243 = vmatpush.msra.mxu0 0.0
    %3244 = vmatpush.msra.mxu0 0.0
    %3245 = vmatpush.msra.mxu0 0.0
    %3246 = vmatpush.msra.mxu0 0.0
    %3247 = vmatpush.msra.mxu0 %v3230
    %3248 = vmatmul.f32.gmra.mxu0 %v3218
    %v3249 = vpop.f32.mrf.mxu0
    %v3250 = vadd.f32 0.0, %v3249
    %3251 = vmatmul.f32.gmra.mxu0 %v3221
    %v3252 = vpop.f32.mrf.mxu0
    %v3253 = vadd.f32 0.0, %v3252
    %3254 = vmatmul.f32.gmra.mxu0 %v3224
    %v3255 = vpop.f32.mrf.mxu0
    %v3256 = vadd.f32 0.0, %v3255
    %3257 = vmatmul.f32.gmra.mxu0 %v3227
    %v3258 = vpop.f32.mrf.mxu0
    %v3259 = vadd.f32 0.0, %v3258
    %3260 = vdwg.mxu0
    %v3261 = vadd.f32 %v3186, %v3250
    %v3262 = vadd.f32 %v3187, %v3253
    %v3263 = vadd.f32 %v3188, %v3256
    %v3264 = vadd.f32 %v3189, %v3259
    %s3265 = scalar_lea.vmem %s11, 352
    %v3266 = vld [vmem:[%s3265] sm:$0xff]
    %v3267 = vld [vmem:[%s3265 + $0x8] sm:$0xff]
    %v3268 = vld [vmem:[%s3265 + $0x10] sm:$0xff]
    %v3269 = vld [vmem:[%s3265 + $0x18] sm:$0xff]
    %s3270 = scalar_lea.vmem %s49, 88
    %v3271 = vld [vmem:[%s3270] sm:$0xff]
    %3272 = vmatpush.msra.mxu0 0.0
    %3273 = vmatpush.msra.mxu0 0.0
    %3274 = vmatpush.msra.mxu0 0.0
    %3275 = vmatpush.msra.mxu0 0.0
    %3276 = vmatpush.msra.mxu0 0.0
    %3277 = vmatpush.msra.mxu0 0.0
    %3278 = vmatpush.msra.mxu0 0.0
    %3279 = vmatpush.msra.mxu0 0.0
    %3280 = vmatpush.msra.mxu0 0.0
    %3281 = vmatpush.msra.mxu0 0.0
    %3282 = vmatpush.msra.mxu0 0.0
    %3283 = vmatpush.msra.mxu0 0.0
    %3284 = vmatpush.msra.mxu0 0.0
    %3285 = vmatpush.msra.mxu0 0.0
    %3286 = vmatpush.msra.mxu0 0.0
    %3287 = vmatpush.msra.mxu0 %v3271
    %3288 = vmatmul.f32.gmra.mxu0 %v2445
    %v3289 = vpop.f32.mrf.mxu0
    %v3290 = vadd.f32 0.0, %v3289
    %3291 = vdwg.mxu0
    %v3293 = vsel %vm393, %v3266, 0
    %v3296 = vsel %vm393, %v3267, 0
    %v3299 = vsel %vm393, %v3268, 0
    %v3302 = vsel %vm393, %v3269, 0
    %v3305 = vsel %vm406, %v3290, 0
    %3307 = vmatpush.msra.mxu0 0.0
    %3308 = vmatpush.msra.mxu0 0.0
    %3309 = vmatpush.msra.mxu0 0.0
    %3310 = vmatpush.msra.mxu0 0.0
    %3311 = vmatpush.msra.mxu0 0.0
    %3312 = vmatpush.msra.mxu0 0.0
    %3313 = vmatpush.msra.mxu0 0.0
    %3314 = vmatpush.msra.mxu0 0.0
    %3315 = vmatpush.msra.mxu0 0.0
    %3316 = vmatpush.msra.mxu0 0.0
    %3317 = vmatpush.msra.mxu0 0.0
    %3318 = vmatpush.msra.mxu0 0.0
    %3319 = vmatpush.msra.mxu0 0.0
    %3320 = vmatpush.msra.mxu0 0.0
    %3321 = vmatpush.msra.mxu0 0.0
    %3322 = vmatpush.msra.mxu0 %v3305
    %3323 = vmatmul.f32.gmra.mxu0 %v3293
    %v3324 = vpop.f32.mrf.mxu0
    %v3325 = vadd.f32 0.0, %v3324
    %3326 = vmatmul.f32.gmra.mxu0 %v3296
    %v3327 = vpop.f32.mrf.mxu0
    %v3328 = vadd.f32 0.0, %v3327
    %3329 = vmatmul.f32.gmra.mxu0 %v3299
    %v3330 = vpop.f32.mrf.mxu0
    %v3331 = vadd.f32 0.0, %v3330
    %3332 = vmatmul.f32.gmra.mxu0 %v3302
    %v3333 = vpop.f32.mrf.mxu0
    %v3334 = vadd.f32 0.0, %v3333
    %3335 = vdwg.mxu0
    %v3336 = vadd.f32 %v3261, %v3325
    %v3337 = vadd.f32 %v3262, %v3328
    %v3338 = vadd.f32 %v3263, %v3331
    %v3339 = vadd.f32 %v3264, %v3334
    %s3340 = scalar_lea.vmem %s11, 384
    %v3341 = vld [vmem:[%s3340] sm:$0xff]
    %v3342 = vld [vmem:[%s3340 + $0x8] sm:$0xff]
    %v3343 = vld [vmem:[%s3340 + $0x10] sm:$0xff]
    %v3344 = vld [vmem:[%s3340 + $0x18] sm:$0xff]
    %s3345 = scalar_lea.vmem %s49, 96
    %v3346 = vld [vmem:[%s3345] sm:$0xff]
    %3347 = vmatpush.msra.mxu0 0.0
    %3348 = vmatpush.msra.mxu0 0.0
    %3349 = vmatpush.msra.mxu0 0.0
    %3350 = vmatpush.msra.mxu0 0.0
    %3351 = vmatpush.msra.mxu0 0.0
    %3352 = vmatpush.msra.mxu0 0.0
    %3353 = vmatpush.msra.mxu0 0.0
    %3354 = vmatpush.msra.mxu0 0.0
    %3355 = vmatpush.msra.mxu0 0.0
    %3356 = vmatpush.msra.mxu0 0.0
    %3357 = vmatpush.msra.mxu0 0.0
    %3358 = vmatpush.msra.mxu0 0.0
    %3359 = vmatpush.msra.mxu0 0.0
    %3360 = vmatpush.msra.mxu0 0.0
    %3361 = vmatpush.msra.mxu0 0.0
    %3362 = vmatpush.msra.mxu0 %v3346
    %3363 = vmatmul.f32.gmra.mxu0 %v2445
    %v3364 = vpop.f32.mrf.mxu0
    %v3365 = vadd.f32 0.0, %v3364
    %3366 = vdwg.mxu0
    %v3368 = vsel %vm393, %v3341, 0
    %v3371 = vsel %vm393, %v3342, 0
    %v3374 = vsel %vm393, %v3343, 0
    %v3377 = vsel %vm393, %v3344, 0
    %v3380 = vsel %vm406, %v3365, 0
    %3382 = vmatpush.msra.mxu0 0.0
    %3383 = vmatpush.msra.mxu0 0.0
    %3384 = vmatpush.msra.mxu0 0.0
    %3385 = vmatpush.msra.mxu0 0.0
    %3386 = vmatpush.msra.mxu0 0.0
    %3387 = vmatpush.msra.mxu0 0.0
    %3388 = vmatpush.msra.mxu0 0.0
    %3389 = vmatpush.msra.mxu0 0.0
    %3390 = vmatpush.msra.mxu0 0.0
    %3391 = vmatpush.msra.mxu0 0.0
    %3392 = vmatpush.msra.mxu0 0.0
    %3393 = vmatpush.msra.mxu0 0.0
    %3394 = vmatpush.msra.mxu0 0.0
    %3395 = vmatpush.msra.mxu0 0.0
    %3396 = vmatpush.msra.mxu0 0.0
    %3397 = vmatpush.msra.mxu0 %v3380
    %3398 = vmatmul.f32.gmra.mxu0 %v3368
    %v3399 = vpop.f32.mrf.mxu0
    %v3400 = vadd.f32 0.0, %v3399
    %3401 = vmatmul.f32.gmra.mxu0 %v3371
    %v3402 = vpop.f32.mrf.mxu0
    %v3403 = vadd.f32 0.0, %v3402
    %3404 = vmatmul.f32.gmra.mxu0 %v3374
    %v3405 = vpop.f32.mrf.mxu0
    %v3406 = vadd.f32 0.0, %v3405
    %3407 = vmatmul.f32.gmra.mxu0 %v3377
    %v3408 = vpop.f32.mrf.mxu0
    %v3409 = vadd.f32 0.0, %v3408
    %3410 = vdwg.mxu0
    %v3411 = vadd.f32 %v3336, %v3400
    %v3412 = vadd.f32 %v3337, %v3403
    %v3413 = vadd.f32 %v3338, %v3406
    %v3414 = vadd.f32 %v3339, %v3409
    %s3415 = scalar_lea.vmem %s11, 416
    %v3416 = vld [vmem:[%s3415] sm:$0xff]
    %v3417 = vld [vmem:[%s3415 + $0x8] sm:$0xff]
    %v3418 = vld [vmem:[%s3415 + $0x10] sm:$0xff]
    %v3419 = vld [vmem:[%s3415 + $0x18] sm:$0xff]
    %s3420 = scalar_lea.vmem %s49, 104
    %v3421 = vld [vmem:[%s3420] sm:$0xff]
    %3422 = vmatpush.msra.mxu0 0.0
    %3423 = vmatpush.msra.mxu0 0.0
    %3424 = vmatpush.msra.mxu0 0.0
    %3425 = vmatpush.msra.mxu0 0.0
    %3426 = vmatpush.msra.mxu0 0.0
    %3427 = vmatpush.msra.mxu0 0.0
    %3428 = vmatpush.msra.mxu0 0.0
    %3429 = vmatpush.msra.mxu0 0.0
    %3430 = vmatpush.msra.mxu0 0.0
    %3431 = vmatpush.msra.mxu0 0.0
    %3432 = vmatpush.msra.mxu0 0.0
    %3433 = vmatpush.msra.mxu0 0.0
    %3434 = vmatpush.msra.mxu0 0.0
    %3435 = vmatpush.msra.mxu0 0.0
    %3436 = vmatpush.msra.mxu0 0.0
    %3437 = vmatpush.msra.mxu0 %v3421
    %3438 = vmatmul.f32.gmra.mxu0 %v2445
    %v3439 = vpop.f32.mrf.mxu0
    %v3440 = vadd.f32 0.0, %v3439
    %3441 = vdwg.mxu0
    %v3443 = vsel %vm393, %v3416, 0
    %v3446 = vsel %vm393, %v3417, 0
    %v3449 = vsel %vm393, %v3418, 0
    %v3452 = vsel %vm393, %v3419, 0
    %v3455 = vsel %vm406, %v3440, 0
    %3457 = vmatpush.msra.mxu0 0.0
    %3458 = vmatpush.msra.mxu0 0.0
    %3459 = vmatpush.msra.mxu0 0.0
    %3460 = vmatpush.msra.mxu0 0.0
    %3461 = vmatpush.msra.mxu0 0.0
    %3462 = vmatpush.msra.mxu0 0.0
    %3463 = vmatpush.msra.mxu0 0.0
    %3464 = vmatpush.msra.mxu0 0.0
    %3465 = vmatpush.msra.mxu0 0.0
    %3466 = vmatpush.msra.mxu0 0.0
    %3467 = vmatpush.msra.mxu0 0.0
    %3468 = vmatpush.msra.mxu0 0.0
    %3469 = vmatpush.msra.mxu0 0.0
    %3470 = vmatpush.msra.mxu0 0.0
    %3471 = vmatpush.msra.mxu0 0.0
    %3472 = vmatpush.msra.mxu0 %v3455
    %3473 = vmatmul.f32.gmra.mxu0 %v3443
    %v3474 = vpop.f32.mrf.mxu0
    %v3475 = vadd.f32 0.0, %v3474
    %3476 = vmatmul.f32.gmra.mxu0 %v3446
    %v3477 = vpop.f32.mrf.mxu0
    %v3478 = vadd.f32 0.0, %v3477
    %3479 = vmatmul.f32.gmra.mxu0 %v3449
    %v3480 = vpop.f32.mrf.mxu0
    %v3481 = vadd.f32 0.0, %v3480
    %3482 = vmatmul.f32.gmra.mxu0 %v3452
    %v3483 = vpop.f32.mrf.mxu0
    %v3484 = vadd.f32 0.0, %v3483
    %3485 = vdwg.mxu0
    %v3486 = vadd.f32 %v3411, %v3475
    %v3487 = vadd.f32 %v3412, %v3478
    %v3488 = vadd.f32 %v3413, %v3481
    %v3489 = vadd.f32 %v3414, %v3484
    %s3490 = scalar_lea.vmem %s11, 448
    %v3491 = vld [vmem:[%s3490] sm:$0xff]
    %v3492 = vld [vmem:[%s3490 + $0x8] sm:$0xff]
    %v3493 = vld [vmem:[%s3490 + $0x10] sm:$0xff]
    %v3494 = vld [vmem:[%s3490 + $0x18] sm:$0xff]
    %s3495 = scalar_lea.vmem %s49, 112
    %v3496 = vld [vmem:[%s3495] sm:$0xff]
    %3497 = vmatpush.msra.mxu0 0.0
    %3498 = vmatpush.msra.mxu0 0.0
    %3499 = vmatpush.msra.mxu0 0.0
    %3500 = vmatpush.msra.mxu0 0.0
    %3501 = vmatpush.msra.mxu0 0.0
    %3502 = vmatpush.msra.mxu0 0.0
    %3503 = vmatpush.msra.mxu0 0.0
    %3504 = vmatpush.msra.mxu0 0.0
    %3505 = vmatpush.msra.mxu0 0.0
    %3506 = vmatpush.msra.mxu0 0.0
    %3507 = vmatpush.msra.mxu0 0.0
    %3508 = vmatpush.msra.mxu0 0.0
    %3509 = vmatpush.msra.mxu0 0.0
    %3510 = vmatpush.msra.mxu0 0.0
    %3511 = vmatpush.msra.mxu0 0.0
    %3512 = vmatpush.msra.mxu0 %v3496
    %3513 = vmatmul.f32.gmra.mxu0 %v2445
    %v3514 = vpop.f32.mrf.mxu0
    %v3515 = vadd.f32 0.0, %v3514
    %3516 = vdwg.mxu0
    %v3518 = vsel %vm393, %v3491, 0
    %v3521 = vsel %vm393, %v3492, 0
    %v3524 = vsel %vm393, %v3493, 0
    %v3527 = vsel %vm393, %v3494, 0
    %v3530 = vsel %vm406, %v3515, 0
    %3532 = vmatpush.msra.mxu0 0.0
    %3533 = vmatpush.msra.mxu0 0.0
    %3534 = vmatpush.msra.mxu0 0.0
    %3535 = vmatpush.msra.mxu0 0.0
    %3536 = vmatpush.msra.mxu0 0.0
    %3537 = vmatpush.msra.mxu0 0.0
    %3538 = vmatpush.msra.mxu0 0.0
    %3539 = vmatpush.msra.mxu0 0.0
    %3540 = vmatpush.msra.mxu0 0.0
    %3541 = vmatpush.msra.mxu0 0.0
    %3542 = vmatpush.msra.mxu0 0.0
    %3543 = vmatpush.msra.mxu0 0.0
    %3544 = vmatpush.msra.mxu0 0.0
    %3545 = vmatpush.msra.mxu0 0.0
    %3546 = vmatpush.msra.mxu0 0.0
    %3547 = vmatpush.msra.mxu0 %v3530
    %3548 = vmatmul.f32.gmra.mxu0 %v3518
    %v3549 = vpop.f32.mrf.mxu0
    %v3550 = vadd.f32 0.0, %v3549
    %3551 = vmatmul.f32.gmra.mxu0 %v3521
    %v3552 = vpop.f32.mrf.mxu0
    %v3553 = vadd.f32 0.0, %v3552
    %3554 = vmatmul.f32.gmra.mxu0 %v3524
    %v3555 = vpop.f32.mrf.mxu0
    %v3556 = vadd.f32 0.0, %v3555
    %3557 = vmatmul.f32.gmra.mxu0 %v3527
    %v3558 = vpop.f32.mrf.mxu0
    %v3559 = vadd.f32 0.0, %v3558
    %3560 = vdwg.mxu0
    %v3561 = vadd.f32 %v3486, %v3550
    %v3562 = vadd.f32 %v3487, %v3553
    %v3563 = vadd.f32 %v3488, %v3556
    %v3564 = vadd.f32 %v3489, %v3559
    %s3565 = scalar_lea.vmem %s11, 480
    %v3566 = vld [vmem:[%s3565] sm:$0xff]
    %v3567 = vld [vmem:[%s3565 + $0x8] sm:$0xff]
    %v3568 = vld [vmem:[%s3565 + $0x10] sm:$0xff]
    %v3569 = vld [vmem:[%s3565 + $0x18] sm:$0xff]
    %s3570 = scalar_lea.vmem %s49, 120
    %v3571 = vld [vmem:[%s3570] sm:$0xff]
    %3572 = vmatpush.msra.mxu0 0.0
    %3573 = vmatpush.msra.mxu0 0.0
    %3574 = vmatpush.msra.mxu0 0.0
    %3575 = vmatpush.msra.mxu0 0.0
    %3576 = vmatpush.msra.mxu0 0.0
    %3577 = vmatpush.msra.mxu0 0.0
    %3578 = vmatpush.msra.mxu0 0.0
    %3579 = vmatpush.msra.mxu0 0.0
    %3580 = vmatpush.msra.mxu0 0.0
    %3581 = vmatpush.msra.mxu0 0.0
    %3582 = vmatpush.msra.mxu0 0.0
    %3583 = vmatpush.msra.mxu0 0.0
    %3584 = vmatpush.msra.mxu0 0.0
    %3585 = vmatpush.msra.mxu0 0.0
    %3586 = vmatpush.msra.mxu0 0.0
    %3587 = vmatpush.msra.mxu0 %v3571
    %3588 = vmatmul.f32.gmra.mxu0 %v2445
    %v3589 = vpop.f32.mrf.mxu0
    %v3590 = vadd.f32 0.0, %v3589
    %3591 = vdwg.mxu0
    %v3593 = vsel %vm393, %v3566, 0
    %v3596 = vsel %vm393, %v3567, 0
    %v3599 = vsel %vm393, %v3568, 0
    %v3602 = vsel %vm393, %v3569, 0
    %v3605 = vsel %vm406, %v3590, 0
    %3607 = vmatpush.msra.mxu0 0.0
    %3608 = vmatpush.msra.mxu0 0.0
    %3609 = vmatpush.msra.mxu0 0.0
    %3610 = vmatpush.msra.mxu0 0.0
    %3611 = vmatpush.msra.mxu0 0.0
    %3612 = vmatpush.msra.mxu0 0.0
    %3613 = vmatpush.msra.mxu0 0.0
    %3614 = vmatpush.msra.mxu0 0.0
    %3615 = vmatpush.msra.mxu0 0.0
    %3616 = vmatpush.msra.mxu0 0.0
    %3617 = vmatpush.msra.mxu0 0.0
    %3618 = vmatpush.msra.mxu0 0.0
    %3619 = vmatpush.msra.mxu0 0.0
    %3620 = vmatpush.msra.mxu0 0.0
    %3621 = vmatpush.msra.mxu0 0.0
    %3622 = vmatpush.msra.mxu0 %v3605
    %3623 = vmatmul.f32.gmra.mxu0 %v3593
    %v3624 = vpop.f32.mrf.mxu0
    %v3625 = vadd.f32 0.0, %v3624
    %3626 = vmatmul.f32.gmra.mxu0 %v3596
    %v3627 = vpop.f32.mrf.mxu0
    %v3628 = vadd.f32 0.0, %v3627
    %3629 = vmatmul.f32.gmra.mxu0 %v3599
    %v3630 = vpop.f32.mrf.mxu0
    %v3631 = vadd.f32 0.0, %v3630
    %3632 = vmatmul.f32.gmra.mxu0 %v3602
    %v3633 = vpop.f32.mrf.mxu0
    %v3634 = vadd.f32 0.0, %v3633
    %3635 = vdwg.mxu0
    %v3636 = vadd.f32 %v3561, %v3625
    %v3637 = vadd.f32 %v3562, %v3628
    %v3638 = vadd.f32 %v3563, %v3631
    %v3639 = vadd.f32 %v3564, %v3634
    %v3640 = vld [vmem:[#allocation17] sm:$0xff]
    %v3641 = vld [vmem:[#allocation17 + $0x8] sm:$0xff]
    %v3643 = vsel %vm891, %v3636, 0
    %v3646 = vsel %vm891, %v3637, 0
    %v3649 = vsel %vm891, %v3638, 0
    %v3652 = vsel %vm891, %v3639, 0
    %3654 = vmatpush.msra.mxu0 0.0
    %3655 = vmatpush.msra.mxu0 0.0
    %3656 = vmatpush.msra.mxu0 0.0
    %3657 = vmatpush.msra.mxu0 0.0
    %3658 = vmatpush.msra.mxu0 0.0
    %3659 = vmatpush.msra.mxu0 0.0
    %3660 = vmatpush.msra.mxu0 0.0
    %3661 = vmatpush.msra.mxu0 0.0
    %3662 = vmatpush.msra.mxu0 0.0
    %3663 = vmatpush.msra.mxu0 0.0
    %3664 = vmatpush.msra.mxu0 0.0
    %3665 = vmatpush.msra.mxu0 0.0
    %3666 = vmatpush.msra.mxu0 0.0
    %3667 = vmatpush.msra.mxu0 0.0
    %3668 = vmatpush.msra.mxu0 %v3641
    %3669 = vmatpush.msra.mxu0 %v3640
    %3670 = vmatmul.f32.gmra.mxu0 %v3643
    %v3671 = vpop.f32.mrf.mxu0
    %v3672 = vadd.f32 0.0, %v3671
    %3673 = vmatmul.f32.gmra.mxu0 %v3646
    %v3674 = vpop.f32.mrf.mxu0
    %v3675 = vadd.f32 0.0, %v3674
    %3676 = vmatmul.f32.gmra.mxu0 %v3649
    %v3677 = vpop.f32.mrf.mxu0
    %v3678 = vadd.f32 0.0, %v3677
    %3679 = vmatmul.f32.gmra.mxu0 %v3652
    %v3680 = vpop.f32.mrf.mxu0
    %v3681 = vadd.f32 0.0, %v3680
    %3682 = vdwg.mxu0
    %s3683 = scalar_lea.vmem [#allocation17], 16
    %v3684 = vld [vmem:[%s3683] sm:$0xff]
    %v3685 = vld [vmem:[%s3683 + $0x8] sm:$0xff]
    %3686 = vmatpush.msra.mxu0 0.0
    %3687 = vmatpush.msra.mxu0 0.0
    %3688 = vmatpush.msra.mxu0 0.0
    %3689 = vmatpush.msra.mxu0 0.0
    %3690 = vmatpush.msra.mxu0 0.0
    %3691 = vmatpush.msra.mxu0 0.0
    %3692 = vmatpush.msra.mxu0 0.0
    %3693 = vmatpush.msra.mxu0 0.0
    %3694 = vmatpush.msra.mxu0 0.0
    %3695 = vmatpush.msra.mxu0 0.0
    %3696 = vmatpush.msra.mxu0 0.0
    %3697 = vmatpush.msra.mxu0 0.0
    %3698 = vmatpush.msra.mxu0 0.0
    %3699 = vmatpush.msra.mxu0 0.0
    %3700 = vmatpush.msra.mxu0 %v3685
    %3701 = vmatpush.msra.mxu0 %v3684
    %3702 = vmatmul.f32.gmra.mxu0 %v3643
    %v3703 = vpop.f32.mrf.mxu0
    %v3704 = vadd.f32 0.0, %v3703
    %3705 = vmatmul.f32.gmra.mxu0 %v3646
    %v3706 = vpop.f32.mrf.mxu0
    %v3707 = vadd.f32 0.0, %v3706
    %3708 = vmatmul.f32.gmra.mxu0 %v3649
    %v3709 = vpop.f32.mrf.mxu0
    %v3710 = vadd.f32 0.0, %v3709
    %3711 = vmatmul.f32.gmra.mxu0 %v3652
    %v3712 = vpop.f32.mrf.mxu0
    %v3713 = vadd.f32 0.0, %v3712
    %3714 = vdwg.mxu0
    %3715 = vmatpush.msra.mxu0 0.0
    %3716 = vmatpush.msra.mxu0 0.0
    %3717 = vmatpush.msra.mxu0 0.0
    %3718 = vmatpush.msra.mxu0 0.0
    %3719 = vmatpush.msra.mxu0 0.0
    %3720 = vmatpush.msra.mxu0 0.0
    %3721 = vmatpush.msra.mxu0 0.0
    %3722 = vmatpush.msra.mxu0 0.0
    %3723 = vmatpush.msra.mxu0 0.0
    %3724 = vmatpush.msra.mxu0 0.0
    %3725 = vmatpush.msra.mxu0 0.0
    %3726 = vmatpush.msra.mxu0 0.0
    %3727 = vmatpush.msra.mxu0 %v3681
    %3728 = vmatpush.msra.mxu0 %v3678
    %3729 = vmatpush.msra.mxu0 %v3675
    %3730 = vmatpush.msra.mxu0 %v3672
    %3731 = vmatmul.f32.gmra.mxu0 %v515
    %v3732 = vpop.f32.mrf.mxu0
    %v3733 = vadd.f32 %v3704, %v3732
    %3734 = vmatmul.f32.gmra.mxu0 %v518
    %v3735 = vpop.f32.mrf.mxu0
    %v3736 = vadd.f32 %v3707, %v3735
    %3737 = vmatmul.f32.gmra.mxu0 %v521
    %v3738 = vpop.f32.mrf.mxu0
    %v3739 = vadd.f32 %v3710, %v3738
    %3740 = vmatmul.f32.gmra.mxu0 %v524
    %v3741 = vpop.f32.mrf.mxu0
    %v3742 = vadd.f32 %v3713, %v3741
    %3743 = vdwg.mxu0
    %s3744 = scalar_lea.vmem [#allocation17], 32
    %v3745 = vld [vmem:[%s3744] sm:$0xff]
    %v3746 = vld [vmem:[%s3744 + $0x8] sm:$0xff]
    %3747 = vmatpush.msra.mxu0 0.0
    %3748 = vmatpush.msra.mxu0 0.0
    %3749 = vmatpush.msra.mxu0 0.0
    %3750 = vmatpush.msra.mxu0 0.0
    %3751 = vmatpush.msra.mxu0 0.0
    %3752 = vmatpush.msra.mxu0 0.0
    %3753 = vmatpush.msra.mxu0 0.0
    %3754 = vmatpush.msra.mxu0 0.0
    %3755 = vmatpush.msra.mxu0 0.0
    %3756 = vmatpush.msra.mxu0 0.0
    %3757 = vmatpush.msra.mxu0 0.0
    %3758 = vmatpush.msra.mxu0 0.0
    %3759 = vmatpush.msra.mxu0 0.0
    %3760 = vmatpush.msra.mxu0 0.0
    %3761 = vmatpush.msra.mxu0 %v3746
    %3762 = vmatpush.msra.mxu0 %v3745
    %3763 = vmatmul.f32.gmra.mxu0 %v3643
    %v3764 = vpop.f32.mrf.mxu0
    %v3765 = vadd.f32 0.0, %v3764
    %3766 = vmatmul.f32.gmra.mxu0 %v3646
    %v3767 = vpop.f32.mrf.mxu0
    %v3768 = vadd.f32 0.0, %v3767
    %3769 = vmatmul.f32.gmra.mxu0 %v3649
    %v3770 = vpop.f32.mrf.mxu0
    %v3771 = vadd.f32 0.0, %v3770
    %3772 = vmatmul.f32.gmra.mxu0 %v3652
    %v3773 = vpop.f32.mrf.mxu0
    %v3774 = vadd.f32 0.0, %v3773
    %3775 = vdwg.mxu0
    %3776 = vmatpush.msra.mxu0 0.0
    %3777 = vmatpush.msra.mxu0 0.0
    %3778 = vmatpush.msra.mxu0 0.0
    %3779 = vmatpush.msra.mxu0 0.0
    %3780 = vmatpush.msra.mxu0 0.0
    %3781 = vmatpush.msra.mxu0 0.0
    %3782 = vmatpush.msra.mxu0 0.0
    %3783 = vmatpush.msra.mxu0 0.0
    %3784 = vmatpush.msra.mxu0 0.0
    %3785 = vmatpush.msra.mxu0 0.0
    %3786 = vmatpush.msra.mxu0 0.0
    %3787 = vmatpush.msra.mxu0 0.0
    %3788 = vmatpush.msra.mxu0 %v3774
    %3789 = vmatpush.msra.mxu0 %v3771
    %3790 = vmatpush.msra.mxu0 %v3768
    %3791 = vmatpush.msra.mxu0 %v3765
    %3792 = vmatmul.f32.gmra.mxu0 %v587
    %v3793 = vpop.f32.mrf.mxu0
    %v3794 = vadd.f32 0.0, %v3793
    %3795 = vmatmul.f32.gmra.mxu0 %v590
    %v3796 = vpop.f32.mrf.mxu0
    %v3797 = vadd.f32 0.0, %v3796
    %3798 = vmatmul.f32.gmra.mxu0 %v593
    %v3799 = vpop.f32.mrf.mxu0
    %v3800 = vadd.f32 0.0, %v3799
    %3801 = vmatmul.f32.gmra.mxu0 %v596
    %v3802 = vpop.f32.mrf.mxu0
    %v3803 = vadd.f32 0.0, %v3802
    %3804 = vdwg.mxu0
    %v3805 = vadd.f32 %v3733, %v3794
    %v3806 = vadd.f32 %v3736, %v3797
    %v3807 = vadd.f32 %v3739, %v3800
    %v3808 = vadd.f32 %v3742, %v3803
    %v3809 = vld [vmem:[%s55] sm:$0x1]
    %v3811 = vperm.slane %v3809, 0
    %v3813 = vadd.f32 %v3805, %v3811
    %v3814 = vadd.f32 %v3806, %v3811
    %v3815 = vadd.f32 %v3807, %v3811
    %v3816 = vadd.f32 %v3808, %v3811
    %v3817 = vsel %vm891, %v3813, 0.0
    %v3818 = vsel %vm891, %v3814, 0.0
    %v3819 = vadd.f32 %v3817, %v3818
    %v3820 = vsel %vm891, %v3815, 0.0
    %v3821 = vadd.f32 %v3819, %v3820
    %v3822 = vsel %vm891, %v3816, 0.0
    %v3823 = vadd.f32 %v3821, %v3822
    %v3824 = vrot.slane %v3823, 4
    %v3825 = vadd.f32 %v3823, %v3824
    %v3826 = vrot.slane %v3825, 2
    %v3827 = vadd.f32 %v3825, %v3826
    %v3828 = vrot.slane %v3827, 1
    %v3829 = vadd.f32 %v3827, %v3828
    %v3830 = vmul.f32 %v3829, %v658
    %v3831 = vsub.f32 %v3813, %v3830
    %v3832 = vsub.f32 %v3814, %v3830
    %v3833 = vsub.f32 %v3815, %v3830
    %v3834 = vsub.f32 %v3816, %v3830
    %v3835 = vmul.f32 %v3831, %v3831
    %v3836 = vmul.f32 %v3832, %v3832
    %v3837 = vmul.f32 %v3833, %v3833
    %v3838 = vmul.f32 %v3834, %v3834
    %v3839 = vsel %vm891, %v3835, 0.0
    %v3840 = vsel %vm891, %v3836, 0.0
    %v3841 = vadd.f32 %v3839, %v3840
    %v3842 = vsel %vm891, %v3837, 0.0
    %v3843 = vadd.f32 %v3841, %v3842
    %v3844 = vsel %vm891, %v3838, 0.0
    %v3845 = vadd.f32 %v3843, %v3844
    %v3846 = vrot.slane %v3845, 4
    %v3847 = vadd.f32 %v3845, %v3846
    %v3848 = vrot.slane %v3847, 2
    %v3849 = vadd.f32 %v3847, %v3848
    %v3850 = vrot.slane %v3849, 1
    %v3851 = vadd.f32 %v3849, %v3850
    %v3852 = vmul.f32 %v3851, %v658
    %v3853 = vadd.f32 %v3852, 1e-05
    %v3854 = vrsqrt.pop %v3853
    %v3855 = vmul.f32 %v3854, %v3853
    %v3856 = vmul.f32 %v3855, %v3854
    %v3857 = vmul.f32 0.5, %v3856
    %v3858 = vsub.f32 1.5, %v3857
    %v3859 = vmul.f32 %v3854, %v3858
    %vm3860 = vweird.f32 %v3853
    %vm3861 = vweird.f32 %v3854
    %vm3862 = vmor %vm3860, %vm3861
    %v3863 = vsel %vm3862, %v3854, %v3859
    %v3864 = vmul.f32 %v3831, %v3863
    %v3865 = vmul.f32 %v3832, %v3863
    %v3866 = vmul.f32 %v3833, %v3863
    %v3867 = vmul.f32 %v3834, %v3863
    %v3868 = vld [vmem:[%s57] sm:$0x1]
    %v3870 = vperm.slane %v3868, 0
    %v3872 = vmul.f32 %v3864, %v3870
    %v3873 = vmul.f32 %v3865, %v3870
    %v3874 = vmul.f32 %v3866, %v3870
    %v3875 = vmul.f32 %v3867, %v3870
    %v3876 = vld [vmem:[%s59] sm:$0x1]
    %v3878 = vperm.slane %v3876, 0
    %v3880 = vadd.f32 %v3872, %v3878
    %v3881 = vadd.f32 %v3873, %v3878
    %v3882 = vadd.f32 %v3874, %v3878
    %v3883 = vadd.f32 %v3875, %v3878
    %v3884 = vmax.f32 %v3880, 0.0
    %v3885 = vmax.f32 %v3881, 0.0
    %v3886 = vmax.f32 %v3882, 0.0
    %v3887 = vmax.f32 %v3883, 0.0
    %v3888 = vld [vmem:[%s61] sm:$0xff]
    %v3889 = vld [vmem:[%s61 + $0x8] sm:$0xff]
    %v3891 = vsel %vm891, %v3884, 0
    %v3894 = vsel %vm891, %v3885, 0
    %v3897 = vsel %vm891, %v3886, 0
    %v3900 = vsel %vm891, %v3887, 0
    %3902 = vmatpush.msra.mxu0 0.0
    %3903 = vmatpush.msra.mxu0 0.0
    %3904 = vmatpush.msra.mxu0 0.0
    %3905 = vmatpush.msra.mxu0 0.0
    %3906 = vmatpush.msra.mxu0 0.0
    %3907 = vmatpush.msra.mxu0 0.0
    %3908 = vmatpush.msra.mxu0 0.0
    %3909 = vmatpush.msra.mxu0 0.0
    %3910 = vmatpush.msra.mxu0 0.0
    %3911 = vmatpush.msra.mxu0 0.0
    %3912 = vmatpush.msra.mxu0 0.0
    %3913 = vmatpush.msra.mxu0 0.0
    %3914 = vmatpush.msra.mxu0 0.0
    %3915 = vmatpush.msra.mxu0 0.0
    %3916 = vmatpush.msra.mxu0 %v3889
    %3917 = vmatpush.msra.mxu0 %v3888
    %3918 = vmatmul.f32.gmra.mxu0 %v3891
    %v3919 = vpop.f32.mrf.mxu0
    %v3920 = vadd.f32 0.0, %v3919
    %3921 = vmatmul.f32.gmra.mxu0 %v3894
    %v3922 = vpop.f32.mrf.mxu0
    %v3923 = vadd.f32 0.0, %v3922
    %3924 = vmatmul.f32.gmra.mxu0 %v3897
    %v3925 = vpop.f32.mrf.mxu0
    %v3926 = vadd.f32 0.0, %v3925
    %3927 = vmatmul.f32.gmra.mxu0 %v3900
    %v3928 = vpop.f32.mrf.mxu0
    %v3929 = vadd.f32 0.0, %v3928
    %3930 = vdwg.mxu0
    %s3931 = scalar_lea.vmem %s61, 16
    %v3932 = vld [vmem:[%s3931] sm:$0xff]
    %v3933 = vld [vmem:[%s3931 + $0x8] sm:$0xff]
    %3934 = vmatpush.msra.mxu0 0.0
    %3935 = vmatpush.msra.mxu0 0.0
    %3936 = vmatpush.msra.mxu0 0.0
    %3937 = vmatpush.msra.mxu0 0.0
    %3938 = vmatpush.msra.mxu0 0.0
    %3939 = vmatpush.msra.mxu0 0.0
    %3940 = vmatpush.msra.mxu0 0.0
    %3941 = vmatpush.msra.mxu0 0.0
    %3942 = vmatpush.msra.mxu0 0.0
    %3943 = vmatpush.msra.mxu0 0.0
    %3944 = vmatpush.msra.mxu0 0.0
    %3945 = vmatpush.msra.mxu0 0.0
    %3946 = vmatpush.msra.mxu0 0.0
    %3947 = vmatpush.msra.mxu0 0.0
    %3948 = vmatpush.msra.mxu0 %v3933
    %3949 = vmatpush.msra.mxu0 %v3932
    %3950 = vmatmul.f32.gmra.mxu0 %v3891
    %v3951 = vpop.f32.mrf.mxu0
    %v3952 = vadd.f32 0.0, %v3951
    %3953 = vmatmul.f32.gmra.mxu0 %v3894
    %v3954 = vpop.f32.mrf.mxu0
    %v3955 = vadd.f32 0.0, %v3954
    %3956 = vmatmul.f32.gmra.mxu0 %v3897
    %v3957 = vpop.f32.mrf.mxu0
    %v3958 = vadd.f32 0.0, %v3957
    %3959 = vmatmul.f32.gmra.mxu0 %v3900
    %v3960 = vpop.f32.mrf.mxu0
    %v3961 = vadd.f32 0.0, %v3960
    %3962 = vdwg.mxu0
    %3963 = vmatpush.msra.mxu0 0.0
    %3964 = vmatpush.msra.mxu0 0.0
    %3965 = vmatpush.msra.mxu0 0.0
    %3966 = vmatpush.msra.mxu0 0.0
    %3967 = vmatpush.msra.mxu0 0.0
    %3968 = vmatpush.msra.mxu0 0.0
    %3969 = vmatpush.msra.mxu0 0.0
    %3970 = vmatpush.msra.mxu0 0.0
    %3971 = vmatpush.msra.mxu0 0.0
    %3972 = vmatpush.msra.mxu0 0.0
    %3973 = vmatpush.msra.mxu0 0.0
    %3974 = vmatpush.msra.mxu0 0.0
    %3975 = vmatpush.msra.mxu0 %v3929
    %3976 = vmatpush.msra.mxu0 %v3926
    %3977 = vmatpush.msra.mxu0 %v3923
    %3978 = vmatpush.msra.mxu0 %v3920
    %3979 = vmatmul.f32.gmra.mxu0 %v515
    %v3980 = vpop.f32.mrf.mxu0
    %v3981 = vadd.f32 %v3952, %v3980
    %3982 = vmatmul.f32.gmra.mxu0 %v518
    %v3983 = vpop.f32.mrf.mxu0
    %v3984 = vadd.f32 %v3955, %v3983
    %3985 = vmatmul.f32.gmra.mxu0 %v521
    %v3986 = vpop.f32.mrf.mxu0
    %v3987 = vadd.f32 %v3958, %v3986
    %3988 = vmatmul.f32.gmra.mxu0 %v524
    %v3989 = vpop.f32.mrf.mxu0
    %v3990 = vadd.f32 %v3961, %v3989
    %3991 = vdwg.mxu0
    %s3992 = scalar_lea.vmem %s61, 32
    %v3993 = vld [vmem:[%s3992] sm:$0xff]
    %v3994 = vld [vmem:[%s3992 + $0x8] sm:$0xff]
    %3995 = vmatpush.msra.mxu0 0.0
    %3996 = vmatpush.msra.mxu0 0.0
    %3997 = vmatpush.msra.mxu0 0.0
    %3998 = vmatpush.msra.mxu0 0.0
    %3999 = vmatpush.msra.mxu0 0.0
    %4000 = vmatpush.msra.mxu0 0.0
    %4001 = vmatpush.msra.mxu0 0.0
    %4002 = vmatpush.msra.mxu0 0.0
    %4003 = vmatpush.msra.mxu0 0.0
    %4004 = vmatpush.msra.mxu0 0.0
    %4005 = vmatpush.msra.mxu0 0.0
    %4006 = vmatpush.msra.mxu0 0.0
    %4007 = vmatpush.msra.mxu0 0.0
    %4008 = vmatpush.msra.mxu0 0.0
    %4009 = vmatpush.msra.mxu0 %v3994
    %4010 = vmatpush.msra.mxu0 %v3993
    %4011 = vmatmul.f32.gmra.mxu0 %v3891
    %v4012 = vpop.f32.mrf.mxu0
    %v4013 = vadd.f32 0.0, %v4012
    %4014 = vmatmul.f32.gmra.mxu0 %v3894
    %v4015 = vpop.f32.mrf.mxu0
    %v4016 = vadd.f32 0.0, %v4015
    %4017 = vmatmul.f32.gmra.mxu0 %v3897
    %v4018 = vpop.f32.mrf.mxu0
    %v4019 = vadd.f32 0.0, %v4018
    %4020 = vmatmul.f32.gmra.mxu0 %v3900
    %v4021 = vpop.f32.mrf.mxu0
    %v4022 = vadd.f32 0.0, %v4021
    %4023 = vdwg.mxu0
    %4024 = vmatpush.msra.mxu0 0.0
    %4025 = vmatpush.msra.mxu0 0.0
    %4026 = vmatpush.msra.mxu0 0.0
    %4027 = vmatpush.msra.mxu0 0.0
    %4028 = vmatpush.msra.mxu0 0.0
    %4029 = vmatpush.msra.mxu0 0.0
    %4030 = vmatpush.msra.mxu0 0.0
    %4031 = vmatpush.msra.mxu0 0.0
    %4032 = vmatpush.msra.mxu0 0.0
    %4033 = vmatpush.msra.mxu0 0.0
    %4034 = vmatpush.msra.mxu0 0.0
    %4035 = vmatpush.msra.mxu0 0.0
    %4036 = vmatpush.msra.mxu0 %v4022
    %4037 = vmatpush.msra.mxu0 %v4019
    %4038 = vmatpush.msra.mxu0 %v4016
    %4039 = vmatpush.msra.mxu0 %v4013
    %4040 = vmatmul.f32.gmra.mxu0 %v587
    %v4041 = vpop.f32.mrf.mxu0
    %v4042 = vadd.f32 0.0, %v4041
    %4043 = vmatmul.f32.gmra.mxu0 %v590
    %v4044 = vpop.f32.mrf.mxu0
    %v4045 = vadd.f32 0.0, %v4044
    %4046 = vmatmul.f32.gmra.mxu0 %v593
    %v4047 = vpop.f32.mrf.mxu0
    %v4048 = vadd.f32 0.0, %v4047
    %4049 = vmatmul.f32.gmra.mxu0 %v596
    %v4050 = vpop.f32.mrf.mxu0
    %v4051 = vadd.f32 0.0, %v4050
    %4052 = vdwg.mxu0
    %v4053 = vadd.f32 %v3981, %v4042
    %v4054 = vadd.f32 %v3984, %v4045
    %v4055 = vadd.f32 %v3987, %v4048
    %v4056 = vadd.f32 %v3990, %v4051
    %v4057 = vld [vmem:[%s63] sm:$0x1]
    %v4059 = vperm.slane %v4057, 0
    %v4061 = vadd.f32 %v4053, %v4059
    %v4062 = vadd.f32 %v4054, %v4059
    %v4063 = vadd.f32 %v4055, %v4059
    %v4064 = vadd.f32 %v4056, %v4059
    %v4065 = vsel %vm440, %v4061, 0.0
    %v4066 = vsel %vm440, %v4062, 0.0
    %v4067 = vadd.f32 %v4065, %v4066
    %v4068 = vsel %vm440, %v4063, 0.0
    %v4069 = vadd.f32 %v4067, %v4068
    %v4070 = vsel %vm440, %v4064, 0.0
    %v4071 = vadd.f32 %v4069, %v4070
    %v4072 = vrot.slane %v4071, 4
    %v4073 = vadd.f32 %v4071, %v4072
    %v4074 = vrot.slane %v4073, 2
    %v4075 = vadd.f32 %v4073, %v4074
    %v4076 = vrot.slane %v4075, 1
    %v4077 = vadd.f32 %v4075, %v4076
    %v4078 = vmul.f32 %v4077, %v658
    %v4079 = vsub.f32 %v4061, %v4078
    %v4080 = vsub.f32 %v4062, %v4078
    %v4081 = vsub.f32 %v4063, %v4078
    %v4082 = vsub.f32 %v4064, %v4078
    %v4083 = vmul.f32 %v4079, %v4079
    %v4084 = vmul.f32 %v4080, %v4080
    %v4085 = vmul.f32 %v4081, %v4081
    %v4086 = vmul.f32 %v4082, %v4082
    %v4087 = vsel %vm440, %v4083, 0.0
    %v4088 = vsel %vm440, %v4084, 0.0
    %v4089 = vadd.f32 %v4087, %v4088
    %v4090 = vsel %vm440, %v4085, 0.0
    %v4091 = vadd.f32 %v4089, %v4090
    %v4092 = vsel %vm440, %v4086, 0.0
    %v4093 = vadd.f32 %v4091, %v4092
    %v4094 = vrot.slane %v4093, 4
    %v4095 = vadd.f32 %v4093, %v4094
    %v4096 = vrot.slane %v4095, 2
    %v4097 = vadd.f32 %v4095, %v4096
    %v4098 = vrot.slane %v4097, 1
    %v4099 = vadd.f32 %v4097, %v4098
    %v4100 = vmul.f32 %v4099, %v658
    %v4101 = vadd.f32 %v4100, 1e-05
    %v4102 = vrsqrt.pop %v4101
    %v4103 = vmul.f32 %v4102, %v4101
    %v4104 = vmul.f32 %v4103, %v4102
    %v4105 = vmul.f32 0.5, %v4104
    %v4106 = vsub.f32 1.5, %v4105
    %v4107 = vmul.f32 %v4102, %v4106
    %vm4108 = vweird.f32 %v4101
    %vm4109 = vweird.f32 %v4102
    %vm4110 = vmor %vm4108, %vm4109
    %v4111 = vsel %vm4110, %v4102, %v4107
    %v4112 = vmul.f32 %v4079, %v4111
    %v4113 = vmul.f32 %v4080, %v4111
    %v4114 = vmul.f32 %v4081, %v4111
    %v4115 = vmul.f32 %v4082, %v4111
    %v4116 = vld [vmem:[%s65] sm:$0x1]
    %v4118 = vperm.slane %v4116, 0
    %v4120 = vmul.f32 %v4112, %v4118
    %v4121 = vmul.f32 %v4113, %v4118
    %v4122 = vmul.f32 %v4114, %v4118
    %v4123 = vmul.f32 %v4115, %v4118
    %v4124 = vld [vmem:[#allocation19] sm:$0x1]
    %v4126 = vperm.slane %v4124, 0
    %v4128 = vadd.f32 %v4120, %v4126
    %v4129 = vadd.f32 %v4121, %v4126
    %v4130 = vadd.f32 %v4122, %v4126
    %v4131 = vadd.f32 %v4123, %v4126
    %v4132 = vmax.f32 %v4128, 0.0
    %v4133 = vmax.f32 %v4129, 0.0
    %v4134 = vmax.f32 %v4130, 0.0
    %v4135 = vmax.f32 %v4131, 0.0
    %v4136 = vld [vmem:[%s69] sm:$0xff]
    %v4138 = vsel %vm440, %v4132, 0
    %v4141 = vsel %vm440, %v4133, 0
    %v4144 = vsel %vm440, %v4134, 0
    %v4147 = vsel %vm440, %v4135, 0
    %4149 = vmatpush.msra.mxu0 0.0
    %4150 = vmatpush.msra.mxu0 0.0
    %4151 = vmatpush.msra.mxu0 0.0
    %4152 = vmatpush.msra.mxu0 0.0
    %4153 = vmatpush.msra.mxu0 0.0
    %4154 = vmatpush.msra.mxu0 0.0
    %4155 = vmatpush.msra.mxu0 0.0
    %4156 = vmatpush.msra.mxu0 0.0
    %4157 = vmatpush.msra.mxu0 0.0
    %4158 = vmatpush.msra.mxu0 0.0
    %4159 = vmatpush.msra.mxu0 0.0
    %4160 = vmatpush.msra.mxu0 0.0
    %4161 = vmatpush.msra.mxu0 0.0
    %4162 = vmatpush.msra.mxu0 0.0
    %4163 = vmatpush.msra.mxu0 0.0
    %4164 = vmatpush.msra.mxu0 %v4136
    %4165 = vmatmul.f32.gmra.mxu0 %v4138
    %v4166 = vpop.f32.mrf.mxu0
    %v4167 = vadd.f32 0.0, %v4166
    %4168 = vmatmul.f32.gmra.mxu0 %v4141
    %v4169 = vpop.f32.mrf.mxu0
    %v4170 = vadd.f32 0.0, %v4169
    %4171 = vmatmul.f32.gmra.mxu0 %v4144
    %v4172 = vpop.f32.mrf.mxu0
    %v4173 = vadd.f32 0.0, %v4172
    %4174 = vmatmul.f32.gmra.mxu0 %v4147
    %v4175 = vpop.f32.mrf.mxu0
    %v4176 = vadd.f32 0.0, %v4175
    %4177 = vdwg.mxu0
    %s4178 = scalar_lea.vmem %s69, 8
    %v4179 = vld [vmem:[%s4178] sm:$0xff]
    %4180 = vmatpush.msra.mxu0 0.0
    %4181 = vmatpush.msra.mxu0 0.0
    %4182 = vmatpush.msra.mxu0 0.0
    %4183 = vmatpush.msra.mxu0 0.0
    %4184 = vmatpush.msra.mxu0 0.0
    %4185 = vmatpush.msra.mxu0 0.0
    %4186 = vmatpush.msra.mxu0 0.0
    %4187 = vmatpush.msra.mxu0 0.0
    %4188 = vmatpush.msra.mxu0 0.0
    %4189 = vmatpush.msra.mxu0 0.0
    %4190 = vmatpush.msra.mxu0 0.0
    %4191 = vmatpush.msra.mxu0 0.0
    %4192 = vmatpush.msra.mxu0 0.0
    %4193 = vmatpush.msra.mxu0 0.0
    %4194 = vmatpush.msra.mxu0 0.0
    %4195 = vmatpush.msra.mxu0 %v4179
    %4196 = vmatmul.f32.gmra.mxu0 %v4138
    %v4197 = vpop.f32.mrf.mxu0
    %v4198 = vadd.f32 0.0, %v4197
    %4199 = vmatmul.f32.gmra.mxu0 %v4141
    %v4200 = vpop.f32.mrf.mxu0
    %v4201 = vadd.f32 0.0, %v4200
    %4202 = vmatmul.f32.gmra.mxu0 %v4144
    %v4203 = vpop.f32.mrf.mxu0
    %v4204 = vadd.f32 0.0, %v4203
    %4205 = vmatmul.f32.gmra.mxu0 %v4147
    %v4206 = vpop.f32.mrf.mxu0
    %v4207 = vadd.f32 0.0, %v4206
    %4208 = vdwg.mxu0
    %4209 = vmatpush.msra.mxu0 0.0
    %4210 = vmatpush.msra.mxu0 0.0
    %4211 = vmatpush.msra.mxu0 0.0
    %4212 = vmatpush.msra.mxu0 0.0
    %4213 = vmatpush.msra.mxu0 0.0
    %4214 = vmatpush.msra.mxu0 0.0
    %4215 = vmatpush.msra.mxu0 0.0
    %4216 = vmatpush.msra.mxu0 0.0
    %4217 = vmatpush.msra.mxu0 0.0
    %4218 = vmatpush.msra.mxu0 0.0
    %4219 = vmatpush.msra.mxu0 0.0
    %4220 = vmatpush.msra.mxu0 0.0
    %4221 = vmatpush.msra.mxu0 %v4176
    %4222 = vmatpush.msra.mxu0 %v4173
    %4223 = vmatpush.msra.mxu0 %v4170
    %4224 = vmatpush.msra.mxu0 %v4167
    %4225 = vmatmul.f32.gmra.mxu0 %v515
    %v4226 = vpop.f32.mrf.mxu0
    %v4227 = vadd.f32 %v4198, %v4226
    %4228 = vmatmul.f32.gmra.mxu0 %v518
    %v4229 = vpop.f32.mrf.mxu0
    %v4230 = vadd.f32 %v4201, %v4229
    %4231 = vmatmul.f32.gmra.mxu0 %v521
    %v4232 = vpop.f32.mrf.mxu0
    %v4233 = vadd.f32 %v4204, %v4232
    %4234 = vmatmul.f32.gmra.mxu0 %v524
    %v4235 = vpop.f32.mrf.mxu0
    %v4236 = vadd.f32 %v4207, %v4235
    %4237 = vdwg.mxu0
    %s4238 = scalar_lea.vmem %s69, 16
    %v4239 = vld [vmem:[%s4238] sm:$0xff]
    %4240 = vmatpush.msra.mxu0 0.0
    %4241 = vmatpush.msra.mxu0 0.0
    %4242 = vmatpush.msra.mxu0 0.0
    %4243 = vmatpush.msra.mxu0 0.0
    %4244 = vmatpush.msra.mxu0 0.0
    %4245 = vmatpush.msra.mxu0 0.0
    %4246 = vmatpush.msra.mxu0 0.0
    %4247 = vmatpush.msra.mxu0 0.0
    %4248 = vmatpush.msra.mxu0 0.0
    %4249 = vmatpush.msra.mxu0 0.0
    %4250 = vmatpush.msra.mxu0 0.0
    %4251 = vmatpush.msra.mxu0 0.0
    %4252 = vmatpush.msra.mxu0 0.0
    %4253 = vmatpush.msra.mxu0 0.0
    %4254 = vmatpush.msra.mxu0 0.0
    %4255 = vmatpush.msra.mxu0 %v4239
    %4256 = vmatmul.f32.gmra.mxu0 %v4138
    %v4257 = vpop.f32.mrf.mxu0
    %v4258 = vadd.f32 0.0, %v4257
    %4259 = vmatmul.f32.gmra.mxu0 %v4141
    %v4260 = vpop.f32.mrf.mxu0
    %v4261 = vadd.f32 0.0, %v4260
    %4262 = vmatmul.f32.gmra.mxu0 %v4144
    %v4263 = vpop.f32.mrf.mxu0
    %v4264 = vadd.f32 0.0, %v4263
    %4265 = vmatmul.f32.gmra.mxu0 %v4147
    %v4266 = vpop.f32.mrf.mxu0
    %v4267 = vadd.f32 0.0, %v4266
    %4268 = vdwg.mxu0
    %4269 = vmatpush.msra.mxu0 0.0
    %4270 = vmatpush.msra.mxu0 0.0
    %4271 = vmatpush.msra.mxu0 0.0
    %4272 = vmatpush.msra.mxu0 0.0
    %4273 = vmatpush.msra.mxu0 0.0
    %4274 = vmatpush.msra.mxu0 0.0
    %4275 = vmatpush.msra.mxu0 0.0
    %4276 = vmatpush.msra.mxu0 0.0
    %4277 = vmatpush.msra.mxu0 0.0
    %4278 = vmatpush.msra.mxu0 0.0
    %4279 = vmatpush.msra.mxu0 0.0
    %4280 = vmatpush.msra.mxu0 0.0
    %4281 = vmatpush.msra.mxu0 %v4267
    %4282 = vmatpush.msra.mxu0 %v4264
    %4283 = vmatpush.msra.mxu0 %v4261
    %4284 = vmatpush.msra.mxu0 %v4258
    %4285 = vmatmul.f32.gmra.mxu0 %v587
    %v4286 = vpop.f32.mrf.mxu0
    %v4287 = vadd.f32 0.0, %v4286
    %4288 = vmatmul.f32.gmra.mxu0 %v590
    %v4289 = vpop.f32.mrf.mxu0
    %v4290 = vadd.f32 0.0, %v4289
    %4291 = vmatmul.f32.gmra.mxu0 %v593
    %v4292 = vpop.f32.mrf.mxu0
    %v4293 = vadd.f32 0.0, %v4292
    %4294 = vmatmul.f32.gmra.mxu0 %v596
    %v4295 = vpop.f32.mrf.mxu0
    %v4296 = vadd.f32 0.0, %v4295
    %4297 = vdwg.mxu0
    %v4298 = vadd.f32 %v4227, %v4287
    %v4299 = vadd.f32 %v4230, %v4290
    %v4300 = vadd.f32 %v4233, %v4293
    %v4301 = vadd.f32 %v4236, %v4296
    %v4302 = vld [vmem:[#allocation20] sm:$0x1]
    %v4304 = vperm.slane %v4302, 0
    %v4306 = vadd.f32 %v4298, %v4304
    %v4307 = vadd.f32 %v4299, %v4304
    %v4308 = vadd.f32 %v4300, %v4304
    %v4309 = vadd.f32 %v4301, %v4304
    %vm4310 = vcmask 23552
    %v4311 = vsel %vm4310, %v4306, 0.0
    %v4312 = vsel %vm4310, %v4307, 0.0
    %v4313 = vadd.f32 %v4311, %v4312
    %v4314 = vsel %vm4310, %v4308, 0.0
    %v4315 = vadd.f32 %v4313, %v4314
    %v4316 = vsel %vm4310, %v4309, 0.0
    %v4317 = vadd.f32 %v4315, %v4316
    %v4318 = vrot.slane %v4317, 4
    %v4319 = vadd.f32 %v4317, %v4318
    %v4320 = vrot.slane %v4319, 2
    %v4321 = vadd.f32 %v4319, %v4320
    %v4322 = vrot.slane %v4321, 1
    %v4323 = vadd.f32 %v4321, %v4322
    %v4324 = vmul.f32 %v4323, %v658
    %v4325 = vsub.f32 %v4306, %v4324
    %v4326 = vsub.f32 %v4307, %v4324
    %v4327 = vsub.f32 %v4308, %v4324
    %v4328 = vsub.f32 %v4309, %v4324
    %v4329 = vmul.f32 %v4325, %v4325
    %v4330 = vmul.f32 %v4326, %v4326
    %v4331 = vmul.f32 %v4327, %v4327
    %v4332 = vmul.f32 %v4328, %v4328
    %v4333 = vsel %vm4310, %v4329, 0.0
    %v4334 = vsel %vm4310, %v4330, 0.0
    %v4335 = vadd.f32 %v4333, %v4334
    %v4336 = vsel %vm4310, %v4331, 0.0
    %v4337 = vadd.f32 %v4335, %v4336
    %v4338 = vsel %vm4310, %v4332, 0.0
    %v4339 = vadd.f32 %v4337, %v4338
    %v4340 = vrot.slane %v4339, 4
    %v4341 = vadd.f32 %v4339, %v4340
    %v4342 = vrot.slane %v4341, 2
    %v4343 = vadd.f32 %v4341, %v4342
    %v4344 = vrot.slane %v4343, 1
    %v4345 = vadd.f32 %v4343, %v4344
    %v4346 = vmul.f32 %v4345, %v658
    %v4347 = vadd.f32 %v4346, 1e-05
    %v4348 = vrsqrt.pop %v4347
    %v4349 = vmul.f32 %v4348, %v4347
    %v4350 = vmul.f32 %v4349, %v4348
    %v4351 = vmul.f32 0.5, %v4350
    %v4352 = vsub.f32 1.5, %v4351
    %v4353 = vmul.f32 %v4348, %v4352
    %vm4354 = vweird.f32 %v4347
    %vm4355 = vweird.f32 %v4348
    %vm4356 = vmor %vm4354, %vm4355
    %v4357 = vsel %vm4356, %v4348, %v4353
    %v4358 = vmul.f32 %v4325, %v4357
    %v4359 = vmul.f32 %v4326, %v4357
    %v4360 = vmul.f32 %v4327, %v4357
    %v4361 = vmul.f32 %v4328, %v4357
    %v4362 = vld [vmem:[#allocation22] sm:$0x1]
    %v4364 = vperm.slane %v4362, 0
    %v4366 = vmul.f32 %v4358, %v4364
    %v4367 = vmul.f32 %v4359, %v4364
    %v4368 = vmul.f32 %v4360, %v4364
    %v4369 = vmul.f32 %v4361, %v4364
    %v4370 = vld [vmem:[#allocation23] sm:$0x1]
    %v4372 = vperm.slane %v4370, 0
    %v4374 = vadd.f32 %v4366, %v4372
    %v4375 = vadd.f32 %v4367, %v4372
    %v4376 = vadd.f32 %v4368, %v4372
    %v4377 = vadd.f32 %v4369, %v4372
    %v4378 = vmax.f32 %v4374, 0.0
    %v4379 = vmax.f32 %v4375, 0.0
    %v4380 = vmax.f32 %v4376, 0.0
    %v4381 = vmax.f32 %v4377, 0.0
    %4382 = vmatpush.msra.mxu0 0.0
    %4383 = vmatpush.msra.mxu0 0.0
    %4384 = vmatpush.msra.mxu0 0.0
    %4385 = vmatpush.msra.mxu0 0.0
    %4386 = vmatpush.msra.mxu0 0.0
    %4387 = vmatpush.msra.mxu0 0.0
    %4388 = vmatpush.msra.mxu0 0.0
    %4389 = vmatpush.msra.mxu0 0.0
    %4390 = vmatpush.msra.mxu0 0.0
    %4391 = vmatpush.msra.mxu0 0.0
    %4392 = vmatpush.msra.mxu0 0.0
    %4393 = vmatpush.msra.mxu0 0.0
    %4394 = vmatpush.msra.mxu0 %v4381
    %4395 = vmatpush.msra.mxu0 %v4380
    %4396 = vmatpush.msra.mxu0 %v4379
    %4397 = vmatpush.msra.mxu0 %v4378
    %4398 = vmatmul.f32.gmra.mxu0 %v1213
    %v4399 = vpop.f32.mrf.mxu0
    %v4400 = vadd.f32 0.0, %v4399
    %4401 = vdwg.mxu0
    %v4402 = vld [vmem:[%s77] sm:$0x7]
    %4403 = vmatpush.msra.mxu0 0.0
    %4404 = vmatpush.msra.mxu0 0.0
    %4405 = vmatpush.msra.mxu0 0.0
    %4406 = vmatpush.msra.mxu0 0.0
    %4407 = vmatpush.msra.mxu0 0.0
    %4408 = vmatpush.msra.mxu0 0.0
    %4409 = vmatpush.msra.mxu0 0.0
    %4410 = vmatpush.msra.mxu0 0.0
    %4411 = vmatpush.msra.mxu0 0.0
    %4412 = vmatpush.msra.mxu0 0.0
    %4413 = vmatpush.msra.mxu0 0.0
    %4414 = vmatpush.msra.mxu0 0.0
    %4415 = vmatpush.msra.mxu0 %v4381
    %4416 = vmatpush.msra.mxu0 %v4380
    %4417 = vmatpush.msra.mxu0 %v4379
    %4418 = vmatpush.msra.mxu0 %v4378
    %4419 = vmatmul.f32.gmra.mxu0 %v1242
    %v4420 = vpop.f32.mrf.mxu0
    %v4421 = vadd.f32 0.0, %v4420
    %4422 = vdwg.mxu0
    %s4423 = scalar_lea.vmem %s77, 4
    %v4424 = vld [vmem:[%s4423] sm:$0x7]
    %v4426 = vsel %vm4310, %v4421, 0
    %vm4428 = vcmask 1042432
    %v4430 = vsel %vm4428, %v4424, 0
    %4432 = vmatpush.msra.mxu0 0.0
    %4433 = vmatpush.msra.mxu0 0.0
    %4434 = vmatpush.msra.mxu0 0.0
    %4435 = vmatpush.msra.mxu0 0.0
    %4436 = vmatpush.msra.mxu0 0.0
    %4437 = vmatpush.msra.mxu0 0.0
    %4438 = vmatpush.msra.mxu0 0.0
    %4439 = vmatpush.msra.mxu0 0.0
    %4440 = vmatpush.msra.mxu0 0.0
    %4441 = vmatpush.msra.mxu0 0.0
    %4442 = vmatpush.msra.mxu0 0.0
    %4443 = vmatpush.msra.mxu0 0.0
    %4444 = vmatpush.msra.mxu0 0.0
    %4445 = vmatpush.msra.mxu0 0.0
    %4446 = vmatpush.msra.mxu0 0.0
    %4447 = vmatpush.msra.mxu0 %v4430
    %4448 = vmatmul.f32.gmra.mxu0 %v4426
    %v4449 = vpop.f32.mrf.mxu0
    %v4450 = vadd.f32 0.0, %v4449
    %4451 = vdwg.mxu0
    %v4453 = vsel %vm4310, %v4400, 0
    %v4456 = vsel %vm4428, %v4402, 0
    %4458 = vmatpush.msra.mxu0 0.0
    %4459 = vmatpush.msra.mxu0 0.0
    %4460 = vmatpush.msra.mxu0 0.0
    %4461 = vmatpush.msra.mxu0 0.0
    %4462 = vmatpush.msra.mxu0 0.0
    %4463 = vmatpush.msra.mxu0 0.0
    %4464 = vmatpush.msra.mxu0 0.0
    %4465 = vmatpush.msra.mxu0 0.0
    %4466 = vmatpush.msra.mxu0 0.0
    %4467 = vmatpush.msra.mxu0 0.0
    %4468 = vmatpush.msra.mxu0 0.0
    %4469 = vmatpush.msra.mxu0 0.0
    %4470 = vmatpush.msra.mxu0 0.0
    %4471 = vmatpush.msra.mxu0 0.0
    %4472 = vmatpush.msra.mxu0 0.0
    %4473 = vmatpush.msra.mxu0 %v4456
    %4474 = vmatmul.f32.gmra.mxu0 %v4453
    %v4475 = vpop.f32.mrf.mxu0
    %v4476 = vadd.f32 %v4450, %v4475
    %4477 = vdwg.mxu0
    %4478 = vmatpush.msra.mxu0 0.0
    %4479 = vmatpush.msra.mxu0 0.0
    %4480 = vmatpush.msra.mxu0 0.0
    %4481 = vmatpush.msra.mxu0 0.0
    %4482 = vmatpush.msra.mxu0 0.0
    %4483 = vmatpush.msra.mxu0 0.0
    %4484 = vmatpush.msra.mxu0 0.0
    %4485 = vmatpush.msra.mxu0 0.0
    %4486 = vmatpush.msra.mxu0 0.0
    %4487 = vmatpush.msra.mxu0 0.0
    %4488 = vmatpush.msra.mxu0 0.0
    %4489 = vmatpush.msra.mxu0 0.0
    %4490 = vmatpush.msra.mxu0 %v4381
    %4491 = vmatpush.msra.mxu0 %v4380
    %4492 = vmatpush.msra.mxu0 %v4379
    %4493 = vmatpush.msra.mxu0 %v4378
    %4494 = vmatmul.f32.gmra.mxu0 %v1359
    %v4495 = vpop.f32.mrf.mxu0
    %v4496 = vadd.f32 0.0, %v4495
    %4497 = vdwg.mxu0
    %s4498 = scalar_lea.vmem %s77, 8
    %v4499 = vld [vmem:[%s4498] sm:$0x7]
    %v4501 = vsel %vm4310, %v4496, 0
    %v4504 = vsel %vm4428, %v4499, 0
    %4506 = vmatpush.msra.mxu0 0.0
    %4507 = vmatpush.msra.mxu0 0.0
    %4508 = vmatpush.msra.mxu0 0.0
    %4509 = vmatpush.msra.mxu0 0.0
    %4510 = vmatpush.msra.mxu0 0.0
    %4511 = vmatpush.msra.mxu0 0.0
    %4512 = vmatpush.msra.mxu0 0.0
    %4513 = vmatpush.msra.mxu0 0.0
    %4514 = vmatpush.msra.mxu0 0.0
    %4515 = vmatpush.msra.mxu0 0.0
    %4516 = vmatpush.msra.mxu0 0.0
    %4517 = vmatpush.msra.mxu0 0.0
    %4518 = vmatpush.msra.mxu0 0.0
    %4519 = vmatpush.msra.mxu0 0.0
    %4520 = vmatpush.msra.mxu0 0.0
    %4521 = vmatpush.msra.mxu0 %v4504
    %4522 = vmatmul.f32.gmra.mxu0 %v4501
    %v4523 = vpop.f32.mrf.mxu0
    %v4524 = vadd.f32 0.0, %v4523
    %4525 = vdwg.mxu0
    %v4526 = vadd.f32 %v4476, %v4524
    %4527 = vmatpush.msra.mxu0 0.0
    %4528 = vmatpush.msra.mxu0 0.0
    %4529 = vmatpush.msra.mxu0 0.0
    %4530 = vmatpush.msra.mxu0 0.0
    %4531 = vmatpush.msra.mxu0 0.0
    %4532 = vmatpush.msra.mxu0 0.0
    %4533 = vmatpush.msra.mxu0 0.0
    %4534 = vmatpush.msra.mxu0 0.0
    %4535 = vmatpush.msra.mxu0 0.0
    %4536 = vmatpush.msra.mxu0 0.0
    %4537 = vmatpush.msra.mxu0 0.0
    %4538 = vmatpush.msra.mxu0 0.0
    %4539 = vmatpush.msra.mxu0 %v4381
    %4540 = vmatpush.msra.mxu0 %v4380
    %4541 = vmatpush.msra.mxu0 %v4379
    %4542 = vmatpush.msra.mxu0 %v4378
    %4543 = vmatmul.f32.gmra.mxu0 %v1435
    %v4544 = vpop.f32.mrf.mxu0
    %v4545 = vadd.f32 0.0, %v4544
    %4546 = vdwg.mxu0
    %s4547 = scalar_lea.vmem %s77, 12
    %v4548 = vld [vmem:[%s4547] sm:$0x7]
    %v4550 = vsel %vm4310, %v4545, 0
    %v4553 = vsel %vm4428, %v4548, 0
    %4555 = vmatpush.msra.mxu0 0.0
    %4556 = vmatpush.msra.mxu0 0.0
    %4557 = vmatpush.msra.mxu0 0.0
    %4558 = vmatpush.msra.mxu0 0.0
    %4559 = vmatpush.msra.mxu0 0.0
    %4560 = vmatpush.msra.mxu0 0.0
    %4561 = vmatpush.msra.mxu0 0.0
    %4562 = vmatpush.msra.mxu0 0.0
    %4563 = vmatpush.msra.mxu0 0.0
    %4564 = vmatpush.msra.mxu0 0.0
    %4565 = vmatpush.msra.mxu0 0.0
    %4566 = vmatpush.msra.mxu0 0.0
    %4567 = vmatpush.msra.mxu0 0.0
    %4568 = vmatpush.msra.mxu0 0.0
    %4569 = vmatpush.msra.mxu0 0.0
    %4570 = vmatpush.msra.mxu0 %v4553
    %4571 = vmatmul.f32.gmra.mxu0 %v4550
    %v4572 = vpop.f32.mrf.mxu0
    %v4573 = vadd.f32 0.0, %v4572
    %4574 = vdwg.mxu0
    %v4575 = vadd.f32 %v4526, %v4573
    %4576 = vmatpush.msra.mxu0 0.0
    %4577 = vmatpush.msra.mxu0 0.0
    %4578 = vmatpush.msra.mxu0 0.0
    %4579 = vmatpush.msra.mxu0 0.0
    %4580 = vmatpush.msra.mxu0 0.0
    %4581 = vmatpush.msra.mxu0 0.0
    %4582 = vmatpush.msra.mxu0 0.0
    %4583 = vmatpush.msra.mxu0 0.0
    %4584 = vmatpush.msra.mxu0 0.0
    %4585 = vmatpush.msra.mxu0 0.0
    %4586 = vmatpush.msra.mxu0 0.0
    %4587 = vmatpush.msra.mxu0 0.0
    %4588 = vmatpush.msra.mxu0 %v4381
    %4589 = vmatpush.msra.mxu0 %v4380
    %4590 = vmatpush.msra.mxu0 %v4379
    %4591 = vmatpush.msra.mxu0 %v4378
    %4592 = vmatmul.f32.gmra.mxu0 %v1511
    %v4593 = vpop.f32.mrf.mxu0
    %v4594 = vadd.f32 0.0, %v4593
    %4595 = vdwg.mxu0
    %s4596 = scalar_lea.vmem %s77, 16
    %v4597 = vld [vmem:[%s4596] sm:$0x7]
    %v4599 = vsel %vm4310, %v4594, 0
    %v4602 = vsel %vm4428, %v4597, 0
    %4604 = vmatpush.msra.mxu0 0.0
    %4605 = vmatpush.msra.mxu0 0.0
    %4606 = vmatpush.msra.mxu0 0.0
    %4607 = vmatpush.msra.mxu0 0.0
    %4608 = vmatpush.msra.mxu0 0.0
    %4609 = vmatpush.msra.mxu0 0.0
    %4610 = vmatpush.msra.mxu0 0.0
    %4611 = vmatpush.msra.mxu0 0.0
    %4612 = vmatpush.msra.mxu0 0.0
    %4613 = vmatpush.msra.mxu0 0.0
    %4614 = vmatpush.msra.mxu0 0.0
    %4615 = vmatpush.msra.mxu0 0.0
    %4616 = vmatpush.msra.mxu0 0.0
    %4617 = vmatpush.msra.mxu0 0.0
    %4618 = vmatpush.msra.mxu0 0.0
    %4619 = vmatpush.msra.mxu0 %v4602
    %4620 = vmatmul.f32.gmra.mxu0 %v4599
    %v4621 = vpop.f32.mrf.mxu0
    %v4622 = vadd.f32 0.0, %v4621
    %4623 = vdwg.mxu0
    %v4624 = vadd.f32 %v4575, %v4622
    %4625 = vmatpush.msra.mxu0 0.0
    %4626 = vmatpush.msra.mxu0 0.0
    %4627 = vmatpush.msra.mxu0 0.0
    %4628 = vmatpush.msra.mxu0 0.0
    %4629 = vmatpush.msra.mxu0 0.0
    %4630 = vmatpush.msra.mxu0 0.0
    %4631 = vmatpush.msra.mxu0 0.0
    %4632 = vmatpush.msra.mxu0 0.0
    %4633 = vmatpush.msra.mxu0 0.0
    %4634 = vmatpush.msra.mxu0 0.0
    %4635 = vmatpush.msra.mxu0 0.0
    %4636 = vmatpush.msra.mxu0 0.0
    %4637 = vmatpush.msra.mxu0 %v4381
    %4638 = vmatpush.msra.mxu0 %v4380
    %4639 = vmatpush.msra.mxu0 %v4379
    %4640 = vmatpush.msra.mxu0 %v4378
    %4641 = vmatmul.f32.gmra.mxu0 %v1587
    %v4642 = vpop.f32.mrf.mxu0
    %v4643 = vadd.f32 0.0, %v4642
    %4644 = vdwg.mxu0
    %s4645 = scalar_lea.vmem %s77, 20
    %v4646 = vld [vmem:[%s4645] sm:$0x7]
    %v4648 = vsel %vm4310, %v4643, 0
    %v4651 = vsel %vm4428, %v4646, 0
    %4653 = vmatpush.msra.mxu0 0.0
    %4654 = vmatpush.msra.mxu0 0.0
    %4655 = vmatpush.msra.mxu0 0.0
    %4656 = vmatpush.msra.mxu0 0.0
    %4657 = vmatpush.msra.mxu0 0.0
    %4658 = vmatpush.msra.mxu0 0.0
    %4659 = vmatpush.msra.mxu0 0.0
    %4660 = vmatpush.msra.mxu0 0.0
    %4661 = vmatpush.msra.mxu0 0.0
    %4662 = vmatpush.msra.mxu0 0.0
    %4663 = vmatpush.msra.mxu0 0.0
    %4664 = vmatpush.msra.mxu0 0.0
    %4665 = vmatpush.msra.mxu0 0.0
    %4666 = vmatpush.msra.mxu0 0.0
    %4667 = vmatpush.msra.mxu0 0.0
    %4668 = vmatpush.msra.mxu0 %v4651
    %4669 = vmatmul.f32.gmra.mxu0 %v4648
    %v4670 = vpop.f32.mrf.mxu0
    %v4671 = vadd.f32 0.0, %v4670
    %4672 = vdwg.mxu0
    %v4673 = vadd.f32 %v4624, %v4671
    %4674 = vmatpush.msra.mxu0 0.0
    %4675 = vmatpush.msra.mxu0 0.0
    %4676 = vmatpush.msra.mxu0 0.0
    %4677 = vmatpush.msra.mxu0 0.0
    %4678 = vmatpush.msra.mxu0 0.0
    %4679 = vmatpush.msra.mxu0 0.0
    %4680 = vmatpush.msra.mxu0 0.0
    %4681 = vmatpush.msra.mxu0 0.0
    %4682 = vmatpush.msra.mxu0 0.0
    %4683 = vmatpush.msra.mxu0 0.0
    %4684 = vmatpush.msra.mxu0 0.0
    %4685 = vmatpush.msra.mxu0 0.0
    %4686 = vmatpush.msra.mxu0 %v4381
    %4687 = vmatpush.msra.mxu0 %v4380
    %4688 = vmatpush.msra.mxu0 %v4379
    %4689 = vmatpush.msra.mxu0 %v4378
    %4690 = vmatmul.f32.gmra.mxu0 %v1663
    %v4691 = vpop.f32.mrf.mxu0
    %v4692 = vadd.f32 0.0, %v4691
    %4693 = vdwg.mxu0
    %s4694 = scalar_lea.vmem %s77, 24
    %v4695 = vld [vmem:[%s4694] sm:$0x7]
    %v4697 = vsel %vm4310, %v4692, 0
    %v4700 = vsel %vm4428, %v4695, 0
    %4702 = vmatpush.msra.mxu0 0.0
    %4703 = vmatpush.msra.mxu0 0.0
    %4704 = vmatpush.msra.mxu0 0.0
    %4705 = vmatpush.msra.mxu0 0.0
    %4706 = vmatpush.msra.mxu0 0.0
    %4707 = vmatpush.msra.mxu0 0.0
    %4708 = vmatpush.msra.mxu0 0.0
    %4709 = vmatpush.msra.mxu0 0.0
    %4710 = vmatpush.msra.mxu0 0.0
    %4711 = vmatpush.msra.mxu0 0.0
    %4712 = vmatpush.msra.mxu0 0.0
    %4713 = vmatpush.msra.mxu0 0.0
    %4714 = vmatpush.msra.mxu0 0.0
    %4715 = vmatpush.msra.mxu0 0.0
    %4716 = vmatpush.msra.mxu0 0.0
    %4717 = vmatpush.msra.mxu0 %v4700
    %4718 = vmatmul.f32.gmra.mxu0 %v4697
    %v4719 = vpop.f32.mrf.mxu0
    %v4720 = vadd.f32 0.0, %v4719
    %4721 = vdwg.mxu0
    %v4722 = vadd.f32 %v4673, %v4720
    %4723 = vmatpush.msra.mxu0 0.0
    %4724 = vmatpush.msra.mxu0 0.0
    %4725 = vmatpush.msra.mxu0 0.0
    %4726 = vmatpush.msra.mxu0 0.0
    %4727 = vmatpush.msra.mxu0 0.0
    %4728 = vmatpush.msra.mxu0 0.0
    %4729 = vmatpush.msra.mxu0 0.0
    %4730 = vmatpush.msra.mxu0 0.0
    %4731 = vmatpush.msra.mxu0 0.0
    %4732 = vmatpush.msra.mxu0 0.0
    %4733 = vmatpush.msra.mxu0 0.0
    %4734 = vmatpush.msra.mxu0 0.0
    %4735 = vmatpush.msra.mxu0 %v4381
    %4736 = vmatpush.msra.mxu0 %v4380
    %4737 = vmatpush.msra.mxu0 %v4379
    %4738 = vmatpush.msra.mxu0 %v4378
    %4739 = vmatmul.f32.gmra.mxu0 %v1739
    %v4740 = vpop.f32.mrf.mxu0
    %v4741 = vadd.f32 0.0, %v4740
    %4742 = vdwg.mxu0
    %s4743 = scalar_lea.vmem %s77, 28
    %v4744 = vld [vmem:[%s4743] sm:$0x7]
    %v4746 = vsel %vm4310, %v4741, 0
    %v4749 = vsel %vm4428, %v4744, 0
    %4751 = vmatpush.msra.mxu0 0.0
    %4752 = vmatpush.msra.mxu0 0.0
    %4753 = vmatpush.msra.mxu0 0.0
    %4754 = vmatpush.msra.mxu0 0.0
    %4755 = vmatpush.msra.mxu0 0.0
    %4756 = vmatpush.msra.mxu0 0.0
    %4757 = vmatpush.msra.mxu0 0.0
    %4758 = vmatpush.msra.mxu0 0.0
    %4759 = vmatpush.msra.mxu0 0.0
    %4760 = vmatpush.msra.mxu0 0.0
    %4761 = vmatpush.msra.mxu0 0.0
    %4762 = vmatpush.msra.mxu0 0.0
    %4763 = vmatpush.msra.mxu0 0.0
    %4764 = vmatpush.msra.mxu0 0.0
    %4765 = vmatpush.msra.mxu0 0.0
    %4766 = vmatpush.msra.mxu0 %v4749
    %4767 = vmatmul.f32.gmra.mxu0 %v4746
    %v4768 = vpop.f32.mrf.mxu0
    %v4769 = vadd.f32 0.0, %v4768
    %4770 = vdwg.mxu0
    %v4771 = vadd.f32 %v4722, %v4769
    %4772 = vmatpush.msra.mxu0 0.0
    %4773 = vmatpush.msra.mxu0 0.0
    %4774 = vmatpush.msra.mxu0 0.0
    %4775 = vmatpush.msra.mxu0 0.0
    %4776 = vmatpush.msra.mxu0 0.0
    %4777 = vmatpush.msra.mxu0 0.0
    %4778 = vmatpush.msra.mxu0 0.0
    %4779 = vmatpush.msra.mxu0 0.0
    %4780 = vmatpush.msra.mxu0 0.0
    %4781 = vmatpush.msra.mxu0 0.0
    %4782 = vmatpush.msra.mxu0 0.0
    %4783 = vmatpush.msra.mxu0 0.0
    %4784 = vmatpush.msra.mxu0 %v4381
    %4785 = vmatpush.msra.mxu0 %v4380
    %4786 = vmatpush.msra.mxu0 %v4379
    %4787 = vmatpush.msra.mxu0 %v4378
    %4788 = vmatmul.f32.gmra.mxu0 %v1815
    %v4789 = vpop.f32.mrf.mxu0
    %v4790 = vadd.f32 0.0, %v4789
    %4791 = vdwg.mxu0
    %s4792 = scalar_lea.vmem %s77, 32
    %v4793 = vld [vmem:[%s4792] sm:$0x7]
    %v4795 = vsel %vm4310, %v4790, 0
    %v4798 = vsel %vm4428, %v4793, 0
    %4800 = vmatpush.msra.mxu0 0.0
    %4801 = vmatpush.msra.mxu0 0.0
    %4802 = vmatpush.msra.mxu0 0.0
    %4803 = vmatpush.msra.mxu0 0.0
    %4804 = vmatpush.msra.mxu0 0.0
    %4805 = vmatpush.msra.mxu0 0.0
    %4806 = vmatpush.msra.mxu0 0.0
    %4807 = vmatpush.msra.mxu0 0.0
    %4808 = vmatpush.msra.mxu0 0.0
    %4809 = vmatpush.msra.mxu0 0.0
    %4810 = vmatpush.msra.mxu0 0.0
    %4811 = vmatpush.msra.mxu0 0.0
    %4812 = vmatpush.msra.mxu0 0.0
    %4813 = vmatpush.msra.mxu0 0.0
    %4814 = vmatpush.msra.mxu0 0.0
    %4815 = vmatpush.msra.mxu0 %v4798
    %4816 = vmatmul.f32.gmra.mxu0 %v4795
    %v4817 = vpop.f32.mrf.mxu0
    %v4818 = vadd.f32 0.0, %v4817
    %4819 = vdwg.mxu0
    %v4820 = vadd.f32 %v4771, %v4818
    %4821 = vmatpush.msra.mxu0 0.0
    %4822 = vmatpush.msra.mxu0 0.0
    %4823 = vmatpush.msra.mxu0 0.0
    %4824 = vmatpush.msra.mxu0 0.0
    %4825 = vmatpush.msra.mxu0 0.0
    %4826 = vmatpush.msra.mxu0 0.0
    %4827 = vmatpush.msra.mxu0 0.0
    %4828 = vmatpush.msra.mxu0 0.0
    %4829 = vmatpush.msra.mxu0 0.0
    %4830 = vmatpush.msra.mxu0 0.0
    %4831 = vmatpush.msra.mxu0 0.0
    %4832 = vmatpush.msra.mxu0 0.0
    %4833 = vmatpush.msra.mxu0 %v4381
    %4834 = vmatpush.msra.mxu0 %v4380
    %4835 = vmatpush.msra.mxu0 %v4379
    %4836 = vmatpush.msra.mxu0 %v4378
    %4837 = vmatmul.f32.gmra.mxu0 %v1891
    %v4838 = vpop.f32.mrf.mxu0
    %v4839 = vadd.f32 0.0, %v4838
    %4840 = vdwg.mxu0
    %s4841 = scalar_lea.vmem %s77, 36
    %v4842 = vld [vmem:[%s4841] sm:$0x7]
    %v4844 = vsel %vm4310, %v4839, 0
    %v4847 = vsel %vm4428, %v4842, 0
    %4849 = vmatpush.msra.mxu0 0.0
    %4850 = vmatpush.msra.mxu0 0.0
    %4851 = vmatpush.msra.mxu0 0.0
    %4852 = vmatpush.msra.mxu0 0.0
    %4853 = vmatpush.msra.mxu0 0.0
    %4854 = vmatpush.msra.mxu0 0.0
    %4855 = vmatpush.msra.mxu0 0.0
    %4856 = vmatpush.msra.mxu0 0.0
    %4857 = vmatpush.msra.mxu0 0.0
    %4858 = vmatpush.msra.mxu0 0.0
    %4859 = vmatpush.msra.mxu0 0.0
    %4860 = vmatpush.msra.mxu0 0.0
    %4861 = vmatpush.msra.mxu0 0.0
    %4862 = vmatpush.msra.mxu0 0.0
    %4863 = vmatpush.msra.mxu0 0.0
    %4864 = vmatpush.msra.mxu0 %v4847
    %4865 = vmatmul.f32.gmra.mxu0 %v4844
    %v4866 = vpop.f32.mrf.mxu0
    %v4867 = vadd.f32 0.0, %v4866
    %4868 = vdwg.mxu0
    %v4869 = vadd.f32 %v4820, %v4867
    %4870 = vmatpush.msra.mxu0 0.0
    %4871 = vmatpush.msra.mxu0 0.0
    %4872 = vmatpush.msra.mxu0 0.0
    %4873 = vmatpush.msra.mxu0 0.0
    %4874 = vmatpush.msra.mxu0 0.0
    %4875 = vmatpush.msra.mxu0 0.0
    %4876 = vmatpush.msra.mxu0 0.0
    %4877 = vmatpush.msra.mxu0 0.0
    %4878 = vmatpush.msra.mxu0 0.0
    %4879 = vmatpush.msra.mxu0 0.0
    %4880 = vmatpush.msra.mxu0 0.0
    %4881 = vmatpush.msra.mxu0 0.0
    %4882 = vmatpush.msra.mxu0 %v4381
    %4883 = vmatpush.msra.mxu0 %v4380
    %4884 = vmatpush.msra.mxu0 %v4379
    %4885 = vmatpush.msra.mxu0 %v4378
    %4886 = vmatmul.f32.gmra.mxu0 %v1967
    %v4887 = vpop.f32.mrf.mxu0
    %v4888 = vadd.f32 0.0, %v4887
    %4889 = vdwg.mxu0
    %s4890 = scalar_lea.vmem %s77, 40
    %v4891 = vld [vmem:[%s4890] sm:$0x7]
    %v4893 = vsel %vm4310, %v4888, 0
    %v4896 = vsel %vm4428, %v4891, 0
    %4898 = vmatpush.msra.mxu0 0.0
    %4899 = vmatpush.msra.mxu0 0.0
    %4900 = vmatpush.msra.mxu0 0.0
    %4901 = vmatpush.msra.mxu0 0.0
    %4902 = vmatpush.msra.mxu0 0.0
    %4903 = vmatpush.msra.mxu0 0.0
    %4904 = vmatpush.msra.mxu0 0.0
    %4905 = vmatpush.msra.mxu0 0.0
    %4906 = vmatpush.msra.mxu0 0.0
    %4907 = vmatpush.msra.mxu0 0.0
    %4908 = vmatpush.msra.mxu0 0.0
    %4909 = vmatpush.msra.mxu0 0.0
    %4910 = vmatpush.msra.mxu0 0.0
    %4911 = vmatpush.msra.mxu0 0.0
    %4912 = vmatpush.msra.mxu0 0.0
    %4913 = vmatpush.msra.mxu0 %v4896
    %4914 = vmatmul.f32.gmra.mxu0 %v4893
    %v4915 = vpop.f32.mrf.mxu0
    %v4916 = vadd.f32 0.0, %v4915
    %4917 = vdwg.mxu0
    %v4918 = vadd.f32 %v4869, %v4916
    %4919 = vmatpush.msra.mxu0 0.0
    %4920 = vmatpush.msra.mxu0 0.0
    %4921 = vmatpush.msra.mxu0 0.0
    %4922 = vmatpush.msra.mxu0 0.0
    %4923 = vmatpush.msra.mxu0 0.0
    %4924 = vmatpush.msra.mxu0 0.0
    %4925 = vmatpush.msra.mxu0 0.0
    %4926 = vmatpush.msra.mxu0 0.0
    %4927 = vmatpush.msra.mxu0 0.0
    %4928 = vmatpush.msra.mxu0 0.0
    %4929 = vmatpush.msra.mxu0 0.0
    %4930 = vmatpush.msra.mxu0 0.0
    %4931 = vmatpush.msra.mxu0 %v4381
    %4932 = vmatpush.msra.mxu0 %v4380
    %4933 = vmatpush.msra.mxu0 %v4379
    %4934 = vmatpush.msra.mxu0 %v4378
    %4935 = vmatmul.f32.gmra.mxu0 %v2043
    %v4936 = vpop.f32.mrf.mxu0
    %v4937 = vadd.f32 0.0, %v4936
    %4938 = vdwg.mxu0
    %s4939 = scalar_lea.vmem %s77, 44
    %v4940 = vld [vmem:[%s4939] sm:$0x7]
    %v4942 = vsel %vm4310, %v4937, 0
    %v4945 = vsel %vm4428, %v4940, 0
    %4947 = vmatpush.msra.mxu0 0.0
    %4948 = vmatpush.msra.mxu0 0.0
    %4949 = vmatpush.msra.mxu0 0.0
    %4950 = vmatpush.msra.mxu0 0.0
    %4951 = vmatpush.msra.mxu0 0.0
    %4952 = vmatpush.msra.mxu0 0.0
    %4953 = vmatpush.msra.mxu0 0.0
    %4954 = vmatpush.msra.mxu0 0.0
    %4955 = vmatpush.msra.mxu0 0.0
    %4956 = vmatpush.msra.mxu0 0.0
    %4957 = vmatpush.msra.mxu0 0.0
    %4958 = vmatpush.msra.mxu0 0.0
    %4959 = vmatpush.msra.mxu0 0.0
    %4960 = vmatpush.msra.mxu0 0.0
    %4961 = vmatpush.msra.mxu0 0.0
    %4962 = vmatpush.msra.mxu0 %v4945
    %4963 = vmatmul.f32.gmra.mxu0 %v4942
    %v4964 = vpop.f32.mrf.mxu0
    %v4965 = vadd.f32 0.0, %v4964
    %4966 = vdwg.mxu0
    %v4967 = vadd.f32 %v4918, %v4965
    %4968 = vmatpush.msra.mxu0 0.0
    %4969 = vmatpush.msra.mxu0 0.0
    %4970 = vmatpush.msra.mxu0 0.0
    %4971 = vmatpush.msra.mxu0 0.0
    %4972 = vmatpush.msra.mxu0 0.0
    %4973 = vmatpush.msra.mxu0 0.0
    %4974 = vmatpush.msra.mxu0 0.0
    %4975 = vmatpush.msra.mxu0 0.0
    %4976 = vmatpush.msra.mxu0 0.0
    %4977 = vmatpush.msra.mxu0 0.0
    %4978 = vmatpush.msra.mxu0 0.0
    %4979 = vmatpush.msra.mxu0 0.0
    %4980 = vmatpush.msra.mxu0 %v4381
    %4981 = vmatpush.msra.mxu0 %v4380
    %4982 = vmatpush.msra.mxu0 %v4379
    %4983 = vmatpush.msra.mxu0 %v4378
    %4984 = vmatmul.f32.gmra.mxu0 %v2119
    %v4985 = vpop.f32.mrf.mxu0
    %v4986 = vadd.f32 0.0, %v4985
    %4987 = vdwg.mxu0
    %s4988 = scalar_lea.vmem %s77, 48
    %v4989 = vld [vmem:[%s4988] sm:$0x7]
    %v4991 = vsel %vm4310, %v4986, 0
    %v4994 = vsel %vm4428, %v4989, 0
    %4996 = vmatpush.msra.mxu0 0.0
    %4997 = vmatpush.msra.mxu0 0.0
    %4998 = vmatpush.msra.mxu0 0.0
    %4999 = vmatpush.msra.mxu0 0.0
    %5000 = vmatpush.msra.mxu0 0.0
    %5001 = vmatpush.msra.mxu0 0.0
    %5002 = vmatpush.msra.mxu0 0.0
    %5003 = vmatpush.msra.mxu0 0.0
    %5004 = vmatpush.msra.mxu0 0.0
    %5005 = vmatpush.msra.mxu0 0.0
    %5006 = vmatpush.msra.mxu0 0.0
    %5007 = vmatpush.msra.mxu0 0.0
    %5008 = vmatpush.msra.mxu0 0.0
    %5009 = vmatpush.msra.mxu0 0.0
    %5010 = vmatpush.msra.mxu0 0.0
    %5011 = vmatpush.msra.mxu0 %v4994
    %5012 = vmatmul.f32.gmra.mxu0 %v4991
    %v5013 = vpop.f32.mrf.mxu0
    %v5014 = vadd.f32 0.0, %v5013
    %5015 = vdwg.mxu0
    %v5016 = vadd.f32 %v4967, %v5014
    %5017 = vmatpush.msra.mxu0 0.0
    %5018 = vmatpush.msra.mxu0 0.0
    %5019 = vmatpush.msra.mxu0 0.0
    %5020 = vmatpush.msra.mxu0 0.0
    %5021 = vmatpush.msra.mxu0 0.0
    %5022 = vmatpush.msra.mxu0 0.0
    %5023 = vmatpush.msra.mxu0 0.0
    %5024 = vmatpush.msra.mxu0 0.0
    %5025 = vmatpush.msra.mxu0 0.0
    %5026 = vmatpush.msra.mxu0 0.0
    %5027 = vmatpush.msra.mxu0 0.0
    %5028 = vmatpush.msra.mxu0 0.0
    %5029 = vmatpush.msra.mxu0 %v4381
    %5030 = vmatpush.msra.mxu0 %v4380
    %5031 = vmatpush.msra.mxu0 %v4379
    %5032 = vmatpush.msra.mxu0 %v4378
    %5033 = vmatmul.f32.gmra.mxu0 %v2195
    %v5034 = vpop.f32.mrf.mxu0
    %v5035 = vadd.f32 0.0, %v5034
    %5036 = vdwg.mxu0
    %s5037 = scalar_lea.vmem %s77, 52
    %v5038 = vld [vmem:[%s5037] sm:$0x7]
    %v5040 = vsel %vm4310, %v5035, 0
    %v5043 = vsel %vm4428, %v5038, 0
    %5045 = vmatpush.msra.mxu0 0.0
    %5046 = vmatpush.msra.mxu0 0.0
    %5047 = vmatpush.msra.mxu0 0.0
    %5048 = vmatpush.msra.mxu0 0.0
    %5049 = vmatpush.msra.mxu0 0.0
    %5050 = vmatpush.msra.mxu0 0.0
    %5051 = vmatpush.msra.mxu0 0.0
    %5052 = vmatpush.msra.mxu0 0.0
    %5053 = vmatpush.msra.mxu0 0.0
    %5054 = vmatpush.msra.mxu0 0.0
    %5055 = vmatpush.msra.mxu0 0.0
    %5056 = vmatpush.msra.mxu0 0.0
    %5057 = vmatpush.msra.mxu0 0.0
    %5058 = vmatpush.msra.mxu0 0.0
    %5059 = vmatpush.msra.mxu0 0.0
    %5060 = vmatpush.msra.mxu0 %v5043
    %5061 = vmatmul.f32.gmra.mxu0 %v5040
    %v5062 = vpop.f32.mrf.mxu0
    %v5063 = vadd.f32 0.0, %v5062
    %5064 = vdwg.mxu0
    %v5065 = vadd.f32 %v5016, %v5063
    %5066 = vmatpush.msra.mxu0 0.0
    %5067 = vmatpush.msra.mxu0 0.0
    %5068 = vmatpush.msra.mxu0 0.0
    %5069 = vmatpush.msra.mxu0 0.0
    %5070 = vmatpush.msra.mxu0 0.0
    %5071 = vmatpush.msra.mxu0 0.0
    %5072 = vmatpush.msra.mxu0 0.0
    %5073 = vmatpush.msra.mxu0 0.0
    %5074 = vmatpush.msra.mxu0 0.0
    %5075 = vmatpush.msra.mxu0 0.0
    %5076 = vmatpush.msra.mxu0 0.0
    %5077 = vmatpush.msra.mxu0 0.0
    %5078 = vmatpush.msra.mxu0 %v4381
    %5079 = vmatpush.msra.mxu0 %v4380
    %5080 = vmatpush.msra.mxu0 %v4379
    %5081 = vmatpush.msra.mxu0 %v4378
    %5082 = vmatmul.f32.gmra.mxu0 %v2271
    %v5083 = vpop.f32.mrf.mxu0
    %v5084 = vadd.f32 0.0, %v5083
    %5085 = vdwg.mxu0
    %s5086 = scalar_lea.vmem %s77, 56
    %v5087 = vld [vmem:[%s5086] sm:$0x7]
    %v5089 = vsel %vm4310, %v5084, 0
    %v5092 = vsel %vm4428, %v5087, 0
    %5094 = vmatpush.msra.mxu0 0.0
    %5095 = vmatpush.msra.mxu0 0.0
    %5096 = vmatpush.msra.mxu0 0.0
    %5097 = vmatpush.msra.mxu0 0.0
    %5098 = vmatpush.msra.mxu0 0.0
    %5099 = vmatpush.msra.mxu0 0.0
    %5100 = vmatpush.msra.mxu0 0.0
    %5101 = vmatpush.msra.mxu0 0.0
    %5102 = vmatpush.msra.mxu0 0.0
    %5103 = vmatpush.msra.mxu0 0.0
    %5104 = vmatpush.msra.mxu0 0.0
    %5105 = vmatpush.msra.mxu0 0.0
    %5106 = vmatpush.msra.mxu0 0.0
    %5107 = vmatpush.msra.mxu0 0.0
    %5108 = vmatpush.msra.mxu0 0.0
    %5109 = vmatpush.msra.mxu0 %v5092
    %5110 = vmatmul.f32.gmra.mxu0 %v5089
    %v5111 = vpop.f32.mrf.mxu0
    %v5112 = vadd.f32 0.0, %v5111
    %5113 = vdwg.mxu0
    %v5114 = vadd.f32 %v5065, %v5112
    %5115 = vmatpush.msra.mxu0 0.0
    %5116 = vmatpush.msra.mxu0 0.0
    %5117 = vmatpush.msra.mxu0 0.0
    %5118 = vmatpush.msra.mxu0 0.0
    %5119 = vmatpush.msra.mxu0 0.0
    %5120 = vmatpush.msra.mxu0 0.0
    %5121 = vmatpush.msra.mxu0 0.0
    %5122 = vmatpush.msra.mxu0 0.0
    %5123 = vmatpush.msra.mxu0 0.0
    %5124 = vmatpush.msra.mxu0 0.0
    %5125 = vmatpush.msra.mxu0 0.0
    %5126 = vmatpush.msra.mxu0 0.0
    %5127 = vmatpush.msra.mxu0 %v4381
    %5128 = vmatpush.msra.mxu0 %v4380
    %5129 = vmatpush.msra.mxu0 %v4379
    %5130 = vmatpush.msra.mxu0 %v4378
    %5131 = vmatmul.f32.gmra.mxu0 %v2347
    %v5132 = vpop.f32.mrf.mxu0
    %v5133 = vadd.f32 0.0, %v5132
    %5134 = vdwg.mxu0
    %s5135 = scalar_lea.vmem %s77, 60
    %v5136 = vld [vmem:[%s5135] sm:$0x7]
    %v5138 = vsel %vm4310, %v5133, 0
    %v5141 = vsel %vm4428, %v5136, 0
    %5143 = vmatpush.msra.mxu0 0.0
    %5144 = vmatpush.msra.mxu0 0.0
    %5145 = vmatpush.msra.mxu0 0.0
    %5146 = vmatpush.msra.mxu0 0.0
    %5147 = vmatpush.msra.mxu0 0.0
    %5148 = vmatpush.msra.mxu0 0.0
    %5149 = vmatpush.msra.mxu0 0.0
    %5150 = vmatpush.msra.mxu0 0.0
    %5151 = vmatpush.msra.mxu0 0.0
    %5152 = vmatpush.msra.mxu0 0.0
    %5153 = vmatpush.msra.mxu0 0.0
    %5154 = vmatpush.msra.mxu0 0.0
    %5155 = vmatpush.msra.mxu0 0.0
    %5156 = vmatpush.msra.mxu0 0.0
    %5157 = vmatpush.msra.mxu0 0.0
    %5158 = vmatpush.msra.mxu0 %v5141
    %5159 = vmatmul.f32.gmra.mxu0 %v5138
    %v5160 = vpop.f32.mrf.mxu0
    %v5161 = vadd.f32 0.0, %v5160
    %5162 = vdwg.mxu0
    %v5163 = vadd.f32 %v5114, %v5161
    %v5164 = vld [vmem:[%s79] sm:$0x1]
    %v5166 = vperm.slane %v5164, 0
    %v5168 = vadd.f32 %v5163, %v5166
    %vm5169 = vcmask 386048
    %5170 = vst.msk [vmem:[#allocation25] sm:$0x3] %vm5169, %v5168
    %vm5171 = vcmask 58368
    %5172 = vst.msk [vmem:[#allocation26] sm:$0x3] %vm5171, %v2424
    %5173 = vst.msk [vmem:[#allocation28] sm:$0x3] %vm5171, %v2429
    %5174 = vst.msk [vmem:[#allocation29] sm:$0x3] %vm5171, %v2434
    // Predicated region
    $region218: #{_run.1} parent=1 // pred_check
      _
    $region219: #{_run.1} parent=1 // pred_check_branch
      %5176 = sbr.rel (0) target = $region221
    $region220: #{_run.1} parent=1 // pred_region
      %5178 = vsyncadd [#allocation4], 0
      %s5180 = sshll.u32 [#allocation25], 4
      %s5181 = int_to_ptr.vmem [resolvable:$true] %s5180
      %s5182 = sshll.u32 %s81, 4
      %s5183 = int_to_ptr.hbm [resolvable:$true] %s5182
      %5185 = dma.vmem_to_hbm [thread:$0]  %s5181, 32, %s5183, [#allocation4]
    $region221: #{_run.1} parent=1 // pred_fallthru
      _
    // Predicated region
    $region222: #{_run.1} parent=1 // pred_check
      _
    $region223: #{_run.1} parent=1 // pred_check_branch
      %5187 = sbr.rel (0) target = $region225
    $region224: #{_run.1} parent=1 // pred_region
      %5189 = vsyncadd [#allocation27], 0
      %s5191 = sshll.u32 [#allocation26], 4
      %s5192 = int_to_ptr.vmem [resolvable:$true] %s5191
      %s5193 = sshll.u32 %s83, 4
      %s5194 = int_to_ptr.hbm [resolvable:$true] %s5193
      %5196 = dma.vmem_to_hbm [thread:$0]  %s5192, 32, %s5194, [#allocation27]
    $region225: #{_run.1} parent=1 // pred_fallthru
      _
    // Predicated region
    $region226: #{_run.1} parent=1 // pred_check
      _
    $region227: #{_run.1} parent=1 // pred_check_branch
      %5198 = sbr.rel (0) target = $region229
    $region228: #{_run.1} parent=1 // pred_region
      %5200 = vsyncadd [#allocation27], 0
      %s5202 = sshll.u32 [#allocation28], 4
      %s5203 = int_to_ptr.vmem [resolvable:$true] %s5202
      %s5204 = sshll.u32 %s85, 4
      %s5205 = int_to_ptr.hbm [resolvable:$true] %s5204
      %5207 = dma.vmem_to_hbm [thread:$0]  %s5203, 32, %s5205, [#allocation27]
    $region229: #{_run.1} parent=1 // pred_fallthru
      _
    // Predicated region
    $region230: #{_run.1} parent=1 // pred_check
      _
    $region231: #{_run.1} parent=1 // pred_check_branch
      %5209 = sbr.rel (0) target = $region233
    $region232: #{_run.1} parent=1 // pred_region
      %5211 = vsyncadd [#allocation30], 0
      %s5213 = sshll.u32 [#allocation29], 4
      %s5214 = int_to_ptr.vmem [resolvable:$true] %s5213
      %s5215 = sshll.u32 %s87, 4
      %s5216 = int_to_ptr.hbm [resolvable:$true] %s5215
      %5218 = dma.vmem_to_hbm [thread:$0]  %s5214, 32, %s5216, [#allocation30]
    $region233: #{_run.1} parent=1 // pred_fallthru
      _
    // Predicated region
    $region234: #{_run.1} parent=1 // pred_check
      _
    $region235: #{_run.1} parent=1 // pred_check_branch
      %5220 = sbr.rel (0) target = $region237
    $region236: #{_run.1} parent=1 // pred_region
      %5222 = dma.done [#allocation4], 32
    $region237: #{_run.1} parent=1 // pred_fallthru
      _
    // Predicated region
    $region238: #{_run.1} parent=1 // pred_check
      _
    $region239: #{_run.1} parent=1 // pred_check_branch
      %5224 = sbr.rel (0) target = $region241
    $region240: #{_run.1} parent=1 // pred_region
      %5226 = dma.done [#allocation27], 32
    $region241: #{_run.1} parent=1 // pred_fallthru
      _
    // Predicated region
    $region242: #{_run.1} parent=1 // pred_check
      _
    $region243: #{_run.1} parent=1 // pred_check_branch
      %5228 = sbr.rel (0) target = $region245
    $region244: #{_run.1} parent=1 // pred_region
      %5230 = dma.done [#allocation27], 32
    $region245: #{_run.1} parent=1 // pred_fallthru
      _
    // Predicated region
    $region246: #{_run.1} parent=1 // pred_check
      _
    $region247: #{_run.1} parent=1 // pred_check_branch
      %5232 = sbr.rel (0) target = $region249
    $region248: #{_run.1} parent=1 // pred_region
      %5234 = dma.done [#allocation30], 32
    $region249: #{_run.1} parent=1 // pred_fallthru
      _
    %5235 = vsyncpa [#allocation3], 1
    %5236 = vsyncpa [#allocation6], 1
    %5237 = vsyncpa [#allocation9], 1
    %5238 = vsyncpa [#allocation12], 1
    %5239 = vsyncpa [#allocation15], 1
    %5240 = vsyncpa [#allocation18], 1
    %5241 = vsyncpa [#allocation21], 1
    %5242 = vsyncpa [#allocation24], 1
    %5243 = vsyncpa [#allocation4], 1
    %5244 = vsyncpa [#allocation27], 1
    %5245 = vsyncpa [#allocation30], 1

</llo_original>
